<compile_context>
chip_gen: v7x
topology: tpu7x:2x2x1
jax: 0.10.0
libtpu: 0.0.40
codegen_flags: <defaults>
</compile_context>

<pallas_src>
import functools

import jax
import jax.numpy as jnp
from jax.experimental import pallas as pl
from jax.experimental.pallas import tpu as pltpu


_VMEM_LIMIT = 48 * 1024 * 1024          # safe on v5e/v6e (128 MiB) and v7x (64 MiB)
_ROW_TILE_CAP = 512                     # ~85% of HBM roofline at >=512 rows


def _round_up(x, m):
    return ((x + m - 1) // m) * m


def _pick_row_tile(m, cap=_ROW_TILE_CAP):
    """Row-tile size: cap at 512, otherwise pad the whole thing to 16 rows."""
    return cap if m >= cap else _round_up(m, 16)


# -----------------------------------------------------------------------------
# Pallas kernels
# -----------------------------------------------------------------------------
def _make_edgeconv_kernel(neg_slope):
    """EdgeConv tile:  max_k( leakyrelu( (nbr@Wa + ctr@Wc) * scale + bias ) )."""

    def kernel(nbr_ref, ctr_ref, wa_ref, wc_ref, scale_ref, bias_ref, out_ref):
        K, tm, cin = nbr_ref.shape
        cout = out_ref.shape[-1]
        # Single merged MXU matmul over all K neighbours (K*tm rows).
        nbr = nbr_ref[...].reshape(K * tm, cin)
        y_nbr = jnp.dot(nbr, wa_ref[...], preferred_element_type=jnp.float32)
        # Center term is k-invariant -> computed once per row.
        y_ctr = jnp.dot(ctr_ref[...], wc_ref[...], preferred_element_type=jnp.float32)
        y = y_nbr.reshape(K, tm, cout) + y_ctr[None, :, :]
        # Fused BN (scale/bias) + LeakyReLU in f32, then max over K.
        y = y * scale_ref[...] + bias_ref[...]
        y = jnp.where(y >= 0, y, neg_slope * y)
        out_ref[...] = jnp.max(y, axis=0).astype(out_ref.dtype)

    return kernel


def edgeconv(nbr, center, w, scale, bias, *, neg_slope=0.2):
    """nbr: (K, M, Cin), center: (M, Cin), w: (2*Cin, Cout) -> (M, Cout) f32.

    Implements  max_k leakyrelu(BN(cat(nbr-ctr, ctr) @ W))  via the W-split
    identity  cat(nbr-ctr, ctr)@W = nbr@Wa + ctr@(Wb - Wa),  W = [Wa; Wb].
    """
    K, M, Cin = nbr.shape
    Cout = w.shape[1]

    wa = w[:Cin]
    wc = w[Cin:] - wa

    # bf16 MXU inputs, f32 accumulation; elementwise math stays f32 in-kernel.
    nbr = nbr.astype(jnp.bfloat16)
    center = center.astype(jnp.bfloat16)
    wa = wa.astype(jnp.bfloat16)
    wc = wc.astype(jnp.bfloat16)

    tm = _pick_row_tile(M)
    Mp = _round_up(M, tm)
    if Mp != M:
        nbr = jnp.pad(nbr, ((0, 0), (0, Mp - M), (0, 0)))
        center = jnp.pad(center, ((0, Mp - M), (0, 0)))

    out = pl.pallas_call(
        _make_edgeconv_kernel(neg_slope),
        out_shape=jax.ShapeDtypeStruct((Mp, Cout), jnp.float32),
        grid_spec=pltpu.PrefetchScalarGridSpec(
            num_scalar_prefetch=0,
            grid=(Mp // tm,),
            in_specs=[
                pl.BlockSpec((K, tm, Cin), lambda i: (0, i, 0)),
                pl.BlockSpec((tm, Cin), lambda i: (i, 0)),
                pl.BlockSpec((Cin, Cout), lambda i: (0, 0)),
                pl.BlockSpec((Cin, Cout), lambda i: (0, 0)),
                pl.BlockSpec((1, Cout), lambda i: (0, 0)),
                pl.BlockSpec((1, Cout), lambda i: (0, 0)),
            ],
            out_specs=pl.BlockSpec((tm, Cout), lambda i: (i, 0)),
        ),
        compiler_params=pltpu.CompilerParams(
            dimension_semantics=("parallel",),
            vmem_limit_bytes=_VMEM_LIMIT,
        ),
    )(nbr, center, wa, wc, scale.reshape(1, -1), bias.reshape(1, -1))
    return out[:M] if Mp != M else out


def _pdist_kernel(q_ref, x_ref, out_ref):
    # q block: (1, tq, C) query rows; x block: (1, N, C) all keys of the batch.
    q = q_ref[0]
    x = x_ref[0]
    inner = jax.lax.dot_general(                      # q @ x.T -> (tq, N)
        q, x, (((1,), (1,)), ((), ())), preferred_element_type=jnp.float32)
    qq = jnp.sum(q * q, axis=-1, keepdims=True)       # (tq, 1)
    xx = jnp.sum(x * x, axis=-1, keepdims=True)       # (N, 1)
    # PyTorch: pd = -xx - (-2 x^T x) - xx^T = 2*inner - qq - xx^T
    out_ref[0] = 2.0 * inner - qq - jnp.transpose(xx)


def pairwise_dist(xT, *, tq_cap=256):
    """xT: (B, N, C) f32 -> negative squared pairwise distances (B, N, N)."""
    B, N, C = xT.shape
    tq = tq_cap if (N % tq_cap == 0) else N
    # TODO(synk): for very large N, fuse a running top-k into this kernel so
    # the (B, N, N) distance matrix never hits HBM.
    return pl.pallas_call(
        _pdist_kernel,
        out_shape=jax.ShapeDtypeStruct((B, N, N), jnp.float32),
        grid_spec=pltpu.PrefetchScalarGridSpec(
            num_scalar_prefetch=0,
            grid=(B, N // tq),
            in_specs=[
                pl.BlockSpec((1, tq, C), lambda b, i: (b, i, 0)),
                pl.BlockSpec((1, N, C), lambda b, i: (b, 0, 0)),
            ],
            out_specs=pl.BlockSpec((1, tq, N), lambda b, i: (b, i, 0)),
        ),
        compiler_params=pltpu.CompilerParams(
            dimension_semantics=("parallel", "parallel"),
            vmem_limit_bytes=_VMEM_LIMIT,
        ),
    )(xT, xT)


def _make_conv7_pool_kernel(neg_slope, inv_n):
    """Fused conv7 (1024->emb) + BN + LeakyReLU + global max/mean pool.

    Consumes x1..x6 tiles directly (6 partial matmuls summed == concat @ W),
    accumulates running max and sum across N tiles in VMEM scratch, and emits
    cat(max, mean) on the last tile.
    """

    def kernel(x1_ref, x2_ref, x3_ref, x4_ref, x5_ref, x6_ref,
               w1_ref, w2_ref, w3_ref, w4_ref, w5_ref, w6_ref,
               scale_ref, bias_ref, out_ref, max_sc, sum_sc):
        j = pl.program_id(1)

        @pl.when(j == 0)
        def _():
            max_sc[...] = jnp.full_like(max_sc, -jnp.inf)
            sum_sc[...] = jnp.zeros_like(sum_sc)

        y = jnp.dot(x1_ref[0], w1_ref[...], preferred_element_type=jnp.float32)
        y = y + jnp.dot(x2_ref[0], w2_ref[...], preferred_element_type=jnp.float32)
        y = y + jnp.dot(x3_ref[0], w3_ref[...], preferred_element_type=jnp.float32)
        y = y + jnp.dot(x4_ref[0], w4_ref[...], preferred_element_type=jnp.float32)
        y = y + jnp.dot(x5_ref[0], w5_ref[...], preferred_element_type=jnp.float32)
        y = y + jnp.dot(x6_ref[0], w6_ref[...], preferred_element_type=jnp.float32)
        y = y * scale_ref[...] + bias_ref[...]
        y = jnp.where(y >= 0, y, neg_slope * y)

        max_sc[...] = jnp.maximum(max_sc[...], jnp.max(y, axis=0, keepdims=True))
        sum_sc[...] = sum_sc[...] + jnp.sum(y, axis=0, keepdims=True)

        @pl.when(j == pl.num_programs(1) - 1)
        def _():
            out_ref[0] = jnp.concatenate(
                [max_sc[...], sum_sc[...] * inv_n], axis=-1)

    return kernel


def conv7_pool(xs, w, scale, bias, *, neg_slope=0.2, tn_cap=256):
    """xs: 6 tensors (B, N, Ci), w: (sum(Ci), emb) -> (B, 2*emb) f32.

    Equivalent to leakyrelu(BN(cat(xs, -1) @ w)) followed by max- and
    mean-pooling over N, concatenated -- without materializing the concat or
    the (B, N, emb) activation in HBM.
    """
    B, N, _ = xs[0].shape
    emb = w.shape[1]

    xs16 = [x.astype(jnp.bfloat16) for x in xs]
    ws, off = [], 0
    for x in xs:
        c = x.shape[-1]
        ws.append(w[off:off + c].astype(jnp.bfloat16))
        off += c

    tn = tn_cap if (N % tn_cap == 0) else N

    in_specs = []
    for x in xs16:
        ci = x.shape[-1]
        in_specs.append(pl.BlockSpec((1, tn, ci), lambda b, j: (b, j, 0)))
    for wpart in ws:
        in_specs.append(pl.BlockSpec(wpart.shape, lambda b, j: (0, 0)))
    in_specs.append(pl.BlockSpec((1, emb), lambda b, j: (0, 0)))
    in_specs.append(pl.BlockSpec((1, emb), lambda b, j: (0, 0)))

    out = pl.pallas_call(
        _make_conv7_pool_kernel(neg_slope, 1.0 / N),
        out_shape=jax.ShapeDtypeStruct((B, 1, 2 * emb), jnp.float32),
        grid_spec=pltpu.PrefetchScalarGridSpec(
            num_scalar_prefetch=0,
            grid=(B, N // tn),
            in_specs=in_specs,
            out_specs=pl.BlockSpec((1, 1, 2 * emb), lambda b, j: (b, 0, 0)),
            scratch_shapes=[pltpu.VMEM((1, emb), jnp.float32),
                            pltpu.VMEM((1, emb), jnp.float32)],
        ),
        compiler_params=pltpu.CompilerParams(
            dimension_semantics=("parallel", "arbitrary"),
            vmem_limit_bytes=_VMEM_LIMIT,
        ),
    )(*xs16, *ws, scale.reshape(1, -1), bias.reshape(1, -1))
    return out.reshape(B, 2 * emb)


def _head_kernel(x_ref,
                 w1_ref, s1_ref, b1_ref,
                 w2_ref, s2_ref, b2_ref,
                 w3_ref, s3_ref, b3_ref,
                 w4_ref, s4_ref, b4_ref,
                 out_ref):
    neg = 0.2
    h = x_ref[...]
    for w_ref, s_ref, b_ref, act in (
        (w1_ref, s1_ref, b1_ref, True),
        (w2_ref, s2_ref, b2_ref, True),
        (w3_ref, s3_ref, b3_ref, True),
        (w4_ref, s4_ref, b4_ref, False),
    ):
        h = jnp.dot(h, w_ref[...], preferred_element_type=jnp.float32)
        h = h * s_ref[...] + b_ref[...]
        if act:
            h = jnp.where(h >= 0, h, neg * h)
    out_ref[...] = h.astype(out_ref.dtype)


def mlp_head(x, params):
    """Fused linear1..linear4 (+BN+LeakyReLU, dropout=identity) in one call."""
    B, Cin = x.shape
    names = ("linear1", "linear2", "linear3", "linear4")
    args = [x.astype(jnp.float32)]
    in_specs = [pl.BlockSpec((B, Cin), lambda i: (0, 0))]
    for name in names:
        p = params[name]
        cout = p["w"].shape[1]
        args += [p["w"], p["scale"].reshape(1, -1), p["bias"].reshape(1, -1)]
        in_specs += [
            pl.BlockSpec(p["w"].shape, lambda i: (0, 0)),
            pl.BlockSpec((1, cout), lambda i: (0, 0)),
            pl.BlockSpec((1, cout), lambda i: (0, 0)),
        ]
    out_ch = params["linear4"]["w"].shape[1]
    return pl.pallas_call(
        _head_kernel,
        out_shape=jax.ShapeDtypeStruct((B, out_ch), jnp.float32),
        grid_spec=pltpu.PrefetchScalarGridSpec(
            num_scalar_prefetch=0,
            grid=(1,),
            in_specs=in_specs,
            out_specs=pl.BlockSpec((B, out_ch), lambda i: (0, 0)),
        ),
        compiler_params=pltpu.CompilerParams(
            dimension_semantics=("arbitrary",),
            vmem_limit_bytes=_VMEM_LIMIT,
        ),
    )(*args)


# -----------------------------------------------------------------------------
# JAX glue (gather, topk)
# -----------------------------------------------------------------------------
def gather_neighbors(xT, idx):
    """xT: (B, N, C), idx: (B, N, K) int -> (K, B*N, C) neighbour features.

    The gather is emitted K-major so no transpose of the K-inflated tensor is
    needed; the (K, B*N, C) reshape is a free contiguous reshape.
    """
    # TODO(synk): for huge point clouds, replace the XLA gather with in-kernel
    # scalar-prefetched DMA gather so the (K, M, C) tensor is streamed, not
    # materialized.
    B, N, C = xT.shape
    K = idx.shape[-1]
    idx_k = jnp.transpose(idx, (2, 0, 1))                         # (K, B, N) tiny
    nbr = jax.vmap(
        lambda ik: jax.vmap(lambda xt, i: xt[i])(xT, ik))(idx_k)  # (K, B, N, C)
    return nbr.reshape(K, B * N, C)


# -----------------------------------------------------------------------------
# Parameters (deterministic synthetic init; BN fused to scale/bias, eval mode)
# -----------------------------------------------------------------------------
def init_params(key, *, init_dims=17, emb_dims=64, output_channels=3, eps=1e-5):
    keys = iter(jax.random.split(key, 64))

    def bn_fused(cout, extra_bias=None):
        gamma = 1.0 + 0.1 * jax.random.normal(next(keys), (cout,))
        beta = 0.1 * jax.random.normal(next(keys), (cout,))
        mean = 0.1 * jax.random.normal(next(keys), (cout,))
        var = 0.5 + jax.random.uniform(next(keys), (cout,))
        scale = gamma / jnp.sqrt(var + eps)
        bias = beta - mean * scale
        if extra_bias is not None:
            bias = bias + extra_bias * scale
        return scale.astype(jnp.float32), bias.astype(jnp.float32)

    def weight(cin, cout):
        return (0.1 * jax.random.normal(next(keys), (cin, cout))).astype(jnp.float32)

    params = {}
    conv_specs = [
        ("conv1", 2 * init_dims, 64), ("conv2", 128, 64), ("conv3", 128, 128),
        ("conv4", 256, 256), ("conv5", 512, 256), ("conv6", 512, 256),
        ("conv7", 1024, emb_dims),
    ]
    for name, cin, cout in conv_specs:
        w = weight(cin, cout)
        s, b = bn_fused(cout)
        params[name] = {"w": w, "scale": s, "bias": b}

    # linear1 (no bias) + bn8
    w1 = weight(2 * emb_dims, 512)
    s1, b1 = bn_fused(512)
    params["linear1"] = {"w": w1, "scale": s1, "bias": b1}
    # linear2 (bias) + bn9
    w2 = weight(512, 256)
    lb2 = (0.1 * jax.random.normal(next(keys), (256,))).astype(jnp.float32)
    s2, b2 = bn_fused(256, extra_bias=lb2)
    params["linear2"] = {"w": w2, "scale": s2, "bias": b2}
    # linear3 (bias) + bn10
    w3 = weight(256, 64)
    lb3 = (0.1 * jax.random.normal(next(keys), (64,))).astype(jnp.float32)
    s3, b3 = bn_fused(64, extra_bias=lb3)
    params["linear3"] = {"w": w3, "scale": s3, "bias": b3}
    # linear4 (bias, no BN, no activation)
    w4 = weight(64, output_channels)
    lb4 = (0.1 * jax.random.normal(next(keys), (output_channels,))).astype(jnp.float32)
    params["linear4"] = {"w": w4,
                         "scale": jnp.ones((output_channels,), jnp.float32),
                         "bias": lb4}
    return params


# -----------------------------------------------------------------------------
# Forward
# -----------------------------------------------------------------------------
@functools.partial(jax.jit, static_argnames=("knn_k",))
def dgcnn_forward(params, inputs, *, knn_k=4):
    B, _, N = inputs.shape
    M = B * N
    x = inputs[:, 0:17, :]                                    # (B, 17, N)
    idx_g = inputs[:, 17:20, :].astype(jnp.int32)             # (B, 3, N)
    idx_g = jnp.transpose(idx_g, (0, 2, 1))                   # (B, N, 3)
    xT = jnp.transpose(x, (0, 2, 1)).astype(jnp.float32)      # (B, N, 17)

    def edge_block(feat_in, idx, name):
        p = params[name]
        feat16 = feat_in.astype(jnp.bfloat16)                 # cast BEFORE gather
        nbr = gather_neighbors(feat16, idx)                   # (K, M, C) bf16
        ctr = feat16.reshape(M, -1)                           # (M, C) bf16
        out = edgeconv(nbr, ctr, p["w"], p["scale"], p["bias"])
        return out.reshape(B, N, -1)

    def knn_idx(feat_in):
        pd = pairwise_dist(feat_in)                           # (B, N, N), f32
        return jax.lax.top_k(pd, knn_k)[1]                    # (B, N, k)

    x1 = edge_block(xT, idx_g, "conv1")                       # (B, N, 64)
    x2 = edge_block(x1, idx_g, "conv2")                       # (B, N, 64)
    x3 = edge_block(x2, idx_g, "conv3")                       # (B, N, 128)
    x4 = edge_block(x3, knn_idx(x3), "conv4")                 # (B, N, 256)
    x5 = edge_block(x4, knn_idx(x4), "conv5")                 # (B, N, 256)
    x6 = edge_block(x5, knn_idx(x5), "conv6")                 # (B, N, 256)

    # Fused conv7 (1024 -> emb) + BN + LeakyReLU + global max/mean pooling.
    p7 = params["conv7"]
    pooled = conv7_pool([x1, x2, x3, x4, x5, x6],
                        p7["w"], p7["scale"], p7["bias"])     # (B, 2*emb)

    # Fused MLP head (dropout is identity in eval mode).
    return mlp_head(pooled, params)                           # (B, output_channels)


# -----------------------------------------------------------------------------
# Main
# -----------------------------------------------------------------------------
if __name__ == "__main__":
    key = jax.random.PRNGKey(0)
    kp, kx, ki = jax.random.split(key, 3)

    B, N = 2, 16
    emb_dims, out_ch, knn_k = 64, 3, 4

    params = init_params(kp, init_dims=17, emb_dims=emb_dims, output_channels=out_ch)

    xfeat = jax.random.normal(kx, (B, 17, N), dtype=jnp.float32)
    nbr_idx = jax.random.randint(ki, (B, 3, N), 0, N).astype(jnp.float32)
    inputs = jnp.concatenate([xfeat, nbr_idx], axis=1)        # (B, 20, N)

    out = dgcnn_forward(params, inputs, knn_k=knn_k)
    out = jax.block_until_ready(out)
    assert out.shape == (B, out_ch), out.shape
    print("KERNEL_OK")
</pallas_src>

<mosaic_0001>
module attributes {stable_mosaic.version = 11 : i64} {
  func.func @kernel(%arg0: i32, %arg1: memref<3x32x17xbf16, #tpu.memory_space<vmem>>, %arg2: memref<32x17xbf16, #tpu.memory_space<vmem>>, %arg3: memref<17x64xbf16, #tpu.memory_space<vmem>>, %arg4: memref<17x64xbf16, #tpu.memory_space<vmem>>, %arg5: memref<1x64xf32, #tpu.memory_space<vmem>>, %arg6: memref<1x64xf32, #tpu.memory_space<vmem>>, %arg7: memref<32x64xf32, #tpu.memory_space<vmem>>) attributes {dimension_semantics = [#tpu.dimension_semantics<parallel>], iteration_bounds = array<i64: 1>, scalar_prefetch = 0 : i64, scratch_operands = 0 : i64, tpu.core_type = #tpu.core_type<tc>, window_params = [{transform_indices = @transform_0, window_bounds = array<i64: 3, 32, 17>}, {transform_indices = @transform_1, window_bounds = array<i64: 32, 17>}, {pipeline_mode = #tpu.pipeline_mode<synchronous>, transform_indices = @transform_2, window_bounds = array<i64: 17, 64>}, {pipeline_mode = #tpu.pipeline_mode<synchronous>, transform_indices = @transform_3, window_bounds = array<i64: 17, 64>}, {pipeline_mode = #tpu.pipeline_mode<synchronous>, transform_indices = @transform_4, window_bounds = array<i64: 1, 64>}, {pipeline_mode = #tpu.pipeline_mode<synchronous>, transform_indices = @transform_5, window_bounds = array<i64: 1, 64>}, {transform_indices = @transform_6, window_bounds = array<i64: 32, 64>}]} {
    %c0 = arith.constant 0 : index
    %c0_0 = arith.constant 0 : index
    %c0_1 = arith.constant 0 : index
    %0 = vector.load %arg1[%c0, %c0_0, %c0_1] : memref<3x32x17xbf16, #tpu.memory_space<vmem>>, vector<3x32x17xbf16>
    %1 = vector.shape_cast %0 : vector<3x32x17xbf16> to vector<96x17xbf16>
    %c0_2 = arith.constant 0 : index
    %c0_3 = arith.constant 0 : index
    %2 = vector.load %arg3[%c0_2, %c0_3] : memref<17x64xbf16, #tpu.memory_space<vmem>>, vector<17x64xbf16>
    %cst = arith.constant dense<0.000000e+00> : vector<96x64xf32>
    %3 = tpu.matmul %1, %2, %cst {dimension_numbers = #tpu.dot_dimension_numbers<[1], [0], [0], [1], [0, 0, 1, 1], [], []>} : vector<96x17xbf16>, vector<17x64xbf16>, vector<96x64xf32> -> vector<96x64xf32>
    %c0_4 = arith.constant 0 : index
    %c0_5 = arith.constant 0 : index
    %4 = vector.load %arg2[%c0_4, %c0_5] : memref<32x17xbf16, #tpu.memory_space<vmem>>, vector<32x17xbf16>
    %c0_6 = arith.constant 0 : index
    %c0_7 = arith.constant 0 : index
    %5 = vector.load %arg4[%c0_6, %c0_7] : memref<17x64xbf16, #tpu.memory_space<vmem>>, vector<17x64xbf16>
    %cst_8 = arith.constant dense<0.000000e+00> : vector<32x64xf32>
    %6 = tpu.matmul %4, %5, %cst_8 {dimension_numbers = #tpu.dot_dimension_numbers<[1], [0], [0], [1], [0, 0, 1, 1], [], []>} : vector<32x17xbf16>, vector<17x64xbf16>, vector<32x64xf32> -> vector<32x64xf32>
    %7 = vector.shape_cast %3 : vector<96x64xf32> to vector<3x32x64xf32>
    %8 = vector.shape_cast %6 : vector<32x64xf32> to vector<1x32x64xf32>
    %9 = vector.broadcast %8 : vector<1x32x64xf32> to vector<3x32x64xf32>
    %10 = arith.addf %7, %9 : vector<3x32x64xf32>
    %c0_9 = arith.constant 0 : index
    %c0_10 = arith.constant 0 : index
    %11 = vector.load %arg5[%c0_9, %c0_10] : memref<1x64xf32, #tpu.memory_space<vmem>>, vector<1x64xf32>
    %12 = vector.shape_cast %11 : vector<1x64xf32> to vector<1x1x64xf32>
    %13 = vector.broadcast %12 : vector<1x1x64xf32> to vector<3x32x64xf32>
    %14 = arith.mulf %10, %13 : vector<3x32x64xf32>
    %c0_11 = arith.constant 0 : index
    %c0_12 = arith.constant 0 : index
    %15 = vector.load %arg6[%c0_11, %c0_12] : memref<1x64xf32, #tpu.memory_space<vmem>>, vector<1x64xf32>
    %16 = vector.shape_cast %15 : vector<1x64xf32> to vector<1x1x64xf32>
    %17 = vector.broadcast %16 : vector<1x1x64xf32> to vector<3x32x64xf32>
    %18 = arith.addf %14, %17 : vector<3x32x64xf32>
    %cst_13 = arith.constant 0.000000e+00 : f32
    %19 = vector.broadcast %cst_13 : f32 to vector<3x32x64xf32>
    %20 = arith.cmpf oge, %18, %19 : vector<3x32x64xf32>
    %cst_14 = arith.constant 2.000000e-01 : f32
    %21 = vector.broadcast %cst_14 : f32 to vector<3x32x64xf32>
    %22 = arith.mulf %21, %18 : vector<3x32x64xf32>
    %23 = arith.select %20, %18, %22 : vector<3x32x64xi1>, vector<3x32x64xf32>
    %cst_15 = arith.constant dense<0xFF800000> : vector<32x64xf32>
    %24 = vector.multi_reduction <maximumf>, %23, %cst_15 [0] : vector<3x32x64xf32> to vector<32x64xf32>
    %c0_16 = arith.constant 0 : index
    %c0_17 = arith.constant 0 : index
    %25 = vector.load %arg7[%c0_16, %c0_17] : memref<32x64xf32, #tpu.memory_space<vmem>>, vector<32x64xf32>
    tpu.vector_store %arg7[%c0_16, %c0_17], %24 {strides = array<i32>} : memref<32x64xf32, #tpu.memory_space<vmem>>, vector<32x64xf32>,
    return
  }
  func.func @transform_0(%arg0: i32) -> (i32, i32, i32) {
    %c0_i32 = arith.constant 0 : i32
    %c0_i32_0 = arith.constant 0 : i32
    %c0_i32_1 = arith.constant 0 : i32
    return %c0_i32, %arg0, %c0_i32_0 : i32, i32, i32
  }
  func.func @transform_1(%arg0: i32) -> (i32, i32) {
    %c0_i32 = arith.constant 0 : i32
    %c0_i32_0 = arith.constant 0 : i32
    return %arg0, %c0_i32 : i32, i32
  }
  func.func @transform_2(%arg0: i32) -> (i32, i32) {
    %c0_i32 = arith.constant 0 : i32
    %c0_i32_0 = arith.constant 0 : i32
    %c0_i32_1 = arith.constant 0 : i32
    return %c0_i32, %c0_i32_0 : i32, i32
  }
  func.func @transform_3(%arg0: i32) -> (i32, i32) {
    %c0_i32 = arith.constant 0 : i32
    %c0_i32_0 = arith.constant 0 : i32
    %c0_i32_1 = arith.constant 0 : i32
    return %c0_i32, %c0_i32_0 : i32, i32
  }
  func.func @transform_4(%arg0: i32) -> (i32, i32) {
    %c0_i32 = arith.constant 0 : i32
    %c0_i32_0 = arith.constant 0 : i32
    %c0_i32_1 = arith.constant 0 : i32
    return %c0_i32, %c0_i32_0 : i32, i32
  }
  func.func @transform_5(%arg0: i32) -> (i32, i32) {
    %c0_i32 = arith.constant 0 : i32
    %c0_i32_0 = arith.constant 0 : i32
    %c0_i32_1 = arith.constant 0 : i32
    return %c0_i32, %c0_i32_0 : i32, i32
  }
  func.func @transform_6(%arg0: i32) -> (i32, i32) {
    %c0_i32 = arith.constant 0 : i32
    %c0_i32_0 = arith.constant 0 : i32
    return %arg0, %c0_i32 : i32, i32
  }
}

module attributes {stable_mosaic.version = 11 : i64} {
  func.func @kernel(%arg0: i32, %arg1: memref<3x32x64xbf16, #tpu.memory_space<vmem>>, %arg2: memref<32x64xbf16, #tpu.memory_space<vmem>>, %arg3: memref<64x64xbf16, #tpu.memory_space<vmem>>, %arg4: memref<64x64xbf16, #tpu.memory_space<vmem>>, %arg5: memref<1x64xf32, #tpu.memory_space<vmem>>, %arg6: memref<1x64xf32, #tpu.memory_space<vmem>>, %arg7: memref<32x64xf32, #tpu.memory_space<vmem>>) attributes {dimension_semantics = [#tpu.dimension_semantics<parallel>], iteration_bounds = array<i64: 1>, scalar_prefetch = 0 : i64, scratch_operands = 0 : i64, tpu.core_type = #tpu.core_type<tc>, window_params = [{transform_indices = @transform_0, window_bounds = array<i64: 3, 32, 64>}, {transform_indices = @transform_1, window_bounds = array<i64: 32, 64>}, {pipeline_mode = #tpu.pipeline_mode<synchronous>, transform_indices = @transform_2, window_bounds = array<i64: 64, 64>}, {pipeline_mode = #tpu.pipeline_mode<synchronous>, transform_indices = @transform_3, window_bounds = array<i64: 64, 64>}, {pipeline_mode = #tpu.pipeline_mode<synchronous>, transform_indices = @transform_4, window_bounds = array<i64: 1, 64>}, {pipeline_mode = #tpu.pipeline_mode<synchronous>, transform_indices = @transform_5, window_bounds = array<i64: 1, 64>}, {transform_indices = @transform_6, window_bounds = array<i64: 32, 64>}]} {
    %c0 = arith.constant 0 : index
    %c0_0 = arith.constant 0 : index
    %c0_1 = arith.constant 0 : index
    %0 = vector.load %arg1[%c0, %c0_0, %c0_1] : memref<3x32x64xbf16, #tpu.memory_space<vmem>>, vector<3x32x64xbf16>
    %1 = vector.shape_cast %0 : vector<3x32x64xbf16> to vector<96x64xbf16>
    %c0_2 = arith.constant 0 : index
    %c0_3 = arith.constant 0 : index
    %2 = vector.load %arg3[%c0_2, %c0_3] : memref<64x64xbf16, #tpu.memory_space<vmem>>, vector<64x64xbf16>
    %cst = arith.constant dense<0.000000e+00> : vector<96x64xf32>
    %3 = tpu.matmul %1, %2, %cst {dimension_numbers = #tpu.dot_dimension_numbers<[1], [0], [0], [1], [0, 0, 1, 1], [], []>} : vector<96x64xbf16>, vector<64x64xbf16>, vector<96x64xf32> -> vector<96x64xf32>
    %c0_4 = arith.constant 0 : index
    %c0_5 = arith.constant 0 : index
    %4 = vector.load %arg2[%c0_4, %c0_5] : memref<32x64xbf16, #tpu.memory_space<vmem>>, vector<32x64xbf16>
    %c0_6 = arith.constant 0 : index
    %c0_7 = arith.constant 0 : index
    %5 = vector.load %arg4[%c0_6, %c0_7] : memref<64x64xbf16, #tpu.memory_space<vmem>>, vector<64x64xbf16>
    %cst_8 = arith.constant dense<0.000000e+00> : vector<32x64xf32>
    %6 = tpu.matmul %4, %5, %cst_8 {dimension_numbers = #tpu.dot_dimension_numbers<[1], [0], [0], [1], [0, 0, 1, 1], [], []>} : vector<32x64xbf16>, vector<64x64xbf16>, vector<32x64xf32> -> vector<32x64xf32>
    %7 = vector.shape_cast %3 : vector<96x64xf32> to vector<3x32x64xf32>
    %8 = vector.shape_cast %6 : vector<32x64xf32> to vector<1x32x64xf32>
    %9 = vector.broadcast %8 : vector<1x32x64xf32> to vector<3x32x64xf32>
    %10 = arith.addf %7, %9 : vector<3x32x64xf32>
    %c0_9 = arith.constant 0 : index
    %c0_10 = arith.constant 0 : index
    %11 = vector.load %arg5[%c0_9, %c0_10] : memref<1x64xf32, #tpu.memory_space<vmem>>, vector<1x64xf32>
    %12 = vector.shape_cast %11 : vector<1x64xf32> to vector<1x1x64xf32>
    %13 = vector.broadcast %12 : vector<1x1x64xf32> to vector<3x32x64xf32>
    %14 = arith.mulf %10, %13 : vector<3x32x64xf32>
    %c0_11 = arith.constant 0 : index
    %c0_12 = arith.constant 0 : index
    %15 = vector.load %arg6[%c0_11, %c0_12] : memref<1x64xf32, #tpu.memory_space<vmem>>, vector<1x64xf32>
    %16 = vector.shape_cast %15 : vector<1x64xf32> to vector<1x1x64xf32>
    %17 = vector.broadcast %16 : vector<1x1x64xf32> to vector<3x32x64xf32>
    %18 = arith.addf %14, %17 : vector<3x32x64xf32>
    %cst_13 = arith.constant 0.000000e+00 : f32
    %19 = vector.broadcast %cst_13 : f32 to vector<3x32x64xf32>
    %20 = arith.cmpf oge, %18, %19 : vector<3x32x64xf32>
    %cst_14 = arith.constant 2.000000e-01 : f32
    %21 = vector.broadcast %cst_14 : f32 to vector<3x32x64xf32>
    %22 = arith.mulf %21, %18 : vector<3x32x64xf32>
    %23 = arith.select %20, %18, %22 : vector<3x32x64xi1>, vector<3x32x64xf32>
    %cst_15 = arith.constant dense<0xFF800000> : vector<32x64xf32>
    %24 = vector.multi_reduction <maximumf>, %23, %cst_15 [0] : vector<3x32x64xf32> to vector<32x64xf32>
    %c0_16 = arith.constant 0 : index
    %c0_17 = arith.constant 0 : index
    %25 = vector.load %arg7[%c0_16, %c0_17] : memref<32x64xf32, #tpu.memory_space<vmem>>, vector<32x64xf32>
    tpu.vector_store %arg7[%c0_16, %c0_17], %24 {strides = array<i32>} : memref<32x64xf32, #tpu.memory_space<vmem>>, vector<32x64xf32>,
    return
  }
  func.func @transform_0(%arg0: i32) -> (i32, i32, i32) {
    %c0_i32 = arith.constant 0 : i32
    %c0_i32_0 = arith.constant 0 : i32
    %c0_i32_1 = arith.constant 0 : i32
    return %c0_i32, %arg0, %c0_i32_0 : i32, i32, i32
  }
  func.func @transform_1(%arg0: i32) -> (i32, i32) {
    %c0_i32 = arith.constant 0 : i32
    %c0_i32_0 = arith.constant 0 : i32
    return %arg0, %c0_i32 : i32, i32
  }
  func.func @transform_2(%arg0: i32) -> (i32, i32) {
    %c0_i32 = arith.constant 0 : i32
    %c0_i32_0 = arith.constant 0 : i32
    %c0_i32_1 = arith.constant 0 : i32
    return %c0_i32, %c0_i32_0 : i32, i32
  }
  func.func @transform_3(%arg0: i32) -> (i32, i32) {
    %c0_i32 = arith.constant 0 : i32
    %c0_i32_0 = arith.constant 0 : i32
    %c0_i32_1 = arith.constant 0 : i32
    return %c0_i32, %c0_i32_0 : i32, i32
  }
  func.func @transform_4(%arg0: i32) -> (i32, i32) {
    %c0_i32 = arith.constant 0 : i32
    %c0_i32_0 = arith.constant 0 : i32
    %c0_i32_1 = arith.constant 0 : i32
    return %c0_i32, %c0_i32_0 : i32, i32
  }
  func.func @transform_5(%arg0: i32) -> (i32, i32) {
    %c0_i32 = arith.constant 0 : i32
    %c0_i32_0 = arith.constant 0 : i32
    %c0_i32_1 = arith.constant 0 : i32
    return %c0_i32, %c0_i32_0 : i32, i32
  }
  func.func @transform_6(%arg0: i32) -> (i32, i32) {
    %c0_i32 = arith.constant 0 : i32
    %c0_i32_0 = arith.constant 0 : i32
    return %arg0, %c0_i32 : i32, i32
  }
}

module attributes {stable_mosaic.version = 11 : i64} {
  func.func @kernel(%arg0: i32, %arg1: memref<3x32x64xbf16, #tpu.memory_space<vmem>>, %arg2: memref<32x64xbf16, #tpu.memory_space<vmem>>, %arg3: memref<64x128xbf16, #tpu.memory_space<vmem>>, %arg4: memref<64x128xbf16, #tpu.memory_space<vmem>>, %arg5: memref<1x128xf32, #tpu.memory_space<vmem>>, %arg6: memref<1x128xf32, #tpu.memory_space<vmem>>, %arg7: memref<32x128xf32, #tpu.memory_space<vmem>>) attributes {dimension_semantics = [#tpu.dimension_semantics<parallel>], iteration_bounds = array<i64: 1>, scalar_prefetch = 0 : i64, scratch_operands = 0 : i64, tpu.core_type = #tpu.core_type<tc>, window_params = [{transform_indices = @transform_0, window_bounds = array<i64: 3, 32, 64>}, {transform_indices = @transform_1, window_bounds = array<i64: 32, 64>}, {pipeline_mode = #tpu.pipeline_mode<synchronous>, transform_indices = @transform_2, window_bounds = array<i64: 64, 128>}, {pipeline_mode = #tpu.pipeline_mode<synchronous>, transform_indices = @transform_3, window_bounds = array<i64: 64, 128>}, {pipeline_mode = #tpu.pipeline_mode<synchronous>, transform_indices = @transform_4, window_bounds = array<i64: 1, 128>}, {pipeline_mode = #tpu.pipeline_mode<synchronous>, transform_indices = @transform_5, window_bounds = array<i64: 1, 128>}, {transform_indices = @transform_6, window_bounds = array<i64: 32, 128>}]} {
    %c0 = arith.constant 0 : index
    %c0_0 = arith.constant 0 : index
    %c0_1 = arith.constant 0 : index
    %0 = vector.load %arg1[%c0, %c0_0, %c0_1] : memref<3x32x64xbf16, #tpu.memory_space<vmem>>, vector<3x32x64xbf16>
    %1 = vector.shape_cast %0 : vector<3x32x64xbf16> to vector<96x64xbf16>
    %c0_2 = arith.constant 0 : index
    %c0_3 = arith.constant 0 : index
    %2 = vector.load %arg3[%c0_2, %c0_3] : memref<64x128xbf16, #tpu.memory_space<vmem>>, vector<64x128xbf16>
    %cst = arith.constant dense<0.000000e+00> : vector<96x128xf32>
    %3 = tpu.matmul %1, %2, %cst {dimension_numbers = #tpu.dot_dimension_numbers<[1], [0], [0], [1], [0, 0, 1, 1], [], []>} : vector<96x64xbf16>, vector<64x128xbf16>, vector<96x128xf32> -> vector<96x128xf32>
    %c0_4 = arith.constant 0 : index
    %c0_5 = arith.constant 0 : index
    %4 = vector.load %arg2[%c0_4, %c0_5] : memref<32x64xbf16, #tpu.memory_space<vmem>>, vector<32x64xbf16>
    %c0_6 = arith.constant 0 : index
    %c0_7 = arith.constant 0 : index
    %5 = vector.load %arg4[%c0_6, %c0_7] : memref<64x128xbf16, #tpu.memory_space<vmem>>, vector<64x128xbf16>
    %cst_8 = arith.constant dense<0.000000e+00> : vector<32x128xf32>
    %6 = tpu.matmul %4, %5, %cst_8 {dimension_numbers = #tpu.dot_dimension_numbers<[1], [0], [0], [1], [0, 0, 1, 1], [], []>} : vector<32x64xbf16>, vector<64x128xbf16>, vector<32x128xf32> -> vector<32x128xf32>
    %7 = vector.shape_cast %3 : vector<96x128xf32> to vector<3x32x128xf32>
    %8 = vector.shape_cast %6 : vector<32x128xf32> to vector<1x32x128xf32>
    %9 = vector.broadcast %8 : vector<1x32x128xf32> to vector<3x32x128xf32>
    %10 = arith.addf %7, %9 : vector<3x32x128xf32>
    %c0_9 = arith.constant 0 : index
    %c0_10 = arith.constant 0 : index
    %11 = vector.load %arg5[%c0_9, %c0_10] : memref<1x128xf32, #tpu.memory_space<vmem>>, vector<1x128xf32>
    %12 = vector.shape_cast %11 : vector<1x128xf32> to vector<1x1x128xf32>
    %13 = vector.broadcast %12 : vector<1x1x128xf32> to vector<3x32x128xf32>
    %14 = arith.mulf %10, %13 : vector<3x32x128xf32>
    %c0_11 = arith.constant 0 : index
    %c0_12 = arith.constant 0 : index
    %15 = vector.load %arg6[%c0_11, %c0_12] : memref<1x128xf32, #tpu.memory_space<vmem>>, vector<1x128xf32>
    %16 = vector.shape_cast %15 : vector<1x128xf32> to vector<1x1x128xf32>
    %17 = vector.broadcast %16 : vector<1x1x128xf32> to vector<3x32x128xf32>
    %18 = arith.addf %14, %17 : vector<3x32x128xf32>
    %cst_13 = arith.constant 0.000000e+00 : f32
    %19 = vector.broadcast %cst_13 : f32 to vector<3x32x128xf32>
    %20 = arith.cmpf oge, %18, %19 : vector<3x32x128xf32>
    %cst_14 = arith.constant 2.000000e-01 : f32
    %21 = vector.broadcast %cst_14 : f32 to vector<3x32x128xf32>
    %22 = arith.mulf %21, %18 : vector<3x32x128xf32>
    %23 = arith.select %20, %18, %22 : vector<3x32x128xi1>, vector<3x32x128xf32>
    %cst_15 = arith.constant dense<0xFF800000> : vector<32x128xf32>
    %24 = vector.multi_reduction <maximumf>, %23, %cst_15 [0] : vector<3x32x128xf32> to vector<32x128xf32>
    %c0_16 = arith.constant 0 : index
    %c0_17 = arith.constant 0 : index
    %25 = vector.load %arg7[%c0_16, %c0_17] : memref<32x128xf32, #tpu.memory_space<vmem>>, vector<32x128xf32>
    tpu.vector_store %arg7[%c0_16, %c0_17], %24 {strides = array<i32>} : memref<32x128xf32, #tpu.memory_space<vmem>>, vector<32x128xf32>,
    return
  }
  func.func @transform_0(%arg0: i32) -> (i32, i32, i32) {
    %c0_i32 = arith.constant 0 : i32
    %c0_i32_0 = arith.constant 0 : i32
    %c0_i32_1 = arith.constant 0 : i32
    return %c0_i32, %arg0, %c0_i32_0 : i32, i32, i32
  }
  func.func @transform_1(%arg0: i32) -> (i32, i32) {
    %c0_i32 = arith.constant 0 : i32
    %c0_i32_0 = arith.constant 0 : i32
    return %arg0, %c0_i32 : i32, i32
  }
  func.func @transform_2(%arg0: i32) -> (i32, i32) {
    %c0_i32 = arith.constant 0 : i32
    %c0_i32_0 = arith.constant 0 : i32
    %c0_i32_1 = arith.constant 0 : i32
    return %c0_i32, %c0_i32_0 : i32, i32
  }
  func.func @transform_3(%arg0: i32) -> (i32, i32) {
    %c0_i32 = arith.constant 0 : i32
    %c0_i32_0 = arith.constant 0 : i32
    %c0_i32_1 = arith.constant 0 : i32
    return %c0_i32, %c0_i32_0 : i32, i32
  }
  func.func @transform_4(%arg0: i32) -> (i32, i32) {
    %c0_i32 = arith.constant 0 : i32
    %c0_i32_0 = arith.constant 0 : i32
    %c0_i32_1 = arith.constant 0 : i32
    return %c0_i32, %c0_i32_0 : i32, i32
  }
  func.func @transform_5(%arg0: i32) -> (i32, i32) {
    %c0_i32 = arith.constant 0 : i32
    %c0_i32_0 = arith.constant 0 : i32
    %c0_i32_1 = arith.constant 0 : i32
    return %c0_i32, %c0_i32_0 : i32, i32
  }
  func.func @transform_6(%arg0: i32) -> (i32, i32) {
    %c0_i32 = arith.constant 0 : i32
    %c0_i32_0 = arith.constant 0 : i32
    return %arg0, %c0_i32 : i32, i32
  }
}

module attributes {stable_mosaic.version = 11 : i64} {
  func.func @_pdist_kernel(%arg0: i32, %arg1: i32, %arg2: memref<1x16x128xf32, #tpu.memory_space<vmem>>, %arg3: memref<1x16x128xf32, #tpu.memory_space<vmem>>, %arg4: memref<1x16x16xf32, #tpu.memory_space<vmem>>) attributes {dimension_semantics = [#tpu.dimension_semantics<parallel>, #tpu.dimension_semantics<parallel>], iteration_bounds = array<i64: 2, 1>, scalar_prefetch = 0 : i64, scratch_operands = 0 : i64, tpu.core_type = #tpu.core_type<tc>, window_params = [{transform_indices = @transform_0, window_bounds = array<i64: 1, 16, 128>}, {transform_indices = @transform_1, window_bounds = array<i64: 1, 16, 128>}, {transform_indices = @transform_2, window_bounds = array<i64: 1, 16, 16>}]} {
    %c0 = arith.constant 0 : index
    %c0_0 = arith.constant 0 : index
    %c0_1 = arith.constant 0 : index
    %0 = vector.load %arg2[%c0, %c0_0, %c0_1] : memref<1x16x128xf32, #tpu.memory_space<vmem>>, vector<1x16x128xf32>
    %1 = vector.shape_cast %0 : vector<1x16x128xf32> to vector<16x128xf32>
    %c0_2 = arith.constant 0 : index
    %c0_3 = arith.constant 0 : index
    %c0_4 = arith.constant 0 : index
    %2 = vector.load %arg3[%c0_2, %c0_3, %c0_4] : memref<1x16x128xf32, #tpu.memory_space<vmem>>, vector<1x16x128xf32>
    %3 = vector.shape_cast %2 : vector<1x16x128xf32> to vector<16x128xf32>
    %cst = arith.constant dense<0.000000e+00> : vector<16x16xf32>
    %4 = tpu.matmul %1, %3, %cst {dimension_numbers = #tpu.dot_dimension_numbers<[1], [1], [0], [0], [0, 0, 1, 0], [], []>} : vector<16x128xf32>, vector<16x128xf32>, vector<16x16xf32> -> vector<16x16xf32>
    %5 = arith.mulf %1, %1 : vector<16x128xf32>
    %cst_5 = arith.constant dense<0.000000e+00> : vector<16xf32>
    %6 = vector.multi_reduction <add>, %5, %cst_5 [1] : vector<16x128xf32> to vector<16xf32>
    %7 = vector.shape_cast %6 : vector<16xf32> to vector<16x1xf32>
    %8 = arith.mulf %3, %3 : vector<16x128xf32>
    %cst_6 = arith.constant dense<0.000000e+00> : vector<16xf32>
    %9 = vector.multi_reduction <add>, %8, %cst_6 [1] : vector<16x128xf32> to vector<16xf32>
    %10 = vector.shape_cast %9 : vector<16xf32> to vector<16x1xf32>
    %cst_7 = arith.constant 2.000000e+00 : f32
    %11 = vector.broadcast %cst_7 : f32 to vector<16x16xf32>
    %12 = arith.mulf %11, %4 : vector<16x16xf32>
    %13 = vector.broadcast %7 : vector<16x1xf32> to vector<16x16xf32>
    %14 = arith.subf %12, %13 : vector<16x16xf32>
    %15 = tpu.transpose %10, [1, 0] : vector<16x1xf32> -> vector<1x16xf32>
    %16 = vector.broadcast %15 : vector<1x16xf32> to vector<16x16xf32>
    %17 = arith.subf %14, %16 : vector<16x16xf32>
    %c0_8 = arith.constant 0 : index
    %c0_9 = arith.constant 0 : index
    %c0_10 = arith.constant 0 : index
    %18 = vector.load %arg4[%c0_8, %c0_9, %c0_10] : memref<1x16x16xf32, #tpu.memory_space<vmem>>, vector<1x16x16xf32>
    %19 = vector.shape_cast %18 : vector<1x16x16xf32> to vector<16x16xf32>
    %20 = vector.shape_cast %17 : vector<16x16xf32> to vector<1x16x16xf32>
    tpu.vector_store %arg4[%c0_8, %c0_9, %c0_10], %20 {strides = array<i32>} : memref<1x16x16xf32, #tpu.memory_space<vmem>>, vector<1x16x16xf32>,
    return
  }
  func.func @transform_0(%arg0: i32, %arg1: i32) -> (i32, i32, i32) {
    %c0_i32 = arith.constant 0 : i32
    %c0_i32_0 = arith.constant 0 : i32
    return %arg0, %arg1, %c0_i32 : i32, i32, i32
  }
  func.func @transform_1(%arg0: i32, %arg1: i32) -> (i32, i32, i32) {
    %c0_i32 = arith.constant 0 : i32
    %c0_i32_0 = arith.constant 0 : i32
    %c0_i32_1 = arith.constant 0 : i32
    return %arg0, %c0_i32, %c0_i32_0 : i32, i32, i32
  }
  func.func @transform_2(%arg0: i32, %arg1: i32) -> (i32, i32, i32) {
    %c0_i32 = arith.constant 0 : i32
    %c0_i32_0 = arith.constant 0 : i32
    return %arg0, %arg1, %c0_i32 : i32, i32, i32
  }
}

module attributes {stable_mosaic.version = 11 : i64} {
  func.func @kernel(%arg0: i32, %arg1: memref<4x32x128xbf16, #tpu.memory_space<vmem>>, %arg2: memref<32x128xbf16, #tpu.memory_space<vmem>>, %arg3: memref<128x256xbf16, #tpu.memory_space<vmem>>, %arg4: memref<128x256xbf16, #tpu.memory_space<vmem>>, %arg5: memref<1x256xf32, #tpu.memory_space<vmem>>, %arg6: memref<1x256xf32, #tpu.memory_space<vmem>>, %arg7: memref<32x256xf32, #tpu.memory_space<vmem>>) attributes {dimension_semantics = [#tpu.dimension_semantics<parallel>], iteration_bounds = array<i64: 1>, scalar_prefetch = 0 : i64, scratch_operands = 0 : i64, tpu.core_type = #tpu.core_type<tc>, window_params = [{transform_indices = @transform_0, window_bounds = array<i64: 4, 32, 128>}, {transform_indices = @transform_1, window_bounds = array<i64: 32, 128>}, {pipeline_mode = #tpu.pipeline_mode<synchronous>, transform_indices = @transform_2, window_bounds = array<i64: 128, 256>}, {pipeline_mode = #tpu.pipeline_mode<synchronous>, transform_indices = @transform_3, window_bounds = array<i64: 128, 256>}, {pipeline_mode = #tpu.pipeline_mode<synchronous>, transform_indices = @transform_4, window_bounds = array<i64: 1, 256>}, {pipeline_mode = #tpu.pipeline_mode<synchronous>, transform_indices = @transform_5, window_bounds = array<i64: 1, 256>}, {transform_indices = @transform_6, window_bounds = array<i64: 32, 256>}]} {
    %c0 = arith.constant 0 : index
    %c0_0 = arith.constant 0 : index
    %c0_1 = arith.constant 0 : index
    %0 = vector.load %arg1[%c0, %c0_0, %c0_1] : memref<4x32x128xbf16, #tpu.memory_space<vmem>>, vector<4x32x128xbf16>
    %1 = vector.shape_cast %0 : vector<4x32x128xbf16> to vector<128x128xbf16>
    %c0_2 = arith.constant 0 : index
    %c0_3 = arith.constant 0 : index
    %2 = vector.load %arg3[%c0_2, %c0_3] : memref<128x256xbf16, #tpu.memory_space<vmem>>, vector<128x256xbf16>
    %cst = arith.constant dense<0.000000e+00> : vector<128x256xf32>
    %3 = tpu.matmul %1, %2, %cst {dimension_numbers = #tpu.dot_dimension_numbers<[1], [0], [0], [1], [0, 0, 1, 1], [], []>} : vector<128x128xbf16>, vector<128x256xbf16>, vector<128x256xf32> -> vector<128x256xf32>
    %c0_4 = arith.constant 0 : index
    %c0_5 = arith.constant 0 : index
    %4 = vector.load %arg2[%c0_4, %c0_5] : memref<32x128xbf16, #tpu.memory_space<vmem>>, vector<32x128xbf16>
    %c0_6 = arith.constant 0 : index
    %c0_7 = arith.constant 0 : index
    %5 = vector.load %arg4[%c0_6, %c0_7] : memref<128x256xbf16, #tpu.memory_space<vmem>>, vector<128x256xbf16>
    %cst_8 = arith.constant dense<0.000000e+00> : vector<32x256xf32>
    %6 = tpu.matmul %4, %5, %cst_8 {dimension_numbers = #tpu.dot_dimension_numbers<[1], [0], [0], [1], [0, 0, 1, 1], [], []>} : vector<32x128xbf16>, vector<128x256xbf16>, vector<32x256xf32> -> vector<32x256xf32>
    %7 = vector.shape_cast %3 : vector<128x256xf32> to vector<4x32x256xf32>
    %8 = vector.shape_cast %6 : vector<32x256xf32> to vector<1x32x256xf32>
    %9 = vector.broadcast %8 : vector<1x32x256xf32> to vector<4x32x256xf32>
    %10 = arith.addf %7, %9 : vector<4x32x256xf32>
    %c0_9 = arith.constant 0 : index
    %c0_10 = arith.constant 0 : index
    %11 = vector.load %arg5[%c0_9, %c0_10] : memref<1x256xf32, #tpu.memory_space<vmem>>, vector<1x256xf32>
    %12 = vector.shape_cast %11 : vector<1x256xf32> to vector<1x1x256xf32>
    %13 = vector.broadcast %12 : vector<1x1x256xf32> to vector<4x32x256xf32>
    %14 = arith.mulf %10, %13 : vector<4x32x256xf32>
    %c0_11 = arith.constant 0 : index
    %c0_12 = arith.constant 0 : index
    %15 = vector.load %arg6[%c0_11, %c0_12] : memref<1x256xf32, #tpu.memory_space<vmem>>, vector<1x256xf32>
    %16 = vector.shape_cast %15 : vector<1x256xf32> to vector<1x1x256xf32>
    %17 = vector.broadcast %16 : vector<1x1x256xf32> to vector<4x32x256xf32>
    %18 = arith.addf %14, %17 : vector<4x32x256xf32>
    %cst_13 = arith.constant 0.000000e+00 : f32
    %19 = vector.broadcast %cst_13 : f32 to vector<4x32x256xf32>
    %20 = arith.cmpf oge, %18, %19 : vector<4x32x256xf32>
    %cst_14 = arith.constant 2.000000e-01 : f32
    %21 = vector.broadcast %cst_14 : f32 to vector<4x32x256xf32>
    %22 = arith.mulf %21, %18 : vector<4x32x256xf32>
    %23 = arith.select %20, %18, %22 : vector<4x32x256xi1>, vector<4x32x256xf32>
    %cst_15 = arith.constant dense<0xFF800000> : vector<32x256xf32>
    %24 = vector.multi_reduction <maximumf>, %23, %cst_15 [0] : vector<4x32x256xf32> to vector<32x256xf32>
    %c0_16 = arith.constant 0 : index
    %c0_17 = arith.constant 0 : index
    %25 = vector.load %arg7[%c0_16, %c0_17] : memref<32x256xf32, #tpu.memory_space<vmem>>, vector<32x256xf32>
    tpu.vector_store %arg7[%c0_16, %c0_17], %24 {strides = array<i32>} : memref<32x256xf32, #tpu.memory_space<vmem>>, vector<32x256xf32>,
    return
  }
  func.func @transform_0(%arg0: i32) -> (i32, i32, i32) {
    %c0_i32 = arith.constant 0 : i32
    %c0_i32_0 = arith.constant 0 : i32
    %c0_i32_1 = arith.constant 0 : i32
    return %c0_i32, %arg0, %c0_i32_0 : i32, i32, i32
  }
  func.func @transform_1(%arg0: i32) -> (i32, i32) {
    %c0_i32 = arith.constant 0 : i32
    %c0_i32_0 = arith.constant 0 : i32
    return %arg0, %c0_i32 : i32, i32
  }
  func.func @transform_2(%arg0: i32) -> (i32, i32) {
    %c0_i32 = arith.constant 0 : i32
    %c0_i32_0 = arith.constant 0 : i32
    %c0_i32_1 = arith.constant 0 : i32
    return %c0_i32, %c0_i32_0 : i32, i32
  }
  func.func @transform_3(%arg0: i32) -> (i32, i32) {
    %c0_i32 = arith.constant 0 : i32
    %c0_i32_0 = arith.constant 0 : i32
    %c0_i32_1 = arith.constant 0 : i32
    return %c0_i32, %c0_i32_0 : i32, i32
  }
  func.func @transform_4(%arg0: i32) -> (i32, i32) {
    %c0_i32 = arith.constant 0 : i32
    %c0_i32_0 = arith.constant 0 : i32
    %c0_i32_1 = arith.constant 0 : i32
    return %c0_i32, %c0_i32_0 : i32, i32
  }
  func.func @transform_5(%arg0: i32) -> (i32, i32) {
    %c0_i32 = arith.constant 0 : i32
    %c0_i32_0 = arith.constant 0 : i32
    %c0_i32_1 = arith.constant 0 : i32
    return %c0_i32, %c0_i32_0 : i32, i32
  }
  func.func @transform_6(%arg0: i32) -> (i32, i32) {
    %c0_i32 = arith.constant 0 : i32
    %c0_i32_0 = arith.constant 0 : i32
    return %arg0, %c0_i32 : i32, i32
  }
}

module attributes {stable_mosaic.version = 11 : i64} {
  func.func @_pdist_kernel(%arg0: i32, %arg1: i32, %arg2: memref<1x16x256xf32, #tpu.memory_space<vmem>>, %arg3: memref<1x16x256xf32, #tpu.memory_space<vmem>>, %arg4: memref<1x16x16xf32, #tpu.memory_space<vmem>>) attributes {dimension_semantics = [#tpu.dimension_semantics<parallel>, #tpu.dimension_semantics<parallel>], iteration_bounds = array<i64: 2, 1>, scalar_prefetch = 0 : i64, scratch_operands = 0 : i64, tpu.core_type = #tpu.core_type<tc>, window_params = [{transform_indices = @transform_0, window_bounds = array<i64: 1, 16, 256>}, {transform_indices = @transform_1, window_bounds = array<i64: 1, 16, 256>}, {transform_indices = @transform_2, window_bounds = array<i64: 1, 16, 16>}]} {
    %c0 = arith.constant 0 : index
    %c0_0 = arith.constant 0 : index
    %c0_1 = arith.constant 0 : index
    %0 = vector.load %arg2[%c0, %c0_0, %c0_1] : memref<1x16x256xf32, #tpu.memory_space<vmem>>, vector<1x16x256xf32>
    %1 = vector.shape_cast %0 : vector<1x16x256xf32> to vector<16x256xf32>
    %c0_2 = arith.constant 0 : index
    %c0_3 = arith.constant 0 : index
    %c0_4 = arith.constant 0 : index
    %2 = vector.load %arg3[%c0_2, %c0_3, %c0_4] : memref<1x16x256xf32, #tpu.memory_space<vmem>>, vector<1x16x256xf32>
    %3 = vector.shape_cast %2 : vector<1x16x256xf32> to vector<16x256xf32>
    %cst = arith.constant dense<0.000000e+00> : vector<16x16xf32>
    %4 = tpu.matmul %1, %3, %cst {dimension_numbers = #tpu.dot_dimension_numbers<[1], [1], [0], [0], [0, 0, 1, 0], [], []>} : vector<16x256xf32>, vector<16x256xf32>, vector<16x16xf32> -> vector<16x16xf32>
    %5 = arith.mulf %1, %1 : vector<16x256xf32>
    %cst_5 = arith.constant dense<0.000000e+00> : vector<16xf32>
    %6 = vector.multi_reduction <add>, %5, %cst_5 [1] : vector<16x256xf32> to vector<16xf32>
    %7 = vector.shape_cast %6 : vector<16xf32> to vector<16x1xf32>
    %8 = arith.mulf %3, %3 : vector<16x256xf32>
    %cst_6 = arith.constant dense<0.000000e+00> : vector<16xf32>
    %9 = vector.multi_reduction <add>, %8, %cst_6 [1] : vector<16x256xf32> to vector<16xf32>
    %10 = vector.shape_cast %9 : vector<16xf32> to vector<16x1xf32>
    %cst_7 = arith.constant 2.000000e+00 : f32
    %11 = vector.broadcast %cst_7 : f32 to vector<16x16xf32>
    %12 = arith.mulf %11, %4 : vector<16x16xf32>
    %13 = vector.broadcast %7 : vector<16x1xf32> to vector<16x16xf32>
    %14 = arith.subf %12, %13 : vector<16x16xf32>
    %15 = tpu.transpose %10, [1, 0] : vector<16x1xf32> -> vector<1x16xf32>
    %16 = vector.broadcast %15 : vector<1x16xf32> to vector<16x16xf32>
    %17 = arith.subf %14, %16 : vector<16x16xf32>
    %c0_8 = arith.constant 0 : index
    %c0_9 = arith.constant 0 : index
    %c0_10 = arith.constant 0 : index
    %18 = vector.load %arg4[%c0_8, %c0_9, %c0_10] : memref<1x16x16xf32, #tpu.memory_space<vmem>>, vector<1x16x16xf32>
    %19 = vector.shape_cast %18 : vector<1x16x16xf32> to vector<16x16xf32>
    %20 = vector.shape_cast %17 : vector<16x16xf32> to vector<1x16x16xf32>
    tpu.vector_store %arg4[%c0_8, %c0_9, %c0_10], %20 {strides = array<i32>} : memref<1x16x16xf32, #tpu.memory_space<vmem>>, vector<1x16x16xf32>,
    return
  }
  func.func @transform_0(%arg0: i32, %arg1: i32) -> (i32, i32, i32) {
    %c0_i32 = arith.constant 0 : i32
    %c0_i32_0 = arith.constant 0 : i32
    return %arg0, %arg1, %c0_i32 : i32, i32, i32
  }
  func.func @transform_1(%arg0: i32, %arg1: i32) -> (i32, i32, i32) {
    %c0_i32 = arith.constant 0 : i32
    %c0_i32_0 = arith.constant 0 : i32
    %c0_i32_1 = arith.constant 0 : i32
    return %arg0, %c0_i32, %c0_i32_0 : i32, i32, i32
  }
  func.func @transform_2(%arg0: i32, %arg1: i32) -> (i32, i32, i32) {
    %c0_i32 = arith.constant 0 : i32
    %c0_i32_0 = arith.constant 0 : i32
    return %arg0, %arg1, %c0_i32 : i32, i32, i32
  }
}

module attributes {stable_mosaic.version = 11 : i64} {
  func.func @kernel(%arg0: i32, %arg1: memref<4x32x256xbf16, #tpu.memory_space<vmem>>, %arg2: memref<32x256xbf16, #tpu.memory_space<vmem>>, %arg3: memref<256x256xbf16, #tpu.memory_space<vmem>>, %arg4: memref<256x256xbf16, #tpu.memory_space<vmem>>, %arg5: memref<1x256xf32, #tpu.memory_space<vmem>>, %arg6: memref<1x256xf32, #tpu.memory_space<vmem>>, %arg7: memref<32x256xf32, #tpu.memory_space<vmem>>) attributes {dimension_semantics = [#tpu.dimension_semantics<parallel>], iteration_bounds = array<i64: 1>, scalar_prefetch = 0 : i64, scratch_operands = 0 : i64, tpu.core_type = #tpu.core_type<tc>, window_params = [{transform_indices = @transform_0, window_bounds = array<i64: 4, 32, 256>}, {transform_indices = @transform_1, window_bounds = array<i64: 32, 256>}, {pipeline_mode = #tpu.pipeline_mode<synchronous>, transform_indices = @transform_2, window_bounds = array<i64: 256, 256>}, {pipeline_mode = #tpu.pipeline_mode<synchronous>, transform_indices = @transform_3, window_bounds = array<i64: 256, 256>}, {pipeline_mode = #tpu.pipeline_mode<synchronous>, transform_indices = @transform_4, window_bounds = array<i64: 1, 256>}, {pipeline_mode = #tpu.pipeline_mode<synchronous>, transform_indices = @transform_5, window_bounds = array<i64: 1, 256>}, {transform_indices = @transform_6, window_bounds = array<i64: 32, 256>}]} {
    %c0 = arith.constant 0 : index
    %c0_0 = arith.constant 0 : index
    %c0_1 = arith.constant 0 : index
    %0 = vector.load %arg1[%c0, %c0_0, %c0_1] : memref<4x32x256xbf16, #tpu.memory_space<vmem>>, vector<4x32x256xbf16>
    %1 = vector.shape_cast %0 : vector<4x32x256xbf16> to vector<128x256xbf16>
    %c0_2 = arith.constant 0 : index
    %c0_3 = arith.constant 0 : index
    %2 = vector.load %arg3[%c0_2, %c0_3] : memref<256x256xbf16, #tpu.memory_space<vmem>>, vector<256x256xbf16>
    %cst = arith.constant dense<0.000000e+00> : vector<128x256xf32>
    %3 = tpu.matmul %1, %2, %cst {dimension_numbers = #tpu.dot_dimension_numbers<[1], [0], [0], [1], [0, 0, 1, 1], [], []>} : vector<128x256xbf16>, vector<256x256xbf16>, vector<128x256xf32> -> vector<128x256xf32>
    %c0_4 = arith.constant 0 : index
    %c0_5 = arith.constant 0 : index
    %4 = vector.load %arg2[%c0_4, %c0_5] : memref<32x256xbf16, #tpu.memory_space<vmem>>, vector<32x256xbf16>
    %c0_6 = arith.constant 0 : index
    %c0_7 = arith.constant 0 : index
    %5 = vector.load %arg4[%c0_6, %c0_7] : memref<256x256xbf16, #tpu.memory_space<vmem>>, vector<256x256xbf16>
    %cst_8 = arith.constant dense<0.000000e+00> : vector<32x256xf32>
    %6 = tpu.matmul %4, %5, %cst_8 {dimension_numbers = #tpu.dot_dimension_numbers<[1], [0], [0], [1], [0, 0, 1, 1], [], []>} : vector<32x256xbf16>, vector<256x256xbf16>, vector<32x256xf32> -> vector<32x256xf32>
    %7 = vector.shape_cast %3 : vector<128x256xf32> to vector<4x32x256xf32>
    %8 = vector.shape_cast %6 : vector<32x256xf32> to vector<1x32x256xf32>
    %9 = vector.broadcast %8 : vector<1x32x256xf32> to vector<4x32x256xf32>
    %10 = arith.addf %7, %9 : vector<4x32x256xf32>
    %c0_9 = arith.constant 0 : index
    %c0_10 = arith.constant 0 : index
    %11 = vector.load %arg5[%c0_9, %c0_10] : memref<1x256xf32, #tpu.memory_space<vmem>>, vector<1x256xf32>
    %12 = vector.shape_cast %11 : vector<1x256xf32> to vector<1x1x256xf32>
    %13 = vector.broadcast %12 : vector<1x1x256xf32> to vector<4x32x256xf32>
    %14 = arith.mulf %10, %13 : vector<4x32x256xf32>
    %c0_11 = arith.constant 0 : index
    %c0_12 = arith.constant 0 : index
    %15 = vector.load %arg6[%c0_11, %c0_12] : memref<1x256xf32, #tpu.memory_space<vmem>>, vector<1x256xf32>
    %16 = vector.shape_cast %15 : vector<1x256xf32> to vector<1x1x256xf32>
    %17 = vector.broadcast %16 : vector<1x1x256xf32> to vector<4x32x256xf32>
    %18 = arith.addf %14, %17 : vector<4x32x256xf32>
    %cst_13 = arith.constant 0.000000e+00 : f32
    %19 = vector.broadcast %cst_13 : f32 to vector<4x32x256xf32>
    %20 = arith.cmpf oge, %18, %19 : vector<4x32x256xf32>
    %cst_14 = arith.constant 2.000000e-01 : f32
    %21 = vector.broadcast %cst_14 : f32 to vector<4x32x256xf32>
    %22 = arith.mulf %21, %18 : vector<4x32x256xf32>
    %23 = arith.select %20, %18, %22 : vector<4x32x256xi1>, vector<4x32x256xf32>
    %cst_15 = arith.constant dense<0xFF800000> : vector<32x256xf32>
    %24 = vector.multi_reduction <maximumf>, %23, %cst_15 [0] : vector<4x32x256xf32> to vector<32x256xf32>
    %c0_16 = arith.constant 0 : index
    %c0_17 = arith.constant 0 : index
    %25 = vector.load %arg7[%c0_16, %c0_17] : memref<32x256xf32, #tpu.memory_space<vmem>>, vector<32x256xf32>
    tpu.vector_store %arg7[%c0_16, %c0_17], %24 {strides = array<i32>} : memref<32x256xf32, #tpu.memory_space<vmem>>, vector<32x256xf32>,
    return
  }
  func.func @transform_0(%arg0: i32) -> (i32, i32, i32) {
    %c0_i32 = arith.constant 0 : i32
    %c0_i32_0 = arith.constant 0 : i32
    %c0_i32_1 = arith.constant 0 : i32
    return %c0_i32, %arg0, %c0_i32_0 : i32, i32, i32
  }
  func.func @transform_1(%arg0: i32) -> (i32, i32) {
    %c0_i32 = arith.constant 0 : i32
    %c0_i32_0 = arith.constant 0 : i32
    return %arg0, %c0_i32 : i32, i32
  }
  func.func @transform_2(%arg0: i32) -> (i32, i32) {
    %c0_i32 = arith.constant 0 : i32
    %c0_i32_0 = arith.constant 0 : i32
    %c0_i32_1 = arith.constant 0 : i32
    return %c0_i32, %c0_i32_0 : i32, i32
  }
  func.func @transform_3(%arg0: i32) -> (i32, i32) {
    %c0_i32 = arith.constant 0 : i32
    %c0_i32_0 = arith.constant 0 : i32
    %c0_i32_1 = arith.constant 0 : i32
    return %c0_i32, %c0_i32_0 : i32, i32
  }
  func.func @transform_4(%arg0: i32) -> (i32, i32) {
    %c0_i32 = arith.constant 0 : i32
    %c0_i32_0 = arith.constant 0 : i32
    %c0_i32_1 = arith.constant 0 : i32
    return %c0_i32, %c0_i32_0 : i32, i32
  }
  func.func @transform_5(%arg0: i32) -> (i32, i32) {
    %c0_i32 = arith.constant 0 : i32
    %c0_i32_0 = arith.constant 0 : i32
    %c0_i32_1 = arith.constant 0 : i32
    return %c0_i32, %c0_i32_0 : i32, i32
  }
  func.func @transform_6(%arg0: i32) -> (i32, i32) {
    %c0_i32 = arith.constant 0 : i32
    %c0_i32_0 = arith.constant 0 : i32
    return %arg0, %c0_i32 : i32, i32
  }
}

module attributes {stable_mosaic.version = 11 : i64} {
  func.func @_head_kernel(%arg0: i32, %arg1: memref<2x128xf32, #tpu.memory_space<vmem>>, %arg2: memref<128x512xf32, #tpu.memory_space<vmem>>, %arg3: memref<1x512xf32, #tpu.memory_space<vmem>>, %arg4: memref<1x512xf32, #tpu.memory_space<vmem>>, %arg5: memref<512x256xf32, #tpu.memory_space<vmem>>, %arg6: memref<1x256xf32, #tpu.memory_space<vmem>>, %arg7: memref<1x256xf32, #tpu.memory_space<vmem>>, %arg8: memref<256x64xf32, #tpu.memory_space<vmem>>, %arg9: memref<1x64xf32, #tpu.memory_space<vmem>>, %arg10: memref<1x64xf32, #tpu.memory_space<vmem>>, %arg11: memref<64x3xf32, #tpu.memory_space<vmem>>, %arg12: memref<1x3xf32, #tpu.memory_space<vmem>>, %arg13: memref<1x3xf32, #tpu.memory_space<vmem>>, %arg14: memref<2x3xf32, #tpu.memory_space<vmem>>) attributes {dimension_semantics = [#tpu.dimension_semantics<arbitrary>], iteration_bounds = array<i64: 1>, scalar_prefetch = 0 : i64, scratch_operands = 0 : i64, tpu.core_type = #tpu.core_type<tc>, window_params = [{pipeline_mode = #tpu.pipeline_mode<synchronous>, transform_indices = @transform_0, window_bounds = array<i64: 2, 128>}, {pipeline_mode = #tpu.pipeline_mode<synchronous>, transform_indices = @transform_1, window_bounds = array<i64: 128, 512>}, {pipeline_mode = #tpu.pipeline_mode<synchronous>, transform_indices = @transform_2, window_bounds = array<i64: 1, 512>}, {pipeline_mode = #tpu.pipeline_mode<synchronous>, transform_indices = @transform_3, window_bounds = array<i64: 1, 512>}, {pipeline_mode = #tpu.pipeline_mode<synchronous>, transform_indices = @transform_4, window_bounds = array<i64: 512, 256>}, {pipeline_mode = #tpu.pipeline_mode<synchronous>, transform_indices = @transform_5, window_bounds = array<i64: 1, 256>}, {pipeline_mode = #tpu.pipeline_mode<synchronous>, transform_indices = @transform_6, window_bounds = array<i64: 1, 256>}, {pipeline_mode = #tpu.pipeline_mode<synchronous>, transform_indices = @transform_7, window_bounds = array<i64: 256, 64>}, {pipeline_mode = #tpu.pipeline_mode<synchronous>, transform_indices = @transform_8, window_bounds = array<i64: 1, 64>}, {pipeline_mode = #tpu.pipeline_mode<synchronous>, transform_indices = @transform_9, window_bounds = array<i64: 1, 64>}, {pipeline_mode = #tpu.pipeline_mode<synchronous>, transform_indices = @transform_10, window_bounds = array<i64: 64, 3>}, {pipeline_mode = #tpu.pipeline_mode<synchronous>, transform_indices = @transform_11, window_bounds = array<i64: 1, 3>}, {pipeline_mode = #tpu.pipeline_mode<synchronous>, transform_indices = @transform_12, window_bounds = array<i64: 1, 3>}, {pipeline_mode = #tpu.pipeline_mode<synchronous>, transform_indices = @transform_13, window_bounds = array<i64: 2, 3>}]} {
    %c0 = arith.constant 0 : index
    %c0_0 = arith.constant 0 : index
    %0 = vector.load %arg1[%c0, %c0_0] : memref<2x128xf32, #tpu.memory_space<vmem>>, vector<2x128xf32>
    %c0_1 = arith.constant 0 : index
    %c0_2 = arith.constant 0 : index
    %1 = vector.load %arg2[%c0_1, %c0_2] : memref<128x512xf32, #tpu.memory_space<vmem>>, vector<128x512xf32>
    %cst = arith.constant dense<0.000000e+00> : vector<2x512xf32>
    %2 = tpu.matmul %0, %1, %cst {dimension_numbers = #tpu.dot_dimension_numbers<[1], [0], [0], [1], [0, 0, 1, 1], [], []>} : vector<2x128xf32>, vector<128x512xf32>, vector<2x512xf32> -> vector<2x512xf32>
    %c0_3 = arith.constant 0 : index
    %c0_4 = arith.constant 0 : index
    %3 = vector.load %arg3[%c0_3, %c0_4] : memref<1x512xf32, #tpu.memory_space<vmem>>, vector<1x512xf32>
    %4 = vector.broadcast %3 : vector<1x512xf32> to vector<2x512xf32>
    %5 = arith.mulf %2, %4 : vector<2x512xf32>
    %c0_5 = arith.constant 0 : index
    %c0_6 = arith.constant 0 : index
    %6 = vector.load %arg4[%c0_5, %c0_6] : memref<1x512xf32, #tpu.memory_space<vmem>>, vector<1x512xf32>
    %7 = vector.broadcast %6 : vector<1x512xf32> to vector<2x512xf32>
    %8 = arith.addf %5, %7 : vector<2x512xf32>
    %cst_7 = arith.constant 0.000000e+00 : f32
    %9 = vector.broadcast %cst_7 : f32 to vector<2x512xf32>
    %10 = arith.cmpf oge, %8, %9 : vector<2x512xf32>
    %cst_8 = arith.constant 2.000000e-01 : f32
    %11 = vector.broadcast %cst_8 : f32 to vector<2x512xf32>
    %12 = arith.mulf %11, %8 : vector<2x512xf32>
    %13 = arith.select %10, %8, %12 : vector<2x512xi1>, vector<2x512xf32>
    %c0_9 = arith.constant 0 : index
    %c0_10 = arith.constant 0 : index
    %14 = vector.load %arg5[%c0_9, %c0_10] : memref<512x256xf32, #tpu.memory_space<vmem>>, vector<512x256xf32>
    %cst_11 = arith.constant dense<0.000000e+00> : vector<2x256xf32>
    %15 = tpu.matmul %13, %14, %cst_11 {dimension_numbers = #tpu.dot_dimension_numbers<[1], [0], [0], [1], [0, 0, 1, 1], [], []>} : vector<2x512xf32>, vector<512x256xf32>, vector<2x256xf32> -> vector<2x256xf32>
    %c0_12 = arith.constant 0 : index
    %c0_13 = arith.constant 0 : index
    %16 = vector.load %arg6[%c0_12, %c0_13] : memref<1x256xf32, #tpu.memory_space<vmem>>, vector<1x256xf32>
    %17 = vector.broadcast %16 : vector<1x256xf32> to vector<2x256xf32>
    %18 = arith.mulf %15, %17 : vector<2x256xf32>
    %c0_14 = arith.constant 0 : index
    %c0_15 = arith.constant 0 : index
    %19 = vector.load %arg7[%c0_14, %c0_15] : memref<1x256xf32, #tpu.memory_space<vmem>>, vector<1x256xf32>
    %20 = vector.broadcast %19 : vector<1x256xf32> to vector<2x256xf32>
    %21 = arith.addf %18, %20 : vector<2x256xf32>
    %cst_16 = arith.constant 0.000000e+00 : f32
    %22 = vector.broadcast %cst_16 : f32 to vector<2x256xf32>
    %23 = arith.cmpf oge, %21, %22 : vector<2x256xf32>
    %cst_17 = arith.constant 2.000000e-01 : f32
    %24 = vector.broadcast %cst_17 : f32 to vector<2x256xf32>
    %25 = arith.mulf %24, %21 : vector<2x256xf32>
    %26 = arith.select %23, %21, %25 : vector<2x256xi1>, vector<2x256xf32>
    %c0_18 = arith.constant 0 : index
    %c0_19 = arith.constant 0 : index
    %27 = vector.load %arg8[%c0_18, %c0_19] : memref<256x64xf32, #tpu.memory_space<vmem>>, vector<256x64xf32>
    %cst_20 = arith.constant dense<0.000000e+00> : vector<2x64xf32>
    %28 = tpu.matmul %26, %27, %cst_20 {dimension_numbers = #tpu.dot_dimension_numbers<[1], [0], [0], [1], [0, 0, 1, 1], [], []>} : vector<2x256xf32>, vector<256x64xf32>, vector<2x64xf32> -> vector<2x64xf32>
    %c0_21 = arith.constant 0 : index
    %c0_22 = arith.constant 0 : index
    %29 = vector.load %arg9[%c0_21, %c0_22] : memref<1x64xf32, #tpu.memory_space<vmem>>, vector<1x64xf32>
    %30 = vector.broadcast %29 : vector<1x64xf32> to vector<2x64xf32>
    %31 = arith.mulf %28, %30 : vector<2x64xf32>
    %c0_23 = arith.constant 0 : index
    %c0_24 = arith.constant 0 : index
    %32 = vector.load %arg10[%c0_23, %c0_24] : memref<1x64xf32, #tpu.memory_space<vmem>>, vector<1x64xf32>
    %33 = vector.broadcast %32 : vector<1x64xf32> to vector<2x64xf32>
    %34 = arith.addf %31, %33 : vector<2x64xf32>
    %cst_25 = arith.constant 0.000000e+00 : f32
    %35 = vector.broadcast %cst_25 : f32 to vector<2x64xf32>
    %36 = arith.cmpf oge, %34, %35 : vector<2x64xf32>
    %cst_26 = arith.constant 2.000000e-01 : f32
    %37 = vector.broadcast %cst_26 : f32 to vector<2x64xf32>
    %38 = arith.mulf %37, %34 : vector<2x64xf32>
    %39 = arith.select %36, %34, %38 : vector<2x64xi1>, vector<2x64xf32>
    %c0_27 = arith.constant 0 : index
    %c0_28 = arith.constant 0 : index
    %40 = vector.load %arg11[%c0_27, %c0_28] : memref<64x3xf32, #tpu.memory_space<vmem>>, vector<64x3xf32>
    %cst_29 = arith.constant dense<0.000000e+00> : vector<2x3xf32>
    %41 = tpu.matmul %39, %40, %cst_29 {dimension_numbers = #tpu.dot_dimension_numbers<[1], [0], [0], [1], [0, 0, 1, 1], [], []>} : vector<2x64xf32>, vector<64x3xf32>, vector<2x3xf32> -> vector<2x3xf32>
    %c0_30 = arith.constant 0 : index
    %c0_31 = arith.constant 0 : index
    %42 = vector.load %arg12[%c0_30, %c0_31] : memref<1x3xf32, #tpu.memory_space<vmem>>, vector<1x3xf32>
    %43 = vector.broadcast %42 : vector<1x3xf32> to vector<2x3xf32>
    %44 = arith.mulf %41, %43 : vector<2x3xf32>
    %c0_32 = arith.constant 0 : index
    %c0_33 = arith.constant 0 : index
    %45 = vector.load %arg13[%c0_32, %c0_33] : memref<1x3xf32, #tpu.memory_space<vmem>>, vector<1x3xf32>
    %46 = vector.broadcast %45 : vector<1x3xf32> to vector<2x3xf32>
    %47 = arith.addf %44, %46 : vector<2x3xf32>
    %c0_34 = arith.constant 0 : index
    %c0_35 = arith.constant 0 : index
    %48 = vector.load %arg14[%c0_34, %c0_35] : memref<2x3xf32, #tpu.memory_space<vmem>>, vector<2x3xf32>
    tpu.vector_store %arg14[%c0_34, %c0_35], %47 {strides = array<i32>} : memref<2x3xf32, #tpu.memory_space<vmem>>, vector<2x3xf32>,
    return
  }
  func.func @transform_0(%arg0: i32) -> (i32, i32) {
    %c0_i32 = arith.constant 0 : i32
    %c0_i32_0 = arith.constant 0 : i32
    %c0_i32_1 = arith.constant 0 : i32
    return %c0_i32, %c0_i32_0 : i32, i32
  }
  func.func @transform_1(%arg0: i32) -> (i32, i32) {
    %c0_i32 = arith.constant 0 : i32
    %c0_i32_0 = arith.constant 0 : i32
    %c0_i32_1 = arith.constant 0 : i32
    return %c0_i32, %c0_i32_0 : i32, i32
  }
  func.func @transform_2(%arg0: i32) -> (i32, i32) {
    %c0_i32 = arith.constant 0 : i32
    %c0_i32_0 = arith.constant 0 : i32
    %c0_i32_1 = arith.constant 0 : i32
    return %c0_i32, %c0_i32_0 : i32, i32
  }
  func.func @transform_3(%arg0: i32) -> (i32, i32) {
    %c0_i32 = arith.constant 0 : i32
    %c0_i32_0 = arith.constant 0 : i32
    %c0_i32_1 = arith.constant 0 : i32
    return %c0_i32, %c0_i32_0 : i32, i32
  }
  func.func @transform_4(%arg0: i32) -> (i32, i32) {
    %c0_i32 = arith.constant 0 : i32
    %c0_i32_0 = arith.constant 0 : i32
    %c0_i32_1 = arith.constant 0 : i32
    return %c0_i32, %c0_i32_0 : i32, i32
  }
  func.func @transform_5(%arg0: i32) -> (i32, i32) {
    %c0_i32 = arith.constant 0 : i32
    %c0_i32_0 = arith.constant 0 : i32
    %c0_i32_1 = arith.constant 0 : i32
    return %c0_i32, %c0_i32_0 : i32, i32
  }
  func.func @transform_6(%arg0: i32) -> (i32, i32) {
    %c0_i32 = arith.constant 0 : i32
    %c0_i32_0 = arith.constant 0 : i32
    %c0_i32_1 = arith.constant 0 : i32
    return %c0_i32, %c0_i32_0 : i32, i32
  }
  func.func @transform_7(%arg0: i32) -> (i32, i32) {
    %c0_i32 = arith.constant 0 : i32
    %c0_i32_0 = arith.constant 0 : i32
    %c0_i32_1 = arith.constant 0 : i32
    return %c0_i32, %c0_i32_0 : i32, i32
  }
  func.func @transform_8(%arg0: i32) -> (i32, i32) {
    %c0_i32 = arith.constant 0 : i32
    %c0_i32_0 = arith.constant 0 : i32
    %c0_i32_1 = arith.constant 0 : i32
    return %c0_i32, %c0_i32_0 : i32, i32
  }
  func.func @transform_9(%arg0: i32) -> (i32, i32) {
    %c0_i32 = arith.constant 0 : i32
    %c0_i32_0 = arith.constant 0 : i32
    %c0_i32_1 = arith.constant 0 : i32
    return %c0_i32, %c0_i32_0 : i32, i32
  }
  func.func @transform_10(%arg0: i32) -> (i32, i32) {
    %c0_i32 = arith.constant 0 : i32
    %c0_i32_0 = arith.constant 0 : i32
    %c0_i32_1 = arith.constant 0 : i32
    return %c0_i32, %c0_i32_0 : i32, i32
  }
  func.func @transform_11(%arg0: i32) -> (i32, i32) {
    %c0_i32 = arith.constant 0 : i32
    %c0_i32_0 = arith.constant 0 : i32
    %c0_i32_1 = arith.constant 0 : i32
    return %c0_i32, %c0_i32_0 : i32, i32
  }
  func.func @transform_12(%arg0: i32) -> (i32, i32) {
    %c0_i32 = arith.constant 0 : i32
    %c0_i32_0 = arith.constant 0 : i32
    %c0_i32_1 = arith.constant 0 : i32
    return %c0_i32, %c0_i32_0 : i32, i32
  }
  func.func @transform_13(%arg0: i32) -> (i32, i32) {
    %c0_i32 = arith.constant 0 : i32
    %c0_i32_0 = arith.constant 0 : i32
    %c0_i32_1 = arith.constant 0 : i32
    return %c0_i32, %c0_i32_0 : i32, i32
  }
}

module attributes {stable_mosaic.version = 11 : i64} {
  func.func @kernel(%arg0: i32, %arg1: i32, %arg2: memref<1x16x64xbf16, #tpu.memory_space<vmem>>, %arg3: memref<1x16x64xbf16, #tpu.memory_space<vmem>>, %arg4: memref<1x16x128xbf16, #tpu.memory_space<vmem>>, %arg5: memref<1x16x256xbf16, #tpu.memory_space<vmem>>, %arg6: memref<1x16x256xbf16, #tpu.memory_space<vmem>>, %arg7: memref<1x16x256xbf16, #tpu.memory_space<vmem>>, %arg8: memref<64x64xbf16, #tpu.memory_space<vmem>>, %arg9: memref<64x64xbf16, #tpu.memory_space<vmem>>, %arg10: memref<128x64xbf16, #tpu.memory_space<vmem>>, %arg11: memref<256x64xbf16, #tpu.memory_space<vmem>>, %arg12: memref<256x64xbf16, #tpu.memory_space<vmem>>, %arg13: memref<256x64xbf16, #tpu.memory_space<vmem>>, %arg14: memref<1x64xf32, #tpu.memory_space<vmem>>, %arg15: memref<1x64xf32, #tpu.memory_space<vmem>>, %arg16: memref<1x1x128xf32, #tpu.memory_space<vmem>>, %arg17: memref<1x64xf32, #tpu.memory_space<vmem>>, %arg18: memref<1x64xf32, #tpu.memory_space<vmem>>) attributes {dimension_semantics = [#tpu.dimension_semantics<parallel>, #tpu.dimension_semantics<arbitrary>], iteration_bounds = array<i64: 2, 1>, scalar_prefetch = 0 : i64, scratch_operands = 2 : i64, tpu.core_type = #tpu.core_type<tc>, window_params = [{transform_indices = @transform_0, window_bounds = array<i64: 1, 16, 64>}, {transform_indices = @transform_1, window_bounds = array<i64: 1, 16, 64>}, {transform_indices = @transform_2, window_bounds = array<i64: 1, 16, 128>}, {transform_indices = @transform_3, window_bounds = array<i64: 1, 16, 256>}, {transform_indices = @transform_4, window_bounds = array<i64: 1, 16, 256>}, {transform_indices = @transform_5, window_bounds = array<i64: 1, 16, 256>}, {pipeline_mode = #tpu.pipeline_mode<synchronous>, transform_indices = @transform_6, window_bounds = array<i64: 64, 64>}, {pipeline_mode = #tpu.pipeline_mode<synchronous>, transform_indices = @transform_7, window_bounds = array<i64: 64, 64>}, {pipeline_mode = #tpu.pipeline_mode<synchronous>, transform_indices = @transform_8, window_bounds = array<i64: 128, 64>}, {pipeline_mode = #tpu.pipeline_mode<synchronous>, transform_indices = @transform_9, window_bounds = array<i64: 256, 64>}, {pipeline_mode = #tpu.pipeline_mode<synchronous>, transform_indices = @transform_10, window_bounds = array<i64: 256, 64>}, {pipeline_mode = #tpu.pipeline_mode<synchronous>, transform_indices = @transform_11, window_bounds = array<i64: 256, 64>}, {pipeline_mode = #tpu.pipeline_mode<synchronous>, transform_indices = @transform_12, window_bounds = array<i64: 1, 64>}, {pipeline_mode = #tpu.pipeline_mode<synchronous>, transform_indices = @transform_13, window_bounds = array<i64: 1, 64>}, {transform_indices = @transform_14, window_bounds = array<i64: 1, 1, 128>}]} {
    %c0_i32 = arith.constant 0 : i32
    %0 = arith.cmpi eq, %arg1, %c0_i32 : i32
    %1 = arith.extui %0 : i1 to i32
    %c0_i32_0 = arith.constant 0 : i32
    %2 = arith.cmpi ne, %1, %c0_i32_0 : i32
    scf.if %2 {
      %cst_53 = arith.constant 0xFF800000 : f32
      %56 = vector.broadcast %cst_53 : f32 to vector<1x64xf32>
      %c0_54 = arith.constant 0 : index
      %c0_55 = arith.constant 0 : index
      %57 = vector.load %arg17[%c0_54, %c0_55] : memref<1x64xf32, #tpu.memory_space<vmem>>, vector<1x64xf32>
      tpu.vector_store %arg17[%c0_54, %c0_55], %56 {strides = array<i32>} : memref<1x64xf32, #tpu.memory_space<vmem>>, vector<1x64xf32>,
      %cst_56 = arith.constant 0.000000e+00 : f32
      %58 = vector.broadcast %cst_56 : f32 to vector<1x64xf32>
      %c0_57 = arith.constant 0 : index
      %c0_58 = arith.constant 0 : index
      %59 = vector.load %arg18[%c0_57, %c0_58] : memref<1x64xf32, #tpu.memory_space<vmem>>, vector<1x64xf32>
      tpu.vector_store %arg18[%c0_57, %c0_58], %58 {strides = array<i32>} : memref<1x64xf32, #tpu.memory_space<vmem>>, vector<1x64xf32>,
    } else {
    }
    %c0 = arith.constant 0 : index
    %c0_1 = arith.constant 0 : index
    %c0_2 = arith.constant 0 : index
    %3 = vector.load %arg2[%c0, %c0_1, %c0_2] : memref<1x16x64xbf16, #tpu.memory_space<vmem>>, vector<1x16x64xbf16>
    %4 = vector.shape_cast %3 : vector<1x16x64xbf16> to vector<16x64xbf16>
    %c0_3 = arith.constant 0 : index
    %c0_4 = arith.constant 0 : index
    %5 = vector.load %arg8[%c0_3, %c0_4] : memref<64x64xbf16, #tpu.memory_space<vmem>>, vector<64x64xbf16>
    %cst = arith.constant dense<0.000000e+00> : vector<16x64xf32>
    %6 = tpu.matmul %4, %5, %cst {dimension_numbers = #tpu.dot_dimension_numbers<[1], [0], [0], [1], [0, 0, 1, 1], [], []>} : vector<16x64xbf16>, vector<64x64xbf16>, vector<16x64xf32> -> vector<16x64xf32>
    %c0_5 = arith.constant 0 : index
    %c0_6 = arith.constant 0 : index
    %c0_7 = arith.constant 0 : index
    %7 = vector.load %arg3[%c0_5, %c0_6, %c0_7] : memref<1x16x64xbf16, #tpu.memory_space<vmem>>, vector<1x16x64xbf16>
    %8 = vector.shape_cast %7 : vector<1x16x64xbf16> to vector<16x64xbf16>
    %c0_8 = arith.constant 0 : index
    %c0_9 = arith.constant 0 : index
    %9 = vector.load %arg9[%c0_8, %c0_9] : memref<64x64xbf16, #tpu.memory_space<vmem>>, vector<64x64xbf16>
    %cst_10 = arith.constant dense<0.000000e+00> : vector<16x64xf32>
    %10 = tpu.matmul %8, %9, %cst_10 {dimension_numbers = #tpu.dot_dimension_numbers<[1], [0], [0], [1], [0, 0, 1, 1], [], []>} : vector<16x64xbf16>, vector<64x64xbf16>, vector<16x64xf32> -> vector<16x64xf32>
    %11 = arith.addf %6, %10 : vector<16x64xf32>
    %c0_11 = arith.constant 0 : index
    %c0_12 = arith.constant 0 : index
    %c0_13 = arith.constant 0 : index
    %12 = vector.load %arg4[%c0_11, %c0_12, %c0_13] : memref<1x16x128xbf16, #tpu.memory_space<vmem>>, vector<1x16x128xbf16>
    %13 = vector.shape_cast %12 : vector<1x16x128xbf16> to vector<16x128xbf16>
    %c0_14 = arith.constant 0 : index
    %c0_15 = arith.constant 0 : index
    %14 = vector.load %arg10[%c0_14, %c0_15] : memref<128x64xbf16, #tpu.memory_space<vmem>>, vector<128x64xbf16>
    %cst_16 = arith.constant dense<0.000000e+00> : vector<16x64xf32>
    %15 = tpu.matmul %13, %14, %cst_16 {dimension_numbers = #tpu.dot_dimension_numbers<[1], [0], [0], [1], [0, 0, 1, 1], [], []>} : vector<16x128xbf16>, vector<128x64xbf16>, vector<16x64xf32> -> vector<16x64xf32>
    %16 = arith.addf %11, %15 : vector<16x64xf32>
    %c0_17 = arith.constant 0 : index
    %c0_18 = arith.constant 0 : index
    %c0_19 = arith.constant 0 : index
    %17 = vector.load %arg5[%c0_17, %c0_18, %c0_19] : memref<1x16x256xbf16, #tpu.memory_space<vmem>>, vector<1x16x256xbf16>
    %18 = vector.shape_cast %17 : vector<1x16x256xbf16> to vector<16x256xbf16>
    %c0_20 = arith.constant 0 : index
    %c0_21 = arith.constant 0 : index
    %19 = vector.load %arg11[%c0_20, %c0_21] : memref<256x64xbf16, #tpu.memory_space<vmem>>, vector<256x64xbf16>
    %cst_22 = arith.constant dense<0.000000e+00> : vector<16x64xf32>
    %20 = tpu.matmul %18, %19, %cst_22 {dimension_numbers = #tpu.dot_dimension_numbers<[1], [0], [0], [1], [0, 0, 1, 1], [], []>} : vector<16x256xbf16>, vector<256x64xbf16>, vector<16x64xf32> -> vector<16x64xf32>
    %21 = arith.addf %16, %20 : vector<16x64xf32>
    %c0_23 = arith.constant 0 : index
    %c0_24 = arith.constant 0 : index
    %c0_25 = arith.constant 0 : index
    %22 = vector.load %arg6[%c0_23, %c0_24, %c0_25] : memref<1x16x256xbf16, #tpu.memory_space<vmem>>, vector<1x16x256xbf16>
    %23 = vector.shape_cast %22 : vector<1x16x256xbf16> to vector<16x256xbf16>
    %c0_26 = arith.constant 0 : index
    %c0_27 = arith.constant 0 : index
    %24 = vector.load %arg12[%c0_26, %c0_27] : memref<256x64xbf16, #tpu.memory_space<vmem>>, vector<256x64xbf16>
    %cst_28 = arith.constant dense<0.000000e+00> : vector<16x64xf32>
    %25 = tpu.matmul %23, %24, %cst_28 {dimension_numbers = #tpu.dot_dimension_numbers<[1], [0], [0], [1], [0, 0, 1, 1], [], []>} : vector<16x256xbf16>, vector<256x64xbf16>, vector<16x64xf32> -> vector<16x64xf32>
    %26 = arith.addf %21, %25 : vector<16x64xf32>
    %c0_29 = arith.constant 0 : index
    %c0_30 = arith.constant 0 : index
    %c0_31 = arith.constant 0 : index
    %27 = vector.load %arg7[%c0_29, %c0_30, %c0_31] : memref<1x16x256xbf16, #tpu.memory_space<vmem>>, vector<1x16x256xbf16>
    %28 = vector.shape_cast %27 : vector<1x16x256xbf16> to vector<16x256xbf16>
    %c0_32 = arith.constant 0 : index
    %c0_33 = arith.constant 0 : index
    %29 = vector.load %arg13[%c0_32, %c0_33] : memref<256x64xbf16, #tpu.memory_space<vmem>>, vector<256x64xbf16>
    %cst_34 = arith.constant dense<0.000000e+00> : vector<16x64xf32>
    %30 = tpu.matmul %28, %29, %cst_34 {dimension_numbers = #tpu.dot_dimension_numbers<[1], [0], [0], [1], [0, 0, 1, 1], [], []>} : vector<16x256xbf16>, vector<256x64xbf16>, vector<16x64xf32> -> vector<16x64xf32>
    %31 = arith.addf %26, %30 : vector<16x64xf32>
    %c0_35 = arith.constant 0 : index
    %c0_36 = arith.constant 0 : index
    %32 = vector.load %arg14[%c0_35, %c0_36] : memref<1x64xf32, #tpu.memory_space<vmem>>, vector<1x64xf32>
    %33 = vector.broadcast %32 : vector<1x64xf32> to vector<16x64xf32>
    %34 = arith.mulf %31, %33 : vector<16x64xf32>
    %c0_37 = arith.constant 0 : index
    %c0_38 = arith.constant 0 : index
    %35 = vector.load %arg15[%c0_37, %c0_38] : memref<1x64xf32, #tpu.memory_space<vmem>>, vector<1x64xf32>
    %36 = vector.broadcast %35 : vector<1x64xf32> to vector<16x64xf32>
    %37 = arith.addf %34, %36 : vector<16x64xf32>
    %cst_39 = arith.constant 0.000000e+00 : f32
    %38 = vector.broadcast %cst_39 : f32 to vector<16x64xf32>
    %39 = arith.cmpf oge, %37, %38 : vector<16x64xf32>
    %cst_40 = arith.constant 2.000000e-01 : f32
    %40 = vector.broadcast %cst_40 : f32 to vector<16x64xf32>
    %41 = arith.mulf %40, %37 : vector<16x64xf32>
    %42 = arith.select %39, %37, %41 : vector<16x64xi1>, vector<16x64xf32>
    %c0_41 = arith.constant 0 : index
    %c0_42 = arith.constant 0 : index
    %43 = vector.load %arg17[%c0_41, %c0_42] : memref<1x64xf32, #tpu.memory_space<vmem>>, vector<1x64xf32>
    %cst_43 = arith.constant dense<0xFF800000> : vector<64xf32>
    %44 = vector.multi_reduction <maximumf>, %42, %cst_43 [0] : vector<16x64xf32> to vector<64xf32>
    %45 = vector.shape_cast %44 : vector<64xf32> to vector<1x64xf32>
    %46 = arith.maximumf %43, %45 : vector<1x64xf32>
    %c0_44 = arith.constant 0 : index
    %c0_45 = arith.constant 0 : index
    %47 = vector.load %arg17[%c0_44, %c0_45] : memref<1x64xf32, #tpu.memory_space<vmem>>, vector<1x64xf32>
    tpu.vector_store %arg17[%c0_44, %c0_45], %46 {strides = array<i32>} : memref<1x64xf32, #tpu.memory_space<vmem>>, vector<1x64xf32>,
    %c0_46 = arith.constant 0 : index
    %c0_47 = arith.constant 0 : index
    %48 = vector.load %arg18[%c0_46, %c0_47] : memref<1x64xf32, #tpu.memory_space<vmem>>, vector<1x64xf32>
    %cst_48 = arith.constant dense<0.000000e+00> : vector<64xf32>
    %49 = vector.multi_reduction <add>, %42, %cst_48 [0] : vector<16x64xf32> to vector<64xf32>
    %50 = vector.shape_cast %49 : vector<64xf32> to vector<1x64xf32>
    %51 = arith.addf %48, %50 : vector<1x64xf32>
    %c0_49 = arith.constant 0 : index
    %c0_50 = arith.constant 0 : index
    %52 = vector.load %arg18[%c0_49, %c0_50] : memref<1x64xf32, #tpu.memory_space<vmem>>, vector<1x64xf32>
    tpu.vector_store %arg18[%c0_49, %c0_50], %51 {strides = array<i32>} : memref<1x64xf32, #tpu.memory_space<vmem>>, vector<1x64xf32>,
    %c0_i32_51 = arith.constant 0 : i32
    %53 = arith.cmpi eq, %arg1, %c0_i32_51 : i32
    %54 = arith.extui %53 : i1 to i32
    %c0_i32_52 = arith.constant 0 : i32
    %55 = arith.cmpi ne, %54, %c0_i32_52 : i32
    scf.if %55 {
      %c0_53 = arith.constant 0 : index
      %c0_54 = arith.constant 0 : index
      %56 = vector.load %arg17[%c0_53, %c0_54] : memref<1x64xf32, #tpu.memory_space<vmem>>, vector<1x64xf32>
      %c0_55 = arith.constant 0 : index
      %c0_56 = arith.constant 0 : index
      %57 = vector.load %arg18[%c0_55, %c0_56] : memref<1x64xf32, #tpu.memory_space<vmem>>, vector<1x64xf32>
      %cst_57 = arith.constant 6.250000e-02 : f32
      %58 = vector.broadcast %cst_57 : f32 to vector<1x64xf32>
      %59 = arith.mulf %57, %58 : vector<1x64xf32>
      %60 = tpu.concatenate %56, %59 in 1 : vector<1x64xf32>, vector<1x64xf32> -> vector<1x128xf32>
      %c0_58 = arith.constant 0 : index
      %c0_59 = arith.constant 0 : index
      %c0_60 = arith.constant 0 : index
      %61 = vector.load %arg16[%c0_58, %c0_59, %c0_60] : memref<1x1x128xf32, #tpu.memory_space<vmem>>, vector<1x1x128xf32>
      %62 = vector.shape_cast %61 : vector<1x1x128xf32> to vector<1x128xf32>
      %63 = vector.shape_cast %60 : vector<1x128xf32> to vector<1x1x128xf32>
      tpu.vector_store %arg16[%c0_58, %c0_59, %c0_60], %63 {strides = array<i32>} : memref<1x1x128xf32, #tpu.memory_space<vmem>>, vector<1x1x128xf32>,
    } else {
    }
    return
  }
  func.func @transform_0(%arg0: i32, %arg1: i32) -> (i32, i32, i32) {
    %c0_i32 = arith.constant 0 : i32
    %c0_i32_0 = arith.constant 0 : i32
    return %arg0, %arg1, %c0_i32 : i32, i32, i32
  }
  func.func @transform_1(%arg0: i32, %arg1: i32) -> (i32, i32, i32) {
    %c0_i32 = arith.constant 0 : i32
    %c0_i32_0 = arith.constant 0 : i32
    return %arg0, %arg1, %c0_i32 : i32, i32, i32
  }
  func.func @transform_2(%arg0: i32, %arg1: i32) -> (i32, i32, i32) {
    %c0_i32 = arith.constant 0 : i32
    %c0_i32_0 = arith.constant 0 : i32
    return %arg0, %arg1, %c0_i32 : i32, i32, i32
  }
  func.func @transform_3(%arg0: i32, %arg1: i32) -> (i32, i32, i32) {
    %c0_i32 = arith.constant 0 : i32
    %c0_i32_0 = arith.constant 0 : i32
    return %arg0, %arg1, %c0_i32 : i32, i32, i32
  }
  func.func @transform_4(%arg0: i32, %arg1: i32) -> (i32, i32, i32) {
    %c0_i32 = arith.constant 0 : i32
    %c0_i32_0 = arith.constant 0 : i32
    return %arg0, %arg1, %c0_i32 : i32, i32, i32
  }
  func.func @transform_5(%arg0: i32, %arg1: i32) -> (i32, i32, i32) {
    %c0_i32 = arith.constant 0 : i32
    %c0_i32_0 = arith.constant 0 : i32
    return %arg0, %arg1, %c0_i32 : i32, i32, i32
  }
  func.func @transform_6(%arg0: i32, %arg1: i32) -> (i32, i32) {
    %c0_i32 = arith.constant 0 : i32
    %c0_i32_0 = arith.constant 0 : i32
    %c0_i32_1 = arith.constant 0 : i32
    return %c0_i32, %c0_i32_0 : i32, i32
  }
  func.func @transform_7(%arg0: i32, %arg1: i32) -> (i32, i32) {
    %c0_i32 = arith.constant 0 : i32
    %c0_i32_0 = arith.constant 0 : i32
    %c0_i32_1 = arith.constant 0 : i32
    return %c0_i32, %c0_i32_0 : i32, i32
  }
  func.func @transform_8(%arg0: i32, %arg1: i32) -> (i32, i32) {
    %c0_i32 = arith.constant 0 : i32
    %c0_i32_0 = arith.constant 0 : i32
    %c0_i32_1 = arith.constant 0 : i32
    return %c0_i32, %c0_i32_0 : i32, i32
  }
  func.func @transform_9(%arg0: i32, %arg1: i32) -> (i32, i32) {
    %c0_i32 = arith.constant 0 : i32
    %c0_i32_0 = arith.constant 0 : i32
    %c0_i32_1 = arith.constant 0 : i32
    return %c0_i32, %c0_i32_0 : i32, i32
  }
  func.func @transform_10(%arg0: i32, %arg1: i32) -> (i32, i32) {
    %c0_i32 = arith.constant 0 : i32
    %c0_i32_0 = arith.constant 0 : i32
    %c0_i32_1 = arith.constant 0 : i32
    return %c0_i32, %c0_i32_0 : i32, i32
  }
  func.func @transform_11(%arg0: i32, %arg1: i32) -> (i32, i32) {
    %c0_i32 = arith.constant 0 : i32
    %c0_i32_0 = arith.constant 0 : i32
    %c0_i32_1 = arith.constant 0 : i32
    return %c0_i32, %c0_i32_0 : i32, i32
  }
  func.func @transform_12(%arg0: i32, %arg1: i32) -> (i32, i32) {
    %c0_i32 = arith.constant 0 : i32
    %c0_i32_0 = arith.constant 0 : i32
    %c0_i32_1 = arith.constant 0 : i32
    return %c0_i32, %c0_i32_0 : i32, i32
  }
  func.func @transform_13(%arg0: i32, %arg1: i32) -> (i32, i32) {
    %c0_i32 = arith.constant 0 : i32
    %c0_i32_0 = arith.constant 0 : i32
    %c0_i32_1 = arith.constant 0 : i32
    return %c0_i32, %c0_i32_0 : i32, i32
  }
  func.func @transform_14(%arg0: i32, %arg1: i32) -> (i32, i32, i32) {
    %c0_i32 = arith.constant 0 : i32
    %c0_i32_0 = arith.constant 0 : i32
    %c0_i32_1 = arith.constant 0 : i32
    return %arg0, %c0_i32, %c0_i32_0 : i32, i32, i32
  }
}

</mosaic_0001>

<llo_original>
// kernel: dgcnn_forward.11
$region0: #{dgcnn_forward.11}
  #allocation0 [shape = 'u32[]', space=smem, size = 0x4, offset = 0x4, fixed_abs, tag = 'smem constant byte address 0x4 - core index']
  #allocation1 [shape = 'u32[144,128]{1,0:T(1,128)}', space=vmem, size = 0x12000, scoped, tag = 'internal scratch']
  %s0 = inlined_call_operand.vmem [shape: bf16[3,32,17], index: 0, kind: input, shape index: {}]
  %s1 = inlined_call_operand.vmem [shape: bf16[32,17], index: 1, kind: input, shape index: {}]
  %s2 = inlined_call_operand.vmem [shape: bf16[17,64], index: 2, kind: input, shape index: {}]
  %s3 = inlined_call_operand.vmem [shape: bf16[17,64], index: 3, kind: input, shape index: {}]
  %s4 = inlined_call_operand.vmem [shape: f32[1,64], index: 4, kind: input, shape index: {}]
  %s5 = inlined_call_operand.vmem [shape: f32[1,64], index: 5, kind: input, shape index: {}]
  %s6 = inlined_call_operand.vmem [shape: f32[32,64], index: 6, kind: output, shape index: {}]
  %s7 = sld [smem:[#allocation0]]
  $region34: #{dgcnn_forward.11} parent=0
    _
  %s9 = ssub.s32 1, %s7
  %s10 = scalar_select 0, %s9, %s7
  // Predicated region
  $region2: #{dgcnn_forward.11} parent=0 // pred_check
    _
  $region3: #{dgcnn_forward.11} parent=0 // pred_check_branch
    %12 = sbr.rel (0) target = $region5
  $region4: #{dgcnn_forward.11} parent=0 // pred_region
    _
  $region5: #{dgcnn_forward.11} parent=0 // pred_fallthru
    _
  // Predicated region
  $region6: #{dgcnn_forward.11} parent=0 // pred_check
    _
  $region7: #{dgcnn_forward.11} parent=0 // pred_check_branch
    %14 = sbr.rel (0) target = $region9
  $region8: #{dgcnn_forward.11} parent=0 // pred_region
    _
  $region9: #{dgcnn_forward.11} parent=0 // pred_fallthru
    _
  // Predicated region
  $region10: #{dgcnn_forward.11} parent=0 // pred_check
    _
  $region11: #{dgcnn_forward.11} parent=0 // pred_check_branch
    %16 = sbr.rel (0) target = $region13
  $region12: #{dgcnn_forward.11} parent=0 // pred_region
    _
  $region13: #{dgcnn_forward.11} parent=0 // pred_fallthru
    _
  // Predicated region
  $region14: #{dgcnn_forward.11} parent=0 // pred_check
    _
  $region15: #{dgcnn_forward.11} parent=0 // pred_check_branch
    %18 = sbr.rel (0) target = $region17
  $region16: #{dgcnn_forward.11} parent=0 // pred_region
    _
  $region17: #{dgcnn_forward.11} parent=0 // pred_fallthru
    _
  // Predicated region
  $region18: #{dgcnn_forward.11} parent=0 // pred_check
    _
  $region19: #{dgcnn_forward.11} parent=0 // pred_check_branch
    %20 = sbr.rel (0) target = $region21
  $region20: #{dgcnn_forward.11} parent=0 // pred_region
    _
  $region21: #{dgcnn_forward.11} parent=0 // pred_fallthru
    _
  // Predicated region
  $region22: #{dgcnn_forward.11} parent=0 // pred_check
    _
  $region23: #{dgcnn_forward.11} parent=0 // pred_check_branch
    %22 = sbr.rel (0) target = $region25
  $region24: #{dgcnn_forward.11} parent=0 // pred_region
    _
  $region25: #{dgcnn_forward.11} parent=0 // pred_fallthru
    _
  %v24 = vld [vmem:[%s0] sm:$0xf]
  %v25 = vld [vmem:[%s0 + $0x4] sm:$0xf]
  %v26 = vld [vmem:[%s0 + $0x8] sm:$0xf]
  %v27 = vld [vmem:[%s0 + $0xc] sm:$0xf]
  %v28 = vld [vmem:[%s0 + $0x10] sm:$0xf]
  %v29 = vld [vmem:[%s0 + $0x14] sm:$0xf]
  %v30 = vld [vmem:[%s0 + $0x18] sm:$0xf]
  %v31 = vld [vmem:[%s0 + $0x1c] sm:$0xf]
  %v32 = vld [vmem:[%s0 + $0x20] sm:$0xf]
  %v33 = vld [vmem:[%s0 + $0x24] sm:$0xf]
  %v34 = vld [vmem:[%s0 + $0x28] sm:$0xf]
  %v35 = vld [vmem:[%s0 + $0x2c] sm:$0xf]
  %v36 = vld [vmem:[%s2] sm:$0xf]
  %v37 = vld [vmem:[%s2 + $0x4] sm:$0xf]
  %v38 = vld [vmem:[%s2 + $0x8] sm:$0x1]
  %v51 = vunpack.c.l.b16 %v24
  %v52 = vunpack.c.l.b16 %v25
  %v53 = vunpack.c.l.b16 %v26
  %v54 = vunpack.c.l.b16 %v27
  %v55 = vunpack.c.l.b16 %v28
  %v56 = vunpack.c.l.b16 %v29
  %v57 = vunpack.c.l.b16 %v30
  %v58 = vunpack.c.l.b16 %v31
  %v59 = vunpack.c.l.b16 %v32
  %v60 = vunpack.c.l.b16 %v33
  %v61 = vunpack.c.l.b16 %v34
  %v62 = vunpack.c.l.b16 %v35
  %v63 = vpack.c.b16 %v52, %v51
  %v64 = vpack.c.b16 %v54, %v53
  %v65 = vpack.c.b16 %v56, %v55
  %v66 = vpack.c.b16 %v58, %v57
  %v67 = vpack.c.b16 %v60, %v59
  %v68 = vpack.c.b16 %v62, %v61
  %v72 = vunpack.c.l.b16 %v36
  %v73 = vunpack.c.l.b16 %v37
  %v74 = vunpack.c.l.b16 %v38
  %v75 = vpack.c.b16 %v73, %v72
  %v76 = vpack.c.b16 %v74, %v74
  %vm78 = vcmask 138240
  %v80 = vsel %vm78, %v63, 0
  %v83 = vsel %vm78, %v64, 0
  %v86 = vsel %vm78, %v65, 0
  %v89 = vsel %vm78, %v66, 0
  %v92 = vsel %vm78, %v67, 0
  %v95 = vsel %vm78, %v68, 0
  %vm97 = vcmask 1040384
  %v98 = vsel 0, 4294967295, 65535
  %v99 = vsel %vm97, %v98, 0
  %v101 = vand.u32 %v76, %v99
  %103 = vmatprep.subr.bf16.mxu0 0
  %104 = vmatpush1.bf16.msra.mxu0 %v75
  %105 = vmatprep.subr.bf16.mxu0 0
  %106 = vmatpush1.bf16.msra.mxu0 %v101
  %107 = vmatprep.subr.bf16.mxu0 0
  %108 = vmatpush1.bf16.msra.mxu0 0
  %109 = vmatprep.subr.bf16.mxu0 0
  %110 = vmatpush1.bf16.msra.mxu0 0
  %111 = vmatprep.subr.bf16.mxu0 0
  %112 = vmatpush1.bf16.msra.mxu0 0
  %113 = vmatprep.subr.bf16.mxu0 0
  %114 = vmatpush1.bf16.msra.mxu0 0
  %115 = vmatprep.subr.bf16.mxu0 0
  %116 = vmatpush1.bf16.msra.mxu0 0
  %117 = vmatprep.subr.bf16.mxu0 0
  %118 = vmatpush1.bf16.msra.mxu0 0
  %119 = vmatprep.subr.bf16.mxu0 0
  %120 = vmatpush1.bf16.msra.mxu0 0
  %121 = vmatprep.subr.bf16.mxu0 0
  %122 = vmatpush1.bf16.msra.mxu0 0
  %123 = vmatprep.subr.bf16.mxu0 0
  %124 = vmatpush1.bf16.msra.mxu0 0
  %125 = vmatprep.subr.bf16.mxu0 0
  %126 = vmatpush1.bf16.msra.mxu0 0
  %127 = vmatprep.subr.bf16.mxu0 0
  %128 = vmatpush1.bf16.msra.mxu0 0
  %129 = vmatprep.subr.bf16.mxu0 0
  %130 = vmatpush1.bf16.msra.mxu0 0
  %131 = vmatprep.subr.bf16.mxu0 0
  %132 = vmatpush1.bf16.msra.mxu0 0
  %133 = vmatprep.subr.bf16.mxu0 0
  %134 = vmatpush1.bf16.msra.mxu0 0
  %135 = vmatprep.mubr.bf16.mxu0 0
  %136 = vmatmul.mubr.bf16.gmra.mrb[0].mxu0 %v80
  %v137 = vpop.f32.mrb[0].mxu0
  %v138 = vadd.f32 0.0, %v137
  %v139 = vpop.f32.mrb[0].mxu0
  %v140 = vpop.f32.mrb[0].mxu0
  %v141 = vadd.f32 0.0, %v140
  %v142 = vpop.f32.mrb[0].mxu0
  %143 = vmatprep.mubr.bf16.mxu0 0
  %144 = vmatmul.mubr.bf16.gmra.mrb[0].mxu0 %v83
  %v145 = vpop.f32.mrb[0].mxu0
  %v146 = vadd.f32 0.0, %v145
  %v147 = vpop.f32.mrb[0].mxu0
  %v148 = vpop.f32.mrb[0].mxu0
  %v149 = vadd.f32 0.0, %v148
  %v150 = vpop.f32.mrb[0].mxu0
  %151 = vmatprep.mubr.bf16.mxu0 0
  %152 = vmatmul.mubr.bf16.gmra.mrb[0].mxu0 %v86
  %v153 = vpop.f32.mrb[0].mxu0
  %v154 = vadd.f32 0.0, %v153
  %v155 = vpop.f32.mrb[0].mxu0
  %v156 = vpop.f32.mrb[0].mxu0
  %v157 = vadd.f32 0.0, %v156
  %v158 = vpop.f32.mrb[0].mxu0
  %159 = vmatprep.mubr.bf16.mxu0 0
  %160 = vmatmul.mubr.bf16.gmra.mrb[0].mxu0 %v89
  %v161 = vpop.f32.mrb[0].mxu0
  %v162 = vadd.f32 0.0, %v161
  %v163 = vpop.f32.mrb[0].mxu0
  %v164 = vpop.f32.mrb[0].mxu0
  %v165 = vadd.f32 0.0, %v164
  %v166 = vpop.f32.mrb[0].mxu0
  %167 = vmatprep.mubr.bf16.mxu0 0
  %168 = vmatmul.mubr.bf16.gmra.mrb[0].mxu0 %v92
  %v169 = vpop.f32.mrb[0].mxu0
  %v170 = vadd.f32 0.0, %v169
  %v171 = vpop.f32.mrb[0].mxu0
  %v172 = vpop.f32.mrb[0].mxu0
  %v173 = vadd.f32 0.0, %v172
  %v174 = vpop.f32.mrb[0].mxu0
  %175 = vmatprep.mubr.bf16.mxu0 0
  %176 = vmatmul.mubr.bf16.gmra.mrb[0].mxu0 %v95
  %v177 = vpop.f32.mrb[0].mxu0
  %v178 = vadd.f32 0.0, %v177
  %v179 = vpop.f32.mrb[0].mxu0
  %v180 = vpop.f32.mrb[0].mxu0
  %v181 = vadd.f32 0.0, %v180
  %v182 = vpop.f32.mrb[0].mxu0
  %183 = vdwg.mxu0
  %v184 = vld [vmem:[%s1] sm:$0xf]
  %v185 = vld [vmem:[%s1 + $0x4] sm:$0xf]
  %v186 = vld [vmem:[%s1 + $0x8] sm:$0xf]
  %v187 = vld [vmem:[%s1 + $0xc] sm:$0xf]
  %v188 = vld [vmem:[%s3] sm:$0xf]
  %v189 = vld [vmem:[%s3 + $0x4] sm:$0xf]
  %v190 = vld [vmem:[%s3 + $0x8] sm:$0x1]
  %v195 = vunpack.c.l.b16 %v184
  %v196 = vunpack.c.l.b16 %v185
  %v197 = vunpack.c.l.b16 %v186
  %v198 = vunpack.c.l.b16 %v187
  %v199 = vpack.c.b16 %v196, %v195
  %v200 = vpack.c.b16 %v198, %v197
  %v204 = vunpack.c.l.b16 %v188
  %v205 = vunpack.c.l.b16 %v189
  %v206 = vunpack.c.l.b16 %v190
  %v207 = vpack.c.b16 %v205, %v204
  %v208 = vpack.c.b16 %v206, %v206
  %v211 = vsel %vm78, %v199, 0
  %v214 = vsel %vm78, %v200, 0
  %v217 = vand.u32 %v208, %v99
  %219 = vmatprep.subr.bf16.mxu0 0
  %220 = vmatpush1.bf16.msra.mxu0 %v207
  %221 = vmatprep.subr.bf16.mxu0 0
  %222 = vmatpush1.bf16.msra.mxu0 %v217
  %223 = vmatprep.subr.bf16.mxu0 0
  %224 = vmatpush1.bf16.msra.mxu0 0
  %225 = vmatprep.subr.bf16.mxu0 0
  %226 = vmatpush1.bf16.msra.mxu0 0
  %227 = vmatprep.subr.bf16.mxu0 0
  %228 = vmatpush1.bf16.msra.mxu0 0
  %229 = vmatprep.subr.bf16.mxu0 0
  %230 = vmatpush1.bf16.msra.mxu0 0
  %231 = vmatprep.subr.bf16.mxu0 0
  %232 = vmatpush1.bf16.msra.mxu0 0
  %233 = vmatprep.subr.bf16.mxu0 0
  %234 = vmatpush1.bf16.msra.mxu0 0
  %235 = vmatprep.subr.bf16.mxu0 0
  %236 = vmatpush1.bf16.msra.mxu0 0
  %237 = vmatprep.subr.bf16.mxu0 0
  %238 = vmatpush1.bf16.msra.mxu0 0
  %239 = vmatprep.subr.bf16.mxu0 0
  %240 = vmatpush1.bf16.msra.mxu0 0
  %241 = vmatprep.subr.bf16.mxu0 0
  %242 = vmatpush1.bf16.msra.mxu0 0
  %243 = vmatprep.subr.bf16.mxu0 0
  %244 = vmatpush1.bf16.msra.mxu0 0
  %245 = vmatprep.subr.bf16.mxu0 0
  %246 = vmatpush1.bf16.msra.mxu0 0
  %247 = vmatprep.subr.bf16.mxu0 0
  %248 = vmatpush1.bf16.msra.mxu0 0
  %249 = vmatprep.subr.bf16.mxu0 0
  %250 = vmatpush1.bf16.msra.mxu0 0
  %251 = vmatprep.mubr.bf16.mxu0 0
  %252 = vmatmul.mubr.bf16.gmra.mrb[0].mxu0 %v211
  %v253 = vpop.f32.mrb[0].mxu0
  %v254 = vadd.f32 0.0, %v253
  %v255 = vpop.f32.mrb[0].mxu0
  %v256 = vpop.f32.mrb[0].mxu0
  %v257 = vadd.f32 0.0, %v256
  %v258 = vpop.f32.mrb[0].mxu0
  %259 = vmatprep.mubr.bf16.mxu0 0
  %260 = vmatmul.mubr.bf16.gmra.mrb[0].mxu0 %v214
  %v261 = vpop.f32.mrb[0].mxu0
  %v262 = vadd.f32 0.0, %v261
  %v263 = vpop.f32.mrb[0].mxu0
  %v264 = vpop.f32.mrb[0].mxu0
  %v265 = vadd.f32 0.0, %v264
  %v266 = vpop.f32.mrb[0].mxu0
  %267 = vdwg.mxu0
  %v268 = vadd.f32 %v138, %v254
  %v269 = vadd.f32 %v141, %v257
  %v270 = vadd.f32 %v146, %v262
  %v271 = vadd.f32 %v149, %v265
  %v272 = vadd.f32 %v154, %v254
  %v273 = vadd.f32 %v157, %v257
  %v274 = vadd.f32 %v162, %v262
  %v275 = vadd.f32 %v165, %v265
  %v276 = vadd.f32 %v170, %v254
  %v277 = vadd.f32 %v173, %v257
  %v278 = vadd.f32 %v178, %v262
  %v279 = vadd.f32 %v181, %v265
  %v280 = vld [vmem:[%s4] sm:$0x1]
  %v282 = vlaneseq
  %v283 = vshrl.u32 %v282, 7
  %v284 = vsub.s32 0, %v283
  %v285 = vrot.slane %v280, %v284
  %v287 = vmul.f32 %v268, %v285
  %v288 = vmul.f32 %v269, %v285
  %v289 = vmul.f32 %v270, %v285
  %v290 = vmul.f32 %v271, %v285
  %v291 = vmul.f32 %v272, %v285
  %v292 = vmul.f32 %v273, %v285
  %v293 = vmul.f32 %v274, %v285
  %v294 = vmul.f32 %v275, %v285
  %v295 = vmul.f32 %v276, %v285
  %v296 = vmul.f32 %v277, %v285
  %v297 = vmul.f32 %v278, %v285
  %v298 = vmul.f32 %v279, %v285
  %v299 = vld [vmem:[%s5] sm:$0x1]
  %v301 = vlaneseq
  %v302 = vshrl.u32 %v301, 7
  %v303 = vsub.s32 0, %v302
  %v304 = vrot.slane %v299, %v303
  %v306 = vadd.f32 %v287, %v304
  %v307 = vadd.f32 %v288, %v304
  %v308 = vadd.f32 %v289, %v304
  %v309 = vadd.f32 %v290, %v304
  %v310 = vadd.f32 %v291, %v304
  %v311 = vadd.f32 %v292, %v304
  %v312 = vadd.f32 %v293, %v304
  %v313 = vadd.f32 %v294, %v304
  %v314 = vadd.f32 %v295, %v304
  %v315 = vadd.f32 %v296, %v304
  %v316 = vadd.f32 %v297, %v304
  %v317 = vadd.f32 %v298, %v304
  %vm318 = vcmp.ge.f32.partialorder %v306, 0.0
  %vm319 = vcmp.ge.f32.partialorder %v307, 0.0
  %vm320 = vcmp.ge.f32.partialorder %v308, 0.0
  %vm321 = vcmp.ge.f32.partialorder %v309, 0.0
  %vm322 = vcmp.ge.f32.partialorder %v310, 0.0
  %vm323 = vcmp.ge.f32.partialorder %v311, 0.0
  %vm324 = vcmp.ge.f32.partialorder %v312, 0.0
  %vm325 = vcmp.ge.f32.partialorder %v313, 0.0
  %vm326 = vcmp.ge.f32.partialorder %v314, 0.0
  %vm327 = vcmp.ge.f32.partialorder %v315, 0.0
  %vm328 = vcmp.ge.f32.partialorder %v316, 0.0
  %vm329 = vcmp.ge.f32.partialorder %v317, 0.0
  %v330 = vmul.f32 %v306, 0.2
  %v331 = vmul.f32 %v307, 0.2
  %v332 = vmul.f32 %v308, 0.2
  %v333 = vmul.f32 %v309, 0.2
  %v334 = vmul.f32 %v310, 0.2
  %v335 = vmul.f32 %v311, 0.2
  %v336 = vmul.f32 %v312, 0.2
  %v337 = vmul.f32 %v313, 0.2
  %v338 = vmul.f32 %v314, 0.2
  %v339 = vmul.f32 %v315, 0.2
  %v340 = vmul.f32 %v316, 0.2
  %v341 = vmul.f32 %v317, 0.2
  %v342 = vsel %vm318, %v306, %v330
  %v343 = vsel %vm319, %v307, %v331
  %v344 = vsel %vm320, %v308, %v332
  %v345 = vsel %vm321, %v309, %v333
  %v346 = vsel %vm322, %v310, %v334
  %v347 = vsel %vm323, %v311, %v335
  %v348 = vsel %vm324, %v312, %v336
  %v349 = vsel %vm325, %v313, %v337
  %v350 = vsel %vm326, %v314, %v338
  %v351 = vsel %vm327, %v315, %v339
  %v352 = vsel %vm328, %v316, %v340
  %v353 = vsel %vm329, %v317, %v341
  %vm354 = vcmask 523264
  %v355 = vsel %vm354, %v342, -inf
  %v356 = vsel %vm354, %v346, -inf
  %v357 = vmax.f32 %v355, %v356
  %v358 = vsel %vm354, %v350, -inf
  %v359 = vmax.f32 %v357, %v358
  %v360 = vsel %vm354, %v343, -inf
  %v361 = vsel %vm354, %v347, -inf
  %v362 = vmax.f32 %v360, %v361
  %v363 = vsel %vm354, %v351, -inf
  %v364 = vmax.f32 %v362, %v363
  %v365 = vsel %vm354, %v344, -inf
  %v366 = vsel %vm354, %v348, -inf
  %v367 = vmax.f32 %v365, %v366
  %v368 = vsel %vm354, %v352, -inf
  %v369 = vmax.f32 %v367, %v368
  %v370 = vsel %vm354, %v345, -inf
  %v371 = vsel %vm354, %v349, -inf
  %v372 = vmax.f32 %v370, %v371
  %v373 = vsel %vm354, %v353, -inf
  %v374 = vmax.f32 %v372, %v373
  %375 = vst.msk [vmem:[%s6] sm:$0xff] %vm354, %v359
  %376 = vst.msk [vmem:[%s6 + $0x8] sm:$0xff] %vm354, %v364
  %377 = vst.msk [vmem:[%s6 + $0x10] sm:$0xff] %vm354, %v369
  %378 = vst.msk [vmem:[%s6 + $0x18] sm:$0xff] %vm354, %v374
  // Predicated region
  $region26: #{dgcnn_forward.11} parent=0 // pred_check
    _
  $region27: #{dgcnn_forward.11} parent=0 // pred_check_branch
    %380 = sbr.rel (0) target = $region29
  $region28: #{dgcnn_forward.11} parent=0 // pred_region
    _
  $region29: #{dgcnn_forward.11} parent=0 // pred_fallthru
    _
  // Predicated region
  $region30: #{dgcnn_forward.11} parent=0 // pred_check
    _
  $region31: #{dgcnn_forward.11} parent=0 // pred_check_branch
    %382 = sbr.rel (0) target = $region33
  $region32: #{dgcnn_forward.11} parent=0 // pred_region
    _
  $region33: #{dgcnn_forward.11} parent=0 // pred_fallthru
    _

// kernel: dgcnn_forward.12
$region0: #{dgcnn_forward.12}
  #allocation0 [shape = 'u32[]', space=smem, size = 0x4, offset = 0x4, fixed_abs, tag = 'smem constant byte address 0x4 - core index']
  #allocation1 [shape = 'u32[144,128]{1,0:T(1,128)}', space=vmem, size = 0x12000, scoped, tag = 'internal scratch']
  %s0 = inlined_call_operand.vmem [shape: bf16[3,32,64], index: 0, kind: input, shape index: {}]
  %s1 = inlined_call_operand.vmem [shape: bf16[32,64], index: 1, kind: input, shape index: {}]
  %s2 = inlined_call_operand.vmem [shape: bf16[64,64], index: 2, kind: input, shape index: {}]
  %s3 = inlined_call_operand.vmem [shape: bf16[64,64], index: 3, kind: input, shape index: {}]
  %s4 = inlined_call_operand.vmem [shape: f32[1,64], index: 4, kind: input, shape index: {}]
  %s5 = inlined_call_operand.vmem [shape: f32[1,64], index: 5, kind: input, shape index: {}]
  %s6 = inlined_call_operand.vmem [shape: f32[32,64], index: 6, kind: output, shape index: {}]
  %s7 = sld [smem:[#allocation0]]
  $region34: #{dgcnn_forward.12} parent=0
    _
  %s9 = ssub.s32 1, %s7
  %s10 = scalar_select 0, %s9, %s7
  // Predicated region
  $region2: #{dgcnn_forward.12} parent=0 // pred_check
    _
  $region3: #{dgcnn_forward.12} parent=0 // pred_check_branch
    %12 = sbr.rel (0) target = $region5
  $region4: #{dgcnn_forward.12} parent=0 // pred_region
    _
  $region5: #{dgcnn_forward.12} parent=0 // pred_fallthru
    _
  // Predicated region
  $region6: #{dgcnn_forward.12} parent=0 // pred_check
    _
  $region7: #{dgcnn_forward.12} parent=0 // pred_check_branch
    %14 = sbr.rel (0) target = $region9
  $region8: #{dgcnn_forward.12} parent=0 // pred_region
    _
  $region9: #{dgcnn_forward.12} parent=0 // pred_fallthru
    _
  // Predicated region
  $region10: #{dgcnn_forward.12} parent=0 // pred_check
    _
  $region11: #{dgcnn_forward.12} parent=0 // pred_check_branch
    %16 = sbr.rel (0) target = $region13
  $region12: #{dgcnn_forward.12} parent=0 // pred_region
    _
  $region13: #{dgcnn_forward.12} parent=0 // pred_fallthru
    _
  // Predicated region
  $region14: #{dgcnn_forward.12} parent=0 // pred_check
    _
  $region15: #{dgcnn_forward.12} parent=0 // pred_check_branch
    %18 = sbr.rel (0) target = $region17
  $region16: #{dgcnn_forward.12} parent=0 // pred_region
    _
  $region17: #{dgcnn_forward.12} parent=0 // pred_fallthru
    _
  // Predicated region
  $region18: #{dgcnn_forward.12} parent=0 // pred_check
    _
  $region19: #{dgcnn_forward.12} parent=0 // pred_check_branch
    %20 = sbr.rel (0) target = $region21
  $region20: #{dgcnn_forward.12} parent=0 // pred_region
    _
  $region21: #{dgcnn_forward.12} parent=0 // pred_fallthru
    _
  // Predicated region
  $region22: #{dgcnn_forward.12} parent=0 // pred_check
    _
  $region23: #{dgcnn_forward.12} parent=0 // pred_check_branch
    %22 = sbr.rel (0) target = $region25
  $region24: #{dgcnn_forward.12} parent=0 // pred_region
    _
  $region25: #{dgcnn_forward.12} parent=0 // pred_fallthru
    _
  %v24 = vld [vmem:[%s0] sm:$0xf]
  %v25 = vld [vmem:[%s0 + $0x4] sm:$0xf]
  %v26 = vld [vmem:[%s0 + $0x8] sm:$0xf]
  %v27 = vld [vmem:[%s0 + $0xc] sm:$0xf]
  %v28 = vld [vmem:[%s0 + $0x10] sm:$0xf]
  %v29 = vld [vmem:[%s0 + $0x14] sm:$0xf]
  %v30 = vld [vmem:[%s0 + $0x18] sm:$0xf]
  %v31 = vld [vmem:[%s0 + $0x1c] sm:$0xf]
  %v32 = vld [vmem:[%s0 + $0x20] sm:$0xf]
  %v33 = vld [vmem:[%s0 + $0x24] sm:$0xf]
  %v34 = vld [vmem:[%s0 + $0x28] sm:$0xf]
  %v35 = vld [vmem:[%s0 + $0x2c] sm:$0xf]
  %v36 = vld [vmem:[%s2] sm:$0xf]
  %v37 = vld [vmem:[%s2 + $0x4] sm:$0xf]
  %v38 = vld [vmem:[%s2 + $0x8] sm:$0xf]
  %v39 = vld [vmem:[%s2 + $0xc] sm:$0xf]
  %v40 = vld [vmem:[%s2 + $0x10] sm:$0xf]
  %v41 = vld [vmem:[%s2 + $0x14] sm:$0xf]
  %v42 = vld [vmem:[%s2 + $0x18] sm:$0xf]
  %v43 = vld [vmem:[%s2 + $0x1c] sm:$0xf]
  %v56 = vunpack.c.l.b16 %v24
  %v57 = vunpack.c.l.b16 %v25
  %v58 = vunpack.c.l.b16 %v26
  %v59 = vunpack.c.l.b16 %v27
  %v60 = vunpack.c.l.b16 %v28
  %v61 = vunpack.c.l.b16 %v29
  %v62 = vunpack.c.l.b16 %v30
  %v63 = vunpack.c.l.b16 %v31
  %v64 = vunpack.c.l.b16 %v32
  %v65 = vunpack.c.l.b16 %v33
  %v66 = vunpack.c.l.b16 %v34
  %v67 = vunpack.c.l.b16 %v35
  %v68 = vpack.c.b16 %v57, %v56
  %v69 = vpack.c.b16 %v59, %v58
  %v70 = vpack.c.b16 %v61, %v60
  %v71 = vpack.c.b16 %v63, %v62
  %v72 = vpack.c.b16 %v65, %v64
  %v73 = vpack.c.b16 %v67, %v66
  %v82 = vunpack.c.l.b16 %v36
  %v83 = vunpack.c.l.b16 %v37
  %v84 = vunpack.c.l.b16 %v38
  %v85 = vunpack.c.l.b16 %v39
  %v86 = vunpack.c.l.b16 %v40
  %v87 = vunpack.c.l.b16 %v41
  %v88 = vunpack.c.l.b16 %v42
  %v89 = vunpack.c.l.b16 %v43
  %v90 = vpack.c.b16 %v83, %v82
  %v91 = vpack.c.b16 %v85, %v84
  %v92 = vpack.c.b16 %v87, %v86
  %v93 = vpack.c.b16 %v89, %v88
  %vm98 = vcmask 523264
  %v100 = vsel %vm98, %v68, 0
  %v103 = vsel %vm98, %v69, 0
  %v106 = vsel %vm98, %v70, 0
  %v109 = vsel %vm98, %v71, 0
  %v112 = vsel %vm98, %v72, 0
  %v115 = vsel %vm98, %v73, 0
  %117 = vmatprep.subr.bf16.mxu0 0
  %118 = vmatpush1.bf16.msra.mxu0 %v90
  %119 = vmatprep.subr.bf16.mxu0 0
  %120 = vmatpush1.bf16.msra.mxu0 %v91
  %121 = vmatprep.subr.bf16.mxu0 0
  %122 = vmatpush1.bf16.msra.mxu0 %v92
  %123 = vmatprep.subr.bf16.mxu0 0
  %124 = vmatpush1.bf16.msra.mxu0 %v93
  %125 = vmatprep.subr.bf16.mxu0 0
  %126 = vmatpush1.bf16.msra.mxu0 0
  %127 = vmatprep.subr.bf16.mxu0 0
  %128 = vmatpush1.bf16.msra.mxu0 0
  %129 = vmatprep.subr.bf16.mxu0 0
  %130 = vmatpush1.bf16.msra.mxu0 0
  %131 = vmatprep.subr.bf16.mxu0 0
  %132 = vmatpush1.bf16.msra.mxu0 0
  %133 = vmatprep.subr.bf16.mxu0 0
  %134 = vmatpush1.bf16.msra.mxu0 0
  %135 = vmatprep.subr.bf16.mxu0 0
  %136 = vmatpush1.bf16.msra.mxu0 0
  %137 = vmatprep.subr.bf16.mxu0 0
  %138 = vmatpush1.bf16.msra.mxu0 0
  %139 = vmatprep.subr.bf16.mxu0 0
  %140 = vmatpush1.bf16.msra.mxu0 0
  %141 = vmatprep.subr.bf16.mxu0 0
  %142 = vmatpush1.bf16.msra.mxu0 0
  %143 = vmatprep.subr.bf16.mxu0 0
  %144 = vmatpush1.bf16.msra.mxu0 0
  %145 = vmatprep.subr.bf16.mxu0 0
  %146 = vmatpush1.bf16.msra.mxu0 0
  %147 = vmatprep.subr.bf16.mxu0 0
  %148 = vmatpush1.bf16.msra.mxu0 0
  %149 = vmatprep.mubr.bf16.mxu0 0
  %150 = vmatmul.mubr.bf16.gmra.mrb[0].mxu0 %v100
  %v151 = vpop.f32.mrb[0].mxu0
  %v152 = vadd.f32 0.0, %v151
  %v153 = vpop.f32.mrb[0].mxu0
  %v154 = vpop.f32.mrb[0].mxu0
  %v155 = vadd.f32 0.0, %v154
  %v156 = vpop.f32.mrb[0].mxu0
  %157 = vmatprep.mubr.bf16.mxu0 0
  %158 = vmatmul.mubr.bf16.gmra.mrb[0].mxu0 %v103
  %v159 = vpop.f32.mrb[0].mxu0
  %v160 = vadd.f32 0.0, %v159
  %v161 = vpop.f32.mrb[0].mxu0
  %v162 = vpop.f32.mrb[0].mxu0
  %v163 = vadd.f32 0.0, %v162
  %v164 = vpop.f32.mrb[0].mxu0
  %165 = vmatprep.mubr.bf16.mxu0 0
  %166 = vmatmul.mubr.bf16.gmra.mrb[0].mxu0 %v106
  %v167 = vpop.f32.mrb[0].mxu0
  %v168 = vadd.f32 0.0, %v167
  %v169 = vpop.f32.mrb[0].mxu0
  %v170 = vpop.f32.mrb[0].mxu0
  %v171 = vadd.f32 0.0, %v170
  %v172 = vpop.f32.mrb[0].mxu0
  %173 = vmatprep.mubr.bf16.mxu0 0
  %174 = vmatmul.mubr.bf16.gmra.mrb[0].mxu0 %v109
  %v175 = vpop.f32.mrb[0].mxu0
  %v176 = vadd.f32 0.0, %v175
  %v177 = vpop.f32.mrb[0].mxu0
  %v178 = vpop.f32.mrb[0].mxu0
  %v179 = vadd.f32 0.0, %v178
  %v180 = vpop.f32.mrb[0].mxu0
  %181 = vmatprep.mubr.bf16.mxu0 0
  %182 = vmatmul.mubr.bf16.gmra.mrb[0].mxu0 %v112
  %v183 = vpop.f32.mrb[0].mxu0
  %v184 = vadd.f32 0.0, %v183
  %v185 = vpop.f32.mrb[0].mxu0
  %v186 = vpop.f32.mrb[0].mxu0
  %v187 = vadd.f32 0.0, %v186
  %v188 = vpop.f32.mrb[0].mxu0
  %189 = vmatprep.mubr.bf16.mxu0 0
  %190 = vmatmul.mubr.bf16.gmra.mrb[0].mxu0 %v115
  %v191 = vpop.f32.mrb[0].mxu0
  %v192 = vadd.f32 0.0, %v191
  %v193 = vpop.f32.mrb[0].mxu0
  %v194 = vpop.f32.mrb[0].mxu0
  %v195 = vadd.f32 0.0, %v194
  %v196 = vpop.f32.mrb[0].mxu0
  %197 = vdwg.mxu0
  %v198 = vld [vmem:[%s1] sm:$0xf]
  %v199 = vld [vmem:[%s1 + $0x4] sm:$0xf]
  %v200 = vld [vmem:[%s1 + $0x8] sm:$0xf]
  %v201 = vld [vmem:[%s1 + $0xc] sm:$0xf]
  %v202 = vld [vmem:[%s3] sm:$0xf]
  %v203 = vld [vmem:[%s3 + $0x4] sm:$0xf]
  %v204 = vld [vmem:[%s3 + $0x8] sm:$0xf]
  %v205 = vld [vmem:[%s3 + $0xc] sm:$0xf]
  %v206 = vld [vmem:[%s3 + $0x10] sm:$0xf]
  %v207 = vld [vmem:[%s3 + $0x14] sm:$0xf]
  %v208 = vld [vmem:[%s3 + $0x18] sm:$0xf]
  %v209 = vld [vmem:[%s3 + $0x1c] sm:$0xf]
  %v214 = vunpack.c.l.b16 %v198
  %v215 = vunpack.c.l.b16 %v199
  %v216 = vunpack.c.l.b16 %v200
  %v217 = vunpack.c.l.b16 %v201
  %v218 = vpack.c.b16 %v215, %v214
  %v219 = vpack.c.b16 %v217, %v216
  %v228 = vunpack.c.l.b16 %v202
  %v229 = vunpack.c.l.b16 %v203
  %v230 = vunpack.c.l.b16 %v204
  %v231 = vunpack.c.l.b16 %v205
  %v232 = vunpack.c.l.b16 %v206
  %v233 = vunpack.c.l.b16 %v207
  %v234 = vunpack.c.l.b16 %v208
  %v235 = vunpack.c.l.b16 %v209
  %v236 = vpack.c.b16 %v229, %v228
  %v237 = vpack.c.b16 %v231, %v230
  %v238 = vpack.c.b16 %v233, %v232
  %v239 = vpack.c.b16 %v235, %v234
  %v245 = vsel %vm98, %v218, 0
  %v248 = vsel %vm98, %v219, 0
  %250 = vmatprep.subr.bf16.mxu0 0
  %251 = vmatpush1.bf16.msra.mxu0 %v236
  %252 = vmatprep.subr.bf16.mxu0 0
  %253 = vmatpush1.bf16.msra.mxu0 %v237
  %254 = vmatprep.subr.bf16.mxu0 0
  %255 = vmatpush1.bf16.msra.mxu0 %v238
  %256 = vmatprep.subr.bf16.mxu0 0
  %257 = vmatpush1.bf16.msra.mxu0 %v239
  %258 = vmatprep.subr.bf16.mxu0 0
  %259 = vmatpush1.bf16.msra.mxu0 0
  %260 = vmatprep.subr.bf16.mxu0 0
  %261 = vmatpush1.bf16.msra.mxu0 0
  %262 = vmatprep.subr.bf16.mxu0 0
  %263 = vmatpush1.bf16.msra.mxu0 0
  %264 = vmatprep.subr.bf16.mxu0 0
  %265 = vmatpush1.bf16.msra.mxu0 0
  %266 = vmatprep.subr.bf16.mxu0 0
  %267 = vmatpush1.bf16.msra.mxu0 0
  %268 = vmatprep.subr.bf16.mxu0 0
  %269 = vmatpush1.bf16.msra.mxu0 0
  %270 = vmatprep.subr.bf16.mxu0 0
  %271 = vmatpush1.bf16.msra.mxu0 0
  %272 = vmatprep.subr.bf16.mxu0 0
  %273 = vmatpush1.bf16.msra.mxu0 0
  %274 = vmatprep.subr.bf16.mxu0 0
  %275 = vmatpush1.bf16.msra.mxu0 0
  %276 = vmatprep.subr.bf16.mxu0 0
  %277 = vmatpush1.bf16.msra.mxu0 0
  %278 = vmatprep.subr.bf16.mxu0 0
  %279 = vmatpush1.bf16.msra.mxu0 0
  %280 = vmatprep.subr.bf16.mxu0 0
  %281 = vmatpush1.bf16.msra.mxu0 0
  %282 = vmatprep.mubr.bf16.mxu0 0
  %283 = vmatmul.mubr.bf16.gmra.mrb[0].mxu0 %v245
  %v284 = vpop.f32.mrb[0].mxu0
  %v285 = vadd.f32 0.0, %v284
  %v286 = vpop.f32.mrb[0].mxu0
  %v287 = vpop.f32.mrb[0].mxu0
  %v288 = vadd.f32 0.0, %v287
  %v289 = vpop.f32.mrb[0].mxu0
  %290 = vmatprep.mubr.bf16.mxu0 0
  %291 = vmatmul.mubr.bf16.gmra.mrb[0].mxu0 %v248
  %v292 = vpop.f32.mrb[0].mxu0
  %v293 = vadd.f32 0.0, %v292
  %v294 = vpop.f32.mrb[0].mxu0
  %v295 = vpop.f32.mrb[0].mxu0
  %v296 = vadd.f32 0.0, %v295
  %v297 = vpop.f32.mrb[0].mxu0
  %298 = vdwg.mxu0
  %v299 = vadd.f32 %v152, %v285
  %v300 = vadd.f32 %v155, %v288
  %v301 = vadd.f32 %v160, %v293
  %v302 = vadd.f32 %v163, %v296
  %v303 = vadd.f32 %v168, %v285
  %v304 = vadd.f32 %v171, %v288
  %v305 = vadd.f32 %v176, %v293
  %v306 = vadd.f32 %v179, %v296
  %v307 = vadd.f32 %v184, %v285
  %v308 = vadd.f32 %v187, %v288
  %v309 = vadd.f32 %v192, %v293
  %v310 = vadd.f32 %v195, %v296
  %v311 = vld [vmem:[%s4] sm:$0x1]
  %v313 = vlaneseq
  %v314 = vshrl.u32 %v313, 7
  %v315 = vsub.s32 0, %v314
  %v316 = vrot.slane %v311, %v315
  %v318 = vmul.f32 %v299, %v316
  %v319 = vmul.f32 %v300, %v316
  %v320 = vmul.f32 %v301, %v316
  %v321 = vmul.f32 %v302, %v316
  %v322 = vmul.f32 %v303, %v316
  %v323 = vmul.f32 %v304, %v316
  %v324 = vmul.f32 %v305, %v316
  %v325 = vmul.f32 %v306, %v316
  %v326 = vmul.f32 %v307, %v316
  %v327 = vmul.f32 %v308, %v316
  %v328 = vmul.f32 %v309, %v316
  %v329 = vmul.f32 %v310, %v316
  %v330 = vld [vmem:[%s5] sm:$0x1]
  %v332 = vlaneseq
  %v333 = vshrl.u32 %v332, 7
  %v334 = vsub.s32 0, %v333
  %v335 = vrot.slane %v330, %v334
  %v337 = vadd.f32 %v318, %v335
  %v338 = vadd.f32 %v319, %v335
  %v339 = vadd.f32 %v320, %v335
  %v340 = vadd.f32 %v321, %v335
  %v341 = vadd.f32 %v322, %v335
  %v342 = vadd.f32 %v323, %v335
  %v343 = vadd.f32 %v324, %v335
  %v344 = vadd.f32 %v325, %v335
  %v345 = vadd.f32 %v326, %v335
  %v346 = vadd.f32 %v327, %v335
  %v347 = vadd.f32 %v328, %v335
  %v348 = vadd.f32 %v329, %v335
  %vm349 = vcmp.ge.f32.partialorder %v337, 0.0
  %vm350 = vcmp.ge.f32.partialorder %v338, 0.0
  %vm351 = vcmp.ge.f32.partialorder %v339, 0.0
  %vm352 = vcmp.ge.f32.partialorder %v340, 0.0
  %vm353 = vcmp.ge.f32.partialorder %v341, 0.0
  %vm354 = vcmp.ge.f32.partialorder %v342, 0.0
  %vm355 = vcmp.ge.f32.partialorder %v343, 0.0
  %vm356 = vcmp.ge.f32.partialorder %v344, 0.0
  %vm357 = vcmp.ge.f32.partialorder %v345, 0.0
  %vm358 = vcmp.ge.f32.partialorder %v346, 0.0
  %vm359 = vcmp.ge.f32.partialorder %v347, 0.0
  %vm360 = vcmp.ge.f32.partialorder %v348, 0.0
  %v361 = vmul.f32 %v337, 0.2
  %v362 = vmul.f32 %v338, 0.2
  %v363 = vmul.f32 %v339, 0.2
  %v364 = vmul.f32 %v340, 0.2
  %v365 = vmul.f32 %v341, 0.2
  %v366 = vmul.f32 %v342, 0.2
  %v367 = vmul.f32 %v343, 0.2
  %v368 = vmul.f32 %v344, 0.2
  %v369 = vmul.f32 %v345, 0.2
  %v370 = vmul.f32 %v346, 0.2
  %v371 = vmul.f32 %v347, 0.2
  %v372 = vmul.f32 %v348, 0.2
  %v373 = vsel %vm349, %v337, %v361
  %v374 = vsel %vm350, %v338, %v362
  %v375 = vsel %vm351, %v339, %v363
  %v376 = vsel %vm352, %v340, %v364
  %v377 = vsel %vm353, %v341, %v365
  %v378 = vsel %vm354, %v342, %v366
  %v379 = vsel %vm355, %v343, %v367
  %v380 = vsel %vm356, %v344, %v368
  %v381 = vsel %vm357, %v345, %v369
  %v382 = vsel %vm358, %v346, %v370
  %v383 = vsel %vm359, %v347, %v371
  %v384 = vsel %vm360, %v348, %v372
  %v385 = vsel %vm98, %v373, -inf
  %v386 = vsel %vm98, %v377, -inf
  %v387 = vmax.f32 %v385, %v386
  %v388 = vsel %vm98, %v381, -inf
  %v389 = vmax.f32 %v387, %v388
  %v390 = vsel %vm98, %v374, -inf
  %v391 = vsel %vm98, %v378, -inf
  %v392 = vmax.f32 %v390, %v391
  %v393 = vsel %vm98, %v382, -inf
  %v394 = vmax.f32 %v392, %v393
  %v395 = vsel %vm98, %v375, -inf
  %v396 = vsel %vm98, %v379, -inf
  %v397 = vmax.f32 %v395, %v396
  %v398 = vsel %vm98, %v383, -inf
  %v399 = vmax.f32 %v397, %v398
  %v400 = vsel %vm98, %v376, -inf
  %v401 = vsel %vm98, %v380, -inf
  %v402 = vmax.f32 %v400, %v401
  %v403 = vsel %vm98, %v384, -inf
  %v404 = vmax.f32 %v402, %v403
  %405 = vst.msk [vmem:[%s6] sm:$0xff] %vm98, %v389
  %406 = vst.msk [vmem:[%s6 + $0x8] sm:$0xff] %vm98, %v394
  %407 = vst.msk [vmem:[%s6 + $0x10] sm:$0xff] %vm98, %v399
  %408 = vst.msk [vmem:[%s6 + $0x18] sm:$0xff] %vm98, %v404
  // Predicated region
  $region26: #{dgcnn_forward.12} parent=0 // pred_check
    _
  $region27: #{dgcnn_forward.12} parent=0 // pred_check_branch
    %410 = sbr.rel (0) target = $region29
  $region28: #{dgcnn_forward.12} parent=0 // pred_region
    _
  $region29: #{dgcnn_forward.12} parent=0 // pred_fallthru
    _
  // Predicated region
  $region30: #{dgcnn_forward.12} parent=0 // pred_check
    _
  $region31: #{dgcnn_forward.12} parent=0 // pred_check_branch
    %412 = sbr.rel (0) target = $region33
  $region32: #{dgcnn_forward.12} parent=0 // pred_region
    _
  $region33: #{dgcnn_forward.12} parent=0 // pred_fallthru
    _

// kernel: dgcnn_forward.14
$region0: #{dgcnn_forward.14}
  #allocation0 [shape = 'u32[]', space=smem, size = 0x4, offset = 0x4, fixed_abs, tag = 'smem constant byte address 0x4 - core index']
  #allocation1 [shape = 'u32[144,128]{1,0:T(1,128)}', space=vmem, size = 0x12000, scoped, tag = 'internal scratch']
  %s0 = inlined_call_operand.vmem [shape: f32[2,16,128], index: 0, kind: input, shape index: {}, may-alias: {0,1}]
  %s1 = inlined_call_operand.vmem [shape: f32[2,16,128], index: 1, kind: input, shape index: {}, may-alias: {0,1}]
  %s2 = inlined_call_operand.vmem [shape: f32[2,16,16], index: 2, kind: output, shape index: {}]
  %s3 = sld [smem:[#allocation0]]
  $region41: #{dgcnn_forward.14} parent=0
    _
  %s5 = ssub.s32 1, %s3
  %s6 = scalar_select 0, %s5, %s3
  loop: start=0, step=1, limit=4
  $region2: #{dgcnn_forward.14} parent=0 // loop_pre_header
    _
  $region3: #{dgcnn_forward.14} parent=0 // loop_header
    %s8 = sphi 0, %s12
    %p9 = scmp.ge.s32.totalorder %s8, 4
    %s15 = sphi 0, %s27
    %s16 = sphi 0, %s23
    %s17 = sphi 0, %s15
    %s18 = sphi 0, %s16
    %s19 = sphi 0, %s17
    %s20 = sphi 0, %s18
    %s32 = sphi 0, %s34
    %s35 = sphi 0, %s32
    %s36 = sphi 0, %s35
    %s52 = sphi 0, %s36
    %s58 = sphi 0, %s60
    %s61 = sphi 0, %s58
    %s62 = sphi 0, %s61
    %s78 = sphi 0, %s62
    %s86 = sphi 0, %s88
    %s89 = sphi 0, %s86
    %s90 = sphi 0, %s89
    %s106 = sphi 0, %s90
  $region4: #{dgcnn_forward.14} parent=0 // loop_header_branch
    %11 = sbr.rel (%p9) target = $region8
  $region5: #{dgcnn_forward.14} parent=0 // loop_body
    %s13 = ssub.s32 %s8, 1
    %s14 = ssub.s32 %s8, 2
    %s21 = sadd.s32 1, %s16
    %p22 = scmp.ge.s32.totalorder %s21, 1
    %s23 = scalar_select %p22, 0, %s21
    %s24 = sadd.s32 1, %s15
    %s25 = scalar_select %p22, %s24, %s15
    %p26 = scmp.ge.s32.totalorder %s25, 2
    %s27 = scalar_select %p26, 0, %s25
    %s28 = ssub.s32 %s15, %s27
    %s29 = ssub.s32 %s16, %s23
    %s30 = sor.u32 %s28, %s29
    %p31 = scmp.eq.s32.totalorder %s30, 0
    %s33 = sadd.s32 %s32, 1
    %s34 = scalar_select %p31, %s32, %s33
    %p37 = pneg %p31
    %p38 = scmp.eq.s32.totalorder %s8, 1
    %p39 = por %p37, %p38
    %p40 = scmp.ne.s32.totalorder %s32, %s35
    %p41 = scmp.eq.s32.totalorder %s8, 0
    %p42 = por %p40, %p41
    %p43 = scmp.ne.s32.totalorder %s32, %s35
    %p44 = scmp.eq.s32.totalorder %s13, 1
    %p45 = por %p43, %p44
    %p46 = scmp.ne.s32.totalorder %s35, %s36
    %p47 = scmp.eq.s32.totalorder %s13, 0
    %p48 = por %p46, %p47
    %p49 = scmp.ne.s32.totalorder %s35, %s36
    %p50 = scmp.eq.s32.totalorder %s14, 1
    %p51 = por %p49, %p50
    %p53 = scmp.ne.s32.totalorder %s36, %s52
    %p54 = scmp.eq.s32.totalorder %s14, 0
    %p55 = por %p53, %p54
    %s56 = ssub.s32 %s15, %s27
    %p57 = scmp.eq.s32.totalorder %s56, 0
    %s59 = sadd.s32 %s58, 1
    %s60 = scalar_select %p57, %s58, %s59
    %p63 = pneg %p57
    %p64 = scmp.eq.s32.totalorder %s8, 1
    %p65 = por %p63, %p64
    %p66 = scmp.ne.s32.totalorder %s58, %s61
    %p67 = scmp.eq.s32.totalorder %s8, 0
    %p68 = por %p66, %p67
    %p69 = scmp.ne.s32.totalorder %s58, %s61
    %p70 = scmp.eq.s32.totalorder %s13, 1
    %p71 = por %p69, %p70
    %p72 = scmp.ne.s32.totalorder %s61, %s62
    %p73 = scmp.eq.s32.totalorder %s13, 0
    %p74 = por %p72, %p73
    %p75 = scmp.ne.s32.totalorder %s61, %s62
    %p76 = scmp.eq.s32.totalorder %s14, 1
    %p77 = por %p75, %p76
    %p79 = scmp.ne.s32.totalorder %s62, %s78
    %p80 = scmp.eq.s32.totalorder %s14, 0
    %p81 = por %p79, %p80
    %s82 = ssub.s32 %s15, %s27
    %s83 = ssub.s32 %s16, %s23
    %s84 = sor.u32 %s82, %s83
    %p85 = scmp.eq.s32.totalorder %s84, 0
    %s87 = sadd.s32 %s86, 1
    %s88 = scalar_select %p85, %s86, %s87
    %p91 = pneg %p85
    %p92 = scmp.eq.s32.totalorder %s8, 1
    %p93 = por %p91, %p92
    %p94 = scmp.ne.s32.totalorder %s86, %s89
    %p95 = scmp.eq.s32.totalorder %s8, 0
    %p96 = por %p94, %p95
    %p97 = scmp.ne.s32.totalorder %s86, %s89
    %p98 = scmp.eq.s32.totalorder %s13, 1
    %p99 = por %p97, %p98
    %p100 = scmp.ne.s32.totalorder %s89, %s90
    %p101 = scmp.eq.s32.totalorder %s13, 0
    %p102 = por %p100, %p101
    %p103 = scmp.ne.s32.totalorder %s89, %s90
    %p104 = scmp.eq.s32.totalorder %s14, 1
    %p105 = por %p103, %p104
    %p107 = scmp.ne.s32.totalorder %s90, %s106
    %p108 = scmp.eq.s32.totalorder %s14, 0
    %p109 = por %p107, %p108
    %p110 = scmp.le.s32.totalorder 1, %s8
    %p111 = scmp.lt.s32.totalorder %s8, 3
    %p112 = pnand %p110, %p111
    %p113 = pneg %p112
    // Predicated region
    $region9: #{dgcnn_forward.14} parent=5 // pred_check
      _
    $region10: #{dgcnn_forward.14} parent=5 // pred_check_branch
      %115 = sbr.rel (%p112) target = $region12
    $region11: #{dgcnn_forward.14} parent=5 // pred_region
      %s116 = ssub.s32 %s8, 1
    $region12: #{dgcnn_forward.14} parent=5 // pred_fallthru
      _
    %p117 = scmp.lt.s32.totalorder %s8, 2
    // Predicated region
    $region13: #{dgcnn_forward.14} parent=5 // pred_check
      %p118 = pneg %p117
    $region14: #{dgcnn_forward.14} parent=5 // pred_check_branch
      %120 = sbr.rel (%p118) target = $region16
    $region15: #{dgcnn_forward.14} parent=5 // pred_region
      // Predicated region
      $region17: #{dgcnn_forward.14} parent=15 // pred_check
        %p121 = pneg %p42
      $region18: #{dgcnn_forward.14} parent=15 // pred_check_branch
        %123 = sbr.rel (%p121) target = $region20
      $region19: #{dgcnn_forward.14} parent=15 // pred_region
        %s124 = smul.u32 2, %s16
        %p125 = scmp.lt.s32.totalorder %s15, 1
        %s126 = scalar_select %p125, %s15, 1
        %p127 = scmp.lt.s32.totalorder %s124, 1
        %s128 = scalar_select %p127, %s124, 1
        %s129 = smul.addr %s126, 2
        %s130 = sadd.s32 %s128, %s129
        %s131 = smul.addr %s130, 8
        %s132 = scalar_lea.vmem %s0, %s131
        %s133 = smul.u32 2, %s16
      $region20: #{dgcnn_forward.14} parent=15 // pred_fallthru
        _
      // Predicated region
      $region21: #{dgcnn_forward.14} parent=15 // pred_check
        %p134 = pneg %p68
      $region22: #{dgcnn_forward.14} parent=15 // pred_check_branch
        %136 = sbr.rel (%p134) target = $region24
      $region23: #{dgcnn_forward.14} parent=15 // pred_region
        %p137 = scmp.lt.s32.totalorder %s15, 1
        %s138 = scalar_select %p137, %s15, 1
        %s139 = smul.addr %s138, 2
        %s140 = smul.addr %s139, 8
        %s141 = scalar_lea.vmem %s1, %s140
      $region24: #{dgcnn_forward.14} parent=15 // pred_fallthru
        _
    $region16: #{dgcnn_forward.14} parent=5 // pred_fallthru
      _
    %p142 = scmp.le.s32.totalorder 1, %s8
    %p143 = scmp.lt.s32.totalorder %s8, 3
    %p144 = pnand %p142, %p143
    %p145 = pneg %p144
    // Predicated region
    $region25: #{dgcnn_forward.14} parent=5 // pred_check
      _
    $region26: #{dgcnn_forward.14} parent=5 // pred_check_branch
      %147 = sbr.rel (%p144) target = $region28
    $region27: #{dgcnn_forward.14} parent=5 // pred_region
      %s148 = ssub.s32 %s8, 1
      %s149 = smul.u32 2, %s18
      %p150 = scmp.lt.s32.totalorder %s17, 1
      %s151 = scalar_select %p150, %s17, 1
      %p152 = scmp.lt.s32.totalorder %s149, 1
      %s153 = scalar_select %p152, %s149, 1
      %s154 = smul.addr %s151, 2
      %s155 = sadd.s32 %s153, %s154
      %s156 = smul.addr %s155, 8
      %s157 = scalar_lea.vmem %s0, %s156
      %p158 = pneg %p48
      %p159 = pneg %p45
      %p160 = scmp.lt.s32.totalorder %s17, 1
      %s161 = scalar_select %p160, %s17, 1
      %s162 = smul.addr %s161, 2
      %s163 = smul.addr %s162, 8
      %s164 = scalar_lea.vmem %s1, %s163
      %p165 = pneg %p74
      %p166 = pneg %p71
      %p167 = pneg %p102
      %p168 = pneg %p99
      %s169 = smul.u32 2, %s18
      %p170 = scmp.lt.s32.totalorder %s17, 1
      %s171 = scalar_select %p170, %s17, 1
      %p172 = scmp.lt.s32.totalorder %s169, 1
      %s173 = scalar_select %p172, %s169, 1
      %s174 = smul.addr %s171, 2
      %s175 = sadd.s32 %s173, %s174
      %s176 = smul.addr %s175, 8
      %s177 = scalar_lea.vmem %s2, %s176
      %s178 = smul.u32 2, %s18
      %p179 = scmp.lt.s32.totalorder %s17, 1
      %s180 = scalar_select %p179, %s17, 1
      %p181 = scmp.lt.s32.totalorder %s178, 1
      %s182 = scalar_select %p181, %s178, 1
      %s183 = smul.addr %s180, 2
      %s184 = sadd.s32 %s182, %s183
      %s185 = smul.addr %s184, 8
      %s186 = scalar_lea.vmem %s0, %s185
      %s187 = smul.u32 2, %s18
      %p188 = scmp.lt.s32.totalorder %s17, 1
      %s189 = scalar_select %p188, %s17, 1
      %s190 = smul.addr %s189, 2
      %s191 = smul.addr %s190, 8
      %s192 = scalar_lea.vmem %s1, %s191
      %s193 = smul.u32 2, %s18
      %p194 = scmp.lt.s32.totalorder %s17, 1
      %s195 = scalar_select %p194, %s17, 1
      %p196 = scmp.lt.s32.totalorder %s193, 1
      %s197 = scalar_select %p196, %s193, 1
      %s198 = smul.addr %s195, 2
      %s199 = sadd.s32 %s197, %s198
      %s200 = smul.addr %s199, 8
      %s201 = scalar_lea.vmem %s2, %s200
      %s202 = smul.u32 2, %s18
      %v203 = vld [vmem:[%s186] sm:$0xff]
      %v204 = vld [vmem:[%s186 + $0x8] sm:$0xff]
      %v205 = vld [vmem:[%s192] sm:$0xff]
      %v206 = vld [vmem:[%s192 + $0x8] sm:$0xff]
      %207 = vmatprep.subr.mxu0 0.0
      %208 = vmatpush1.xpose.msra.mxu0 %v205
      %209 = vmatprep.subr.mxu0 0.0
      %210 = vmatpush1.xpose.msra.mxu0 %v206
      %211 = vmatprep.subr.mxu0 0.0
      %212 = vmatpush1.xpose.msra.mxu0 0.0
      %213 = vmatprep.subr.mxu0 0.0
      %214 = vmatpush1.xpose.msra.mxu0 0.0
      %215 = vmatprep.subr.mxu0 0.0
      %216 = vmatpush1.xpose.msra.mxu0 0.0
      %217 = vmatprep.subr.mxu0 0.0
      %218 = vmatpush1.xpose.msra.mxu0 0.0
      %219 = vmatprep.subr.mxu0 0.0
      %220 = vmatpush1.xpose.msra.mxu0 0.0
      %221 = vmatprep.subr.mxu0 0.0
      %222 = vmatpush1.xpose.msra.mxu0 0.0
      %223 = vmatprep.subr.mxu0 0.0
      %224 = vmatpush1.xpose.msra.mxu0 0.0
      %225 = vmatprep.subr.mxu0 0.0
      %226 = vmatpush1.xpose.msra.mxu0 0.0
      %227 = vmatprep.subr.mxu0 0.0
      %228 = vmatpush1.xpose.msra.mxu0 0.0
      %229 = vmatprep.subr.mxu0 0.0
      %230 = vmatpush1.xpose.msra.mxu0 0.0
      %231 = vmatprep.subr.mxu0 0.0
      %232 = vmatpush1.xpose.msra.mxu0 0.0
      %233 = vmatprep.subr.mxu0 0.0
      %234 = vmatpush1.xpose.msra.mxu0 0.0
      %235 = vmatprep.subr.mxu0 0.0
      %236 = vmatpush1.xpose.msra.mxu0 0.0
      %237 = vmatprep.subr.mxu0 0.0
      %238 = vmatpush1.xpose.msra.mxu0 0.0
      %239 = vmatprep.subr.mxu0 0.0
      %240 = vmatpush1.xpose.msra.mxu0 0.0
      %241 = vmatprep.subr.mxu0 0.0
      %242 = vmatpush1.xpose.msra.mxu0 0.0
      %243 = vmatprep.subr.mxu0 0.0
      %244 = vmatpush1.xpose.msra.mxu0 0.0
      %245 = vmatprep.subr.mxu0 0.0
      %246 = vmatpush1.xpose.msra.mxu0 0.0
      %247 = vmatprep.subr.mxu0 0.0
      %248 = vmatpush1.xpose.msra.mxu0 0.0
      %249 = vmatprep.subr.mxu0 0.0
      %250 = vmatpush1.xpose.msra.mxu0 0.0
      %251 = vmatprep.subr.mxu0 0.0
      %252 = vmatpush1.xpose.msra.mxu0 0.0
      %253 = vmatprep.subr.mxu0 0.0
      %254 = vmatpush1.xpose.msra.mxu0 0.0
      %255 = vmatprep.subr.mxu0 0.0
      %256 = vmatpush1.xpose.msra.mxu0 0.0
      %257 = vmatprep.subr.mxu0 0.0
      %258 = vmatpush1.xpose.msra.mxu0 0.0
      %259 = vmatprep.subr.mxu0 0.0
      %260 = vmatpush1.xpose.msra.mxu0 0.0
      %261 = vmatprep.subr.mxu0 0.0
      %262 = vmatpush1.xpose.msra.mxu0 0.0
      %263 = vmatprep.subr.mxu0 0.0
      %264 = vmatpush1.xpose.msra.mxu0 0.0
      %265 = vmatprep.subr.mxu0 0.0
      %266 = vmatpush1.xpose.msra.mxu0 0.0
      %267 = vmatprep.subr.mxu0 0.0
      %268 = vmatpush1.xpose.msra.mxu0 0.0
      %269 = vmatprep.subr.mxu0 0.0
      %270 = vmatpush1.xpose.msra.mxu0 0.0
      %271 = vmatprep.mubr.f32.mxu0 0.0
      %272 = vmatmul.mubr.f32.gmra.mrb[0].mxu0 %v203
      %v273 = vpop.f32.mrb[0].mxu0
      %v274 = vadd.f32 0.0, %v273
      %v275 = vpop.f32.mrb[0].mxu0
      %276 = vmatprep.mubr.f32.mxu0 0.0
      %277 = vmatmul.mubr.f32.gmra.mrb[0].mxu0 %v204
      %v278 = vpop.f32.mrb[0].mxu0
      %v279 = vadd.f32 0.0, %v278
      %v280 = vpop.f32.mrb[0].mxu0
      %281 = vdwg.mxu0
      %v282 = vmul.f32 %v203, %v203
      %v283 = vmul.f32 %v204, %v204
      %284 = vadd.xlane.f32.xlu0 %v282
      %v285 = vpop.xlane.xlu0 %284
      %286 = vadd.xlane.f32.xlu0 %v283
      %v287 = vpop.xlane.xlu0 %286
      %v288 = vmul.f32 %v205, %v205
      %v289 = vmul.f32 %v206, %v206
      %290 = vadd.xlane.f32.xlu0 %v288
      %v291 = vpop.xlane.xlu0 %290
      %292 = vadd.xlane.f32.xlu0 %v289
      %v293 = vpop.xlane.xlu0 %292
      %v294 = vmul.f32 %v274, 2.0
      %v295 = vmul.f32 %v279, 2.0
      %v296 = vsub.f32 %v294, %v285
      %v297 = vsub.f32 %v295, %v287
      %298 = vxpose.xlu0.b32.start [1/16] %v291, 128
      %299 = vxpose.xlu0.b32.cont [2/16] %v293, 128
      %300 = vxpose.xlu0.b32.cont [3/16] 0.0, 128
      %301 = vxpose.xlu0.b32.cont [4/16] 0.0, 128
      %302 = vxpose.xlu0.b32.cont [5/16] 0.0, 128
      %303 = vxpose.xlu0.b32.cont [6/16] 0.0, 128
      %304 = vxpose.xlu0.b32.cont [7/16] 0.0, 128
      %305 = vxpose.xlu0.b32.cont [8/16] 0.0, 128
      %306 = vxpose.xlu0.b32.cont [9/16] 0.0, 128
      %307 = vxpose.xlu0.b32.cont [10/16] 0.0, 128
      %308 = vxpose.xlu0.b32.cont [11/16] 0.0, 128
      %309 = vxpose.xlu0.b32.cont [12/16] 0.0, 128
      %310 = vxpose.xlu0.b32.cont [13/16] 0.0, 128
      %311 = vxpose.xlu0.b32.cont [14/16] 0.0, 128
      %312 = vxpose.xlu0.b32.cont [15/16] 0.0, 128
      %313 = vxpose.xlu0.b32.end [16/16] 0.0, 128
      %v314 = vpop.trf.xlu0
      %v315 = vpop.trf.xlu0
      %v316 = vpop.trf.xlu0
      %v317 = vpop.trf.xlu0
      %v318 = vpop.trf.xlu0
      %v319 = vpop.trf.xlu0
      %v320 = vpop.trf.xlu0
      %v321 = vpop.trf.xlu0
      %v322 = vpop.trf.xlu0
      %v323 = vpop.trf.xlu0
      %v324 = vpop.trf.xlu0
      %v325 = vpop.trf.xlu0
      %v326 = vpop.trf.xlu0
      %v327 = vpop.trf.xlu0
      %v328 = vpop.trf.xlu0
      %v329 = vpop.trf.xlu0
      %v330 = vlaneseq
      %v331 = vshrl.u32 %v330, 7
      %v332 = vsub.s32 0, %v331
      %v333 = vrot.slane %v314, %v332
      %v334 = vsub.f32 %v296, %v333
      %v335 = vsub.f32 %v297, %v333
      %vm336 = vcmask 130048
      %337 = vst.msk [vmem:[%s201] sm:$0xff] %vm336, %v334
      %338 = vst.msk [vmem:[%s201 + $0x8] sm:$0xff] %vm336, %v335
      %s339 = smul.u32 2, %s18
      %p340 = scmp.lt.s32.totalorder %s17, 1
      %s341 = scalar_select %p340, %s17, 1
      %p342 = scmp.lt.s32.totalorder %s339, 1
      %s343 = scalar_select %p342, %s339, 1
      %s344 = smul.addr %s341, 2
      %s345 = sadd.s32 %s343, %s344
      %s346 = smul.addr %s345, 8
      %s347 = scalar_lea.vmem %s2, %s346
      // Predicated region
      $region29: #{dgcnn_forward.14} parent=27 // pred_check
        %p348 = pneg %p99
      $region30: #{dgcnn_forward.14} parent=27 // pred_check_branch
        %350 = sbr.rel (%p348) target = $region32
      $region31: #{dgcnn_forward.14} parent=27 // pred_region
        %s351 = smul.u32 2, %s18
      $region32: #{dgcnn_forward.14} parent=27 // pred_fallthru
        _
    $region28: #{dgcnn_forward.14} parent=5 // pred_fallthru
      _
    %p352 = scmp.le.s32.totalorder 2, %s8
    // Predicated region
    $region33: #{dgcnn_forward.14} parent=5 // pred_check
      %p353 = pneg %p352
    $region34: #{dgcnn_forward.14} parent=5 // pred_check_branch
      %355 = sbr.rel (%p353) target = $region36
    $region35: #{dgcnn_forward.14} parent=5 // pred_region
      %s356 = ssub.s32 %s8, 2
      // Predicated region
      $region37: #{dgcnn_forward.14} parent=35 // pred_check
        %p357 = pneg %p105
      $region38: #{dgcnn_forward.14} parent=35 // pred_check_branch
        %359 = sbr.rel (%p357) target = $region40
      $region39: #{dgcnn_forward.14} parent=35 // pred_region
        %s360 = smul.u32 2, %s20
        %p361 = scmp.lt.s32.totalorder %s19, 1
        %s362 = scalar_select %p361, %s19, 1
        %p363 = scmp.lt.s32.totalorder %s360, 1
        %s364 = scalar_select %p363, %s360, 1
        %s365 = smul.addr %s362, 2
        %s366 = sadd.s32 %s364, %s365
        %s367 = smul.addr %s366, 8
        %s368 = scalar_lea.vmem %s2, %s367
      $region40: #{dgcnn_forward.14} parent=35 // pred_fallthru
        _
    $region36: #{dgcnn_forward.14} parent=5 // pred_fallthru
      _
  $region6: #{dgcnn_forward.14} parent=0 // loop_footer
    %s12 = sadd.s32 1, %s8
  $region7: #{dgcnn_forward.14} parent=0 // loop_footer_branch
    %7 = sbr.rel target = $region3
  $region8: #{dgcnn_forward.14} parent=0 // loop_exit
    _

// kernel: dgcnn_forward.13
$region0: #{dgcnn_forward.13}
  #allocation0 [shape = 'u32[]', space=smem, size = 0x4, offset = 0x4, fixed_abs, tag = 'smem constant byte address 0x4 - core index']
  #allocation1 [shape = 'u32[144,128]{1,0:T(1,128)}', space=vmem, size = 0x12000, scoped, tag = 'internal scratch']
  %s0 = inlined_call_operand.vmem [shape: bf16[3,32,64], index: 0, kind: input, shape index: {}]
  %s1 = inlined_call_operand.vmem [shape: bf16[32,64], index: 1, kind: input, shape index: {}]
  %s2 = inlined_call_operand.vmem [shape: bf16[64,128], index: 2, kind: input, shape index: {}]
  %s3 = inlined_call_operand.vmem [shape: bf16[64,128], index: 3, kind: input, shape index: {}]
  %s4 = inlined_call_operand.vmem [shape: f32[1,128], index: 4, kind: input, shape index: {}]
  %s5 = inlined_call_operand.vmem [shape: f32[1,128], index: 5, kind: input, shape index: {}]
  %s6 = inlined_call_operand.vmem [shape: f32[32,128], index: 6, kind: output, shape index: {}]
  %s7 = sld [smem:[#allocation0]]
  $region34: #{dgcnn_forward.13} parent=0
    _
  %s9 = ssub.s32 1, %s7
  %s10 = scalar_select 0, %s9, %s7
  // Predicated region
  $region2: #{dgcnn_forward.13} parent=0 // pred_check
    _
  $region3: #{dgcnn_forward.13} parent=0 // pred_check_branch
    %12 = sbr.rel (0) target = $region5
  $region4: #{dgcnn_forward.13} parent=0 // pred_region
    _
  $region5: #{dgcnn_forward.13} parent=0 // pred_fallthru
    _
  // Predicated region
  $region6: #{dgcnn_forward.13} parent=0 // pred_check
    _
  $region7: #{dgcnn_forward.13} parent=0 // pred_check_branch
    %14 = sbr.rel (0) target = $region9
  $region8: #{dgcnn_forward.13} parent=0 // pred_region
    _
  $region9: #{dgcnn_forward.13} parent=0 // pred_fallthru
    _
  // Predicated region
  $region10: #{dgcnn_forward.13} parent=0 // pred_check
    _
  $region11: #{dgcnn_forward.13} parent=0 // pred_check_branch
    %16 = sbr.rel (0) target = $region13
  $region12: #{dgcnn_forward.13} parent=0 // pred_region
    _
  $region13: #{dgcnn_forward.13} parent=0 // pred_fallthru
    _
  // Predicated region
  $region14: #{dgcnn_forward.13} parent=0 // pred_check
    _
  $region15: #{dgcnn_forward.13} parent=0 // pred_check_branch
    %18 = sbr.rel (0) target = $region17
  $region16: #{dgcnn_forward.13} parent=0 // pred_region
    _
  $region17: #{dgcnn_forward.13} parent=0 // pred_fallthru
    _
  // Predicated region
  $region18: #{dgcnn_forward.13} parent=0 // pred_check
    _
  $region19: #{dgcnn_forward.13} parent=0 // pred_check_branch
    %20 = sbr.rel (0) target = $region21
  $region20: #{dgcnn_forward.13} parent=0 // pred_region
    _
  $region21: #{dgcnn_forward.13} parent=0 // pred_fallthru
    _
  // Predicated region
  $region22: #{dgcnn_forward.13} parent=0 // pred_check
    _
  $region23: #{dgcnn_forward.13} parent=0 // pred_check_branch
    %22 = sbr.rel (0) target = $region25
  $region24: #{dgcnn_forward.13} parent=0 // pred_region
    _
  $region25: #{dgcnn_forward.13} parent=0 // pred_fallthru
    _
  %v24 = vld [vmem:[%s0] sm:$0xf]
  %v25 = vld [vmem:[%s0 + $0x4] sm:$0xf]
  %v26 = vld [vmem:[%s0 + $0x8] sm:$0xf]
  %v27 = vld [vmem:[%s0 + $0xc] sm:$0xf]
  %v28 = vld [vmem:[%s0 + $0x10] sm:$0xf]
  %v29 = vld [vmem:[%s0 + $0x14] sm:$0xf]
  %v30 = vld [vmem:[%s0 + $0x18] sm:$0xf]
  %v31 = vld [vmem:[%s0 + $0x1c] sm:$0xf]
  %v32 = vld [vmem:[%s0 + $0x20] sm:$0xf]
  %v33 = vld [vmem:[%s0 + $0x24] sm:$0xf]
  %v34 = vld [vmem:[%s0 + $0x28] sm:$0xf]
  %v35 = vld [vmem:[%s0 + $0x2c] sm:$0xf]
  %v36 = vld [vmem:[%s2] sm:$0xf]
  %v37 = vld [vmem:[%s2 + $0x4] sm:$0xf]
  %v38 = vld [vmem:[%s2 + $0x8] sm:$0xf]
  %v39 = vld [vmem:[%s2 + $0xc] sm:$0xf]
  %v40 = vld [vmem:[%s2 + $0x10] sm:$0xf]
  %v41 = vld [vmem:[%s2 + $0x14] sm:$0xf]
  %v42 = vld [vmem:[%s2 + $0x18] sm:$0xf]
  %v43 = vld [vmem:[%s2 + $0x1c] sm:$0xf]
  %v56 = vunpack.c.l.b16 %v24
  %v57 = vunpack.c.l.b16 %v25
  %v58 = vunpack.c.l.b16 %v26
  %v59 = vunpack.c.l.b16 %v27
  %v60 = vunpack.c.l.b16 %v28
  %v61 = vunpack.c.l.b16 %v29
  %v62 = vunpack.c.l.b16 %v30
  %v63 = vunpack.c.l.b16 %v31
  %v64 = vunpack.c.l.b16 %v32
  %v65 = vunpack.c.l.b16 %v33
  %v66 = vunpack.c.l.b16 %v34
  %v67 = vunpack.c.l.b16 %v35
  %v68 = vpack.c.b16 %v57, %v56
  %v69 = vpack.c.b16 %v59, %v58
  %v70 = vpack.c.b16 %v61, %v60
  %v71 = vpack.c.b16 %v63, %v62
  %v72 = vpack.c.b16 %v65, %v64
  %v73 = vpack.c.b16 %v67, %v66
  %v82 = vunpack.c.l.b16 %v36
  %v83 = vunpack.c.l.b16 %v37
  %v84 = vunpack.c.l.b16 %v38
  %v85 = vunpack.c.l.b16 %v39
  %v86 = vunpack.c.l.b16 %v40
  %v87 = vunpack.c.l.b16 %v41
  %v88 = vunpack.c.l.b16 %v42
  %v89 = vunpack.c.l.b16 %v43
  %v90 = vpack.c.b16 %v83, %v82
  %v91 = vpack.c.b16 %v85, %v84
  %v92 = vpack.c.b16 %v87, %v86
  %v93 = vpack.c.b16 %v89, %v88
  %vm98 = vcmask 523264
  %v100 = vsel %vm98, %v68, 0
  %v103 = vsel %vm98, %v69, 0
  %v106 = vsel %vm98, %v70, 0
  %v109 = vsel %vm98, %v71, 0
  %v112 = vsel %vm98, %v72, 0
  %v115 = vsel %vm98, %v73, 0
  %117 = vmatprep.subr.bf16.mxu0 0
  %118 = vmatpush1.bf16.msra.mxu0 %v90
  %119 = vmatprep.subr.bf16.mxu0 0
  %120 = vmatpush1.bf16.msra.mxu0 %v91
  %121 = vmatprep.subr.bf16.mxu0 0
  %122 = vmatpush1.bf16.msra.mxu0 %v92
  %123 = vmatprep.subr.bf16.mxu0 0
  %124 = vmatpush1.bf16.msra.mxu0 %v93
  %125 = vmatprep.subr.bf16.mxu0 0
  %126 = vmatpush1.bf16.msra.mxu0 0
  %127 = vmatprep.subr.bf16.mxu0 0
  %128 = vmatpush1.bf16.msra.mxu0 0
  %129 = vmatprep.subr.bf16.mxu0 0
  %130 = vmatpush1.bf16.msra.mxu0 0
  %131 = vmatprep.subr.bf16.mxu0 0
  %132 = vmatpush1.bf16.msra.mxu0 0
  %133 = vmatprep.subr.bf16.mxu0 0
  %134 = vmatpush1.bf16.msra.mxu0 0
  %135 = vmatprep.subr.bf16.mxu0 0
  %136 = vmatpush1.bf16.msra.mxu0 0
  %137 = vmatprep.subr.bf16.mxu0 0
  %138 = vmatpush1.bf16.msra.mxu0 0
  %139 = vmatprep.subr.bf16.mxu0 0
  %140 = vmatpush1.bf16.msra.mxu0 0
  %141 = vmatprep.subr.bf16.mxu0 0
  %142 = vmatpush1.bf16.msra.mxu0 0
  %143 = vmatprep.subr.bf16.mxu0 0
  %144 = vmatpush1.bf16.msra.mxu0 0
  %145 = vmatprep.subr.bf16.mxu0 0
  %146 = vmatpush1.bf16.msra.mxu0 0
  %147 = vmatprep.subr.bf16.mxu0 0
  %148 = vmatpush1.bf16.msra.mxu0 0
  %149 = vmatprep.mubr.bf16.mxu0 0
  %150 = vmatmul.mubr.bf16.gmra.mrb[0].mxu0 %v100
  %v151 = vpop.f32.mrb[0].mxu0
  %v152 = vadd.f32 0.0, %v151
  %v153 = vpop.f32.mrb[0].mxu0
  %v154 = vpop.f32.mrb[0].mxu0
  %v155 = vadd.f32 0.0, %v154
  %v156 = vpop.f32.mrb[0].mxu0
  %157 = vmatprep.mubr.bf16.mxu0 0
  %158 = vmatmul.mubr.bf16.gmra.mrb[0].mxu0 %v103
  %v159 = vpop.f32.mrb[0].mxu0
  %v160 = vadd.f32 0.0, %v159
  %v161 = vpop.f32.mrb[0].mxu0
  %v162 = vpop.f32.mrb[0].mxu0
  %v163 = vadd.f32 0.0, %v162
  %v164 = vpop.f32.mrb[0].mxu0
  %165 = vmatprep.mubr.bf16.mxu0 0
  %166 = vmatmul.mubr.bf16.gmra.mrb[0].mxu0 %v106
  %v167 = vpop.f32.mrb[0].mxu0
  %v168 = vadd.f32 0.0, %v167
  %v169 = vpop.f32.mrb[0].mxu0
  %v170 = vpop.f32.mrb[0].mxu0
  %v171 = vadd.f32 0.0, %v170
  %v172 = vpop.f32.mrb[0].mxu0
  %173 = vmatprep.mubr.bf16.mxu0 0
  %174 = vmatmul.mubr.bf16.gmra.mrb[0].mxu0 %v109
  %v175 = vpop.f32.mrb[0].mxu0
  %v176 = vadd.f32 0.0, %v175
  %v177 = vpop.f32.mrb[0].mxu0
  %v178 = vpop.f32.mrb[0].mxu0
  %v179 = vadd.f32 0.0, %v178
  %v180 = vpop.f32.mrb[0].mxu0
  %181 = vmatprep.mubr.bf16.mxu0 0
  %182 = vmatmul.mubr.bf16.gmra.mrb[0].mxu0 %v112
  %v183 = vpop.f32.mrb[0].mxu0
  %v184 = vadd.f32 0.0, %v183
  %v185 = vpop.f32.mrb[0].mxu0
  %v186 = vpop.f32.mrb[0].mxu0
  %v187 = vadd.f32 0.0, %v186
  %v188 = vpop.f32.mrb[0].mxu0
  %189 = vmatprep.mubr.bf16.mxu0 0
  %190 = vmatmul.mubr.bf16.gmra.mrb[0].mxu0 %v115
  %v191 = vpop.f32.mrb[0].mxu0
  %v192 = vadd.f32 0.0, %v191
  %v193 = vpop.f32.mrb[0].mxu0
  %v194 = vpop.f32.mrb[0].mxu0
  %v195 = vadd.f32 0.0, %v194
  %v196 = vpop.f32.mrb[0].mxu0
  %197 = vdwg.mxu0
  %v198 = vld [vmem:[%s1] sm:$0xf]
  %v199 = vld [vmem:[%s1 + $0x4] sm:$0xf]
  %v200 = vld [vmem:[%s1 + $0x8] sm:$0xf]
  %v201 = vld [vmem:[%s1 + $0xc] sm:$0xf]
  %v202 = vld [vmem:[%s3] sm:$0xf]
  %v203 = vld [vmem:[%s3 + $0x4] sm:$0xf]
  %v204 = vld [vmem:[%s3 + $0x8] sm:$0xf]
  %v205 = vld [vmem:[%s3 + $0xc] sm:$0xf]
  %v206 = vld [vmem:[%s3 + $0x10] sm:$0xf]
  %v207 = vld [vmem:[%s3 + $0x14] sm:$0xf]
  %v208 = vld [vmem:[%s3 + $0x18] sm:$0xf]
  %v209 = vld [vmem:[%s3 + $0x1c] sm:$0xf]
  %v214 = vunpack.c.l.b16 %v198
  %v215 = vunpack.c.l.b16 %v199
  %v216 = vunpack.c.l.b16 %v200
  %v217 = vunpack.c.l.b16 %v201
  %v218 = vpack.c.b16 %v215, %v214
  %v219 = vpack.c.b16 %v217, %v216
  %v228 = vunpack.c.l.b16 %v202
  %v229 = vunpack.c.l.b16 %v203
  %v230 = vunpack.c.l.b16 %v204
  %v231 = vunpack.c.l.b16 %v205
  %v232 = vunpack.c.l.b16 %v206
  %v233 = vunpack.c.l.b16 %v207
  %v234 = vunpack.c.l.b16 %v208
  %v235 = vunpack.c.l.b16 %v209
  %v236 = vpack.c.b16 %v229, %v228
  %v237 = vpack.c.b16 %v231, %v230
  %v238 = vpack.c.b16 %v233, %v232
  %v239 = vpack.c.b16 %v235, %v234
  %v245 = vsel %vm98, %v218, 0
  %v248 = vsel %vm98, %v219, 0
  %250 = vmatprep.subr.bf16.mxu0 0
  %251 = vmatpush1.bf16.msra.mxu0 %v236
  %252 = vmatprep.subr.bf16.mxu0 0
  %253 = vmatpush1.bf16.msra.mxu0 %v237
  %254 = vmatprep.subr.bf16.mxu0 0
  %255 = vmatpush1.bf16.msra.mxu0 %v238
  %256 = vmatprep.subr.bf16.mxu0 0
  %257 = vmatpush1.bf16.msra.mxu0 %v239
  %258 = vmatprep.subr.bf16.mxu0 0
  %259 = vmatpush1.bf16.msra.mxu0 0
  %260 = vmatprep.subr.bf16.mxu0 0
  %261 = vmatpush1.bf16.msra.mxu0 0
  %262 = vmatprep.subr.bf16.mxu0 0
  %263 = vmatpush1.bf16.msra.mxu0 0
  %264 = vmatprep.subr.bf16.mxu0 0
  %265 = vmatpush1.bf16.msra.mxu0 0
  %266 = vmatprep.subr.bf16.mxu0 0
  %267 = vmatpush1.bf16.msra.mxu0 0
  %268 = vmatprep.subr.bf16.mxu0 0
  %269 = vmatpush1.bf16.msra.mxu0 0
  %270 = vmatprep.subr.bf16.mxu0 0
  %271 = vmatpush1.bf16.msra.mxu0 0
  %272 = vmatprep.subr.bf16.mxu0 0
  %273 = vmatpush1.bf16.msra.mxu0 0
  %274 = vmatprep.subr.bf16.mxu0 0
  %275 = vmatpush1.bf16.msra.mxu0 0
  %276 = vmatprep.subr.bf16.mxu0 0
  %277 = vmatpush1.bf16.msra.mxu0 0
  %278 = vmatprep.subr.bf16.mxu0 0
  %279 = vmatpush1.bf16.msra.mxu0 0
  %280 = vmatprep.subr.bf16.mxu0 0
  %281 = vmatpush1.bf16.msra.mxu0 0
  %282 = vmatprep.mubr.bf16.mxu0 0
  %283 = vmatmul.mubr.bf16.gmra.mrb[0].mxu0 %v245
  %v284 = vpop.f32.mrb[0].mxu0
  %v285 = vadd.f32 0.0, %v284
  %v286 = vpop.f32.mrb[0].mxu0
  %v287 = vpop.f32.mrb[0].mxu0
  %v288 = vadd.f32 0.0, %v287
  %v289 = vpop.f32.mrb[0].mxu0
  %290 = vmatprep.mubr.bf16.mxu0 0
  %291 = vmatmul.mubr.bf16.gmra.mrb[0].mxu0 %v248
  %v292 = vpop.f32.mrb[0].mxu0
  %v293 = vadd.f32 0.0, %v292
  %v294 = vpop.f32.mrb[0].mxu0
  %v295 = vpop.f32.mrb[0].mxu0
  %v296 = vadd.f32 0.0, %v295
  %v297 = vpop.f32.mrb[0].mxu0
  %298 = vdwg.mxu0
  %v299 = vadd.f32 %v152, %v285
  %v300 = vadd.f32 %v155, %v288
  %v301 = vadd.f32 %v160, %v293
  %v302 = vadd.f32 %v163, %v296
  %v303 = vadd.f32 %v168, %v285
  %v304 = vadd.f32 %v171, %v288
  %v305 = vadd.f32 %v176, %v293
  %v306 = vadd.f32 %v179, %v296
  %v307 = vadd.f32 %v184, %v285
  %v308 = vadd.f32 %v187, %v288
  %v309 = vadd.f32 %v192, %v293
  %v310 = vadd.f32 %v195, %v296
  %v311 = vld [vmem:[%s4] sm:$0x1]
  %v313 = vlaneseq
  %v314 = vshrl.u32 %v313, 7
  %v315 = vsub.s32 0, %v314
  %v316 = vrot.slane %v311, %v315
  %v318 = vmul.f32 %v299, %v316
  %v319 = vmul.f32 %v300, %v316
  %v320 = vmul.f32 %v301, %v316
  %v321 = vmul.f32 %v302, %v316
  %v322 = vmul.f32 %v303, %v316
  %v323 = vmul.f32 %v304, %v316
  %v324 = vmul.f32 %v305, %v316
  %v325 = vmul.f32 %v306, %v316
  %v326 = vmul.f32 %v307, %v316
  %v327 = vmul.f32 %v308, %v316
  %v328 = vmul.f32 %v309, %v316
  %v329 = vmul.f32 %v310, %v316
  %v330 = vld [vmem:[%s5] sm:$0x1]
  %v332 = vlaneseq
  %v333 = vshrl.u32 %v332, 7
  %v334 = vsub.s32 0, %v333
  %v335 = vrot.slane %v330, %v334
  %v337 = vadd.f32 %v318, %v335
  %v338 = vadd.f32 %v319, %v335
  %v339 = vadd.f32 %v320, %v335
  %v340 = vadd.f32 %v321, %v335
  %v341 = vadd.f32 %v322, %v335
  %v342 = vadd.f32 %v323, %v335
  %v343 = vadd.f32 %v324, %v335
  %v344 = vadd.f32 %v325, %v335
  %v345 = vadd.f32 %v326, %v335
  %v346 = vadd.f32 %v327, %v335
  %v347 = vadd.f32 %v328, %v335
  %v348 = vadd.f32 %v329, %v335
  %vm349 = vcmp.ge.f32.partialorder %v337, 0.0
  %vm350 = vcmp.ge.f32.partialorder %v338, 0.0
  %vm351 = vcmp.ge.f32.partialorder %v339, 0.0
  %vm352 = vcmp.ge.f32.partialorder %v340, 0.0
  %vm353 = vcmp.ge.f32.partialorder %v341, 0.0
  %vm354 = vcmp.ge.f32.partialorder %v342, 0.0
  %vm355 = vcmp.ge.f32.partialorder %v343, 0.0
  %vm356 = vcmp.ge.f32.partialorder %v344, 0.0
  %vm357 = vcmp.ge.f32.partialorder %v345, 0.0
  %vm358 = vcmp.ge.f32.partialorder %v346, 0.0
  %vm359 = vcmp.ge.f32.partialorder %v347, 0.0
  %vm360 = vcmp.ge.f32.partialorder %v348, 0.0
  %v361 = vmul.f32 %v337, 0.2
  %v362 = vmul.f32 %v338, 0.2
  %v363 = vmul.f32 %v339, 0.2
  %v364 = vmul.f32 %v340, 0.2
  %v365 = vmul.f32 %v341, 0.2
  %v366 = vmul.f32 %v342, 0.2
  %v367 = vmul.f32 %v343, 0.2
  %v368 = vmul.f32 %v344, 0.2
  %v369 = vmul.f32 %v345, 0.2
  %v370 = vmul.f32 %v346, 0.2
  %v371 = vmul.f32 %v347, 0.2
  %v372 = vmul.f32 %v348, 0.2
  %v373 = vsel %vm349, %v337, %v361
  %v374 = vsel %vm350, %v338, %v362
  %v375 = vsel %vm351, %v339, %v363
  %v376 = vsel %vm352, %v340, %v364
  %v377 = vsel %vm353, %v341, %v365
  %v378 = vsel %vm354, %v342, %v366
  %v379 = vsel %vm355, %v343, %v367
  %v380 = vsel %vm356, %v344, %v368
  %v381 = vsel %vm357, %v345, %v369
  %v382 = vsel %vm358, %v346, %v370
  %v383 = vsel %vm359, %v347, %v371
  %v384 = vsel %vm360, %v348, %v372
  %v385 = vmax.f32 %v373, %v377
  %v386 = vmax.f32 %v385, %v381
  %v387 = vmax.f32 %v374, %v378
  %v388 = vmax.f32 %v387, %v382
  %v389 = vmax.f32 %v375, %v379
  %v390 = vmax.f32 %v389, %v383
  %v391 = vmax.f32 %v376, %v380
  %v392 = vmax.f32 %v391, %v384
  %393 = vst [vmem:[%s6] sm:$0xff] %v386
  %394 = vst [vmem:[%s6 + $0x8] sm:$0xff] %v388
  %395 = vst [vmem:[%s6 + $0x10] sm:$0xff] %v390
  %396 = vst [vmem:[%s6 + $0x18] sm:$0xff] %v392
  // Predicated region
  $region26: #{dgcnn_forward.13} parent=0 // pred_check
    _
  $region27: #{dgcnn_forward.13} parent=0 // pred_check_branch
    %398 = sbr.rel (0) target = $region29
  $region28: #{dgcnn_forward.13} parent=0 // pred_region
    _
  $region29: #{dgcnn_forward.13} parent=0 // pred_fallthru
    _
  // Predicated region
  $region30: #{dgcnn_forward.13} parent=0 // pred_check
    _
  $region31: #{dgcnn_forward.13} parent=0 // pred_check_branch
    %400 = sbr.rel (0) target = $region33
  $region32: #{dgcnn_forward.13} parent=0 // pred_region
    _
  $region33: #{dgcnn_forward.13} parent=0 // pred_fallthru
    _

// kernel: dgcnn_forward.16
$region0: #{dgcnn_forward.16}
  #allocation0 [shape = 'u32[]', space=smem, size = 0x4, offset = 0x4, fixed_abs, tag = 'smem constant byte address 0x4 - core index']
  #allocation1 [shape = 'u32[144,128]{1,0:T(1,128)}', space=vmem, size = 0x12000, scoped, tag = 'internal scratch']
  %s0 = inlined_call_operand.vmem [shape: f32[2,16,256], index: 0, kind: input, shape index: {}, may-alias: {0,1}]
  %s1 = inlined_call_operand.vmem [shape: f32[2,16,256], index: 1, kind: input, shape index: {}, may-alias: {0,1}]
  %s2 = inlined_call_operand.vmem [shape: f32[2,16,16], index: 2, kind: output, shape index: {}]
  %s3 = sld [smem:[#allocation0]]
  $region41: #{dgcnn_forward.16} parent=0
    _
  %s5 = ssub.s32 1, %s3
  %s6 = scalar_select 0, %s5, %s3
  loop: start=0, step=1, limit=4
  $region2: #{dgcnn_forward.16} parent=0 // loop_pre_header
    _
  $region3: #{dgcnn_forward.16} parent=0 // loop_header
    %s8 = sphi 0, %s12
    %p9 = scmp.ge.s32.totalorder %s8, 4
    %s15 = sphi 0, %s27
    %s16 = sphi 0, %s23
    %s17 = sphi 0, %s15
    %s18 = sphi 0, %s16
    %s19 = sphi 0, %s17
    %s20 = sphi 0, %s18
    %s32 = sphi 0, %s34
    %s35 = sphi 0, %s32
    %s36 = sphi 0, %s35
    %s52 = sphi 0, %s36
    %s58 = sphi 0, %s60
    %s61 = sphi 0, %s58
    %s62 = sphi 0, %s61
    %s78 = sphi 0, %s62
    %s86 = sphi 0, %s88
    %s89 = sphi 0, %s86
    %s90 = sphi 0, %s89
    %s106 = sphi 0, %s90
  $region4: #{dgcnn_forward.16} parent=0 // loop_header_branch
    %11 = sbr.rel (%p9) target = $region8
  $region5: #{dgcnn_forward.16} parent=0 // loop_body
    %s13 = ssub.s32 %s8, 1
    %s14 = ssub.s32 %s8, 2
    %s21 = sadd.s32 1, %s16
    %p22 = scmp.ge.s32.totalorder %s21, 1
    %s23 = scalar_select %p22, 0, %s21
    %s24 = sadd.s32 1, %s15
    %s25 = scalar_select %p22, %s24, %s15
    %p26 = scmp.ge.s32.totalorder %s25, 2
    %s27 = scalar_select %p26, 0, %s25
    %s28 = ssub.s32 %s15, %s27
    %s29 = ssub.s32 %s16, %s23
    %s30 = sor.u32 %s28, %s29
    %p31 = scmp.eq.s32.totalorder %s30, 0
    %s33 = sadd.s32 %s32, 1
    %s34 = scalar_select %p31, %s32, %s33
    %p37 = pneg %p31
    %p38 = scmp.eq.s32.totalorder %s8, 1
    %p39 = por %p37, %p38
    %p40 = scmp.ne.s32.totalorder %s32, %s35
    %p41 = scmp.eq.s32.totalorder %s8, 0
    %p42 = por %p40, %p41
    %p43 = scmp.ne.s32.totalorder %s32, %s35
    %p44 = scmp.eq.s32.totalorder %s13, 1
    %p45 = por %p43, %p44
    %p46 = scmp.ne.s32.totalorder %s35, %s36
    %p47 = scmp.eq.s32.totalorder %s13, 0
    %p48 = por %p46, %p47
    %p49 = scmp.ne.s32.totalorder %s35, %s36
    %p50 = scmp.eq.s32.totalorder %s14, 1
    %p51 = por %p49, %p50
    %p53 = scmp.ne.s32.totalorder %s36, %s52
    %p54 = scmp.eq.s32.totalorder %s14, 0
    %p55 = por %p53, %p54
    %s56 = ssub.s32 %s15, %s27
    %p57 = scmp.eq.s32.totalorder %s56, 0
    %s59 = sadd.s32 %s58, 1
    %s60 = scalar_select %p57, %s58, %s59
    %p63 = pneg %p57
    %p64 = scmp.eq.s32.totalorder %s8, 1
    %p65 = por %p63, %p64
    %p66 = scmp.ne.s32.totalorder %s58, %s61
    %p67 = scmp.eq.s32.totalorder %s8, 0
    %p68 = por %p66, %p67
    %p69 = scmp.ne.s32.totalorder %s58, %s61
    %p70 = scmp.eq.s32.totalorder %s13, 1
    %p71 = por %p69, %p70
    %p72 = scmp.ne.s32.totalorder %s61, %s62
    %p73 = scmp.eq.s32.totalorder %s13, 0
    %p74 = por %p72, %p73
    %p75 = scmp.ne.s32.totalorder %s61, %s62
    %p76 = scmp.eq.s32.totalorder %s14, 1
    %p77 = por %p75, %p76
    %p79 = scmp.ne.s32.totalorder %s62, %s78
    %p80 = scmp.eq.s32.totalorder %s14, 0
    %p81 = por %p79, %p80
    %s82 = ssub.s32 %s15, %s27
    %s83 = ssub.s32 %s16, %s23
    %s84 = sor.u32 %s82, %s83
    %p85 = scmp.eq.s32.totalorder %s84, 0
    %s87 = sadd.s32 %s86, 1
    %s88 = scalar_select %p85, %s86, %s87
    %p91 = pneg %p85
    %p92 = scmp.eq.s32.totalorder %s8, 1
    %p93 = por %p91, %p92
    %p94 = scmp.ne.s32.totalorder %s86, %s89
    %p95 = scmp.eq.s32.totalorder %s8, 0
    %p96 = por %p94, %p95
    %p97 = scmp.ne.s32.totalorder %s86, %s89
    %p98 = scmp.eq.s32.totalorder %s13, 1
    %p99 = por %p97, %p98
    %p100 = scmp.ne.s32.totalorder %s89, %s90
    %p101 = scmp.eq.s32.totalorder %s13, 0
    %p102 = por %p100, %p101
    %p103 = scmp.ne.s32.totalorder %s89, %s90
    %p104 = scmp.eq.s32.totalorder %s14, 1
    %p105 = por %p103, %p104
    %p107 = scmp.ne.s32.totalorder %s90, %s106
    %p108 = scmp.eq.s32.totalorder %s14, 0
    %p109 = por %p107, %p108
    %p110 = scmp.le.s32.totalorder 1, %s8
    %p111 = scmp.lt.s32.totalorder %s8, 3
    %p112 = pnand %p110, %p111
    %p113 = pneg %p112
    // Predicated region
    $region9: #{dgcnn_forward.16} parent=5 // pred_check
      _
    $region10: #{dgcnn_forward.16} parent=5 // pred_check_branch
      %115 = sbr.rel (%p112) target = $region12
    $region11: #{dgcnn_forward.16} parent=5 // pred_region
      %s116 = ssub.s32 %s8, 1
    $region12: #{dgcnn_forward.16} parent=5 // pred_fallthru
      _
    %p117 = scmp.lt.s32.totalorder %s8, 2
    // Predicated region
    $region13: #{dgcnn_forward.16} parent=5 // pred_check
      %p118 = pneg %p117
    $region14: #{dgcnn_forward.16} parent=5 // pred_check_branch
      %120 = sbr.rel (%p118) target = $region16
    $region15: #{dgcnn_forward.16} parent=5 // pred_region
      // Predicated region
      $region17: #{dgcnn_forward.16} parent=15 // pred_check
        %p121 = pneg %p42
      $region18: #{dgcnn_forward.16} parent=15 // pred_check_branch
        %123 = sbr.rel (%p121) target = $region20
      $region19: #{dgcnn_forward.16} parent=15 // pred_region
        %s124 = smul.u32 2, %s16
        %p125 = scmp.lt.s32.totalorder %s15, 1
        %s126 = scalar_select %p125, %s15, 1
        %p127 = scmp.lt.s32.totalorder %s124, 1
        %s128 = scalar_select %p127, %s124, 1
        %s129 = smul.addr %s128, 2
        %s130 = smul.addr %s126, 4
        %s131 = sadd.s32 %s129, %s130
        %s132 = smul.addr %s131, 8
        %s133 = scalar_lea.vmem %s0, %s132
        %s134 = smul.u32 2, %s16
      $region20: #{dgcnn_forward.16} parent=15 // pred_fallthru
        _
      // Predicated region
      $region21: #{dgcnn_forward.16} parent=15 // pred_check
        %p135 = pneg %p68
      $region22: #{dgcnn_forward.16} parent=15 // pred_check_branch
        %137 = sbr.rel (%p135) target = $region24
      $region23: #{dgcnn_forward.16} parent=15 // pred_region
        %p138 = scmp.lt.s32.totalorder %s15, 1
        %s139 = scalar_select %p138, %s15, 1
        %s140 = smul.addr %s139, 4
        %s141 = smul.addr %s140, 8
        %s142 = scalar_lea.vmem %s1, %s141
      $region24: #{dgcnn_forward.16} parent=15 // pred_fallthru
        _
    $region16: #{dgcnn_forward.16} parent=5 // pred_fallthru
      _
    %p143 = scmp.le.s32.totalorder 1, %s8
    %p144 = scmp.lt.s32.totalorder %s8, 3
    %p145 = pnand %p143, %p144
    %p146 = pneg %p145
    // Predicated region
    $region25: #{dgcnn_forward.16} parent=5 // pred_check
      _
    $region26: #{dgcnn_forward.16} parent=5 // pred_check_branch
      %148 = sbr.rel (%p145) target = $region28
    $region27: #{dgcnn_forward.16} parent=5 // pred_region
      %s149 = ssub.s32 %s8, 1
      %s150 = smul.u32 2, %s18
      %p151 = scmp.lt.s32.totalorder %s17, 1
      %s152 = scalar_select %p151, %s17, 1
      %p153 = scmp.lt.s32.totalorder %s150, 1
      %s154 = scalar_select %p153, %s150, 1
      %s155 = smul.addr %s154, 2
      %s156 = smul.addr %s152, 4
      %s157 = sadd.s32 %s155, %s156
      %s158 = smul.addr %s157, 8
      %s159 = scalar_lea.vmem %s0, %s158
      %p160 = pneg %p48
      %p161 = pneg %p45
      %p162 = scmp.lt.s32.totalorder %s17, 1
      %s163 = scalar_select %p162, %s17, 1
      %s164 = smul.addr %s163, 4
      %s165 = smul.addr %s164, 8
      %s166 = scalar_lea.vmem %s1, %s165
      %p167 = pneg %p74
      %p168 = pneg %p71
      %p169 = pneg %p102
      %p170 = pneg %p99
      %s171 = smul.u32 2, %s18
      %p172 = scmp.lt.s32.totalorder %s17, 1
      %s173 = scalar_select %p172, %s17, 1
      %p174 = scmp.lt.s32.totalorder %s171, 1
      %s175 = scalar_select %p174, %s171, 1
      %s176 = smul.addr %s173, 2
      %s177 = sadd.s32 %s175, %s176
      %s178 = smul.addr %s177, 8
      %s179 = scalar_lea.vmem %s2, %s178
      %s180 = smul.u32 2, %s18
      %p181 = scmp.lt.s32.totalorder %s17, 1
      %s182 = scalar_select %p181, %s17, 1
      %p183 = scmp.lt.s32.totalorder %s180, 1
      %s184 = scalar_select %p183, %s180, 1
      %s185 = smul.addr %s184, 2
      %s186 = smul.addr %s182, 4
      %s187 = sadd.s32 %s185, %s186
      %s188 = smul.addr %s187, 8
      %s189 = scalar_lea.vmem %s0, %s188
      %s190 = smul.u32 2, %s18
      %p191 = scmp.lt.s32.totalorder %s17, 1
      %s192 = scalar_select %p191, %s17, 1
      %s193 = smul.addr %s192, 4
      %s194 = smul.addr %s193, 8
      %s195 = scalar_lea.vmem %s1, %s194
      %s196 = smul.u32 2, %s18
      %p197 = scmp.lt.s32.totalorder %s17, 1
      %s198 = scalar_select %p197, %s17, 1
      %p199 = scmp.lt.s32.totalorder %s196, 1
      %s200 = scalar_select %p199, %s196, 1
      %s201 = smul.addr %s198, 2
      %s202 = sadd.s32 %s200, %s201
      %s203 = smul.addr %s202, 8
      %s204 = scalar_lea.vmem %s2, %s203
      %s205 = smul.u32 2, %s18
      %v206 = vld [vmem:[%s189] sm:$0xff]
      %v207 = vld [vmem:[%s189 + $0x8] sm:$0xff]
      %v208 = vld [vmem:[%s189 + $0x10] sm:$0xff]
      %v209 = vld [vmem:[%s189 + $0x18] sm:$0xff]
      %v210 = vld [vmem:[%s195] sm:$0xff]
      %v211 = vld [vmem:[%s195 + $0x8] sm:$0xff]
      %v212 = vld [vmem:[%s195 + $0x10] sm:$0xff]
      %v213 = vld [vmem:[%s195 + $0x18] sm:$0xff]
      %214 = vmatprep.subr.mxu0 %v211
      %215 = vmatpush1.xpose.msra.mxu0 %v210
      %216 = vmatprep.subr.mxu0 %v213
      %217 = vmatpush1.xpose.msra.mxu0 %v212
      %218 = vmatprep.subr.mxu0 0.0
      %219 = vmatpush1.xpose.msra.mxu0 0.0
      %220 = vmatprep.subr.mxu0 0.0
      %221 = vmatpush1.xpose.msra.mxu0 0.0
      %222 = vmatprep.subr.mxu0 0.0
      %223 = vmatpush1.xpose.msra.mxu0 0.0
      %224 = vmatprep.subr.mxu0 0.0
      %225 = vmatpush1.xpose.msra.mxu0 0.0
      %226 = vmatprep.subr.mxu0 0.0
      %227 = vmatpush1.xpose.msra.mxu0 0.0
      %228 = vmatprep.subr.mxu0 0.0
      %229 = vmatpush1.xpose.msra.mxu0 0.0
      %230 = vmatprep.subr.mxu0 0.0
      %231 = vmatpush1.xpose.msra.mxu0 0.0
      %232 = vmatprep.subr.mxu0 0.0
      %233 = vmatpush1.xpose.msra.mxu0 0.0
      %234 = vmatprep.subr.mxu0 0.0
      %235 = vmatpush1.xpose.msra.mxu0 0.0
      %236 = vmatprep.subr.mxu0 0.0
      %237 = vmatpush1.xpose.msra.mxu0 0.0
      %238 = vmatprep.subr.mxu0 0.0
      %239 = vmatpush1.xpose.msra.mxu0 0.0
      %240 = vmatprep.subr.mxu0 0.0
      %241 = vmatpush1.xpose.msra.mxu0 0.0
      %242 = vmatprep.subr.mxu0 0.0
      %243 = vmatpush1.xpose.msra.mxu0 0.0
      %244 = vmatprep.subr.mxu0 0.0
      %245 = vmatpush1.xpose.msra.mxu0 0.0
      %246 = vmatprep.subr.mxu0 0.0
      %247 = vmatpush1.xpose.msra.mxu0 0.0
      %248 = vmatprep.subr.mxu0 0.0
      %249 = vmatpush1.xpose.msra.mxu0 0.0
      %250 = vmatprep.subr.mxu0 0.0
      %251 = vmatpush1.xpose.msra.mxu0 0.0
      %252 = vmatprep.subr.mxu0 0.0
      %253 = vmatpush1.xpose.msra.mxu0 0.0
      %254 = vmatprep.subr.mxu0 0.0
      %255 = vmatpush1.xpose.msra.mxu0 0.0
      %256 = vmatprep.subr.mxu0 0.0
      %257 = vmatpush1.xpose.msra.mxu0 0.0
      %258 = vmatprep.subr.mxu0 0.0
      %259 = vmatpush1.xpose.msra.mxu0 0.0
      %260 = vmatprep.subr.mxu0 0.0
      %261 = vmatpush1.xpose.msra.mxu0 0.0
      %262 = vmatprep.subr.mxu0 0.0
      %263 = vmatpush1.xpose.msra.mxu0 0.0
      %264 = vmatprep.subr.mxu0 0.0
      %265 = vmatpush1.xpose.msra.mxu0 0.0
      %266 = vmatprep.subr.mxu0 0.0
      %267 = vmatpush1.xpose.msra.mxu0 0.0
      %268 = vmatprep.subr.mxu0 0.0
      %269 = vmatpush1.xpose.msra.mxu0 0.0
      %270 = vmatprep.subr.mxu0 0.0
      %271 = vmatpush1.xpose.msra.mxu0 0.0
      %272 = vmatprep.subr.mxu0 0.0
      %273 = vmatpush1.xpose.msra.mxu0 0.0
      %274 = vmatprep.subr.mxu0 0.0
      %275 = vmatpush1.xpose.msra.mxu0 0.0
      %276 = vmatprep.subr.mxu0 0.0
      %277 = vmatpush1.xpose.msra.mxu0 0.0
      %278 = vmatprep.mubr.f32.mxu0 %v207
      %279 = vmatmul.mubr.f32.gmra.mrb[0].mxu0 %v206
      %v280 = vpop.f32.mrb[0].mxu0
      %v281 = vadd.f32 0.0, %v280
      %v282 = vpop.f32.mrb[0].mxu0
      %283 = vmatprep.mubr.f32.mxu0 %v209
      %284 = vmatmul.mubr.f32.gmra.mrb[0].mxu0 %v208
      %v285 = vpop.f32.mrb[0].mxu0
      %v286 = vadd.f32 0.0, %v285
      %v287 = vpop.f32.mrb[0].mxu0
      %288 = vdwg.mxu0
      %v289 = vmul.f32 %v206, %v206
      %v290 = vmul.f32 %v207, %v207
      %v291 = vmul.f32 %v208, %v208
      %v292 = vmul.f32 %v209, %v209
      %v293 = vadd.f32 %v289, %v290
      %294 = vadd.xlane.f32.xlu0 %v293
      %v295 = vpop.xlane.xlu0 %294
      %v296 = vadd.f32 %v291, %v292
      %297 = vadd.xlane.f32.xlu0 %v296
      %v298 = vpop.xlane.xlu0 %297
      %v299 = vmul.f32 %v210, %v210
      %v300 = vmul.f32 %v211, %v211
      %v301 = vmul.f32 %v212, %v212
      %v302 = vmul.f32 %v213, %v213
      %v303 = vadd.f32 %v299, %v300
      %304 = vadd.xlane.f32.xlu0 %v303
      %v305 = vpop.xlane.xlu0 %304
      %v306 = vadd.f32 %v301, %v302
      %307 = vadd.xlane.f32.xlu0 %v306
      %v308 = vpop.xlane.xlu0 %307
      %v309 = vmul.f32 %v281, 2.0
      %v310 = vmul.f32 %v286, 2.0
      %v311 = vsub.f32 %v309, %v295
      %v312 = vsub.f32 %v310, %v298
      %313 = vxpose.xlu0.b32.start [1/16] %v305, 128
      %314 = vxpose.xlu0.b32.cont [2/16] %v308, 128
      %315 = vxpose.xlu0.b32.cont [3/16] 0.0, 128
      %316 = vxpose.xlu0.b32.cont [4/16] 0.0, 128
      %317 = vxpose.xlu0.b32.cont [5/16] 0.0, 128
      %318 = vxpose.xlu0.b32.cont [6/16] 0.0, 128
      %319 = vxpose.xlu0.b32.cont [7/16] 0.0, 128
      %320 = vxpose.xlu0.b32.cont [8/16] 0.0, 128
      %321 = vxpose.xlu0.b32.cont [9/16] 0.0, 128
      %322 = vxpose.xlu0.b32.cont [10/16] 0.0, 128
      %323 = vxpose.xlu0.b32.cont [11/16] 0.0, 128
      %324 = vxpose.xlu0.b32.cont [12/16] 0.0, 128
      %325 = vxpose.xlu0.b32.cont [13/16] 0.0, 128
      %326 = vxpose.xlu0.b32.cont [14/16] 0.0, 128
      %327 = vxpose.xlu0.b32.cont [15/16] 0.0, 128
      %328 = vxpose.xlu0.b32.end [16/16] 0.0, 128
      %v329 = vpop.trf.xlu0
      %v330 = vpop.trf.xlu0
      %v331 = vpop.trf.xlu0
      %v332 = vpop.trf.xlu0
      %v333 = vpop.trf.xlu0
      %v334 = vpop.trf.xlu0
      %v335 = vpop.trf.xlu0
      %v336 = vpop.trf.xlu0
      %v337 = vpop.trf.xlu0
      %v338 = vpop.trf.xlu0
      %v339 = vpop.trf.xlu0
      %v340 = vpop.trf.xlu0
      %v341 = vpop.trf.xlu0
      %v342 = vpop.trf.xlu0
      %v343 = vpop.trf.xlu0
      %v344 = vpop.trf.xlu0
      %v345 = vlaneseq
      %v346 = vshrl.u32 %v345, 7
      %v347 = vsub.s32 0, %v346
      %v348 = vrot.slane %v329, %v347
      %v349 = vsub.f32 %v311, %v348
      %v350 = vsub.f32 %v312, %v348
      %vm351 = vcmask 130048
      %352 = vst.msk [vmem:[%s204] sm:$0xff] %vm351, %v349
      %353 = vst.msk [vmem:[%s204 + $0x8] sm:$0xff] %vm351, %v350
      %s354 = smul.u32 2, %s18
      %p355 = scmp.lt.s32.totalorder %s17, 1
      %s356 = scalar_select %p355, %s17, 1
      %p357 = scmp.lt.s32.totalorder %s354, 1
      %s358 = scalar_select %p357, %s354, 1
      %s359 = smul.addr %s356, 2
      %s360 = sadd.s32 %s358, %s359
      %s361 = smul.addr %s360, 8
      %s362 = scalar_lea.vmem %s2, %s361
      // Predicated region
      $region29: #{dgcnn_forward.16} parent=27 // pred_check
        %p363 = pneg %p99
      $region30: #{dgcnn_forward.16} parent=27 // pred_check_branch
        %365 = sbr.rel (%p363) target = $region32
      $region31: #{dgcnn_forward.16} parent=27 // pred_region
        %s366 = smul.u32 2, %s18
      $region32: #{dgcnn_forward.16} parent=27 // pred_fallthru
        _
    $region28: #{dgcnn_forward.16} parent=5 // pred_fallthru
      _
    %p367 = scmp.le.s32.totalorder 2, %s8
    // Predicated region
    $region33: #{dgcnn_forward.16} parent=5 // pred_check
      %p368 = pneg %p367
    $region34: #{dgcnn_forward.16} parent=5 // pred_check_branch
      %370 = sbr.rel (%p368) target = $region36
    $region35: #{dgcnn_forward.16} parent=5 // pred_region
      %s371 = ssub.s32 %s8, 2
      // Predicated region
      $region37: #{dgcnn_forward.16} parent=35 // pred_check
        %p372 = pneg %p105
      $region38: #{dgcnn_forward.16} parent=35 // pred_check_branch
        %374 = sbr.rel (%p372) target = $region40
      $region39: #{dgcnn_forward.16} parent=35 // pred_region
        %s375 = smul.u32 2, %s20
        %p376 = scmp.lt.s32.totalorder %s19, 1
        %s377 = scalar_select %p376, %s19, 1
        %p378 = scmp.lt.s32.totalorder %s375, 1
        %s379 = scalar_select %p378, %s375, 1
        %s380 = smul.addr %s377, 2
        %s381 = sadd.s32 %s379, %s380
        %s382 = smul.addr %s381, 8
        %s383 = scalar_lea.vmem %s2, %s382
      $region40: #{dgcnn_forward.16} parent=35 // pred_fallthru
        _
    $region36: #{dgcnn_forward.16} parent=5 // pred_fallthru
      _
  $region6: #{dgcnn_forward.16} parent=0 // loop_footer
    %s12 = sadd.s32 1, %s8
  $region7: #{dgcnn_forward.16} parent=0 // loop_footer_branch
    %7 = sbr.rel target = $region3
  $region8: #{dgcnn_forward.16} parent=0 // loop_exit
    _

// kernel: dgcnn_forward.15
$region0: #{dgcnn_forward.15}
  #allocation0 [shape = 'u32[]', space=smem, size = 0x4, offset = 0x4, fixed_abs, tag = 'smem constant byte address 0x4 - core index']
  #allocation1 [shape = 'u32[144,128]{1,0:T(1,128)}', space=vmem, size = 0x12000, scoped, tag = 'internal scratch']
  %s0 = inlined_call_operand.vmem [shape: bf16[4,32,128], index: 0, kind: input, shape index: {}]
  %s1 = inlined_call_operand.vmem [shape: bf16[32,128], index: 1, kind: input, shape index: {}]
  %s2 = inlined_call_operand.vmem [shape: bf16[128,256], index: 2, kind: input, shape index: {}]
  %s3 = inlined_call_operand.vmem [shape: bf16[128,256], index: 3, kind: input, shape index: {}]
  %s4 = inlined_call_operand.vmem [shape: f32[1,256], index: 4, kind: input, shape index: {}]
  %s5 = inlined_call_operand.vmem [shape: f32[1,256], index: 5, kind: input, shape index: {}]
  %s6 = inlined_call_operand.vmem [shape: f32[32,256], index: 6, kind: output, shape index: {}]
  %s7 = sld [smem:[#allocation0]]
  $region34: #{dgcnn_forward.15} parent=0
    _
  %s9 = ssub.s32 1, %s7
  %s10 = scalar_select 0, %s9, %s7
  // Predicated region
  $region2: #{dgcnn_forward.15} parent=0 // pred_check
    _
  $region3: #{dgcnn_forward.15} parent=0 // pred_check_branch
    %12 = sbr.rel (0) target = $region5
  $region4: #{dgcnn_forward.15} parent=0 // pred_region
    _
  $region5: #{dgcnn_forward.15} parent=0 // pred_fallthru
    _
  // Predicated region
  $region6: #{dgcnn_forward.15} parent=0 // pred_check
    _
  $region7: #{dgcnn_forward.15} parent=0 // pred_check_branch
    %14 = sbr.rel (0) target = $region9
  $region8: #{dgcnn_forward.15} parent=0 // pred_region
    _
  $region9: #{dgcnn_forward.15} parent=0 // pred_fallthru
    _
  // Predicated region
  $region10: #{dgcnn_forward.15} parent=0 // pred_check
    _
  $region11: #{dgcnn_forward.15} parent=0 // pred_check_branch
    %16 = sbr.rel (0) target = $region13
  $region12: #{dgcnn_forward.15} parent=0 // pred_region
    _
  $region13: #{dgcnn_forward.15} parent=0 // pred_fallthru
    _
  // Predicated region
  $region14: #{dgcnn_forward.15} parent=0 // pred_check
    _
  $region15: #{dgcnn_forward.15} parent=0 // pred_check_branch
    %18 = sbr.rel (0) target = $region17
  $region16: #{dgcnn_forward.15} parent=0 // pred_region
    _
  $region17: #{dgcnn_forward.15} parent=0 // pred_fallthru
    _
  // Predicated region
  $region18: #{dgcnn_forward.15} parent=0 // pred_check
    _
  $region19: #{dgcnn_forward.15} parent=0 // pred_check_branch
    %20 = sbr.rel (0) target = $region21
  $region20: #{dgcnn_forward.15} parent=0 // pred_region
    _
  $region21: #{dgcnn_forward.15} parent=0 // pred_fallthru
    _
  // Predicated region
  $region22: #{dgcnn_forward.15} parent=0 // pred_check
    _
  $region23: #{dgcnn_forward.15} parent=0 // pred_check_branch
    %22 = sbr.rel (0) target = $region25
  $region24: #{dgcnn_forward.15} parent=0 // pred_region
    _
  $region25: #{dgcnn_forward.15} parent=0 // pred_fallthru
    _
  %v24 = vld [vmem:[%s0] sm:$0xf]
  %v25 = vld [vmem:[%s0 + $0x4] sm:$0xf]
  %v26 = vld [vmem:[%s0 + $0x8] sm:$0xf]
  %v27 = vld [vmem:[%s0 + $0xc] sm:$0xf]
  %v28 = vld [vmem:[%s0 + $0x10] sm:$0xf]
  %v29 = vld [vmem:[%s0 + $0x14] sm:$0xf]
  %v30 = vld [vmem:[%s0 + $0x18] sm:$0xf]
  %v31 = vld [vmem:[%s0 + $0x1c] sm:$0xf]
  %v32 = vld [vmem:[%s0 + $0x20] sm:$0xf]
  %v33 = vld [vmem:[%s0 + $0x24] sm:$0xf]
  %v34 = vld [vmem:[%s0 + $0x28] sm:$0xf]
  %v35 = vld [vmem:[%s0 + $0x2c] sm:$0xf]
  %v36 = vld [vmem:[%s0 + $0x30] sm:$0xf]
  %v37 = vld [vmem:[%s0 + $0x34] sm:$0xf]
  %v38 = vld [vmem:[%s0 + $0x38] sm:$0xf]
  %v39 = vld [vmem:[%s0 + $0x3c] sm:$0xf]
  %v40 = vld [vmem:[%s2] sm:$0xff]
  %v41 = vld [vmem:[%s2 + $0x8] sm:$0xff]
  %v42 = vld [vmem:[%s2 + $0x10] sm:$0xff]
  %v43 = vld [vmem:[%s2 + $0x18] sm:$0xff]
  %v44 = vld [vmem:[%s2 + $0x20] sm:$0xff]
  %v45 = vld [vmem:[%s2 + $0x28] sm:$0xff]
  %v46 = vld [vmem:[%s2 + $0x30] sm:$0xff]
  %v47 = vld [vmem:[%s2 + $0x38] sm:$0xff]
  %v48 = vld [vmem:[%s2 + $0x40] sm:$0xff]
  %v49 = vld [vmem:[%s2 + $0x48] sm:$0xff]
  %v50 = vld [vmem:[%s2 + $0x50] sm:$0xff]
  %v51 = vld [vmem:[%s2 + $0x58] sm:$0xff]
  %v52 = vld [vmem:[%s2 + $0x60] sm:$0xff]
  %v53 = vld [vmem:[%s2 + $0x68] sm:$0xff]
  %v54 = vld [vmem:[%s2 + $0x70] sm:$0xff]
  %v55 = vld [vmem:[%s2 + $0x78] sm:$0xff]
  %v72 = vunpack.c.l.b16 %v24
  %v73 = vunpack.c.l.b16 %v25
  %v74 = vunpack.c.l.b16 %v26
  %v75 = vunpack.c.l.b16 %v27
  %v76 = vunpack.c.l.b16 %v28
  %v77 = vunpack.c.l.b16 %v29
  %v78 = vunpack.c.l.b16 %v30
  %v79 = vunpack.c.l.b16 %v31
  %v80 = vunpack.c.l.b16 %v32
  %v81 = vunpack.c.l.b16 %v33
  %v82 = vunpack.c.l.b16 %v34
  %v83 = vunpack.c.l.b16 %v35
  %v84 = vunpack.c.l.b16 %v36
  %v85 = vunpack.c.l.b16 %v37
  %v86 = vunpack.c.l.b16 %v38
  %v87 = vunpack.c.l.b16 %v39
  %v88 = vpack.c.b16 %v73, %v72
  %v89 = vpack.c.b16 %v75, %v74
  %v90 = vpack.c.b16 %v77, %v76
  %v91 = vpack.c.b16 %v79, %v78
  %v92 = vpack.c.b16 %v81, %v80
  %v93 = vpack.c.b16 %v83, %v82
  %v94 = vpack.c.b16 %v85, %v84
  %v95 = vpack.c.b16 %v87, %v86
  %v120 = vunpack.c.l.b16 %v40
  %v121 = vunpack.c.h.b16 %v40
  %v122 = vunpack.c.l.b16 %v41
  %v123 = vunpack.c.h.b16 %v41
  %v124 = vunpack.c.l.b16 %v42
  %v125 = vunpack.c.h.b16 %v42
  %v126 = vunpack.c.l.b16 %v43
  %v127 = vunpack.c.h.b16 %v43
  %v128 = vunpack.c.l.b16 %v44
  %v129 = vunpack.c.h.b16 %v44
  %v130 = vunpack.c.l.b16 %v45
  %v131 = vunpack.c.h.b16 %v45
  %v132 = vunpack.c.l.b16 %v46
  %v133 = vunpack.c.h.b16 %v46
  %v134 = vunpack.c.l.b16 %v47
  %v135 = vunpack.c.h.b16 %v47
  %v136 = vunpack.c.l.b16 %v48
  %v137 = vunpack.c.h.b16 %v48
  %v138 = vunpack.c.l.b16 %v49
  %v139 = vunpack.c.h.b16 %v49
  %v140 = vunpack.c.l.b16 %v50
  %v141 = vunpack.c.h.b16 %v50
  %v142 = vunpack.c.l.b16 %v51
  %v143 = vunpack.c.h.b16 %v51
  %v144 = vunpack.c.l.b16 %v52
  %v145 = vunpack.c.h.b16 %v52
  %v146 = vunpack.c.l.b16 %v53
  %v147 = vunpack.c.h.b16 %v53
  %v148 = vunpack.c.l.b16 %v54
  %v149 = vunpack.c.h.b16 %v54
  %v150 = vunpack.c.l.b16 %v55
  %v151 = vunpack.c.h.b16 %v55
  %v152 = vpack.c.b16 %v122, %v120
  %v153 = vpack.c.b16 %v123, %v121
  %v154 = vpack.c.b16 %v126, %v124
  %v155 = vpack.c.b16 %v127, %v125
  %v156 = vpack.c.b16 %v130, %v128
  %v157 = vpack.c.b16 %v131, %v129
  %v158 = vpack.c.b16 %v134, %v132
  %v159 = vpack.c.b16 %v135, %v133
  %v160 = vpack.c.b16 %v138, %v136
  %v161 = vpack.c.b16 %v139, %v137
  %v162 = vpack.c.b16 %v142, %v140
  %v163 = vpack.c.b16 %v143, %v141
  %v164 = vpack.c.b16 %v146, %v144
  %v165 = vpack.c.b16 %v147, %v145
  %v166 = vpack.c.b16 %v150, %v148
  %v167 = vpack.c.b16 %v151, %v149
  %184 = vmatprep.subr.bf16.mxu0 %v153
  %185 = vmatpush1.bf16.msra.mxu0 %v152
  %186 = vmatprep.subr.bf16.mxu0 %v155
  %187 = vmatpush1.bf16.msra.mxu0 %v154
  %188 = vmatprep.subr.bf16.mxu0 %v157
  %189 = vmatpush1.bf16.msra.mxu0 %v156
  %190 = vmatprep.subr.bf16.mxu0 %v159
  %191 = vmatpush1.bf16.msra.mxu0 %v158
  %192 = vmatprep.subr.bf16.mxu0 %v161
  %193 = vmatpush1.bf16.msra.mxu0 %v160
  %194 = vmatprep.subr.bf16.mxu0 %v163
  %195 = vmatpush1.bf16.msra.mxu0 %v162
  %196 = vmatprep.subr.bf16.mxu0 %v165
  %197 = vmatpush1.bf16.msra.mxu0 %v164
  %198 = vmatprep.subr.bf16.mxu0 %v167
  %199 = vmatpush1.bf16.msra.mxu0 %v166
  %200 = vmatprep.subr.bf16.mxu0 0
  %201 = vmatpush1.bf16.msra.mxu0 0
  %202 = vmatprep.subr.bf16.mxu0 0
  %203 = vmatpush1.bf16.msra.mxu0 0
  %204 = vmatprep.subr.bf16.mxu0 0
  %205 = vmatpush1.bf16.msra.mxu0 0
  %206 = vmatprep.subr.bf16.mxu0 0
  %207 = vmatpush1.bf16.msra.mxu0 0
  %208 = vmatprep.subr.bf16.mxu0 0
  %209 = vmatpush1.bf16.msra.mxu0 0
  %210 = vmatprep.subr.bf16.mxu0 0
  %211 = vmatpush1.bf16.msra.mxu0 0
  %212 = vmatprep.subr.bf16.mxu0 0
  %213 = vmatpush1.bf16.msra.mxu0 0
  %214 = vmatprep.subr.bf16.mxu0 0
  %215 = vmatpush1.bf16.msra.mxu0 0
  %216 = vmatprep.mubr.bf16.mxu0 0
  %217 = vmatmul.mubr.bf16.gmra.mrb[0].mxu0 %v88
  %v218 = vpop.f32.mrb[0].mxu0
  %v219 = vadd.f32 0.0, %v218
  %v220 = vpop.f32.mrb[0].mxu0
  %v221 = vadd.f32 0.0, %v220
  %v222 = vpop.f32.mrb[0].mxu0
  %v223 = vadd.f32 0.0, %v222
  %v224 = vpop.f32.mrb[0].mxu0
  %v225 = vadd.f32 0.0, %v224
  %226 = vmatprep.mubr.bf16.mxu0 0
  %227 = vmatmul.mubr.bf16.gmra.mrb[0].mxu0 %v89
  %v228 = vpop.f32.mrb[0].mxu0
  %v229 = vadd.f32 0.0, %v228
  %v230 = vpop.f32.mrb[0].mxu0
  %v231 = vadd.f32 0.0, %v230
  %v232 = vpop.f32.mrb[0].mxu0
  %v233 = vadd.f32 0.0, %v232
  %v234 = vpop.f32.mrb[0].mxu0
  %v235 = vadd.f32 0.0, %v234
  %236 = vmatprep.mubr.bf16.mxu0 0
  %237 = vmatmul.mubr.bf16.gmra.mrb[0].mxu0 %v90
  %v238 = vpop.f32.mrb[0].mxu0
  %v239 = vadd.f32 0.0, %v238
  %v240 = vpop.f32.mrb[0].mxu0
  %v241 = vadd.f32 0.0, %v240
  %v242 = vpop.f32.mrb[0].mxu0
  %v243 = vadd.f32 0.0, %v242
  %v244 = vpop.f32.mrb[0].mxu0
  %v245 = vadd.f32 0.0, %v244
  %246 = vmatprep.mubr.bf16.mxu0 0
  %247 = vmatmul.mubr.bf16.gmra.mrb[0].mxu0 %v91
  %v248 = vpop.f32.mrb[0].mxu0
  %v249 = vadd.f32 0.0, %v248
  %v250 = vpop.f32.mrb[0].mxu0
  %v251 = vadd.f32 0.0, %v250
  %v252 = vpop.f32.mrb[0].mxu0
  %v253 = vadd.f32 0.0, %v252
  %v254 = vpop.f32.mrb[0].mxu0
  %v255 = vadd.f32 0.0, %v254
  %256 = vmatprep.mubr.bf16.mxu0 0
  %257 = vmatmul.mubr.bf16.gmra.mrb[0].mxu0 %v92
  %v258 = vpop.f32.mrb[0].mxu0
  %v259 = vadd.f32 0.0, %v258
  %v260 = vpop.f32.mrb[0].mxu0
  %v261 = vadd.f32 0.0, %v260
  %v262 = vpop.f32.mrb[0].mxu0
  %v263 = vadd.f32 0.0, %v262
  %v264 = vpop.f32.mrb[0].mxu0
  %v265 = vadd.f32 0.0, %v264
  %266 = vmatprep.mubr.bf16.mxu0 0
  %267 = vmatmul.mubr.bf16.gmra.mrb[0].mxu0 %v93
  %v268 = vpop.f32.mrb[0].mxu0
  %v269 = vadd.f32 0.0, %v268
  %v270 = vpop.f32.mrb[0].mxu0
  %v271 = vadd.f32 0.0, %v270
  %v272 = vpop.f32.mrb[0].mxu0
  %v273 = vadd.f32 0.0, %v272
  %v274 = vpop.f32.mrb[0].mxu0
  %v275 = vadd.f32 0.0, %v274
  %276 = vmatprep.mubr.bf16.mxu0 0
  %277 = vmatmul.mubr.bf16.gmra.mrb[0].mxu0 %v94
  %v278 = vpop.f32.mrb[0].mxu0
  %v279 = vadd.f32 0.0, %v278
  %v280 = vpop.f32.mrb[0].mxu0
  %v281 = vadd.f32 0.0, %v280
  %v282 = vpop.f32.mrb[0].mxu0
  %v283 = vadd.f32 0.0, %v282
  %v284 = vpop.f32.mrb[0].mxu0
  %v285 = vadd.f32 0.0, %v284
  %286 = vmatprep.mubr.bf16.mxu0 0
  %287 = vmatmul.mubr.bf16.gmra.mrb[0].mxu0 %v95
  %v288 = vpop.f32.mrb[0].mxu0
  %v289 = vadd.f32 0.0, %v288
  %v290 = vpop.f32.mrb[0].mxu0
  %v291 = vadd.f32 0.0, %v290
  %v292 = vpop.f32.mrb[0].mxu0
  %v293 = vadd.f32 0.0, %v292
  %v294 = vpop.f32.mrb[0].mxu0
  %v295 = vadd.f32 0.0, %v294
  %296 = vdwg.mxu0
  %v297 = vld [vmem:[%s1] sm:$0xf]
  %v298 = vld [vmem:[%s1 + $0x4] sm:$0xf]
  %v299 = vld [vmem:[%s1 + $0x8] sm:$0xf]
  %v300 = vld [vmem:[%s1 + $0xc] sm:$0xf]
  %v301 = vld [vmem:[%s3] sm:$0xff]
  %v302 = vld [vmem:[%s3 + $0x8] sm:$0xff]
  %v303 = vld [vmem:[%s3 + $0x10] sm:$0xff]
  %v304 = vld [vmem:[%s3 + $0x18] sm:$0xff]
  %v305 = vld [vmem:[%s3 + $0x20] sm:$0xff]
  %v306 = vld [vmem:[%s3 + $0x28] sm:$0xff]
  %v307 = vld [vmem:[%s3 + $0x30] sm:$0xff]
  %v308 = vld [vmem:[%s3 + $0x38] sm:$0xff]
  %v309 = vld [vmem:[%s3 + $0x40] sm:$0xff]
  %v310 = vld [vmem:[%s3 + $0x48] sm:$0xff]
  %v311 = vld [vmem:[%s3 + $0x50] sm:$0xff]
  %v312 = vld [vmem:[%s3 + $0x58] sm:$0xff]
  %v313 = vld [vmem:[%s3 + $0x60] sm:$0xff]
  %v314 = vld [vmem:[%s3 + $0x68] sm:$0xff]
  %v315 = vld [vmem:[%s3 + $0x70] sm:$0xff]
  %v316 = vld [vmem:[%s3 + $0x78] sm:$0xff]
  %v321 = vunpack.c.l.b16 %v297
  %v322 = vunpack.c.l.b16 %v298
  %v323 = vunpack.c.l.b16 %v299
  %v324 = vunpack.c.l.b16 %v300
  %v325 = vpack.c.b16 %v322, %v321
  %v326 = vpack.c.b16 %v324, %v323
  %v345 = vunpack.c.l.b16 %v301
  %v346 = vunpack.c.h.b16 %v301
  %v347 = vunpack.c.l.b16 %v302
  %v348 = vunpack.c.h.b16 %v302
  %v349 = vunpack.c.l.b16 %v303
  %v350 = vunpack.c.h.b16 %v303
  %v351 = vunpack.c.l.b16 %v304
  %v352 = vunpack.c.h.b16 %v304
  %v353 = vunpack.c.l.b16 %v305
  %v354 = vunpack.c.h.b16 %v305
  %v355 = vunpack.c.l.b16 %v306
  %v356 = vunpack.c.h.b16 %v306
  %v357 = vunpack.c.l.b16 %v307
  %v358 = vunpack.c.h.b16 %v307
  %v359 = vunpack.c.l.b16 %v308
  %v360 = vunpack.c.h.b16 %v308
  %v361 = vunpack.c.l.b16 %v309
  %v362 = vunpack.c.h.b16 %v309
  %v363 = vunpack.c.l.b16 %v310
  %v364 = vunpack.c.h.b16 %v310
  %v365 = vunpack.c.l.b16 %v311
  %v366 = vunpack.c.h.b16 %v311
  %v367 = vunpack.c.l.b16 %v312
  %v368 = vunpack.c.h.b16 %v312
  %v369 = vunpack.c.l.b16 %v313
  %v370 = vunpack.c.h.b16 %v313
  %v371 = vunpack.c.l.b16 %v314
  %v372 = vunpack.c.h.b16 %v314
  %v373 = vunpack.c.l.b16 %v315
  %v374 = vunpack.c.h.b16 %v315
  %v375 = vunpack.c.l.b16 %v316
  %v376 = vunpack.c.h.b16 %v316
  %v377 = vpack.c.b16 %v347, %v345
  %v378 = vpack.c.b16 %v348, %v346
  %v379 = vpack.c.b16 %v351, %v349
  %v380 = vpack.c.b16 %v352, %v350
  %v381 = vpack.c.b16 %v355, %v353
  %v382 = vpack.c.b16 %v356, %v354
  %v383 = vpack.c.b16 %v359, %v357
  %v384 = vpack.c.b16 %v360, %v358
  %v385 = vpack.c.b16 %v363, %v361
  %v386 = vpack.c.b16 %v364, %v362
  %v387 = vpack.c.b16 %v367, %v365
  %v388 = vpack.c.b16 %v368, %v366
  %v389 = vpack.c.b16 %v371, %v369
  %v390 = vpack.c.b16 %v372, %v370
  %v391 = vpack.c.b16 %v375, %v373
  %v392 = vpack.c.b16 %v376, %v374
  %409 = vmatprep.subr.bf16.mxu0 %v378
  %410 = vmatpush1.bf16.msra.mxu0 %v377
  %411 = vmatprep.subr.bf16.mxu0 %v380
  %412 = vmatpush1.bf16.msra.mxu0 %v379
  %413 = vmatprep.subr.bf16.mxu0 %v382
  %414 = vmatpush1.bf16.msra.mxu0 %v381
  %415 = vmatprep.subr.bf16.mxu0 %v384
  %416 = vmatpush1.bf16.msra.mxu0 %v383
  %417 = vmatprep.subr.bf16.mxu0 %v386
  %418 = vmatpush1.bf16.msra.mxu0 %v385
  %419 = vmatprep.subr.bf16.mxu0 %v388
  %420 = vmatpush1.bf16.msra.mxu0 %v387
  %421 = vmatprep.subr.bf16.mxu0 %v390
  %422 = vmatpush1.bf16.msra.mxu0 %v389
  %423 = vmatprep.subr.bf16.mxu0 %v392
  %424 = vmatpush1.bf16.msra.mxu0 %v391
  %425 = vmatprep.subr.bf16.mxu0 0
  %426 = vmatpush1.bf16.msra.mxu0 0
  %427 = vmatprep.subr.bf16.mxu0 0
  %428 = vmatpush1.bf16.msra.mxu0 0
  %429 = vmatprep.subr.bf16.mxu0 0
  %430 = vmatpush1.bf16.msra.mxu0 0
  %431 = vmatprep.subr.bf16.mxu0 0
  %432 = vmatpush1.bf16.msra.mxu0 0
  %433 = vmatprep.subr.bf16.mxu0 0
  %434 = vmatpush1.bf16.msra.mxu0 0
  %435 = vmatprep.subr.bf16.mxu0 0
  %436 = vmatpush1.bf16.msra.mxu0 0
  %437 = vmatprep.subr.bf16.mxu0 0
  %438 = vmatpush1.bf16.msra.mxu0 0
  %439 = vmatprep.subr.bf16.mxu0 0
  %440 = vmatpush1.bf16.msra.mxu0 0
  %441 = vmatprep.mubr.bf16.mxu0 0
  %442 = vmatmul.mubr.bf16.gmra.mrb[0].mxu0 %v325
  %v443 = vpop.f32.mrb[0].mxu0
  %v444 = vadd.f32 0.0, %v443
  %v445 = vpop.f32.mrb[0].mxu0
  %v446 = vadd.f32 0.0, %v445
  %v447 = vpop.f32.mrb[0].mxu0
  %v448 = vadd.f32 0.0, %v447
  %v449 = vpop.f32.mrb[0].mxu0
  %v450 = vadd.f32 0.0, %v449
  %451 = vmatprep.mubr.bf16.mxu0 0
  %452 = vmatmul.mubr.bf16.gmra.mrb[0].mxu0 %v326
  %v453 = vpop.f32.mrb[0].mxu0
  %v454 = vadd.f32 0.0, %v453
  %v455 = vpop.f32.mrb[0].mxu0
  %v456 = vadd.f32 0.0, %v455
  %v457 = vpop.f32.mrb[0].mxu0
  %v458 = vadd.f32 0.0, %v457
  %v459 = vpop.f32.mrb[0].mxu0
  %v460 = vadd.f32 0.0, %v459
  %461 = vdwg.mxu0
  %v462 = vadd.f32 %v219, %v444
  %v463 = vadd.f32 %v221, %v446
  %v464 = vadd.f32 %v223, %v448
  %v465 = vadd.f32 %v225, %v450
  %v466 = vadd.f32 %v229, %v454
  %v467 = vadd.f32 %v231, %v456
  %v468 = vadd.f32 %v233, %v458
  %v469 = vadd.f32 %v235, %v460
  %v470 = vadd.f32 %v239, %v444
  %v471 = vadd.f32 %v241, %v446
  %v472 = vadd.f32 %v243, %v448
  %v473 = vadd.f32 %v245, %v450
  %v474 = vadd.f32 %v249, %v454
  %v475 = vadd.f32 %v251, %v456
  %v476 = vadd.f32 %v253, %v458
  %v477 = vadd.f32 %v255, %v460
  %v478 = vadd.f32 %v259, %v444
  %v479 = vadd.f32 %v261, %v446
  %v480 = vadd.f32 %v263, %v448
  %v481 = vadd.f32 %v265, %v450
  %v482 = vadd.f32 %v269, %v454
  %v483 = vadd.f32 %v271, %v456
  %v484 = vadd.f32 %v273, %v458
  %v485 = vadd.f32 %v275, %v460
  %v486 = vadd.f32 %v279, %v444
  %v487 = vadd.f32 %v281, %v446
  %v488 = vadd.f32 %v283, %v448
  %v489 = vadd.f32 %v285, %v450
  %v490 = vadd.f32 %v289, %v454
  %v491 = vadd.f32 %v291, %v456
  %v492 = vadd.f32 %v293, %v458
  %v493 = vadd.f32 %v295, %v460
  %v494 = vld [vmem:[%s4] sm:$0x3]
  %v496 = vlaneseq
  %v497 = vshrl.u32 %v496, 7
  %v498 = vsub.s32 0, %v497
  %v499 = vrot.slane %v494, %v498
  %v500 = vlaneseq
  %v501 = vshrl.u32 %v500, 7
  %v502 = vsub.s32 1, %v501
  %v503 = vrot.slane %v494, %v502
  %v506 = vmul.f32 %v462, %v499
  %v507 = vmul.f32 %v463, %v503
  %v508 = vmul.f32 %v464, %v499
  %v509 = vmul.f32 %v465, %v503
  %v510 = vmul.f32 %v466, %v499
  %v511 = vmul.f32 %v467, %v503
  %v512 = vmul.f32 %v468, %v499
  %v513 = vmul.f32 %v469, %v503
  %v514 = vmul.f32 %v470, %v499
  %v515 = vmul.f32 %v471, %v503
  %v516 = vmul.f32 %v472, %v499
  %v517 = vmul.f32 %v473, %v503
  %v518 = vmul.f32 %v474, %v499
  %v519 = vmul.f32 %v475, %v503
  %v520 = vmul.f32 %v476, %v499
  %v521 = vmul.f32 %v477, %v503
  %v522 = vmul.f32 %v478, %v499
  %v523 = vmul.f32 %v479, %v503
  %v524 = vmul.f32 %v480, %v499
  %v525 = vmul.f32 %v481, %v503
  %v526 = vmul.f32 %v482, %v499
  %v527 = vmul.f32 %v483, %v503
  %v528 = vmul.f32 %v484, %v499
  %v529 = vmul.f32 %v485, %v503
  %v530 = vmul.f32 %v486, %v499
  %v531 = vmul.f32 %v487, %v503
  %v532 = vmul.f32 %v488, %v499
  %v533 = vmul.f32 %v489, %v503
  %v534 = vmul.f32 %v490, %v499
  %v535 = vmul.f32 %v491, %v503
  %v536 = vmul.f32 %v492, %v499
  %v537 = vmul.f32 %v493, %v503
  %v538 = vld [vmem:[%s5] sm:$0x3]
  %v540 = vlaneseq
  %v541 = vshrl.u32 %v540, 7
  %v542 = vsub.s32 0, %v541
  %v543 = vrot.slane %v538, %v542
  %v544 = vlaneseq
  %v545 = vshrl.u32 %v544, 7
  %v546 = vsub.s32 1, %v545
  %v547 = vrot.slane %v538, %v546
  %v550 = vadd.f32 %v506, %v543
  %v551 = vadd.f32 %v507, %v547
  %v552 = vadd.f32 %v508, %v543
  %v553 = vadd.f32 %v509, %v547
  %v554 = vadd.f32 %v510, %v543
  %v555 = vadd.f32 %v511, %v547
  %v556 = vadd.f32 %v512, %v543
  %v557 = vadd.f32 %v513, %v547
  %v558 = vadd.f32 %v514, %v543
  %v559 = vadd.f32 %v515, %v547
  %v560 = vadd.f32 %v516, %v543
  %v561 = vadd.f32 %v517, %v547
  %v562 = vadd.f32 %v518, %v543
  %v563 = vadd.f32 %v519, %v547
  %v564 = vadd.f32 %v520, %v543
  %v565 = vadd.f32 %v521, %v547
  %v566 = vadd.f32 %v522, %v543
  %v567 = vadd.f32 %v523, %v547
  %v568 = vadd.f32 %v524, %v543
  %v569 = vadd.f32 %v525, %v547
  %v570 = vadd.f32 %v526, %v543
  %v571 = vadd.f32 %v527, %v547
  %v572 = vadd.f32 %v528, %v543
  %v573 = vadd.f32 %v529, %v547
  %v574 = vadd.f32 %v530, %v543
  %v575 = vadd.f32 %v531, %v547
  %v576 = vadd.f32 %v532, %v543
  %v577 = vadd.f32 %v533, %v547
  %v578 = vadd.f32 %v534, %v543
  %v579 = vadd.f32 %v535, %v547
  %v580 = vadd.f32 %v536, %v543
  %v581 = vadd.f32 %v537, %v547
  %vm582 = vcmp.ge.f32.partialorder %v550, 0.0
  %vm583 = vcmp.ge.f32.partialorder %v551, 0.0
  %vm584 = vcmp.ge.f32.partialorder %v552, 0.0
  %vm585 = vcmp.ge.f32.partialorder %v553, 0.0
  %vm586 = vcmp.ge.f32.partialorder %v554, 0.0
  %vm587 = vcmp.ge.f32.partialorder %v555, 0.0
  %vm588 = vcmp.ge.f32.partialorder %v556, 0.0
  %vm589 = vcmp.ge.f32.partialorder %v557, 0.0
  %vm590 = vcmp.ge.f32.partialorder %v558, 0.0
  %vm591 = vcmp.ge.f32.partialorder %v559, 0.0
  %vm592 = vcmp.ge.f32.partialorder %v560, 0.0
  %vm593 = vcmp.ge.f32.partialorder %v561, 0.0
  %vm594 = vcmp.ge.f32.partialorder %v562, 0.0
  %vm595 = vcmp.ge.f32.partialorder %v563, 0.0
  %vm596 = vcmp.ge.f32.partialorder %v564, 0.0
  %vm597 = vcmp.ge.f32.partialorder %v565, 0.0
  %vm598 = vcmp.ge.f32.partialorder %v566, 0.0
  %vm599 = vcmp.ge.f32.partialorder %v567, 0.0
  %vm600 = vcmp.ge.f32.partialorder %v568, 0.0
  %vm601 = vcmp.ge.f32.partialorder %v569, 0.0
  %vm602 = vcmp.ge.f32.partialorder %v570, 0.0
  %vm603 = vcmp.ge.f32.partialorder %v571, 0.0
  %vm604 = vcmp.ge.f32.partialorder %v572, 0.0
  %vm605 = vcmp.ge.f32.partialorder %v573, 0.0
  %vm606 = vcmp.ge.f32.partialorder %v574, 0.0
  %vm607 = vcmp.ge.f32.partialorder %v575, 0.0
  %vm608 = vcmp.ge.f32.partialorder %v576, 0.0
  %vm609 = vcmp.ge.f32.partialorder %v577, 0.0
  %vm610 = vcmp.ge.f32.partialorder %v578, 0.0
  %vm611 = vcmp.ge.f32.partialorder %v579, 0.0
  %vm612 = vcmp.ge.f32.partialorder %v580, 0.0
  %vm613 = vcmp.ge.f32.partialorder %v581, 0.0
  %v614 = vmul.f32 %v550, 0.2
  %v615 = vmul.f32 %v551, 0.2
  %v616 = vmul.f32 %v552, 0.2
  %v617 = vmul.f32 %v553, 0.2
  %v618 = vmul.f32 %v554, 0.2
  %v619 = vmul.f32 %v555, 0.2
  %v620 = vmul.f32 %v556, 0.2
  %v621 = vmul.f32 %v557, 0.2
  %v622 = vmul.f32 %v558, 0.2
  %v623 = vmul.f32 %v559, 0.2
  %v624 = vmul.f32 %v560, 0.2
  %v625 = vmul.f32 %v561, 0.2
  %v626 = vmul.f32 %v562, 0.2
  %v627 = vmul.f32 %v563, 0.2
  %v628 = vmul.f32 %v564, 0.2
  %v629 = vmul.f32 %v565, 0.2
  %v630 = vmul.f32 %v566, 0.2
  %v631 = vmul.f32 %v567, 0.2
  %v632 = vmul.f32 %v568, 0.2
  %v633 = vmul.f32 %v569, 0.2
  %v634 = vmul.f32 %v570, 0.2
  %v635 = vmul.f32 %v571, 0.2
  %v636 = vmul.f32 %v572, 0.2
  %v637 = vmul.f32 %v573, 0.2
  %v638 = vmul.f32 %v574, 0.2
  %v639 = vmul.f32 %v575, 0.2
  %v640 = vmul.f32 %v576, 0.2
  %v641 = vmul.f32 %v577, 0.2
  %v642 = vmul.f32 %v578, 0.2
  %v643 = vmul.f32 %v579, 0.2
  %v644 = vmul.f32 %v580, 0.2
  %v645 = vmul.f32 %v581, 0.2
  %v646 = vsel %vm582, %v550, %v614
  %v647 = vsel %vm583, %v551, %v615
  %v648 = vsel %vm584, %v552, %v616
  %v649 = vsel %vm585, %v553, %v617
  %v650 = vsel %vm586, %v554, %v618
  %v651 = vsel %vm587, %v555, %v619
  %v652 = vsel %vm588, %v556, %v620
  %v653 = vsel %vm589, %v557, %v621
  %v654 = vsel %vm590, %v558, %v622
  %v655 = vsel %vm591, %v559, %v623
  %v656 = vsel %vm592, %v560, %v624
  %v657 = vsel %vm593, %v561, %v625
  %v658 = vsel %vm594, %v562, %v626
  %v659 = vsel %vm595, %v563, %v627
  %v660 = vsel %vm596, %v564, %v628
  %v661 = vsel %vm597, %v565, %v629
  %v662 = vsel %vm598, %v566, %v630
  %v663 = vsel %vm599, %v567, %v631
  %v664 = vsel %vm600, %v568, %v632
  %v665 = vsel %vm601, %v569, %v633
  %v666 = vsel %vm602, %v570, %v634
  %v667 = vsel %vm603, %v571, %v635
  %v668 = vsel %vm604, %v572, %v636
  %v669 = vsel %vm605, %v573, %v637
  %v670 = vsel %vm606, %v574, %v638
  %v671 = vsel %vm607, %v575, %v639
  %v672 = vsel %vm608, %v576, %v640
  %v673 = vsel %vm609, %v577, %v641
  %v674 = vsel %vm610, %v578, %v642
  %v675 = vsel %vm611, %v579, %v643
  %v676 = vsel %vm612, %v580, %v644
  %v677 = vsel %vm613, %v581, %v645
  %v678 = vmax.f32 %v646, %v654
  %v679 = vmax.f32 %v678, %v662
  %v680 = vmax.f32 %v679, %v670
  %v681 = vmax.f32 %v647, %v655
  %v682 = vmax.f32 %v681, %v663
  %v683 = vmax.f32 %v682, %v671
  %v684 = vmax.f32 %v648, %v656
  %v685 = vmax.f32 %v684, %v664
  %v686 = vmax.f32 %v685, %v672
  %v687 = vmax.f32 %v649, %v657
  %v688 = vmax.f32 %v687, %v665
  %v689 = vmax.f32 %v688, %v673
  %v690 = vmax.f32 %v650, %v658
  %v691 = vmax.f32 %v690, %v666
  %v692 = vmax.f32 %v691, %v674
  %v693 = vmax.f32 %v651, %v659
  %v694 = vmax.f32 %v693, %v667
  %v695 = vmax.f32 %v694, %v675
  %v696 = vmax.f32 %v652, %v660
  %v697 = vmax.f32 %v696, %v668
  %v698 = vmax.f32 %v697, %v676
  %v699 = vmax.f32 %v653, %v661
  %v700 = vmax.f32 %v699, %v669
  %v701 = vmax.f32 %v700, %v677
  %702 = vst [vmem:[%s6] sm:$0xff] %v680
  %703 = vst [vmem:[%s6 + $0x8] sm:$0xff] %v683
  %704 = vst [vmem:[%s6 + $0x10] sm:$0xff] %v686
  %705 = vst [vmem:[%s6 + $0x18] sm:$0xff] %v689
  %706 = vst [vmem:[%s6 + $0x20] sm:$0xff] %v692
  %707 = vst [vmem:[%s6 + $0x28] sm:$0xff] %v695
  %708 = vst [vmem:[%s6 + $0x30] sm:$0xff] %v698
  %709 = vst [vmem:[%s6 + $0x38] sm:$0xff] %v701
  // Predicated region
  $region26: #{dgcnn_forward.15} parent=0 // pred_check
    _
  $region27: #{dgcnn_forward.15} parent=0 // pred_check_branch
    %711 = sbr.rel (0) target = $region29
  $region28: #{dgcnn_forward.15} parent=0 // pred_region
    _
  $region29: #{dgcnn_forward.15} parent=0 // pred_fallthru
    _
  // Predicated region
  $region30: #{dgcnn_forward.15} parent=0 // pred_check
    _
  $region31: #{dgcnn_forward.15} parent=0 // pred_check_branch
    %713 = sbr.rel (0) target = $region33
  $region32: #{dgcnn_forward.15} parent=0 // pred_region
    _
  $region33: #{dgcnn_forward.15} parent=0 // pred_fallthru
    _

// kernel: dgcnn_forward.17
$region0: #{dgcnn_forward.17}
  #allocation0 [shape = 'u32[]', space=smem, size = 0x4, offset = 0x4, fixed_abs, tag = 'smem constant byte address 0x4 - core index']
  #allocation1 [shape = 'u32[144,128]{1,0:T(1,128)}', space=vmem, size = 0x12000, scoped, tag = 'internal scratch']
  %s0 = inlined_call_operand.vmem [shape: bf16[4,32,256], index: 0, kind: input, shape index: {}]
  %s1 = inlined_call_operand.vmem [shape: bf16[32,256], index: 1, kind: input, shape index: {}]
  %s2 = inlined_call_operand.vmem [shape: bf16[256,256], index: 2, kind: input, shape index: {}]
  %s3 = inlined_call_operand.vmem [shape: bf16[256,256], index: 3, kind: input, shape index: {}]
  %s4 = inlined_call_operand.vmem [shape: f32[1,256], index: 4, kind: input, shape index: {}]
  %s5 = inlined_call_operand.vmem [shape: f32[1,256], index: 5, kind: input, shape index: {}]
  %s6 = inlined_call_operand.vmem [shape: f32[32,256], index: 6, kind: output, shape index: {}]
  %s7 = sld [smem:[#allocation0]]
  $region34: #{dgcnn_forward.17} parent=0
    _
  %s9 = ssub.s32 1, %s7
  %s10 = scalar_select 0, %s9, %s7
  // Predicated region
  $region2: #{dgcnn_forward.17} parent=0 // pred_check
    _
  $region3: #{dgcnn_forward.17} parent=0 // pred_check_branch
    %12 = sbr.rel (0) target = $region5
  $region4: #{dgcnn_forward.17} parent=0 // pred_region
    _
  $region5: #{dgcnn_forward.17} parent=0 // pred_fallthru
    _
  // Predicated region
  $region6: #{dgcnn_forward.17} parent=0 // pred_check
    _
  $region7: #{dgcnn_forward.17} parent=0 // pred_check_branch
    %14 = sbr.rel (0) target = $region9
  $region8: #{dgcnn_forward.17} parent=0 // pred_region
    _
  $region9: #{dgcnn_forward.17} parent=0 // pred_fallthru
    _
  // Predicated region
  $region10: #{dgcnn_forward.17} parent=0 // pred_check
    _
  $region11: #{dgcnn_forward.17} parent=0 // pred_check_branch
    %16 = sbr.rel (0) target = $region13
  $region12: #{dgcnn_forward.17} parent=0 // pred_region
    _
  $region13: #{dgcnn_forward.17} parent=0 // pred_fallthru
    _
  // Predicated region
  $region14: #{dgcnn_forward.17} parent=0 // pred_check
    _
  $region15: #{dgcnn_forward.17} parent=0 // pred_check_branch
    %18 = sbr.rel (0) target = $region17
  $region16: #{dgcnn_forward.17} parent=0 // pred_region
    _
  $region17: #{dgcnn_forward.17} parent=0 // pred_fallthru
    _
  // Predicated region
  $region18: #{dgcnn_forward.17} parent=0 // pred_check
    _
  $region19: #{dgcnn_forward.17} parent=0 // pred_check_branch
    %20 = sbr.rel (0) target = $region21
  $region20: #{dgcnn_forward.17} parent=0 // pred_region
    _
  $region21: #{dgcnn_forward.17} parent=0 // pred_fallthru
    _
  // Predicated region
  $region22: #{dgcnn_forward.17} parent=0 // pred_check
    _
  $region23: #{dgcnn_forward.17} parent=0 // pred_check_branch
    %22 = sbr.rel (0) target = $region25
  $region24: #{dgcnn_forward.17} parent=0 // pred_region
    _
  $region25: #{dgcnn_forward.17} parent=0 // pred_fallthru
    _
  %v23 = vld [vmem:[%s0] sm:$0xff]
  %v24 = vld [vmem:[%s0 + $0x8] sm:$0xff]
  %v25 = vld [vmem:[%s0 + $0x10] sm:$0xff]
  %v26 = vld [vmem:[%s0 + $0x18] sm:$0xff]
  %v27 = vld [vmem:[%s0 + $0x20] sm:$0xff]
  %v28 = vld [vmem:[%s0 + $0x28] sm:$0xff]
  %v29 = vld [vmem:[%s0 + $0x30] sm:$0xff]
  %v30 = vld [vmem:[%s0 + $0x38] sm:$0xff]
  %v31 = vld [vmem:[%s0 + $0x40] sm:$0xff]
  %v32 = vld [vmem:[%s0 + $0x48] sm:$0xff]
  %v33 = vld [vmem:[%s0 + $0x50] sm:$0xff]
  %v34 = vld [vmem:[%s0 + $0x58] sm:$0xff]
  %v35 = vld [vmem:[%s0 + $0x60] sm:$0xff]
  %v36 = vld [vmem:[%s0 + $0x68] sm:$0xff]
  %v37 = vld [vmem:[%s0 + $0x70] sm:$0xff]
  %v38 = vld [vmem:[%s0 + $0x78] sm:$0xff]
  %v39 = vld [vmem:[%s2] sm:$0xff]
  %v40 = vld [vmem:[%s2 + $0x8] sm:$0xff]
  %v41 = vld [vmem:[%s2 + $0x10] sm:$0xff]
  %v42 = vld [vmem:[%s2 + $0x18] sm:$0xff]
  %v43 = vld [vmem:[%s2 + $0x20] sm:$0xff]
  %v44 = vld [vmem:[%s2 + $0x28] sm:$0xff]
  %v45 = vld [vmem:[%s2 + $0x30] sm:$0xff]
  %v46 = vld [vmem:[%s2 + $0x38] sm:$0xff]
  %v47 = vld [vmem:[%s2 + $0x40] sm:$0xff]
  %v48 = vld [vmem:[%s2 + $0x48] sm:$0xff]
  %v49 = vld [vmem:[%s2 + $0x50] sm:$0xff]
  %v50 = vld [vmem:[%s2 + $0x58] sm:$0xff]
  %v51 = vld [vmem:[%s2 + $0x60] sm:$0xff]
  %v52 = vld [vmem:[%s2 + $0x68] sm:$0xff]
  %v53 = vld [vmem:[%s2 + $0x70] sm:$0xff]
  %v54 = vld [vmem:[%s2 + $0x78] sm:$0xff]
  %v55 = vld [vmem:[%s2 + $0x80] sm:$0xff]
  %v56 = vld [vmem:[%s2 + $0x88] sm:$0xff]
  %v57 = vld [vmem:[%s2 + $0x90] sm:$0xff]
  %v58 = vld [vmem:[%s2 + $0x98] sm:$0xff]
  %v59 = vld [vmem:[%s2 + $0xa0] sm:$0xff]
  %v60 = vld [vmem:[%s2 + $0xa8] sm:$0xff]
  %v61 = vld [vmem:[%s2 + $0xb0] sm:$0xff]
  %v62 = vld [vmem:[%s2 + $0xb8] sm:$0xff]
  %v63 = vld [vmem:[%s2 + $0xc0] sm:$0xff]
  %v64 = vld [vmem:[%s2 + $0xc8] sm:$0xff]
  %v65 = vld [vmem:[%s2 + $0xd0] sm:$0xff]
  %v66 = vld [vmem:[%s2 + $0xd8] sm:$0xff]
  %v67 = vld [vmem:[%s2 + $0xe0] sm:$0xff]
  %v68 = vld [vmem:[%s2 + $0xe8] sm:$0xff]
  %v69 = vld [vmem:[%s2 + $0xf0] sm:$0xff]
  %v70 = vld [vmem:[%s2 + $0xf8] sm:$0xff]
  %v87 = vunpack.c.l.b16 %v23
  %v88 = vunpack.c.h.b16 %v23
  %v89 = vunpack.c.l.b16 %v24
  %v90 = vunpack.c.h.b16 %v24
  %v91 = vunpack.c.l.b16 %v25
  %v92 = vunpack.c.h.b16 %v25
  %v93 = vunpack.c.l.b16 %v26
  %v94 = vunpack.c.h.b16 %v26
  %v95 = vunpack.c.l.b16 %v27
  %v96 = vunpack.c.h.b16 %v27
  %v97 = vunpack.c.l.b16 %v28
  %v98 = vunpack.c.h.b16 %v28
  %v99 = vunpack.c.l.b16 %v29
  %v100 = vunpack.c.h.b16 %v29
  %v101 = vunpack.c.l.b16 %v30
  %v102 = vunpack.c.h.b16 %v30
  %v103 = vunpack.c.l.b16 %v31
  %v104 = vunpack.c.h.b16 %v31
  %v105 = vunpack.c.l.b16 %v32
  %v106 = vunpack.c.h.b16 %v32
  %v107 = vunpack.c.l.b16 %v33
  %v108 = vunpack.c.h.b16 %v33
  %v109 = vunpack.c.l.b16 %v34
  %v110 = vunpack.c.h.b16 %v34
  %v111 = vunpack.c.l.b16 %v35
  %v112 = vunpack.c.h.b16 %v35
  %v113 = vunpack.c.l.b16 %v36
  %v114 = vunpack.c.h.b16 %v36
  %v115 = vunpack.c.l.b16 %v37
  %v116 = vunpack.c.h.b16 %v37
  %v117 = vunpack.c.l.b16 %v38
  %v118 = vunpack.c.h.b16 %v38
  %v119 = vpack.c.b16 %v89, %v87
  %v120 = vpack.c.b16 %v90, %v88
  %v121 = vpack.c.b16 %v93, %v91
  %v122 = vpack.c.b16 %v94, %v92
  %v123 = vpack.c.b16 %v97, %v95
  %v124 = vpack.c.b16 %v98, %v96
  %v125 = vpack.c.b16 %v101, %v99
  %v126 = vpack.c.b16 %v102, %v100
  %v127 = vpack.c.b16 %v105, %v103
  %v128 = vpack.c.b16 %v106, %v104
  %v129 = vpack.c.b16 %v109, %v107
  %v130 = vpack.c.b16 %v110, %v108
  %v131 = vpack.c.b16 %v113, %v111
  %v132 = vpack.c.b16 %v114, %v112
  %v133 = vpack.c.b16 %v117, %v115
  %v134 = vpack.c.b16 %v118, %v116
  %v183 = vunpack.c.l.b16 %v39
  %v184 = vunpack.c.h.b16 %v39
  %v185 = vunpack.c.l.b16 %v40
  %v186 = vunpack.c.h.b16 %v40
  %v187 = vunpack.c.l.b16 %v41
  %v188 = vunpack.c.h.b16 %v41
  %v189 = vunpack.c.l.b16 %v42
  %v190 = vunpack.c.h.b16 %v42
  %v191 = vunpack.c.l.b16 %v43
  %v192 = vunpack.c.h.b16 %v43
  %v193 = vunpack.c.l.b16 %v44
  %v194 = vunpack.c.h.b16 %v44
  %v195 = vunpack.c.l.b16 %v45
  %v196 = vunpack.c.h.b16 %v45
  %v197 = vunpack.c.l.b16 %v46
  %v198 = vunpack.c.h.b16 %v46
  %v199 = vunpack.c.l.b16 %v47
  %v200 = vunpack.c.h.b16 %v47
  %v201 = vunpack.c.l.b16 %v48
  %v202 = vunpack.c.h.b16 %v48
  %v203 = vunpack.c.l.b16 %v49
  %v204 = vunpack.c.h.b16 %v49
  %v205 = vunpack.c.l.b16 %v50
  %v206 = vunpack.c.h.b16 %v50
  %v207 = vunpack.c.l.b16 %v51
  %v208 = vunpack.c.h.b16 %v51
  %v209 = vunpack.c.l.b16 %v52
  %v210 = vunpack.c.h.b16 %v52
  %v211 = vunpack.c.l.b16 %v53
  %v212 = vunpack.c.h.b16 %v53
  %v213 = vunpack.c.l.b16 %v54
  %v214 = vunpack.c.h.b16 %v54
  %v215 = vunpack.c.l.b16 %v55
  %v216 = vunpack.c.h.b16 %v55
  %v217 = vunpack.c.l.b16 %v56
  %v218 = vunpack.c.h.b16 %v56
  %v219 = vunpack.c.l.b16 %v57
  %v220 = vunpack.c.h.b16 %v57
  %v221 = vunpack.c.l.b16 %v58
  %v222 = vunpack.c.h.b16 %v58
  %v223 = vunpack.c.l.b16 %v59
  %v224 = vunpack.c.h.b16 %v59
  %v225 = vunpack.c.l.b16 %v60
  %v226 = vunpack.c.h.b16 %v60
  %v227 = vunpack.c.l.b16 %v61
  %v228 = vunpack.c.h.b16 %v61
  %v229 = vunpack.c.l.b16 %v62
  %v230 = vunpack.c.h.b16 %v62
  %v231 = vunpack.c.l.b16 %v63
  %v232 = vunpack.c.h.b16 %v63
  %v233 = vunpack.c.l.b16 %v64
  %v234 = vunpack.c.h.b16 %v64
  %v235 = vunpack.c.l.b16 %v65
  %v236 = vunpack.c.h.b16 %v65
  %v237 = vunpack.c.l.b16 %v66
  %v238 = vunpack.c.h.b16 %v66
  %v239 = vunpack.c.l.b16 %v67
  %v240 = vunpack.c.h.b16 %v67
  %v241 = vunpack.c.l.b16 %v68
  %v242 = vunpack.c.h.b16 %v68
  %v243 = vunpack.c.l.b16 %v69
  %v244 = vunpack.c.h.b16 %v69
  %v245 = vunpack.c.l.b16 %v70
  %v246 = vunpack.c.h.b16 %v70
  %v247 = vpack.c.b16 %v185, %v183
  %v248 = vpack.c.b16 %v186, %v184
  %v249 = vpack.c.b16 %v189, %v187
  %v250 = vpack.c.b16 %v190, %v188
  %v251 = vpack.c.b16 %v193, %v191
  %v252 = vpack.c.b16 %v194, %v192
  %v253 = vpack.c.b16 %v197, %v195
  %v254 = vpack.c.b16 %v198, %v196
  %v255 = vpack.c.b16 %v201, %v199
  %v256 = vpack.c.b16 %v202, %v200
  %v257 = vpack.c.b16 %v205, %v203
  %v258 = vpack.c.b16 %v206, %v204
  %v259 = vpack.c.b16 %v209, %v207
  %v260 = vpack.c.b16 %v210, %v208
  %v261 = vpack.c.b16 %v213, %v211
  %v262 = vpack.c.b16 %v214, %v212
  %v263 = vpack.c.b16 %v217, %v215
  %v264 = vpack.c.b16 %v218, %v216
  %v265 = vpack.c.b16 %v221, %v219
  %v266 = vpack.c.b16 %v222, %v220
  %v267 = vpack.c.b16 %v225, %v223
  %v268 = vpack.c.b16 %v226, %v224
  %v269 = vpack.c.b16 %v229, %v227
  %v270 = vpack.c.b16 %v230, %v228
  %v271 = vpack.c.b16 %v233, %v231
  %v272 = vpack.c.b16 %v234, %v232
  %v273 = vpack.c.b16 %v237, %v235
  %v274 = vpack.c.b16 %v238, %v236
  %v275 = vpack.c.b16 %v241, %v239
  %v276 = vpack.c.b16 %v242, %v240
  %v277 = vpack.c.b16 %v245, %v243
  %v278 = vpack.c.b16 %v246, %v244
  %311 = vmatprep.subr.bf16.mxu0 %v248
  %312 = vmatpush1.bf16.msra.mxu0 %v247
  %313 = vmatprep.subr.bf16.mxu0 %v250
  %314 = vmatpush1.bf16.msra.mxu0 %v249
  %315 = vmatprep.subr.bf16.mxu0 %v252
  %316 = vmatpush1.bf16.msra.mxu0 %v251
  %317 = vmatprep.subr.bf16.mxu0 %v254
  %318 = vmatpush1.bf16.msra.mxu0 %v253
  %319 = vmatprep.subr.bf16.mxu0 %v256
  %320 = vmatpush1.bf16.msra.mxu0 %v255
  %321 = vmatprep.subr.bf16.mxu0 %v258
  %322 = vmatpush1.bf16.msra.mxu0 %v257
  %323 = vmatprep.subr.bf16.mxu0 %v260
  %324 = vmatpush1.bf16.msra.mxu0 %v259
  %325 = vmatprep.subr.bf16.mxu0 %v262
  %326 = vmatpush1.bf16.msra.mxu0 %v261
  %327 = vmatprep.subr.bf16.mxu0 %v264
  %328 = vmatpush1.bf16.msra.mxu0 %v263
  %329 = vmatprep.subr.bf16.mxu0 %v266
  %330 = vmatpush1.bf16.msra.mxu0 %v265
  %331 = vmatprep.subr.bf16.mxu0 %v268
  %332 = vmatpush1.bf16.msra.mxu0 %v267
  %333 = vmatprep.subr.bf16.mxu0 %v270
  %334 = vmatpush1.bf16.msra.mxu0 %v269
  %335 = vmatprep.subr.bf16.mxu0 %v272
  %336 = vmatpush1.bf16.msra.mxu0 %v271
  %337 = vmatprep.subr.bf16.mxu0 %v274
  %338 = vmatpush1.bf16.msra.mxu0 %v273
  %339 = vmatprep.subr.bf16.mxu0 %v276
  %340 = vmatpush1.bf16.msra.mxu0 %v275
  %341 = vmatprep.subr.bf16.mxu0 %v278
  %342 = vmatpush1.bf16.msra.mxu0 %v277
  %343 = vmatprep.mubr.bf16.mxu0 %v120
  %344 = vmatmul.mubr.bf16.gmra.mrb[0].mxu0 %v119
  %v345 = vpop.f32.mrb[0].mxu0
  %v346 = vadd.f32 0.0, %v345
  %v347 = vpop.f32.mrb[0].mxu0
  %v348 = vadd.f32 0.0, %v347
  %v349 = vpop.f32.mrb[0].mxu0
  %v350 = vadd.f32 0.0, %v349
  %v351 = vpop.f32.mrb[0].mxu0
  %v352 = vadd.f32 0.0, %v351
  %353 = vmatprep.mubr.bf16.mxu0 %v122
  %354 = vmatmul.mubr.bf16.gmra.mrb[0].mxu0 %v121
  %v355 = vpop.f32.mrb[0].mxu0
  %v356 = vadd.f32 0.0, %v355
  %v357 = vpop.f32.mrb[0].mxu0
  %v358 = vadd.f32 0.0, %v357
  %v359 = vpop.f32.mrb[0].mxu0
  %v360 = vadd.f32 0.0, %v359
  %v361 = vpop.f32.mrb[0].mxu0
  %v362 = vadd.f32 0.0, %v361
  %363 = vmatprep.mubr.bf16.mxu0 %v124
  %364 = vmatmul.mubr.bf16.gmra.mrb[0].mxu0 %v123
  %v365 = vpop.f32.mrb[0].mxu0
  %v366 = vadd.f32 0.0, %v365
  %v367 = vpop.f32.mrb[0].mxu0
  %v368 = vadd.f32 0.0, %v367
  %v369 = vpop.f32.mrb[0].mxu0
  %v370 = vadd.f32 0.0, %v369
  %v371 = vpop.f32.mrb[0].mxu0
  %v372 = vadd.f32 0.0, %v371
  %373 = vmatprep.mubr.bf16.mxu0 %v126
  %374 = vmatmul.mubr.bf16.gmra.mrb[0].mxu0 %v125
  %v375 = vpop.f32.mrb[0].mxu0
  %v376 = vadd.f32 0.0, %v375
  %v377 = vpop.f32.mrb[0].mxu0
  %v378 = vadd.f32 0.0, %v377
  %v379 = vpop.f32.mrb[0].mxu0
  %v380 = vadd.f32 0.0, %v379
  %v381 = vpop.f32.mrb[0].mxu0
  %v382 = vadd.f32 0.0, %v381
  %383 = vmatprep.mubr.bf16.mxu0 %v128
  %384 = vmatmul.mubr.bf16.gmra.mrb[0].mxu0 %v127
  %v385 = vpop.f32.mrb[0].mxu0
  %v386 = vadd.f32 0.0, %v385
  %v387 = vpop.f32.mrb[0].mxu0
  %v388 = vadd.f32 0.0, %v387
  %v389 = vpop.f32.mrb[0].mxu0
  %v390 = vadd.f32 0.0, %v389
  %v391 = vpop.f32.mrb[0].mxu0
  %v392 = vadd.f32 0.0, %v391
  %393 = vmatprep.mubr.bf16.mxu0 %v130
  %394 = vmatmul.mubr.bf16.gmra.mrb[0].mxu0 %v129
  %v395 = vpop.f32.mrb[0].mxu0
  %v396 = vadd.f32 0.0, %v395
  %v397 = vpop.f32.mrb[0].mxu0
  %v398 = vadd.f32 0.0, %v397
  %v399 = vpop.f32.mrb[0].mxu0
  %v400 = vadd.f32 0.0, %v399
  %v401 = vpop.f32.mrb[0].mxu0
  %v402 = vadd.f32 0.0, %v401
  %403 = vmatprep.mubr.bf16.mxu0 %v132
  %404 = vmatmul.mubr.bf16.gmra.mrb[0].mxu0 %v131
  %v405 = vpop.f32.mrb[0].mxu0
  %v406 = vadd.f32 0.0, %v405
  %v407 = vpop.f32.mrb[0].mxu0
  %v408 = vadd.f32 0.0, %v407
  %v409 = vpop.f32.mrb[0].mxu0
  %v410 = vadd.f32 0.0, %v409
  %v411 = vpop.f32.mrb[0].mxu0
  %v412 = vadd.f32 0.0, %v411
  %413 = vmatprep.mubr.bf16.mxu0 %v134
  %414 = vmatmul.mubr.bf16.gmra.mrb[0].mxu0 %v133
  %v415 = vpop.f32.mrb[0].mxu0
  %v416 = vadd.f32 0.0, %v415
  %v417 = vpop.f32.mrb[0].mxu0
  %v418 = vadd.f32 0.0, %v417
  %v419 = vpop.f32.mrb[0].mxu0
  %v420 = vadd.f32 0.0, %v419
  %v421 = vpop.f32.mrb[0].mxu0
  %v422 = vadd.f32 0.0, %v421
  %423 = vdwg.mxu0
  %v424 = vld [vmem:[%s1] sm:$0xff]
  %v425 = vld [vmem:[%s1 + $0x8] sm:$0xff]
  %v426 = vld [vmem:[%s1 + $0x10] sm:$0xff]
  %v427 = vld [vmem:[%s1 + $0x18] sm:$0xff]
  %v428 = vld [vmem:[%s3] sm:$0xff]
  %v429 = vld [vmem:[%s3 + $0x8] sm:$0xff]
  %v430 = vld [vmem:[%s3 + $0x10] sm:$0xff]
  %v431 = vld [vmem:[%s3 + $0x18] sm:$0xff]
  %v432 = vld [vmem:[%s3 + $0x20] sm:$0xff]
  %v433 = vld [vmem:[%s3 + $0x28] sm:$0xff]
  %v434 = vld [vmem:[%s3 + $0x30] sm:$0xff]
  %v435 = vld [vmem:[%s3 + $0x38] sm:$0xff]
  %v436 = vld [vmem:[%s3 + $0x40] sm:$0xff]
  %v437 = vld [vmem:[%s3 + $0x48] sm:$0xff]
  %v438 = vld [vmem:[%s3 + $0x50] sm:$0xff]
  %v439 = vld [vmem:[%s3 + $0x58] sm:$0xff]
  %v440 = vld [vmem:[%s3 + $0x60] sm:$0xff]
  %v441 = vld [vmem:[%s3 + $0x68] sm:$0xff]
  %v442 = vld [vmem:[%s3 + $0x70] sm:$0xff]
  %v443 = vld [vmem:[%s3 + $0x78] sm:$0xff]
  %v444 = vld [vmem:[%s3 + $0x80] sm:$0xff]
  %v445 = vld [vmem:[%s3 + $0x88] sm:$0xff]
  %v446 = vld [vmem:[%s3 + $0x90] sm:$0xff]
  %v447 = vld [vmem:[%s3 + $0x98] sm:$0xff]
  %v448 = vld [vmem:[%s3 + $0xa0] sm:$0xff]
  %v449 = vld [vmem:[%s3 + $0xa8] sm:$0xff]
  %v450 = vld [vmem:[%s3 + $0xb0] sm:$0xff]
  %v451 = vld [vmem:[%s3 + $0xb8] sm:$0xff]
  %v452 = vld [vmem:[%s3 + $0xc0] sm:$0xff]
  %v453 = vld [vmem:[%s3 + $0xc8] sm:$0xff]
  %v454 = vld [vmem:[%s3 + $0xd0] sm:$0xff]
  %v455 = vld [vmem:[%s3 + $0xd8] sm:$0xff]
  %v456 = vld [vmem:[%s3 + $0xe0] sm:$0xff]
  %v457 = vld [vmem:[%s3 + $0xe8] sm:$0xff]
  %v458 = vld [vmem:[%s3 + $0xf0] sm:$0xff]
  %v459 = vld [vmem:[%s3 + $0xf8] sm:$0xff]
  %v464 = vunpack.c.l.b16 %v424
  %v465 = vunpack.c.h.b16 %v424
  %v466 = vunpack.c.l.b16 %v425
  %v467 = vunpack.c.h.b16 %v425
  %v468 = vunpack.c.l.b16 %v426
  %v469 = vunpack.c.h.b16 %v426
  %v470 = vunpack.c.l.b16 %v427
  %v471 = vunpack.c.h.b16 %v427
  %v472 = vpack.c.b16 %v466, %v464
  %v473 = vpack.c.b16 %v467, %v465
  %v474 = vpack.c.b16 %v470, %v468
  %v475 = vpack.c.b16 %v471, %v469
  %v512 = vunpack.c.l.b16 %v428
  %v513 = vunpack.c.h.b16 %v428
  %v514 = vunpack.c.l.b16 %v429
  %v515 = vunpack.c.h.b16 %v429
  %v516 = vunpack.c.l.b16 %v430
  %v517 = vunpack.c.h.b16 %v430
  %v518 = vunpack.c.l.b16 %v431
  %v519 = vunpack.c.h.b16 %v431
  %v520 = vunpack.c.l.b16 %v432
  %v521 = vunpack.c.h.b16 %v432
  %v522 = vunpack.c.l.b16 %v433
  %v523 = vunpack.c.h.b16 %v433
  %v524 = vunpack.c.l.b16 %v434
  %v525 = vunpack.c.h.b16 %v434
  %v526 = vunpack.c.l.b16 %v435
  %v527 = vunpack.c.h.b16 %v435
  %v528 = vunpack.c.l.b16 %v436
  %v529 = vunpack.c.h.b16 %v436
  %v530 = vunpack.c.l.b16 %v437
  %v531 = vunpack.c.h.b16 %v437
  %v532 = vunpack.c.l.b16 %v438
  %v533 = vunpack.c.h.b16 %v438
  %v534 = vunpack.c.l.b16 %v439
  %v535 = vunpack.c.h.b16 %v439
  %v536 = vunpack.c.l.b16 %v440
  %v537 = vunpack.c.h.b16 %v440
  %v538 = vunpack.c.l.b16 %v441
  %v539 = vunpack.c.h.b16 %v441
  %v540 = vunpack.c.l.b16 %v442
  %v541 = vunpack.c.h.b16 %v442
  %v542 = vunpack.c.l.b16 %v443
  %v543 = vunpack.c.h.b16 %v443
  %v544 = vunpack.c.l.b16 %v444
  %v545 = vunpack.c.h.b16 %v444
  %v546 = vunpack.c.l.b16 %v445
  %v547 = vunpack.c.h.b16 %v445
  %v548 = vunpack.c.l.b16 %v446
  %v549 = vunpack.c.h.b16 %v446
  %v550 = vunpack.c.l.b16 %v447
  %v551 = vunpack.c.h.b16 %v447
  %v552 = vunpack.c.l.b16 %v448
  %v553 = vunpack.c.h.b16 %v448
  %v554 = vunpack.c.l.b16 %v449
  %v555 = vunpack.c.h.b16 %v449
  %v556 = vunpack.c.l.b16 %v450
  %v557 = vunpack.c.h.b16 %v450
  %v558 = vunpack.c.l.b16 %v451
  %v559 = vunpack.c.h.b16 %v451
  %v560 = vunpack.c.l.b16 %v452
  %v561 = vunpack.c.h.b16 %v452
  %v562 = vunpack.c.l.b16 %v453
  %v563 = vunpack.c.h.b16 %v453
  %v564 = vunpack.c.l.b16 %v454
  %v565 = vunpack.c.h.b16 %v454
  %v566 = vunpack.c.l.b16 %v455
  %v567 = vunpack.c.h.b16 %v455
  %v568 = vunpack.c.l.b16 %v456
  %v569 = vunpack.c.h.b16 %v456
  %v570 = vunpack.c.l.b16 %v457
  %v571 = vunpack.c.h.b16 %v457
  %v572 = vunpack.c.l.b16 %v458
  %v573 = vunpack.c.h.b16 %v458
  %v574 = vunpack.c.l.b16 %v459
  %v575 = vunpack.c.h.b16 %v459
  %v576 = vpack.c.b16 %v514, %v512
  %v577 = vpack.c.b16 %v515, %v513
  %v578 = vpack.c.b16 %v518, %v516
  %v579 = vpack.c.b16 %v519, %v517
  %v580 = vpack.c.b16 %v522, %v520
  %v581 = vpack.c.b16 %v523, %v521
  %v582 = vpack.c.b16 %v526, %v524
  %v583 = vpack.c.b16 %v527, %v525
  %v584 = vpack.c.b16 %v530, %v528
  %v585 = vpack.c.b16 %v531, %v529
  %v586 = vpack.c.b16 %v534, %v532
  %v587 = vpack.c.b16 %v535, %v533
  %v588 = vpack.c.b16 %v538, %v536
  %v589 = vpack.c.b16 %v539, %v537
  %v590 = vpack.c.b16 %v542, %v540
  %v591 = vpack.c.b16 %v543, %v541
  %v592 = vpack.c.b16 %v546, %v544
  %v593 = vpack.c.b16 %v547, %v545
  %v594 = vpack.c.b16 %v550, %v548
  %v595 = vpack.c.b16 %v551, %v549
  %v596 = vpack.c.b16 %v554, %v552
  %v597 = vpack.c.b16 %v555, %v553
  %v598 = vpack.c.b16 %v558, %v556
  %v599 = vpack.c.b16 %v559, %v557
  %v600 = vpack.c.b16 %v562, %v560
  %v601 = vpack.c.b16 %v563, %v561
  %v602 = vpack.c.b16 %v566, %v564
  %v603 = vpack.c.b16 %v567, %v565
  %v604 = vpack.c.b16 %v570, %v568
  %v605 = vpack.c.b16 %v571, %v569
  %v606 = vpack.c.b16 %v574, %v572
  %v607 = vpack.c.b16 %v575, %v573
  %640 = vmatprep.subr.bf16.mxu0 %v577
  %641 = vmatpush1.bf16.msra.mxu0 %v576
  %642 = vmatprep.subr.bf16.mxu0 %v579
  %643 = vmatpush1.bf16.msra.mxu0 %v578
  %644 = vmatprep.subr.bf16.mxu0 %v581
  %645 = vmatpush1.bf16.msra.mxu0 %v580
  %646 = vmatprep.subr.bf16.mxu0 %v583
  %647 = vmatpush1.bf16.msra.mxu0 %v582
  %648 = vmatprep.subr.bf16.mxu0 %v585
  %649 = vmatpush1.bf16.msra.mxu0 %v584
  %650 = vmatprep.subr.bf16.mxu0 %v587
  %651 = vmatpush1.bf16.msra.mxu0 %v586
  %652 = vmatprep.subr.bf16.mxu0 %v589
  %653 = vmatpush1.bf16.msra.mxu0 %v588
  %654 = vmatprep.subr.bf16.mxu0 %v591
  %655 = vmatpush1.bf16.msra.mxu0 %v590
  %656 = vmatprep.subr.bf16.mxu0 %v593
  %657 = vmatpush1.bf16.msra.mxu0 %v592
  %658 = vmatprep.subr.bf16.mxu0 %v595
  %659 = vmatpush1.bf16.msra.mxu0 %v594
  %660 = vmatprep.subr.bf16.mxu0 %v597
  %661 = vmatpush1.bf16.msra.mxu0 %v596
  %662 = vmatprep.subr.bf16.mxu0 %v599
  %663 = vmatpush1.bf16.msra.mxu0 %v598
  %664 = vmatprep.subr.bf16.mxu0 %v601
  %665 = vmatpush1.bf16.msra.mxu0 %v600
  %666 = vmatprep.subr.bf16.mxu0 %v603
  %667 = vmatpush1.bf16.msra.mxu0 %v602
  %668 = vmatprep.subr.bf16.mxu0 %v605
  %669 = vmatpush1.bf16.msra.mxu0 %v604
  %670 = vmatprep.subr.bf16.mxu0 %v607
  %671 = vmatpush1.bf16.msra.mxu0 %v606
  %672 = vmatprep.mubr.bf16.mxu0 %v473
  %673 = vmatmul.mubr.bf16.gmra.mrb[0].mxu0 %v472
  %v674 = vpop.f32.mrb[0].mxu0
  %v675 = vadd.f32 0.0, %v674
  %v676 = vpop.f32.mrb[0].mxu0
  %v677 = vadd.f32 0.0, %v676
  %v678 = vpop.f32.mrb[0].mxu0
  %v679 = vadd.f32 0.0, %v678
  %v680 = vpop.f32.mrb[0].mxu0
  %v681 = vadd.f32 0.0, %v680
  %682 = vmatprep.mubr.bf16.mxu0 %v475
  %683 = vmatmul.mubr.bf16.gmra.mrb[0].mxu0 %v474
  %v684 = vpop.f32.mrb[0].mxu0
  %v685 = vadd.f32 0.0, %v684
  %v686 = vpop.f32.mrb[0].mxu0
  %v687 = vadd.f32 0.0, %v686
  %v688 = vpop.f32.mrb[0].mxu0
  %v689 = vadd.f32 0.0, %v688
  %v690 = vpop.f32.mrb[0].mxu0
  %v691 = vadd.f32 0.0, %v690
  %692 = vdwg.mxu0
  %v693 = vadd.f32 %v346, %v675
  %v694 = vadd.f32 %v348, %v677
  %v695 = vadd.f32 %v350, %v679
  %v696 = vadd.f32 %v352, %v681
  %v697 = vadd.f32 %v356, %v685
  %v698 = vadd.f32 %v358, %v687
  %v699 = vadd.f32 %v360, %v689
  %v700 = vadd.f32 %v362, %v691
  %v701 = vadd.f32 %v366, %v675
  %v702 = vadd.f32 %v368, %v677
  %v703 = vadd.f32 %v370, %v679
  %v704 = vadd.f32 %v372, %v681
  %v705 = vadd.f32 %v376, %v685
  %v706 = vadd.f32 %v378, %v687
  %v707 = vadd.f32 %v380, %v689
  %v708 = vadd.f32 %v382, %v691
  %v709 = vadd.f32 %v386, %v675
  %v710 = vadd.f32 %v388, %v677
  %v711 = vadd.f32 %v390, %v679
  %v712 = vadd.f32 %v392, %v681
  %v713 = vadd.f32 %v396, %v685
  %v714 = vadd.f32 %v398, %v687
  %v715 = vadd.f32 %v400, %v689
  %v716 = vadd.f32 %v402, %v691
  %v717 = vadd.f32 %v406, %v675
  %v718 = vadd.f32 %v408, %v677
  %v719 = vadd.f32 %v410, %v679
  %v720 = vadd.f32 %v412, %v681
  %v721 = vadd.f32 %v416, %v685
  %v722 = vadd.f32 %v418, %v687
  %v723 = vadd.f32 %v420, %v689
  %v724 = vadd.f32 %v422, %v691
  %v725 = vld [vmem:[%s4] sm:$0x3]
  %v727 = vlaneseq
  %v728 = vshrl.u32 %v727, 7
  %v729 = vsub.s32 0, %v728
  %v730 = vrot.slane %v725, %v729
  %v731 = vlaneseq
  %v732 = vshrl.u32 %v731, 7
  %v733 = vsub.s32 1, %v732
  %v734 = vrot.slane %v725, %v733
  %v737 = vmul.f32 %v693, %v730
  %v738 = vmul.f32 %v694, %v734
  %v739 = vmul.f32 %v695, %v730
  %v740 = vmul.f32 %v696, %v734
  %v741 = vmul.f32 %v697, %v730
  %v742 = vmul.f32 %v698, %v734
  %v743 = vmul.f32 %v699, %v730
  %v744 = vmul.f32 %v700, %v734
  %v745 = vmul.f32 %v701, %v730
  %v746 = vmul.f32 %v702, %v734
  %v747 = vmul.f32 %v703, %v730
  %v748 = vmul.f32 %v704, %v734
  %v749 = vmul.f32 %v705, %v730
  %v750 = vmul.f32 %v706, %v734
  %v751 = vmul.f32 %v707, %v730
  %v752 = vmul.f32 %v708, %v734
  %v753 = vmul.f32 %v709, %v730
  %v754 = vmul.f32 %v710, %v734
  %v755 = vmul.f32 %v711, %v730
  %v756 = vmul.f32 %v712, %v734
  %v757 = vmul.f32 %v713, %v730
  %v758 = vmul.f32 %v714, %v734
  %v759 = vmul.f32 %v715, %v730
  %v760 = vmul.f32 %v716, %v734
  %v761 = vmul.f32 %v717, %v730
  %v762 = vmul.f32 %v718, %v734
  %v763 = vmul.f32 %v719, %v730
  %v764 = vmul.f32 %v720, %v734
  %v765 = vmul.f32 %v721, %v730
  %v766 = vmul.f32 %v722, %v734
  %v767 = vmul.f32 %v723, %v730
  %v768 = vmul.f32 %v724, %v734
  %v769 = vld [vmem:[%s5] sm:$0x3]
  %v771 = vlaneseq
  %v772 = vshrl.u32 %v771, 7
  %v773 = vsub.s32 0, %v772
  %v774 = vrot.slane %v769, %v773
  %v775 = vlaneseq
  %v776 = vshrl.u32 %v775, 7
  %v777 = vsub.s32 1, %v776
  %v778 = vrot.slane %v769, %v777
  %v781 = vadd.f32 %v737, %v774
  %v782 = vadd.f32 %v738, %v778
  %v783 = vadd.f32 %v739, %v774
  %v784 = vadd.f32 %v740, %v778
  %v785 = vadd.f32 %v741, %v774
  %v786 = vadd.f32 %v742, %v778
  %v787 = vadd.f32 %v743, %v774
  %v788 = vadd.f32 %v744, %v778
  %v789 = vadd.f32 %v745, %v774
  %v790 = vadd.f32 %v746, %v778
  %v791 = vadd.f32 %v747, %v774
  %v792 = vadd.f32 %v748, %v778
  %v793 = vadd.f32 %v749, %v774
  %v794 = vadd.f32 %v750, %v778
  %v795 = vadd.f32 %v751, %v774
  %v796 = vadd.f32 %v752, %v778
  %v797 = vadd.f32 %v753, %v774
  %v798 = vadd.f32 %v754, %v778
  %v799 = vadd.f32 %v755, %v774
  %v800 = vadd.f32 %v756, %v778
  %v801 = vadd.f32 %v757, %v774
  %v802 = vadd.f32 %v758, %v778
  %v803 = vadd.f32 %v759, %v774
  %v804 = vadd.f32 %v760, %v778
  %v805 = vadd.f32 %v761, %v774
  %v806 = vadd.f32 %v762, %v778
  %v807 = vadd.f32 %v763, %v774
  %v808 = vadd.f32 %v764, %v778
  %v809 = vadd.f32 %v765, %v774
  %v810 = vadd.f32 %v766, %v778
  %v811 = vadd.f32 %v767, %v774
  %v812 = vadd.f32 %v768, %v778
  %vm813 = vcmp.ge.f32.partialorder %v781, 0.0
  %vm814 = vcmp.ge.f32.partialorder %v782, 0.0
  %vm815 = vcmp.ge.f32.partialorder %v783, 0.0
  %vm816 = vcmp.ge.f32.partialorder %v784, 0.0
  %vm817 = vcmp.ge.f32.partialorder %v785, 0.0
  %vm818 = vcmp.ge.f32.partialorder %v786, 0.0
  %vm819 = vcmp.ge.f32.partialorder %v787, 0.0
  %vm820 = vcmp.ge.f32.partialorder %v788, 0.0
  %vm821 = vcmp.ge.f32.partialorder %v789, 0.0
  %vm822 = vcmp.ge.f32.partialorder %v790, 0.0
  %vm823 = vcmp.ge.f32.partialorder %v791, 0.0
  %vm824 = vcmp.ge.f32.partialorder %v792, 0.0
  %vm825 = vcmp.ge.f32.partialorder %v793, 0.0
  %vm826 = vcmp.ge.f32.partialorder %v794, 0.0
  %vm827 = vcmp.ge.f32.partialorder %v795, 0.0
  %vm828 = vcmp.ge.f32.partialorder %v796, 0.0
  %vm829 = vcmp.ge.f32.partialorder %v797, 0.0
  %vm830 = vcmp.ge.f32.partialorder %v798, 0.0
  %vm831 = vcmp.ge.f32.partialorder %v799, 0.0
  %vm832 = vcmp.ge.f32.partialorder %v800, 0.0
  %vm833 = vcmp.ge.f32.partialorder %v801, 0.0
  %vm834 = vcmp.ge.f32.partialorder %v802, 0.0
  %vm835 = vcmp.ge.f32.partialorder %v803, 0.0
  %vm836 = vcmp.ge.f32.partialorder %v804, 0.0
  %vm837 = vcmp.ge.f32.partialorder %v805, 0.0
  %vm838 = vcmp.ge.f32.partialorder %v806, 0.0
  %vm839 = vcmp.ge.f32.partialorder %v807, 0.0
  %vm840 = vcmp.ge.f32.partialorder %v808, 0.0
  %vm841 = vcmp.ge.f32.partialorder %v809, 0.0
  %vm842 = vcmp.ge.f32.partialorder %v810, 0.0
  %vm843 = vcmp.ge.f32.partialorder %v811, 0.0
  %vm844 = vcmp.ge.f32.partialorder %v812, 0.0
  %v845 = vmul.f32 %v781, 0.2
  %v846 = vmul.f32 %v782, 0.2
  %v847 = vmul.f32 %v783, 0.2
  %v848 = vmul.f32 %v784, 0.2
  %v849 = vmul.f32 %v785, 0.2
  %v850 = vmul.f32 %v786, 0.2
  %v851 = vmul.f32 %v787, 0.2
  %v852 = vmul.f32 %v788, 0.2
  %v853 = vmul.f32 %v789, 0.2
  %v854 = vmul.f32 %v790, 0.2
  %v855 = vmul.f32 %v791, 0.2
  %v856 = vmul.f32 %v792, 0.2
  %v857 = vmul.f32 %v793, 0.2
  %v858 = vmul.f32 %v794, 0.2
  %v859 = vmul.f32 %v795, 0.2
  %v860 = vmul.f32 %v796, 0.2
  %v861 = vmul.f32 %v797, 0.2
  %v862 = vmul.f32 %v798, 0.2
  %v863 = vmul.f32 %v799, 0.2
  %v864 = vmul.f32 %v800, 0.2
  %v865 = vmul.f32 %v801, 0.2
  %v866 = vmul.f32 %v802, 0.2
  %v867 = vmul.f32 %v803, 0.2
  %v868 = vmul.f32 %v804, 0.2
  %v869 = vmul.f32 %v805, 0.2
  %v870 = vmul.f32 %v806, 0.2
  %v871 = vmul.f32 %v807, 0.2
  %v872 = vmul.f32 %v808, 0.2
  %v873 = vmul.f32 %v809, 0.2
  %v874 = vmul.f32 %v810, 0.2
  %v875 = vmul.f32 %v811, 0.2
  %v876 = vmul.f32 %v812, 0.2
  %v877 = vsel %vm813, %v781, %v845
  %v878 = vsel %vm814, %v782, %v846
  %v879 = vsel %vm815, %v783, %v847
  %v880 = vsel %vm816, %v784, %v848
  %v881 = vsel %vm817, %v785, %v849
  %v882 = vsel %vm818, %v786, %v850
  %v883 = vsel %vm819, %v787, %v851
  %v884 = vsel %vm820, %v788, %v852
  %v885 = vsel %vm821, %v789, %v853
  %v886 = vsel %vm822, %v790, %v854
  %v887 = vsel %vm823, %v791, %v855
  %v888 = vsel %vm824, %v792, %v856
  %v889 = vsel %vm825, %v793, %v857
  %v890 = vsel %vm826, %v794, %v858
  %v891 = vsel %vm827, %v795, %v859
  %v892 = vsel %vm828, %v796, %v860
  %v893 = vsel %vm829, %v797, %v861
  %v894 = vsel %vm830, %v798, %v862
  %v895 = vsel %vm831, %v799, %v863
  %v896 = vsel %vm832, %v800, %v864
  %v897 = vsel %vm833, %v801, %v865
  %v898 = vsel %vm834, %v802, %v866
  %v899 = vsel %vm835, %v803, %v867
  %v900 = vsel %vm836, %v804, %v868
  %v901 = vsel %vm837, %v805, %v869
  %v902 = vsel %vm838, %v806, %v870
  %v903 = vsel %vm839, %v807, %v871
  %v904 = vsel %vm840, %v808, %v872
  %v905 = vsel %vm841, %v809, %v873
  %v906 = vsel %vm842, %v810, %v874
  %v907 = vsel %vm843, %v811, %v875
  %v908 = vsel %vm844, %v812, %v876
  %v909 = vmax.f32 %v877, %v885
  %v910 = vmax.f32 %v909, %v893
  %v911 = vmax.f32 %v910, %v901
  %v912 = vmax.f32 %v878, %v886
  %v913 = vmax.f32 %v912, %v894
  %v914 = vmax.f32 %v913, %v902
  %v915 = vmax.f32 %v879, %v887
  %v916 = vmax.f32 %v915, %v895
  %v917 = vmax.f32 %v916, %v903
  %v918 = vmax.f32 %v880, %v888
  %v919 = vmax.f32 %v918, %v896
  %v920 = vmax.f32 %v919, %v904
  %v921 = vmax.f32 %v881, %v889
  %v922 = vmax.f32 %v921, %v897
  %v923 = vmax.f32 %v922, %v905
  %v924 = vmax.f32 %v882, %v890
  %v925 = vmax.f32 %v924, %v898
  %v926 = vmax.f32 %v925, %v906
  %v927 = vmax.f32 %v883, %v891
  %v928 = vmax.f32 %v927, %v899
  %v929 = vmax.f32 %v928, %v907
  %v930 = vmax.f32 %v884, %v892
  %v931 = vmax.f32 %v930, %v900
  %v932 = vmax.f32 %v931, %v908
  %933 = vst [vmem:[%s6] sm:$0xff] %v911
  %934 = vst [vmem:[%s6 + $0x8] sm:$0xff] %v914
  %935 = vst [vmem:[%s6 + $0x10] sm:$0xff] %v917
  %936 = vst [vmem:[%s6 + $0x18] sm:$0xff] %v920
  %937 = vst [vmem:[%s6 + $0x20] sm:$0xff] %v923
  %938 = vst [vmem:[%s6 + $0x28] sm:$0xff] %v926
  %939 = vst [vmem:[%s6 + $0x30] sm:$0xff] %v929
  %940 = vst [vmem:[%s6 + $0x38] sm:$0xff] %v932
  // Predicated region
  $region26: #{dgcnn_forward.17} parent=0 // pred_check
    _
  $region27: #{dgcnn_forward.17} parent=0 // pred_check_branch
    %942 = sbr.rel (0) target = $region29
  $region28: #{dgcnn_forward.17} parent=0 // pred_region
    _
  $region29: #{dgcnn_forward.17} parent=0 // pred_fallthru
    _
  // Predicated region
  $region30: #{dgcnn_forward.17} parent=0 // pred_check
    _
  $region31: #{dgcnn_forward.17} parent=0 // pred_check_branch
    %944 = sbr.rel (0) target = $region33
  $region32: #{dgcnn_forward.17} parent=0 // pred_region
    _
  $region33: #{dgcnn_forward.17} parent=0 // pred_fallthru
    _

// kernel: dgcnn_forward.21
$region0: #{dgcnn_forward.21}
  #allocation0 [shape = 'u32[]', space=smem, size = 0x4, offset = 0x4, fixed_abs, tag = 'smem constant byte address 0x4 - core index']
  #allocation1 [shape = 'u32[144,128]{1,0:T(1,128)}', space=vmem, size = 0x12000, scoped, tag = 'internal scratch']
  %s0 = inlined_call_operand.vmem [shape: f32[2,128], index: 0, kind: input, shape index: {}]
  %s1 = inlined_call_operand.vmem [shape: f32[128,512], index: 1, kind: input, shape index: {}]
  %s2 = inlined_call_operand.vmem [shape: f32[1,512], index: 2, kind: input, shape index: {}]
  %s3 = inlined_call_operand.vmem [shape: f32[1,512], index: 3, kind: input, shape index: {}]
  %s4 = inlined_call_operand.vmem [shape: f32[512,256], index: 4, kind: input, shape index: {}]
  %s5 = inlined_call_operand.vmem [shape: f32[1,256], index: 5, kind: input, shape index: {}]
  %s6 = inlined_call_operand.vmem [shape: f32[1,256], index: 6, kind: input, shape index: {}]
  %s7 = inlined_call_operand.vmem [shape: f32[256,64], index: 7, kind: input, shape index: {}]
  %s8 = inlined_call_operand.vmem [shape: f32[1,64], index: 8, kind: input, shape index: {}]
  %s9 = inlined_call_operand.vmem [shape: f32[1,64], index: 9, kind: input, shape index: {}]
  %s10 = inlined_call_operand.vmem [shape: f32[64,3], index: 10, kind: input, shape index: {}]
  %s11 = inlined_call_operand.vmem [shape: f32[1,3], index: 11, kind: input, shape index: {}]
  %s12 = inlined_call_operand.vmem [shape: f32[1,3], index: 12, kind: input, shape index: {}]
  %s13 = inlined_call_operand.hbm [shape: f32[2,3], index: 13, kind: output, shape index: {}]
  %s14 = sld [smem:[#allocation0]]
  $region62: #{dgcnn_forward.21} parent=0
    _
  %s16 = ssub.s32 1, %s14
  %s17 = scalar_select 0, %s16, %s14
  $region1: #{dgcnn_forward.21} parent=0
    #allocation2 [shape = 'u8[1024]{0}', space=vmem, size = 0x400, scoped, tag = 'output window, operand 0, single buffered']
    #allocation3 [shape = 's32[1]{0}', space=sflag, size = 0x4, scoped, tag = 'scoped memory for dgcnn_forward.21']
    %18 = vsyncpa [#allocation3], 0
    // Predicated region
    $region2: #{dgcnn_forward.21} parent=1 // pred_check
      _
    $region3: #{dgcnn_forward.21} parent=1 // pred_check_branch
      %20 = sbr.rel (0) target = $region5
    $region4: #{dgcnn_forward.21} parent=1 // pred_region
      _
    $region5: #{dgcnn_forward.21} parent=1 // pred_fallthru
      _
    // Predicated region
    $region6: #{dgcnn_forward.21} parent=1 // pred_check
      _
    $region7: #{dgcnn_forward.21} parent=1 // pred_check_branch
      %22 = sbr.rel (0) target = $region9
    $region8: #{dgcnn_forward.21} parent=1 // pred_region
      _
    $region9: #{dgcnn_forward.21} parent=1 // pred_fallthru
      _
    // Predicated region
    $region10: #{dgcnn_forward.21} parent=1 // pred_check
      _
    $region11: #{dgcnn_forward.21} parent=1 // pred_check_branch
      %24 = sbr.rel (0) target = $region13
    $region12: #{dgcnn_forward.21} parent=1 // pred_region
      _
    $region13: #{dgcnn_forward.21} parent=1 // pred_fallthru
      _
    // Predicated region
    $region14: #{dgcnn_forward.21} parent=1 // pred_check
      _
    $region15: #{dgcnn_forward.21} parent=1 // pred_check_branch
      %26 = sbr.rel (0) target = $region17
    $region16: #{dgcnn_forward.21} parent=1 // pred_region
      _
    $region17: #{dgcnn_forward.21} parent=1 // pred_fallthru
      _
    // Predicated region
    $region18: #{dgcnn_forward.21} parent=1 // pred_check
      _
    $region19: #{dgcnn_forward.21} parent=1 // pred_check_branch
      %28 = sbr.rel (0) target = $region21
    $region20: #{dgcnn_forward.21} parent=1 // pred_region
      _
    $region21: #{dgcnn_forward.21} parent=1 // pred_fallthru
      _
    // Predicated region
    $region22: #{dgcnn_forward.21} parent=1 // pred_check
      _
    $region23: #{dgcnn_forward.21} parent=1 // pred_check_branch
      %30 = sbr.rel (0) target = $region25
    $region24: #{dgcnn_forward.21} parent=1 // pred_region
      _
    $region25: #{dgcnn_forward.21} parent=1 // pred_fallthru
      _
    // Predicated region
    $region26: #{dgcnn_forward.21} parent=1 // pred_check
      _
    $region27: #{dgcnn_forward.21} parent=1 // pred_check_branch
      %32 = sbr.rel (0) target = $region29
    $region28: #{dgcnn_forward.21} parent=1 // pred_region
      _
    $region29: #{dgcnn_forward.21} parent=1 // pred_fallthru
      _
    // Predicated region
    $region30: #{dgcnn_forward.21} parent=1 // pred_check
      _
    $region31: #{dgcnn_forward.21} parent=1 // pred_check_branch
      %34 = sbr.rel (0) target = $region33
    $region32: #{dgcnn_forward.21} parent=1 // pred_region
      _
    $region33: #{dgcnn_forward.21} parent=1 // pred_fallthru
      _
    // Predicated region
    $region34: #{dgcnn_forward.21} parent=1 // pred_check
      _
    $region35: #{dgcnn_forward.21} parent=1 // pred_check_branch
      %36 = sbr.rel (0) target = $region37
    $region36: #{dgcnn_forward.21} parent=1 // pred_region
      _
    $region37: #{dgcnn_forward.21} parent=1 // pred_fallthru
      _
    // Predicated region
    $region38: #{dgcnn_forward.21} parent=1 // pred_check
      _
    $region39: #{dgcnn_forward.21} parent=1 // pred_check_branch
      %38 = sbr.rel (0) target = $region41
    $region40: #{dgcnn_forward.21} parent=1 // pred_region
      _
    $region41: #{dgcnn_forward.21} parent=1 // pred_fallthru
      _
    // Predicated region
    $region42: #{dgcnn_forward.21} parent=1 // pred_check
      _
    $region43: #{dgcnn_forward.21} parent=1 // pred_check_branch
      %40 = sbr.rel (0) target = $region45
    $region44: #{dgcnn_forward.21} parent=1 // pred_region
      _
    $region45: #{dgcnn_forward.21} parent=1 // pred_fallthru
      _
    // Predicated region
    $region46: #{dgcnn_forward.21} parent=1 // pred_check
      _
    $region47: #{dgcnn_forward.21} parent=1 // pred_check_branch
      %42 = sbr.rel (0) target = $region49
    $region48: #{dgcnn_forward.21} parent=1 // pred_region
      _
    $region49: #{dgcnn_forward.21} parent=1 // pred_fallthru
      _
    // Predicated region
    $region50: #{dgcnn_forward.21} parent=1 // pred_check
      _
    $region51: #{dgcnn_forward.21} parent=1 // pred_check_branch
      %44 = sbr.rel (0) target = $region53
    $region52: #{dgcnn_forward.21} parent=1 // pred_region
      _
    $region53: #{dgcnn_forward.21} parent=1 // pred_fallthru
      _
    %v45 = vld [vmem:[%s0] sm:$0x3]
    %v46 = vld [vmem:[%s1] sm:$0xff]
    %v47 = vld [vmem:[%s1 + $0x8] sm:$0xff]
    %v48 = vld [vmem:[%s1 + $0x10] sm:$0xff]
    %v49 = vld [vmem:[%s1 + $0x18] sm:$0xff]
    %v50 = vld [vmem:[%s1 + $0x20] sm:$0xff]
    %v51 = vld [vmem:[%s1 + $0x28] sm:$0xff]
    %v52 = vld [vmem:[%s1 + $0x30] sm:$0xff]
    %v53 = vld [vmem:[%s1 + $0x38] sm:$0xff]
    %v54 = vld [vmem:[%s1 + $0x40] sm:$0xff]
    %v55 = vld [vmem:[%s1 + $0x48] sm:$0xff]
    %v56 = vld [vmem:[%s1 + $0x50] sm:$0xff]
    %v57 = vld [vmem:[%s1 + $0x58] sm:$0xff]
    %v58 = vld [vmem:[%s1 + $0x60] sm:$0xff]
    %v59 = vld [vmem:[%s1 + $0x68] sm:$0xff]
    %v60 = vld [vmem:[%s1 + $0x70] sm:$0xff]
    %v61 = vld [vmem:[%s1 + $0x78] sm:$0xff]
    %v62 = vld [vmem:[%s1 + $0x80] sm:$0xff]
    %v63 = vld [vmem:[%s1 + $0x88] sm:$0xff]
    %v64 = vld [vmem:[%s1 + $0x90] sm:$0xff]
    %v65 = vld [vmem:[%s1 + $0x98] sm:$0xff]
    %v66 = vld [vmem:[%s1 + $0xa0] sm:$0xff]
    %v67 = vld [vmem:[%s1 + $0xa8] sm:$0xff]
    %v68 = vld [vmem:[%s1 + $0xb0] sm:$0xff]
    %v69 = vld [vmem:[%s1 + $0xb8] sm:$0xff]
    %v70 = vld [vmem:[%s1 + $0xc0] sm:$0xff]
    %v71 = vld [vmem:[%s1 + $0xc8] sm:$0xff]
    %v72 = vld [vmem:[%s1 + $0xd0] sm:$0xff]
    %v73 = vld [vmem:[%s1 + $0xd8] sm:$0xff]
    %v74 = vld [vmem:[%s1 + $0xe0] sm:$0xff]
    %v75 = vld [vmem:[%s1 + $0xe8] sm:$0xff]
    %v76 = vld [vmem:[%s1 + $0xf0] sm:$0xff]
    %v77 = vld [vmem:[%s1 + $0xf8] sm:$0xff]
    %v78 = vld [vmem:[%s1 + $0x100] sm:$0xff]
    %v79 = vld [vmem:[%s1 + $0x108] sm:$0xff]
    %v80 = vld [vmem:[%s1 + $0x110] sm:$0xff]
    %v81 = vld [vmem:[%s1 + $0x118] sm:$0xff]
    %v82 = vld [vmem:[%s1 + $0x120] sm:$0xff]
    %v83 = vld [vmem:[%s1 + $0x128] sm:$0xff]
    %v84 = vld [vmem:[%s1 + $0x130] sm:$0xff]
    %v85 = vld [vmem:[%s1 + $0x138] sm:$0xff]
    %v86 = vld [vmem:[%s1 + $0x140] sm:$0xff]
    %v87 = vld [vmem:[%s1 + $0x148] sm:$0xff]
    %v88 = vld [vmem:[%s1 + $0x150] sm:$0xff]
    %v89 = vld [vmem:[%s1 + $0x158] sm:$0xff]
    %v90 = vld [vmem:[%s1 + $0x160] sm:$0xff]
    %v91 = vld [vmem:[%s1 + $0x168] sm:$0xff]
    %v92 = vld [vmem:[%s1 + $0x170] sm:$0xff]
    %v93 = vld [vmem:[%s1 + $0x178] sm:$0xff]
    %v94 = vld [vmem:[%s1 + $0x180] sm:$0xff]
    %v95 = vld [vmem:[%s1 + $0x188] sm:$0xff]
    %v96 = vld [vmem:[%s1 + $0x190] sm:$0xff]
    %v97 = vld [vmem:[%s1 + $0x198] sm:$0xff]
    %v98 = vld [vmem:[%s1 + $0x1a0] sm:$0xff]
    %v99 = vld [vmem:[%s1 + $0x1a8] sm:$0xff]
    %v100 = vld [vmem:[%s1 + $0x1b0] sm:$0xff]
    %v101 = vld [vmem:[%s1 + $0x1b8] sm:$0xff]
    %v102 = vld [vmem:[%s1 + $0x1c0] sm:$0xff]
    %v103 = vld [vmem:[%s1 + $0x1c8] sm:$0xff]
    %v104 = vld [vmem:[%s1 + $0x1d0] sm:$0xff]
    %v105 = vld [vmem:[%s1 + $0x1d8] sm:$0xff]
    %v106 = vld [vmem:[%s1 + $0x1e0] sm:$0xff]
    %v107 = vld [vmem:[%s1 + $0x1e8] sm:$0xff]
    %v108 = vld [vmem:[%s1 + $0x1f0] sm:$0xff]
    %v109 = vld [vmem:[%s1 + $0x1f8] sm:$0xff]
    %110 = vmatprep.subr.mxu0 %v47
    %111 = vmatpush1.msra.mxu0 %v46
    %112 = vmatprep.subr.mxu0 %v51
    %113 = vmatpush1.msra.mxu0 %v50
    %114 = vmatprep.subr.mxu0 %v55
    %115 = vmatpush1.msra.mxu0 %v54
    %116 = vmatprep.subr.mxu0 %v59
    %117 = vmatpush1.msra.mxu0 %v58
    %118 = vmatprep.subr.mxu0 %v63
    %119 = vmatpush1.msra.mxu0 %v62
    %120 = vmatprep.subr.mxu0 %v67
    %121 = vmatpush1.msra.mxu0 %v66
    %122 = vmatprep.subr.mxu0 %v71
    %123 = vmatpush1.msra.mxu0 %v70
    %124 = vmatprep.subr.mxu0 %v75
    %125 = vmatpush1.msra.mxu0 %v74
    %126 = vmatprep.subr.mxu0 %v79
    %127 = vmatpush1.msra.mxu0 %v78
    %128 = vmatprep.subr.mxu0 %v83
    %129 = vmatpush1.msra.mxu0 %v82
    %130 = vmatprep.subr.mxu0 %v87
    %131 = vmatpush1.msra.mxu0 %v86
    %132 = vmatprep.subr.mxu0 %v91
    %133 = vmatpush1.msra.mxu0 %v90
    %134 = vmatprep.subr.mxu0 %v95
    %135 = vmatpush1.msra.mxu0 %v94
    %136 = vmatprep.subr.mxu0 %v99
    %137 = vmatpush1.msra.mxu0 %v98
    %138 = vmatprep.subr.mxu0 %v103
    %139 = vmatpush1.msra.mxu0 %v102
    %140 = vmatprep.subr.mxu0 %v107
    %141 = vmatpush1.msra.mxu0 %v106
    %142 = vmatprep.subr.mxu0 0.0
    %143 = vmatpush1.msra.mxu0 0.0
    %144 = vmatprep.subr.mxu0 0.0
    %145 = vmatpush1.msra.mxu0 0.0
    %146 = vmatprep.subr.mxu0 0.0
    %147 = vmatpush1.msra.mxu0 0.0
    %148 = vmatprep.subr.mxu0 0.0
    %149 = vmatpush1.msra.mxu0 0.0
    %150 = vmatprep.subr.mxu0 0.0
    %151 = vmatpush1.msra.mxu0 0.0
    %152 = vmatprep.subr.mxu0 0.0
    %153 = vmatpush1.msra.mxu0 0.0
    %154 = vmatprep.subr.mxu0 0.0
    %155 = vmatpush1.msra.mxu0 0.0
    %156 = vmatprep.subr.mxu0 0.0
    %157 = vmatpush1.msra.mxu0 0.0
    %158 = vmatprep.subr.mxu0 0.0
    %159 = vmatpush1.msra.mxu0 0.0
    %160 = vmatprep.subr.mxu0 0.0
    %161 = vmatpush1.msra.mxu0 0.0
    %162 = vmatprep.subr.mxu0 0.0
    %163 = vmatpush1.msra.mxu0 0.0
    %164 = vmatprep.subr.mxu0 0.0
    %165 = vmatpush1.msra.mxu0 0.0
    %166 = vmatprep.subr.mxu0 0.0
    %167 = vmatpush1.msra.mxu0 0.0
    %168 = vmatprep.subr.mxu0 0.0
    %169 = vmatpush1.msra.mxu0 0.0
    %170 = vmatprep.subr.mxu0 0.0
    %171 = vmatpush1.msra.mxu0 0.0
    %172 = vmatprep.subr.mxu0 0.0
    %173 = vmatpush1.msra.mxu0 0.0
    %174 = vmatprep.mubr.f32.mxu0 0.0
    %175 = vmatmul.mubr.f32.gmra.mrb[0].mxu0 %v45
    %v176 = vpop.f32.mrb[0].mxu0
    %v177 = vadd.f32 0.0, %v176
    %v178 = vpop.f32.mrb[0].mxu0
    %v179 = vadd.f32 0.0, %v178
    %180 = vdwg.mxu0
    %181 = vmatprep.subr.mxu0 %v49
    %182 = vmatpush1.msra.mxu0 %v48
    %183 = vmatprep.subr.mxu0 %v53
    %184 = vmatpush1.msra.mxu0 %v52
    %185 = vmatprep.subr.mxu0 %v57
    %186 = vmatpush1.msra.mxu0 %v56
    %187 = vmatprep.subr.mxu0 %v61
    %188 = vmatpush1.msra.mxu0 %v60
    %189 = vmatprep.subr.mxu0 %v65
    %190 = vmatpush1.msra.mxu0 %v64
    %191 = vmatprep.subr.mxu0 %v69
    %192 = vmatpush1.msra.mxu0 %v68
    %193 = vmatprep.subr.mxu0 %v73
    %194 = vmatpush1.msra.mxu0 %v72
    %195 = vmatprep.subr.mxu0 %v77
    %196 = vmatpush1.msra.mxu0 %v76
    %197 = vmatprep.subr.mxu0 %v81
    %198 = vmatpush1.msra.mxu0 %v80
    %199 = vmatprep.subr.mxu0 %v85
    %200 = vmatpush1.msra.mxu0 %v84
    %201 = vmatprep.subr.mxu0 %v89
    %202 = vmatpush1.msra.mxu0 %v88
    %203 = vmatprep.subr.mxu0 %v93
    %204 = vmatpush1.msra.mxu0 %v92
    %205 = vmatprep.subr.mxu0 %v97
    %206 = vmatpush1.msra.mxu0 %v96
    %207 = vmatprep.subr.mxu0 %v101
    %208 = vmatpush1.msra.mxu0 %v100
    %209 = vmatprep.subr.mxu0 %v105
    %210 = vmatpush1.msra.mxu0 %v104
    %211 = vmatprep.subr.mxu0 %v109
    %212 = vmatpush1.msra.mxu0 %v108
    %213 = vmatprep.subr.mxu0 0.0
    %214 = vmatpush1.msra.mxu0 0.0
    %215 = vmatprep.subr.mxu0 0.0
    %216 = vmatpush1.msra.mxu0 0.0
    %217 = vmatprep.subr.mxu0 0.0
    %218 = vmatpush1.msra.mxu0 0.0
    %219 = vmatprep.subr.mxu0 0.0
    %220 = vmatpush1.msra.mxu0 0.0
    %221 = vmatprep.subr.mxu0 0.0
    %222 = vmatpush1.msra.mxu0 0.0
    %223 = vmatprep.subr.mxu0 0.0
    %224 = vmatpush1.msra.mxu0 0.0
    %225 = vmatprep.subr.mxu0 0.0
    %226 = vmatpush1.msra.mxu0 0.0
    %227 = vmatprep.subr.mxu0 0.0
    %228 = vmatpush1.msra.mxu0 0.0
    %229 = vmatprep.subr.mxu0 0.0
    %230 = vmatpush1.msra.mxu0 0.0
    %231 = vmatprep.subr.mxu0 0.0
    %232 = vmatpush1.msra.mxu0 0.0
    %233 = vmatprep.subr.mxu0 0.0
    %234 = vmatpush1.msra.mxu0 0.0
    %235 = vmatprep.subr.mxu0 0.0
    %236 = vmatpush1.msra.mxu0 0.0
    %237 = vmatprep.subr.mxu0 0.0
    %238 = vmatpush1.msra.mxu0 0.0
    %239 = vmatprep.subr.mxu0 0.0
    %240 = vmatpush1.msra.mxu0 0.0
    %241 = vmatprep.subr.mxu0 0.0
    %242 = vmatpush1.msra.mxu0 0.0
    %243 = vmatprep.subr.mxu0 0.0
    %244 = vmatpush1.msra.mxu0 0.0
    %245 = vmatprep.mubr.f32.mxu0 0.0
    %246 = vmatmul.mubr.f32.gmra.mrb[0].mxu0 %v45
    %v247 = vpop.f32.mrb[0].mxu0
    %v248 = vadd.f32 0.0, %v247
    %v249 = vpop.f32.mrb[0].mxu0
    %v250 = vadd.f32 0.0, %v249
    %251 = vdwg.mxu0
    %v252 = vld [vmem:[%s2] sm:$0xf]
    %v254 = vlaneseq
    %v255 = vshrl.u32 %v254, 7
    %v256 = vsub.s32 0, %v255
    %v257 = vrot.slane %v252, %v256
    %v258 = vlaneseq
    %v259 = vshrl.u32 %v258, 7
    %v260 = vsub.s32 1, %v259
    %v261 = vrot.slane %v252, %v260
    %v262 = vlaneseq
    %v263 = vshrl.u32 %v262, 7
    %v264 = vsub.s32 2, %v263
    %v265 = vrot.slane %v252, %v264
    %v266 = vlaneseq
    %v267 = vshrl.u32 %v266, 7
    %v268 = vsub.s32 3, %v267
    %v269 = vrot.slane %v252, %v268
    %v274 = vmul.f32 %v177, %v257
    %v275 = vmul.f32 %v179, %v261
    %v276 = vmul.f32 %v248, %v265
    %v277 = vmul.f32 %v250, %v269
    %v278 = vld [vmem:[%s3] sm:$0xf]
    %v280 = vlaneseq
    %v281 = vshrl.u32 %v280, 7
    %v282 = vsub.s32 0, %v281
    %v283 = vrot.slane %v278, %v282
    %v284 = vlaneseq
    %v285 = vshrl.u32 %v284, 7
    %v286 = vsub.s32 1, %v285
    %v287 = vrot.slane %v278, %v286
    %v288 = vlaneseq
    %v289 = vshrl.u32 %v288, 7
    %v290 = vsub.s32 2, %v289
    %v291 = vrot.slane %v278, %v290
    %v292 = vlaneseq
    %v293 = vshrl.u32 %v292, 7
    %v294 = vsub.s32 3, %v293
    %v295 = vrot.slane %v278, %v294
    %v300 = vadd.f32 %v274, %v283
    %v301 = vadd.f32 %v275, %v287
    %v302 = vadd.f32 %v276, %v291
    %v303 = vadd.f32 %v277, %v295
    %vm304 = vcmp.ge.f32.partialorder %v300, 0.0
    %vm305 = vcmp.ge.f32.partialorder %v301, 0.0
    %vm306 = vcmp.ge.f32.partialorder %v302, 0.0
    %vm307 = vcmp.ge.f32.partialorder %v303, 0.0
    %v308 = vmul.f32 %v300, 0.2
    %v309 = vmul.f32 %v301, 0.2
    %v310 = vmul.f32 %v302, 0.2
    %v311 = vmul.f32 %v303, 0.2
    %v312 = vsel %vm304, %v300, %v308
    %v313 = vsel %vm305, %v301, %v309
    %v314 = vsel %vm306, %v302, %v310
    %v315 = vsel %vm307, %v303, %v311
    %v316 = vld [vmem:[%s4] sm:$0xff]
    %v317 = vld [vmem:[%s4 + $0x8] sm:$0xff]
    %v318 = vld [vmem:[%s4 + $0x10] sm:$0xff]
    %v319 = vld [vmem:[%s4 + $0x18] sm:$0xff]
    %v320 = vld [vmem:[%s4 + $0x20] sm:$0xff]
    %v321 = vld [vmem:[%s4 + $0x28] sm:$0xff]
    %v322 = vld [vmem:[%s4 + $0x30] sm:$0xff]
    %v323 = vld [vmem:[%s4 + $0x38] sm:$0xff]
    %v324 = vld [vmem:[%s4 + $0x40] sm:$0xff]
    %v325 = vld [vmem:[%s4 + $0x48] sm:$0xff]
    %v326 = vld [vmem:[%s4 + $0x50] sm:$0xff]
    %v327 = vld [vmem:[%s4 + $0x58] sm:$0xff]
    %v328 = vld [vmem:[%s4 + $0x60] sm:$0xff]
    %v329 = vld [vmem:[%s4 + $0x68] sm:$0xff]
    %v330 = vld [vmem:[%s4 + $0x70] sm:$0xff]
    %v331 = vld [vmem:[%s4 + $0x78] sm:$0xff]
    %v332 = vld [vmem:[%s4 + $0x80] sm:$0xff]
    %v333 = vld [vmem:[%s4 + $0x88] sm:$0xff]
    %v334 = vld [vmem:[%s4 + $0x90] sm:$0xff]
    %v335 = vld [vmem:[%s4 + $0x98] sm:$0xff]
    %v336 = vld [vmem:[%s4 + $0xa0] sm:$0xff]
    %v337 = vld [vmem:[%s4 + $0xa8] sm:$0xff]
    %v338 = vld [vmem:[%s4 + $0xb0] sm:$0xff]
    %v339 = vld [vmem:[%s4 + $0xb8] sm:$0xff]
    %v340 = vld [vmem:[%s4 + $0xc0] sm:$0xff]
    %v341 = vld [vmem:[%s4 + $0xc8] sm:$0xff]
    %v342 = vld [vmem:[%s4 + $0xd0] sm:$0xff]
    %v343 = vld [vmem:[%s4 + $0xd8] sm:$0xff]
    %v344 = vld [vmem:[%s4 + $0xe0] sm:$0xff]
    %v345 = vld [vmem:[%s4 + $0xe8] sm:$0xff]
    %v346 = vld [vmem:[%s4 + $0xf0] sm:$0xff]
    %v347 = vld [vmem:[%s4 + $0xf8] sm:$0xff]
    %v348 = vld [vmem:[%s4 + $0x100] sm:$0xff]
    %v349 = vld [vmem:[%s4 + $0x108] sm:$0xff]
    %v350 = vld [vmem:[%s4 + $0x110] sm:$0xff]
    %v351 = vld [vmem:[%s4 + $0x118] sm:$0xff]
    %v352 = vld [vmem:[%s4 + $0x120] sm:$0xff]
    %v353 = vld [vmem:[%s4 + $0x128] sm:$0xff]
    %v354 = vld [vmem:[%s4 + $0x130] sm:$0xff]
    %v355 = vld [vmem:[%s4 + $0x138] sm:$0xff]
    %v356 = vld [vmem:[%s4 + $0x140] sm:$0xff]
    %v357 = vld [vmem:[%s4 + $0x148] sm:$0xff]
    %v358 = vld [vmem:[%s4 + $0x150] sm:$0xff]
    %v359 = vld [vmem:[%s4 + $0x158] sm:$0xff]
    %v360 = vld [vmem:[%s4 + $0x160] sm:$0xff]
    %v361 = vld [vmem:[%s4 + $0x168] sm:$0xff]
    %v362 = vld [vmem:[%s4 + $0x170] sm:$0xff]
    %v363 = vld [vmem:[%s4 + $0x178] sm:$0xff]
    %v364 = vld [vmem:[%s4 + $0x180] sm:$0xff]
    %v365 = vld [vmem:[%s4 + $0x188] sm:$0xff]
    %v366 = vld [vmem:[%s4 + $0x190] sm:$0xff]
    %v367 = vld [vmem:[%s4 + $0x198] sm:$0xff]
    %v368 = vld [vmem:[%s4 + $0x1a0] sm:$0xff]
    %v369 = vld [vmem:[%s4 + $0x1a8] sm:$0xff]
    %v370 = vld [vmem:[%s4 + $0x1b0] sm:$0xff]
    %v371 = vld [vmem:[%s4 + $0x1b8] sm:$0xff]
    %v372 = vld [vmem:[%s4 + $0x1c0] sm:$0xff]
    %v373 = vld [vmem:[%s4 + $0x1c8] sm:$0xff]
    %v374 = vld [vmem:[%s4 + $0x1d0] sm:$0xff]
    %v375 = vld [vmem:[%s4 + $0x1d8] sm:$0xff]
    %v376 = vld [vmem:[%s4 + $0x1e0] sm:$0xff]
    %v377 = vld [vmem:[%s4 + $0x1e8] sm:$0xff]
    %v378 = vld [vmem:[%s4 + $0x1f0] sm:$0xff]
    %v379 = vld [vmem:[%s4 + $0x1f8] sm:$0xff]
    %v380 = vld [vmem:[%s4 + $0x200] sm:$0xff]
    %v381 = vld [vmem:[%s4 + $0x208] sm:$0xff]
    %v382 = vld [vmem:[%s4 + $0x210] sm:$0xff]
    %v383 = vld [vmem:[%s4 + $0x218] sm:$0xff]
    %v384 = vld [vmem:[%s4 + $0x220] sm:$0xff]
    %v385 = vld [vmem:[%s4 + $0x228] sm:$0xff]
    %v386 = vld [vmem:[%s4 + $0x230] sm:$0xff]
    %v387 = vld [vmem:[%s4 + $0x238] sm:$0xff]
    %v388 = vld [vmem:[%s4 + $0x240] sm:$0xff]
    %v389 = vld [vmem:[%s4 + $0x248] sm:$0xff]
    %v390 = vld [vmem:[%s4 + $0x250] sm:$0xff]
    %v391 = vld [vmem:[%s4 + $0x258] sm:$0xff]
    %v392 = vld [vmem:[%s4 + $0x260] sm:$0xff]
    %v393 = vld [vmem:[%s4 + $0x268] sm:$0xff]
    %v394 = vld [vmem:[%s4 + $0x270] sm:$0xff]
    %v395 = vld [vmem:[%s4 + $0x278] sm:$0xff]
    %v396 = vld [vmem:[%s4 + $0x280] sm:$0xff]
    %v397 = vld [vmem:[%s4 + $0x288] sm:$0xff]
    %v398 = vld [vmem:[%s4 + $0x290] sm:$0xff]
    %v399 = vld [vmem:[%s4 + $0x298] sm:$0xff]
    %v400 = vld [vmem:[%s4 + $0x2a0] sm:$0xff]
    %v401 = vld [vmem:[%s4 + $0x2a8] sm:$0xff]
    %v402 = vld [vmem:[%s4 + $0x2b0] sm:$0xff]
    %v403 = vld [vmem:[%s4 + $0x2b8] sm:$0xff]
    %v404 = vld [vmem:[%s4 + $0x2c0] sm:$0xff]
    %v405 = vld [vmem:[%s4 + $0x2c8] sm:$0xff]
    %v406 = vld [vmem:[%s4 + $0x2d0] sm:$0xff]
    %v407 = vld [vmem:[%s4 + $0x2d8] sm:$0xff]
    %v408 = vld [vmem:[%s4 + $0x2e0] sm:$0xff]
    %v409 = vld [vmem:[%s4 + $0x2e8] sm:$0xff]
    %v410 = vld [vmem:[%s4 + $0x2f0] sm:$0xff]
    %v411 = vld [vmem:[%s4 + $0x2f8] sm:$0xff]
    %v412 = vld [vmem:[%s4 + $0x300] sm:$0xff]
    %v413 = vld [vmem:[%s4 + $0x308] sm:$0xff]
    %v414 = vld [vmem:[%s4 + $0x310] sm:$0xff]
    %v415 = vld [vmem:[%s4 + $0x318] sm:$0xff]
    %v416 = vld [vmem:[%s4 + $0x320] sm:$0xff]
    %v417 = vld [vmem:[%s4 + $0x328] sm:$0xff]
    %v418 = vld [vmem:[%s4 + $0x330] sm:$0xff]
    %v419 = vld [vmem:[%s4 + $0x338] sm:$0xff]
    %v420 = vld [vmem:[%s4 + $0x340] sm:$0xff]
    %v421 = vld [vmem:[%s4 + $0x348] sm:$0xff]
    %v422 = vld [vmem:[%s4 + $0x350] sm:$0xff]
    %v423 = vld [vmem:[%s4 + $0x358] sm:$0xff]
    %v424 = vld [vmem:[%s4 + $0x360] sm:$0xff]
    %v425 = vld [vmem:[%s4 + $0x368] sm:$0xff]
    %v426 = vld [vmem:[%s4 + $0x370] sm:$0xff]
    %v427 = vld [vmem:[%s4 + $0x378] sm:$0xff]
    %v428 = vld [vmem:[%s4 + $0x380] sm:$0xff]
    %v429 = vld [vmem:[%s4 + $0x388] sm:$0xff]
    %v430 = vld [vmem:[%s4 + $0x390] sm:$0xff]
    %v431 = vld [vmem:[%s4 + $0x398] sm:$0xff]
    %v432 = vld [vmem:[%s4 + $0x3a0] sm:$0xff]
    %v433 = vld [vmem:[%s4 + $0x3a8] sm:$0xff]
    %v434 = vld [vmem:[%s4 + $0x3b0] sm:$0xff]
    %v435 = vld [vmem:[%s4 + $0x3b8] sm:$0xff]
    %v436 = vld [vmem:[%s4 + $0x3c0] sm:$0xff]
    %v437 = vld [vmem:[%s4 + $0x3c8] sm:$0xff]
    %v438 = vld [vmem:[%s4 + $0x3d0] sm:$0xff]
    %v439 = vld [vmem:[%s4 + $0x3d8] sm:$0xff]
    %v440 = vld [vmem:[%s4 + $0x3e0] sm:$0xff]
    %v441 = vld [vmem:[%s4 + $0x3e8] sm:$0xff]
    %v442 = vld [vmem:[%s4 + $0x3f0] sm:$0xff]
    %v443 = vld [vmem:[%s4 + $0x3f8] sm:$0xff]
    %444 = vmatprep.subr.mxu0 %v317
    %445 = vmatpush1.msra.mxu0 %v316
    %446 = vmatprep.subr.mxu0 %v319
    %447 = vmatpush1.msra.mxu0 %v318
    %448 = vmatprep.subr.mxu0 %v321
    %449 = vmatpush1.msra.mxu0 %v320
    %450 = vmatprep.subr.mxu0 %v323
    %451 = vmatpush1.msra.mxu0 %v322
    %452 = vmatprep.subr.mxu0 %v325
    %453 = vmatpush1.msra.mxu0 %v324
    %454 = vmatprep.subr.mxu0 %v327
    %455 = vmatpush1.msra.mxu0 %v326
    %456 = vmatprep.subr.mxu0 %v329
    %457 = vmatpush1.msra.mxu0 %v328
    %458 = vmatprep.subr.mxu0 %v331
    %459 = vmatpush1.msra.mxu0 %v330
    %460 = vmatprep.subr.mxu0 %v333
    %461 = vmatpush1.msra.mxu0 %v332
    %462 = vmatprep.subr.mxu0 %v335
    %463 = vmatpush1.msra.mxu0 %v334
    %464 = vmatprep.subr.mxu0 %v337
    %465 = vmatpush1.msra.mxu0 %v336
    %466 = vmatprep.subr.mxu0 %v339
    %467 = vmatpush1.msra.mxu0 %v338
    %468 = vmatprep.subr.mxu0 %v341
    %469 = vmatpush1.msra.mxu0 %v340
    %470 = vmatprep.subr.mxu0 %v343
    %471 = vmatpush1.msra.mxu0 %v342
    %472 = vmatprep.subr.mxu0 %v345
    %473 = vmatpush1.msra.mxu0 %v344
    %474 = vmatprep.subr.mxu0 %v347
    %475 = vmatpush1.msra.mxu0 %v346
    %476 = vmatprep.subr.mxu0 %v349
    %477 = vmatpush1.msra.mxu0 %v348
    %478 = vmatprep.subr.mxu0 %v351
    %479 = vmatpush1.msra.mxu0 %v350
    %480 = vmatprep.subr.mxu0 %v353
    %481 = vmatpush1.msra.mxu0 %v352
    %482 = vmatprep.subr.mxu0 %v355
    %483 = vmatpush1.msra.mxu0 %v354
    %484 = vmatprep.subr.mxu0 %v357
    %485 = vmatpush1.msra.mxu0 %v356
    %486 = vmatprep.subr.mxu0 %v359
    %487 = vmatpush1.msra.mxu0 %v358
    %488 = vmatprep.subr.mxu0 %v361
    %489 = vmatpush1.msra.mxu0 %v360
    %490 = vmatprep.subr.mxu0 %v363
    %491 = vmatpush1.msra.mxu0 %v362
    %492 = vmatprep.subr.mxu0 %v365
    %493 = vmatpush1.msra.mxu0 %v364
    %494 = vmatprep.subr.mxu0 %v367
    %495 = vmatpush1.msra.mxu0 %v366
    %496 = vmatprep.subr.mxu0 %v369
    %497 = vmatpush1.msra.mxu0 %v368
    %498 = vmatprep.subr.mxu0 %v371
    %499 = vmatpush1.msra.mxu0 %v370
    %500 = vmatprep.subr.mxu0 %v373
    %501 = vmatpush1.msra.mxu0 %v372
    %502 = vmatprep.subr.mxu0 %v375
    %503 = vmatpush1.msra.mxu0 %v374
    %504 = vmatprep.subr.mxu0 %v377
    %505 = vmatpush1.msra.mxu0 %v376
    %506 = vmatprep.subr.mxu0 %v379
    %507 = vmatpush1.msra.mxu0 %v378
    %508 = vmatprep.mubr.f32.mxu0 %v313
    %509 = vmatmul.mubr.f32.gmra.mrb[0].mxu0 %v312
    %v510 = vpop.f32.mrb[0].mxu0
    %v511 = vadd.f32 0.0, %v510
    %v512 = vpop.f32.mrb[0].mxu0
    %v513 = vadd.f32 0.0, %v512
    %514 = vdwg.mxu0
    %515 = vmatprep.subr.mxu0 %v381
    %516 = vmatpush1.msra.mxu0 %v380
    %517 = vmatprep.subr.mxu0 %v383
    %518 = vmatpush1.msra.mxu0 %v382
    %519 = vmatprep.subr.mxu0 %v385
    %520 = vmatpush1.msra.mxu0 %v384
    %521 = vmatprep.subr.mxu0 %v387
    %522 = vmatpush1.msra.mxu0 %v386
    %523 = vmatprep.subr.mxu0 %v389
    %524 = vmatpush1.msra.mxu0 %v388
    %525 = vmatprep.subr.mxu0 %v391
    %526 = vmatpush1.msra.mxu0 %v390
    %527 = vmatprep.subr.mxu0 %v393
    %528 = vmatpush1.msra.mxu0 %v392
    %529 = vmatprep.subr.mxu0 %v395
    %530 = vmatpush1.msra.mxu0 %v394
    %531 = vmatprep.subr.mxu0 %v397
    %532 = vmatpush1.msra.mxu0 %v396
    %533 = vmatprep.subr.mxu0 %v399
    %534 = vmatpush1.msra.mxu0 %v398
    %535 = vmatprep.subr.mxu0 %v401
    %536 = vmatpush1.msra.mxu0 %v400
    %537 = vmatprep.subr.mxu0 %v403
    %538 = vmatpush1.msra.mxu0 %v402
    %539 = vmatprep.subr.mxu0 %v405
    %540 = vmatpush1.msra.mxu0 %v404
    %541 = vmatprep.subr.mxu0 %v407
    %542 = vmatpush1.msra.mxu0 %v406
    %543 = vmatprep.subr.mxu0 %v409
    %544 = vmatpush1.msra.mxu0 %v408
    %545 = vmatprep.subr.mxu0 %v411
    %546 = vmatpush1.msra.mxu0 %v410
    %547 = vmatprep.subr.mxu0 %v413
    %548 = vmatpush1.msra.mxu0 %v412
    %549 = vmatprep.subr.mxu0 %v415
    %550 = vmatpush1.msra.mxu0 %v414
    %551 = vmatprep.subr.mxu0 %v417
    %552 = vmatpush1.msra.mxu0 %v416
    %553 = vmatprep.subr.mxu0 %v419
    %554 = vmatpush1.msra.mxu0 %v418
    %555 = vmatprep.subr.mxu0 %v421
    %556 = vmatpush1.msra.mxu0 %v420
    %557 = vmatprep.subr.mxu0 %v423
    %558 = vmatpush1.msra.mxu0 %v422
    %559 = vmatprep.subr.mxu0 %v425
    %560 = vmatpush1.msra.mxu0 %v424
    %561 = vmatprep.subr.mxu0 %v427
    %562 = vmatpush1.msra.mxu0 %v426
    %563 = vmatprep.subr.mxu0 %v429
    %564 = vmatpush1.msra.mxu0 %v428
    %565 = vmatprep.subr.mxu0 %v431
    %566 = vmatpush1.msra.mxu0 %v430
    %567 = vmatprep.subr.mxu0 %v433
    %568 = vmatpush1.msra.mxu0 %v432
    %569 = vmatprep.subr.mxu0 %v435
    %570 = vmatpush1.msra.mxu0 %v434
    %571 = vmatprep.subr.mxu0 %v437
    %572 = vmatpush1.msra.mxu0 %v436
    %573 = vmatprep.subr.mxu0 %v439
    %574 = vmatpush1.msra.mxu0 %v438
    %575 = vmatprep.subr.mxu0 %v441
    %576 = vmatpush1.msra.mxu0 %v440
    %577 = vmatprep.subr.mxu0 %v443
    %578 = vmatpush1.msra.mxu0 %v442
    %579 = vmatprep.mubr.f32.mxu0 %v315
    %580 = vmatmul.mubr.f32.gmra.mrb[0].mxu0 %v314
    %v581 = vpop.f32.mrb[0].mxu0
    %v582 = vadd.f32 %v511, %v581
    %v583 = vpop.f32.mrb[0].mxu0
    %v584 = vadd.f32 %v513, %v583
    %585 = vdwg.mxu0
    %v586 = vld [vmem:[%s5] sm:$0x3]
    %v588 = vlaneseq
    %v589 = vshrl.u32 %v588, 7
    %v590 = vsub.s32 0, %v589
    %v591 = vrot.slane %v586, %v590
    %v592 = vlaneseq
    %v593 = vshrl.u32 %v592, 7
    %v594 = vsub.s32 1, %v593
    %v595 = vrot.slane %v586, %v594
    %v598 = vmul.f32 %v582, %v591
    %v599 = vmul.f32 %v584, %v595
    %v600 = vld [vmem:[%s6] sm:$0x3]
    %v602 = vlaneseq
    %v603 = vshrl.u32 %v602, 7
    %v604 = vsub.s32 0, %v603
    %v605 = vrot.slane %v600, %v604
    %v606 = vlaneseq
    %v607 = vshrl.u32 %v606, 7
    %v608 = vsub.s32 1, %v607
    %v609 = vrot.slane %v600, %v608
    %v612 = vadd.f32 %v598, %v605
    %v613 = vadd.f32 %v599, %v609
    %vm614 = vcmp.ge.f32.partialorder %v612, 0.0
    %vm615 = vcmp.ge.f32.partialorder %v613, 0.0
    %v616 = vmul.f32 %v612, 0.2
    %v617 = vmul.f32 %v613, 0.2
    %v618 = vsel %vm614, %v612, %v616
    %v619 = vsel %vm615, %v613, %v617
    %v620 = vld [vmem:[%s7] sm:$0xff]
    %v621 = vld [vmem:[%s7 + $0x8] sm:$0xff]
    %v622 = vld [vmem:[%s7 + $0x10] sm:$0xff]
    %v623 = vld [vmem:[%s7 + $0x18] sm:$0xff]
    %v624 = vld [vmem:[%s7 + $0x20] sm:$0xff]
    %v625 = vld [vmem:[%s7 + $0x28] sm:$0xff]
    %v626 = vld [vmem:[%s7 + $0x30] sm:$0xff]
    %v627 = vld [vmem:[%s7 + $0x38] sm:$0xff]
    %v628 = vld [vmem:[%s7 + $0x40] sm:$0xff]
    %v629 = vld [vmem:[%s7 + $0x48] sm:$0xff]
    %v630 = vld [vmem:[%s7 + $0x50] sm:$0xff]
    %v631 = vld [vmem:[%s7 + $0x58] sm:$0xff]
    %v632 = vld [vmem:[%s7 + $0x60] sm:$0xff]
    %v633 = vld [vmem:[%s7 + $0x68] sm:$0xff]
    %v634 = vld [vmem:[%s7 + $0x70] sm:$0xff]
    %v635 = vld [vmem:[%s7 + $0x78] sm:$0xff]
    %v636 = vld [vmem:[%s7 + $0x80] sm:$0xff]
    %v637 = vld [vmem:[%s7 + $0x88] sm:$0xff]
    %v638 = vld [vmem:[%s7 + $0x90] sm:$0xff]
    %v639 = vld [vmem:[%s7 + $0x98] sm:$0xff]
    %v640 = vld [vmem:[%s7 + $0xa0] sm:$0xff]
    %v641 = vld [vmem:[%s7 + $0xa8] sm:$0xff]
    %v642 = vld [vmem:[%s7 + $0xb0] sm:$0xff]
    %v643 = vld [vmem:[%s7 + $0xb8] sm:$0xff]
    %v644 = vld [vmem:[%s7 + $0xc0] sm:$0xff]
    %v645 = vld [vmem:[%s7 + $0xc8] sm:$0xff]
    %v646 = vld [vmem:[%s7 + $0xd0] sm:$0xff]
    %v647 = vld [vmem:[%s7 + $0xd8] sm:$0xff]
    %v648 = vld [vmem:[%s7 + $0xe0] sm:$0xff]
    %v649 = vld [vmem:[%s7 + $0xe8] sm:$0xff]
    %v650 = vld [vmem:[%s7 + $0xf0] sm:$0xff]
    %v651 = vld [vmem:[%s7 + $0xf8] sm:$0xff]
    %652 = vmatprep.subr.mxu0 0.0
    %653 = vmatpush1.msra.mxu0 %v620
    %654 = vmatprep.subr.mxu0 0.0
    %655 = vmatpush1.msra.mxu0 %v621
    %656 = vmatprep.subr.mxu0 0.0
    %657 = vmatpush1.msra.mxu0 %v622
    %658 = vmatprep.subr.mxu0 0.0
    %659 = vmatpush1.msra.mxu0 %v623
    %660 = vmatprep.subr.mxu0 0.0
    %661 = vmatpush1.msra.mxu0 %v624
    %662 = vmatprep.subr.mxu0 0.0
    %663 = vmatpush1.msra.mxu0 %v625
    %664 = vmatprep.subr.mxu0 0.0
    %665 = vmatpush1.msra.mxu0 %v626
    %666 = vmatprep.subr.mxu0 0.0
    %667 = vmatpush1.msra.mxu0 %v627
    %668 = vmatprep.subr.mxu0 0.0
    %669 = vmatpush1.msra.mxu0 %v628
    %670 = vmatprep.subr.mxu0 0.0
    %671 = vmatpush1.msra.mxu0 %v629
    %672 = vmatprep.subr.mxu0 0.0
    %673 = vmatpush1.msra.mxu0 %v630
    %674 = vmatprep.subr.mxu0 0.0
    %675 = vmatpush1.msra.mxu0 %v631
    %676 = vmatprep.subr.mxu0 0.0
    %677 = vmatpush1.msra.mxu0 %v632
    %678 = vmatprep.subr.mxu0 0.0
    %679 = vmatpush1.msra.mxu0 %v633
    %680 = vmatprep.subr.mxu0 0.0
    %681 = vmatpush1.msra.mxu0 %v634
    %682 = vmatprep.subr.mxu0 0.0
    %683 = vmatpush1.msra.mxu0 %v635
    %684 = vmatprep.subr.mxu0 0.0
    %685 = vmatpush1.msra.mxu0 %v636
    %686 = vmatprep.subr.mxu0 0.0
    %687 = vmatpush1.msra.mxu0 %v637
    %688 = vmatprep.subr.mxu0 0.0
    %689 = vmatpush1.msra.mxu0 %v638
    %690 = vmatprep.subr.mxu0 0.0
    %691 = vmatpush1.msra.mxu0 %v639
    %692 = vmatprep.subr.mxu0 0.0
    %693 = vmatpush1.msra.mxu0 %v640
    %694 = vmatprep.subr.mxu0 0.0
    %695 = vmatpush1.msra.mxu0 %v641
    %696 = vmatprep.subr.mxu0 0.0
    %697 = vmatpush1.msra.mxu0 %v642
    %698 = vmatprep.subr.mxu0 0.0
    %699 = vmatpush1.msra.mxu0 %v643
    %700 = vmatprep.subr.mxu0 0.0
    %701 = vmatpush1.msra.mxu0 %v644
    %702 = vmatprep.subr.mxu0 0.0
    %703 = vmatpush1.msra.mxu0 %v645
    %704 = vmatprep.subr.mxu0 0.0
    %705 = vmatpush1.msra.mxu0 %v646
    %706 = vmatprep.subr.mxu0 0.0
    %707 = vmatpush1.msra.mxu0 %v647
    %708 = vmatprep.subr.mxu0 0.0
    %709 = vmatpush1.msra.mxu0 %v648
    %710 = vmatprep.subr.mxu0 0.0
    %711 = vmatpush1.msra.mxu0 %v649
    %712 = vmatprep.subr.mxu0 0.0
    %713 = vmatpush1.msra.mxu0 %v650
    %714 = vmatprep.subr.mxu0 0.0
    %715 = vmatpush1.msra.mxu0 %v651
    %716 = vmatprep.mubr.f32.mxu0 %v619
    %717 = vmatmul.mubr.f32.gmra.mrb[0].mxu0 %v618
    %v718 = vpop.f32.mrb[0].mxu0
    %v719 = vadd.f32 0.0, %v718
    %v720 = vpop.f32.mrb[0].mxu0
    %721 = vdwg.mxu0
    %v722 = vld [vmem:[%s8] sm:$0x1]
    %v724 = vlaneseq
    %v725 = vshrl.u32 %v724, 7
    %v726 = vsub.s32 0, %v725
    %v727 = vrot.slane %v722, %v726
    %v729 = vmul.f32 %v719, %v727
    %v730 = vld [vmem:[%s9] sm:$0x1]
    %v732 = vlaneseq
    %v733 = vshrl.u32 %v732, 7
    %v734 = vsub.s32 0, %v733
    %v735 = vrot.slane %v730, %v734
    %v737 = vadd.f32 %v729, %v735
    %vm738 = vcmp.ge.f32.partialorder %v737, 0.0
    %v739 = vmul.f32 %v737, 0.2
    %v740 = vsel %vm738, %v737, %v739
    %v741 = vld [vmem:[%s10] sm:$0xff]
    %v742 = vld [vmem:[%s10 + $0x8] sm:$0xff]
    %v743 = vld [vmem:[%s10 + $0x10] sm:$0xff]
    %v744 = vld [vmem:[%s10 + $0x18] sm:$0xff]
    %v745 = vld [vmem:[%s10 + $0x20] sm:$0xff]
    %v746 = vld [vmem:[%s10 + $0x28] sm:$0xff]
    %v747 = vld [vmem:[%s10 + $0x30] sm:$0xff]
    %v748 = vld [vmem:[%s10 + $0x38] sm:$0xff]
    %vm749 = vcmask 523264
    %v751 = vsel %vm749, %v740, 0
    %753 = vmatprep.subr.mxu0 0.0
    %754 = vmatpush1.msra.mxu0 %v741
    %755 = vmatprep.subr.mxu0 0.0
    %756 = vmatpush1.msra.mxu0 %v742
    %757 = vmatprep.subr.mxu0 0.0
    %758 = vmatpush1.msra.mxu0 %v743
    %759 = vmatprep.subr.mxu0 0.0
    %760 = vmatpush1.msra.mxu0 %v744
    %761 = vmatprep.subr.mxu0 0.0
    %762 = vmatpush1.msra.mxu0 %v745
    %763 = vmatprep.subr.mxu0 0.0
    %764 = vmatpush1.msra.mxu0 %v746
    %765 = vmatprep.subr.mxu0 0.0
    %766 = vmatpush1.msra.mxu0 %v747
    %767 = vmatprep.subr.mxu0 0.0
    %768 = vmatpush1.msra.mxu0 %v748
    %769 = vmatprep.subr.mxu0 0.0
    %770 = vmatpush1.msra.mxu0 0.0
    %771 = vmatprep.subr.mxu0 0.0
    %772 = vmatpush1.msra.mxu0 0.0
    %773 = vmatprep.subr.mxu0 0.0
    %774 = vmatpush1.msra.mxu0 0.0
    %775 = vmatprep.subr.mxu0 0.0
    %776 = vmatpush1.msra.mxu0 0.0
    %777 = vmatprep.subr.mxu0 0.0
    %778 = vmatpush1.msra.mxu0 0.0
    %779 = vmatprep.subr.mxu0 0.0
    %780 = vmatpush1.msra.mxu0 0.0
    %781 = vmatprep.subr.mxu0 0.0
    %782 = vmatpush1.msra.mxu0 0.0
    %783 = vmatprep.subr.mxu0 0.0
    %784 = vmatpush1.msra.mxu0 0.0
    %785 = vmatprep.subr.mxu0 0.0
    %786 = vmatpush1.msra.mxu0 0.0
    %787 = vmatprep.subr.mxu0 0.0
    %788 = vmatpush1.msra.mxu0 0.0
    %789 = vmatprep.subr.mxu0 0.0
    %790 = vmatpush1.msra.mxu0 0.0
    %791 = vmatprep.subr.mxu0 0.0
    %792 = vmatpush1.msra.mxu0 0.0
    %793 = vmatprep.subr.mxu0 0.0
    %794 = vmatpush1.msra.mxu0 0.0
    %795 = vmatprep.subr.mxu0 0.0
    %796 = vmatpush1.msra.mxu0 0.0
    %797 = vmatprep.subr.mxu0 0.0
    %798 = vmatpush1.msra.mxu0 0.0
    %799 = vmatprep.subr.mxu0 0.0
    %800 = vmatpush1.msra.mxu0 0.0
    %801 = vmatprep.subr.mxu0 0.0
    %802 = vmatpush1.msra.mxu0 0.0
    %803 = vmatprep.subr.mxu0 0.0
    %804 = vmatpush1.msra.mxu0 0.0
    %805 = vmatprep.subr.mxu0 0.0
    %806 = vmatpush1.msra.mxu0 0.0
    %807 = vmatprep.subr.mxu0 0.0
    %808 = vmatpush1.msra.mxu0 0.0
    %809 = vmatprep.subr.mxu0 0.0
    %810 = vmatpush1.msra.mxu0 0.0
    %811 = vmatprep.subr.mxu0 0.0
    %812 = vmatpush1.msra.mxu0 0.0
    %813 = vmatprep.subr.mxu0 0.0
    %814 = vmatpush1.msra.mxu0 0.0
    %815 = vmatprep.subr.mxu0 0.0
    %816 = vmatpush1.msra.mxu0 0.0
    %817 = vmatprep.mubr.f32.mxu0 0.0
    %818 = vmatmul.mubr.f32.gmra.mrb[0].mxu0 %v751
    %v819 = vpop.f32.mrb[0].mxu0
    %v820 = vadd.f32 0.0, %v819
    %v821 = vpop.f32.mrb[0].mxu0
    %822 = vdwg.mxu0
    %v823 = vld [vmem:[%s11] sm:$0x1]
    %v825 = vlaneseq
    %v826 = vshrl.u32 %v825, 7
    %v827 = vsub.s32 0, %v826
    %v828 = vrot.slane %v823, %v827
    %v830 = vmul.f32 %v820, %v828
    %v831 = vld [vmem:[%s12] sm:$0x1]
    %v833 = vlaneseq
    %v834 = vshrl.u32 %v833, 7
    %v835 = vsub.s32 0, %v834
    %v836 = vrot.slane %v831, %v835
    %v838 = vadd.f32 %v830, %v836
    %vm839 = vcmask 17408
    %840 = vst.msk [vmem:[#allocation2] sm:$0x3] %vm839, %v838
    // Predicated region
    $region54: #{dgcnn_forward.21} parent=1 // pred_check
      _
    $region55: #{dgcnn_forward.21} parent=1 // pred_check_branch
      %842 = sbr.rel (0) target = $region57
    $region56: #{dgcnn_forward.21} parent=1 // pred_region
      %s844 = ssub.s32 32, 32
      %845 = vsyncadd [#allocation3], %s844
      %s847 = sshll.u32 [#allocation2], 4
      %s848 = int_to_ptr.vmem [resolvable:$true] %s847
      %850 = dma.vmem_to_hbm [thread:$0]  %s848, 32, %s13, [#allocation3]
    $region57: #{dgcnn_forward.21} parent=1 // pred_fallthru
      _
    // Predicated region
    $region58: #{dgcnn_forward.21} parent=1 // pred_check
      _
    $region59: #{dgcnn_forward.21} parent=1 // pred_check_branch
      %852 = sbr.rel (0) target = $region61
    $region60: #{dgcnn_forward.21} parent=1 // pred_region
      %853 = dma.done [#allocation3], 32
    $region61: #{dgcnn_forward.21} parent=1 // pred_fallthru
      _
    %854 = vsyncpa [#allocation3], 1

// kernel: dgcnn_forward.20
$region0: #{dgcnn_forward.20}
  #allocation0 [shape = 'u32[]', space=smem, size = 0x4, offset = 0x4, fixed_abs, tag = 'smem constant byte address 0x4 - core index']
  #allocation1 [shape = 'u32[144,128]{1,0:T(1,128)}', space=vmem, size = 0x12000, scoped, tag = 'internal scratch']
  #allocation2 [shape = 'f32[1,64]{1,0:T(1,128)}', space=vmem, size = 0x200, scoped, tag = 'scratch operand']
  #allocation3 [shape = 'f32[1,64]{1,0:T(1,128)}', space=vmem, size = 0x200, scoped, tag = 'scratch operand']
  %s0 = inlined_call_operand.vmem [shape: bf16[2,16,64], index: 0, kind: input, shape index: {}]
  %s1 = inlined_call_operand.vmem [shape: bf16[2,16,64], index: 1, kind: input, shape index: {}]
  %s2 = inlined_call_operand.vmem [shape: bf16[2,16,128], index: 2, kind: input, shape index: {}]
  %s3 = inlined_call_operand.vmem [shape: bf16[2,16,256], index: 3, kind: input, shape index: {}]
  %s4 = inlined_call_operand.vmem [shape: bf16[2,16,256], index: 4, kind: input, shape index: {}]
  %s5 = inlined_call_operand.vmem [shape: bf16[2,16,256], index: 5, kind: input, shape index: {}]
  %s6 = inlined_call_operand.vmem [shape: bf16[64,64], index: 6, kind: input, shape index: {}]
  %s7 = inlined_call_operand.vmem [shape: bf16[64,64], index: 7, kind: input, shape index: {}]
  %s8 = inlined_call_operand.vmem [shape: bf16[128,64], index: 8, kind: input, shape index: {}]
  %s9 = inlined_call_operand.vmem [shape: bf16[256,64], index: 9, kind: input, shape index: {}]
  %s10 = inlined_call_operand.vmem [shape: bf16[256,64], index: 10, kind: input, shape index: {}]
  %s11 = inlined_call_operand.vmem [shape: bf16[256,64], index: 11, kind: input, shape index: {}]
  %s12 = inlined_call_operand.vmem [shape: f32[1,64], index: 12, kind: input, shape index: {}]
  %s13 = inlined_call_operand.vmem [shape: f32[1,64], index: 13, kind: input, shape index: {}]
  %s14 = inlined_call_operand.vmem [shape: f32[2,1,128], index: 14, kind: output, shape index: {}]
  %s15 = sld [smem:[#allocation0]]
  $region97: #{dgcnn_forward.20} parent=0
    _
  %s17 = ssub.s32 1, %s15
  %s18 = scalar_select 0, %s17, %s15
  loop: start=0, step=1, limit=4
  $region2: #{dgcnn_forward.20} parent=0 // loop_pre_header
    _
  $region3: #{dgcnn_forward.20} parent=0 // loop_header
    %s20 = sphi 0, %s24
    %p21 = scmp.ge.s32.totalorder %s20, 4
    %s27 = sphi 0, %s39
    %s28 = sphi 0, %s35
    %s29 = sphi 0, %s27
    %s30 = sphi 0, %s28
    %s31 = sphi 0, %s29
    %s32 = sphi 0, %s30
    %s44 = sphi 0, %s46
    %s47 = sphi 0, %s44
    %s48 = sphi 0, %s47
    %s64 = sphi 0, %s48
    %s72 = sphi 0, %s74
    %s75 = sphi 0, %s72
    %s76 = sphi 0, %s75
    %s92 = sphi 0, %s76
    %s100 = sphi 0, %s102
    %s103 = sphi 0, %s100
    %s104 = sphi 0, %s103
    %s120 = sphi 0, %s104
    %s128 = sphi 0, %s130
    %s131 = sphi 0, %s128
    %s132 = sphi 0, %s131
    %s148 = sphi 0, %s132
    %s156 = sphi 0, %s158
    %s159 = sphi 0, %s156
    %s160 = sphi 0, %s159
    %s176 = sphi 0, %s160
    %s184 = sphi 0, %s186
    %s187 = sphi 0, %s184
    %s188 = sphi 0, %s187
    %s204 = sphi 0, %s188
    %s208 = sphi 0, %s208
    %s210 = sphi 0, %s208
    %s211 = sphi 0, %s210
    %s225 = sphi 0, %s211
    %s229 = sphi 0, %s229
    %s231 = sphi 0, %s229
    %s232 = sphi 0, %s231
    %s246 = sphi 0, %s232
    %s250 = sphi 0, %s250
    %s252 = sphi 0, %s250
    %s253 = sphi 0, %s252
    %s267 = sphi 0, %s253
    %s271 = sphi 0, %s271
    %s273 = sphi 0, %s271
    %s274 = sphi 0, %s273
    %s288 = sphi 0, %s274
    %s292 = sphi 0, %s292
    %s294 = sphi 0, %s292
    %s295 = sphi 0, %s294
    %s309 = sphi 0, %s295
    %s313 = sphi 0, %s313
    %s315 = sphi 0, %s313
    %s316 = sphi 0, %s315
    %s330 = sphi 0, %s316
    %s334 = sphi 0, %s334
    %s336 = sphi 0, %s334
    %s337 = sphi 0, %s336
    %s351 = sphi 0, %s337
    %s355 = sphi 0, %s355
    %s357 = sphi 0, %s355
    %s358 = sphi 0, %s357
    %s372 = sphi 0, %s358
    %s378 = sphi 0, %s380
    %s381 = sphi 0, %s378
    %s382 = sphi 0, %s381
    %s398 = sphi 0, %s382
  $region4: #{dgcnn_forward.20} parent=0 // loop_header_branch
    %23 = sbr.rel (%p21) target = $region8
  $region5: #{dgcnn_forward.20} parent=0 // loop_body
    %s25 = ssub.s32 %s20, 1
    %s26 = ssub.s32 %s20, 2
    %s33 = sadd.s32 1, %s28
    %p34 = scmp.ge.s32.totalorder %s33, 1
    %s35 = scalar_select %p34, 0, %s33
    %s36 = sadd.s32 1, %s27
    %s37 = scalar_select %p34, %s36, %s27
    %p38 = scmp.ge.s32.totalorder %s37, 2
    %s39 = scalar_select %p38, 0, %s37
    %s40 = ssub.s32 %s27, %s39
    %s41 = ssub.s32 %s28, %s35
    %s42 = sor.u32 %s40, %s41
    %p43 = scmp.eq.s32.totalorder %s42, 0
    %s45 = sadd.s32 %s44, 1
    %s46 = scalar_select %p43, %s44, %s45
    %p49 = pneg %p43
    %p50 = scmp.eq.s32.totalorder %s20, 1
    %p51 = por %p49, %p50
    %p52 = scmp.ne.s32.totalorder %s44, %s47
    %p53 = scmp.eq.s32.totalorder %s20, 0
    %p54 = por %p52, %p53
    %p55 = scmp.ne.s32.totalorder %s44, %s47
    %p56 = scmp.eq.s32.totalorder %s25, 1
    %p57 = por %p55, %p56
    %p58 = scmp.ne.s32.totalorder %s47, %s48
    %p59 = scmp.eq.s32.totalorder %s25, 0
    %p60 = por %p58, %p59
    %p61 = scmp.ne.s32.totalorder %s47, %s48
    %p62 = scmp.eq.s32.totalorder %s26, 1
    %p63 = por %p61, %p62
    %p65 = scmp.ne.s32.totalorder %s48, %s64
    %p66 = scmp.eq.s32.totalorder %s26, 0
    %p67 = por %p65, %p66
    %s68 = ssub.s32 %s27, %s39
    %s69 = ssub.s32 %s28, %s35
    %s70 = sor.u32 %s68, %s69
    %p71 = scmp.eq.s32.totalorder %s70, 0
    %s73 = sadd.s32 %s72, 1
    %s74 = scalar_select %p71, %s72, %s73
    %p77 = pneg %p71
    %p78 = scmp.eq.s32.totalorder %s20, 1
    %p79 = por %p77, %p78
    %p80 = scmp.ne.s32.totalorder %s72, %s75
    %p81 = scmp.eq.s32.totalorder %s20, 0
    %p82 = por %p80, %p81
    %p83 = scmp.ne.s32.totalorder %s72, %s75
    %p84 = scmp.eq.s32.totalorder %s25, 1
    %p85 = por %p83, %p84
    %p86 = scmp.ne.s32.totalorder %s75, %s76
    %p87 = scmp.eq.s32.totalorder %s25, 0
    %p88 = por %p86, %p87
    %p89 = scmp.ne.s32.totalorder %s75, %s76
    %p90 = scmp.eq.s32.totalorder %s26, 1
    %p91 = por %p89, %p90
    %p93 = scmp.ne.s32.totalorder %s76, %s92
    %p94 = scmp.eq.s32.totalorder %s26, 0
    %p95 = por %p93, %p94
    %s96 = ssub.s32 %s27, %s39
    %s97 = ssub.s32 %s28, %s35
    %s98 = sor.u32 %s96, %s97
    %p99 = scmp.eq.s32.totalorder %s98, 0
    %s101 = sadd.s32 %s100, 1
    %s102 = scalar_select %p99, %s100, %s101
    %p105 = pneg %p99
    %p106 = scmp.eq.s32.totalorder %s20, 1
    %p107 = por %p105, %p106
    %p108 = scmp.ne.s32.totalorder %s100, %s103
    %p109 = scmp.eq.s32.totalorder %s20, 0
    %p110 = por %p108, %p109
    %p111 = scmp.ne.s32.totalorder %s100, %s103
    %p112 = scmp.eq.s32.totalorder %s25, 1
    %p113 = por %p111, %p112
    %p114 = scmp.ne.s32.totalorder %s103, %s104
    %p115 = scmp.eq.s32.totalorder %s25, 0
    %p116 = por %p114, %p115
    %p117 = scmp.ne.s32.totalorder %s103, %s104
    %p118 = scmp.eq.s32.totalorder %s26, 1
    %p119 = por %p117, %p118
    %p121 = scmp.ne.s32.totalorder %s104, %s120
    %p122 = scmp.eq.s32.totalorder %s26, 0
    %p123 = por %p121, %p122
    %s124 = ssub.s32 %s27, %s39
    %s125 = ssub.s32 %s28, %s35
    %s126 = sor.u32 %s124, %s125
    %p127 = scmp.eq.s32.totalorder %s126, 0
    %s129 = sadd.s32 %s128, 1
    %s130 = scalar_select %p127, %s128, %s129
    %p133 = pneg %p127
    %p134 = scmp.eq.s32.totalorder %s20, 1
    %p135 = por %p133, %p134
    %p136 = scmp.ne.s32.totalorder %s128, %s131
    %p137 = scmp.eq.s32.totalorder %s20, 0
    %p138 = por %p136, %p137
    %p139 = scmp.ne.s32.totalorder %s128, %s131
    %p140 = scmp.eq.s32.totalorder %s25, 1
    %p141 = por %p139, %p140
    %p142 = scmp.ne.s32.totalorder %s131, %s132
    %p143 = scmp.eq.s32.totalorder %s25, 0
    %p144 = por %p142, %p143
    %p145 = scmp.ne.s32.totalorder %s131, %s132
    %p146 = scmp.eq.s32.totalorder %s26, 1
    %p147 = por %p145, %p146
    %p149 = scmp.ne.s32.totalorder %s132, %s148
    %p150 = scmp.eq.s32.totalorder %s26, 0
    %p151 = por %p149, %p150
    %s152 = ssub.s32 %s27, %s39
    %s153 = ssub.s32 %s28, %s35
    %s154 = sor.u32 %s152, %s153
    %p155 = scmp.eq.s32.totalorder %s154, 0
    %s157 = sadd.s32 %s156, 1
    %s158 = scalar_select %p155, %s156, %s157
    %p161 = pneg %p155
    %p162 = scmp.eq.s32.totalorder %s20, 1
    %p163 = por %p161, %p162
    %p164 = scmp.ne.s32.totalorder %s156, %s159
    %p165 = scmp.eq.s32.totalorder %s20, 0
    %p166 = por %p164, %p165
    %p167 = scmp.ne.s32.totalorder %s156, %s159
    %p168 = scmp.eq.s32.totalorder %s25, 1
    %p169 = por %p167, %p168
    %p170 = scmp.ne.s32.totalorder %s159, %s160
    %p171 = scmp.eq.s32.totalorder %s25, 0
    %p172 = por %p170, %p171
    %p173 = scmp.ne.s32.totalorder %s159, %s160
    %p174 = scmp.eq.s32.totalorder %s26, 1
    %p175 = por %p173, %p174
    %p177 = scmp.ne.s32.totalorder %s160, %s176
    %p178 = scmp.eq.s32.totalorder %s26, 0
    %p179 = por %p177, %p178
    %s180 = ssub.s32 %s27, %s39
    %s181 = ssub.s32 %s28, %s35
    %s182 = sor.u32 %s180, %s181
    %p183 = scmp.eq.s32.totalorder %s182, 0
    %s185 = sadd.s32 %s184, 1
    %s186 = scalar_select %p183, %s184, %s185
    %p189 = pneg %p183
    %p190 = scmp.eq.s32.totalorder %s20, 1
    %p191 = por %p189, %p190
    %p192 = scmp.ne.s32.totalorder %s184, %s187
    %p193 = scmp.eq.s32.totalorder %s20, 0
    %p194 = por %p192, %p193
    %p195 = scmp.ne.s32.totalorder %s184, %s187
    %p196 = scmp.eq.s32.totalorder %s25, 1
    %p197 = por %p195, %p196
    %p198 = scmp.ne.s32.totalorder %s187, %s188
    %p199 = scmp.eq.s32.totalorder %s25, 0
    %p200 = por %p198, %p199
    %p201 = scmp.ne.s32.totalorder %s187, %s188
    %p202 = scmp.eq.s32.totalorder %s26, 1
    %p203 = por %p201, %p202
    %p205 = scmp.ne.s32.totalorder %s188, %s204
    %p206 = scmp.eq.s32.totalorder %s26, 0
    %p207 = por %p205, %p206
    %s209 = sadd.s32 %s208, 1
    %p212 = scmp.eq.s32.totalorder %s20, 1
    %p213 = scmp.ne.s32.totalorder %s208, %s210
    %p214 = scmp.eq.s32.totalorder %s20, 0
    %p215 = por %p213, %p214
    %p216 = scmp.ne.s32.totalorder %s208, %s210
    %p217 = scmp.eq.s32.totalorder %s25, 1
    %p218 = por %p216, %p217
    %p219 = scmp.ne.s32.totalorder %s210, %s211
    %p220 = scmp.eq.s32.totalorder %s25, 0
    %p221 = por %p219, %p220
    %p222 = scmp.ne.s32.totalorder %s210, %s211
    %p223 = scmp.eq.s32.totalorder %s26, 1
    %p224 = por %p222, %p223
    %p226 = scmp.ne.s32.totalorder %s211, %s225
    %p227 = scmp.eq.s32.totalorder %s26, 0
    %p228 = por %p226, %p227
    %s230 = sadd.s32 %s229, 1
    %p233 = scmp.eq.s32.totalorder %s20, 1
    %p234 = scmp.ne.s32.totalorder %s229, %s231
    %p235 = scmp.eq.s32.totalorder %s20, 0
    %p236 = por %p234, %p235
    %p237 = scmp.ne.s32.totalorder %s229, %s231
    %p238 = scmp.eq.s32.totalorder %s25, 1
    %p239 = por %p237, %p238
    %p240 = scmp.ne.s32.totalorder %s231, %s232
    %p241 = scmp.eq.s32.totalorder %s25, 0
    %p242 = por %p240, %p241
    %p243 = scmp.ne.s32.totalorder %s231, %s232
    %p244 = scmp.eq.s32.totalorder %s26, 1
    %p245 = por %p243, %p244
    %p247 = scmp.ne.s32.totalorder %s232, %s246
    %p248 = scmp.eq.s32.totalorder %s26, 0
    %p249 = por %p247, %p248
    %s251 = sadd.s32 %s250, 1
    %p254 = scmp.eq.s32.totalorder %s20, 1
    %p255 = scmp.ne.s32.totalorder %s250, %s252
    %p256 = scmp.eq.s32.totalorder %s20, 0
    %p257 = por %p255, %p256
    %p258 = scmp.ne.s32.totalorder %s250, %s252
    %p259 = scmp.eq.s32.totalorder %s25, 1
    %p260 = por %p258, %p259
    %p261 = scmp.ne.s32.totalorder %s252, %s253
    %p262 = scmp.eq.s32.totalorder %s25, 0
    %p263 = por %p261, %p262
    %p264 = scmp.ne.s32.totalorder %s252, %s253
    %p265 = scmp.eq.s32.totalorder %s26, 1
    %p266 = por %p264, %p265
    %p268 = scmp.ne.s32.totalorder %s253, %s267
    %p269 = scmp.eq.s32.totalorder %s26, 0
    %p270 = por %p268, %p269
    %s272 = sadd.s32 %s271, 1
    %p275 = scmp.eq.s32.totalorder %s20, 1
    %p276 = scmp.ne.s32.totalorder %s271, %s273
    %p277 = scmp.eq.s32.totalorder %s20, 0
    %p278 = por %p276, %p277
    %p279 = scmp.ne.s32.totalorder %s271, %s273
    %p280 = scmp.eq.s32.totalorder %s25, 1
    %p281 = por %p279, %p280
    %p282 = scmp.ne.s32.totalorder %s273, %s274
    %p283 = scmp.eq.s32.totalorder %s25, 0
    %p284 = por %p282, %p283
    %p285 = scmp.ne.s32.totalorder %s273, %s274
    %p286 = scmp.eq.s32.totalorder %s26, 1
    %p287 = por %p285, %p286
    %p289 = scmp.ne.s32.totalorder %s274, %s288
    %p290 = scmp.eq.s32.totalorder %s26, 0
    %p291 = por %p289, %p290
    %s293 = sadd.s32 %s292, 1
    %p296 = scmp.eq.s32.totalorder %s20, 1
    %p297 = scmp.ne.s32.totalorder %s292, %s294
    %p298 = scmp.eq.s32.totalorder %s20, 0
    %p299 = por %p297, %p298
    %p300 = scmp.ne.s32.totalorder %s292, %s294
    %p301 = scmp.eq.s32.totalorder %s25, 1
    %p302 = por %p300, %p301
    %p303 = scmp.ne.s32.totalorder %s294, %s295
    %p304 = scmp.eq.s32.totalorder %s25, 0
    %p305 = por %p303, %p304
    %p306 = scmp.ne.s32.totalorder %s294, %s295
    %p307 = scmp.eq.s32.totalorder %s26, 1
    %p308 = por %p306, %p307
    %p310 = scmp.ne.s32.totalorder %s295, %s309
    %p311 = scmp.eq.s32.totalorder %s26, 0
    %p312 = por %p310, %p311
    %s314 = sadd.s32 %s313, 1
    %p317 = scmp.eq.s32.totalorder %s20, 1
    %p318 = scmp.ne.s32.totalorder %s313, %s315
    %p319 = scmp.eq.s32.totalorder %s20, 0
    %p320 = por %p318, %p319
    %p321 = scmp.ne.s32.totalorder %s313, %s315
    %p322 = scmp.eq.s32.totalorder %s25, 1
    %p323 = por %p321, %p322
    %p324 = scmp.ne.s32.totalorder %s315, %s316
    %p325 = scmp.eq.s32.totalorder %s25, 0
    %p326 = por %p324, %p325
    %p327 = scmp.ne.s32.totalorder %s315, %s316
    %p328 = scmp.eq.s32.totalorder %s26, 1
    %p329 = por %p327, %p328
    %p331 = scmp.ne.s32.totalorder %s316, %s330
    %p332 = scmp.eq.s32.totalorder %s26, 0
    %p333 = por %p331, %p332
    %s335 = sadd.s32 %s334, 1
    %p338 = scmp.eq.s32.totalorder %s20, 1
    %p339 = scmp.ne.s32.totalorder %s334, %s336
    %p340 = scmp.eq.s32.totalorder %s20, 0
    %p341 = por %p339, %p340
    %p342 = scmp.ne.s32.totalorder %s334, %s336
    %p343 = scmp.eq.s32.totalorder %s25, 1
    %p344 = por %p342, %p343
    %p345 = scmp.ne.s32.totalorder %s336, %s337
    %p346 = scmp.eq.s32.totalorder %s25, 0
    %p347 = por %p345, %p346
    %p348 = scmp.ne.s32.totalorder %s336, %s337
    %p349 = scmp.eq.s32.totalorder %s26, 1
    %p350 = por %p348, %p349
    %p352 = scmp.ne.s32.totalorder %s337, %s351
    %p353 = scmp.eq.s32.totalorder %s26, 0
    %p354 = por %p352, %p353
    %s356 = sadd.s32 %s355, 1
    %p359 = scmp.eq.s32.totalorder %s20, 1
    %p360 = scmp.ne.s32.totalorder %s355, %s357
    %p361 = scmp.eq.s32.totalorder %s20, 0
    %p362 = por %p360, %p361
    %p363 = scmp.ne.s32.totalorder %s355, %s357
    %p364 = scmp.eq.s32.totalorder %s25, 1
    %p365 = por %p363, %p364
    %p366 = scmp.ne.s32.totalorder %s357, %s358
    %p367 = scmp.eq.s32.totalorder %s25, 0
    %p368 = por %p366, %p367
    %p369 = scmp.ne.s32.totalorder %s357, %s358
    %p370 = scmp.eq.s32.totalorder %s26, 1
    %p371 = por %p369, %p370
    %p373 = scmp.ne.s32.totalorder %s358, %s372
    %p374 = scmp.eq.s32.totalorder %s26, 0
    %p375 = por %p373, %p374
    %s376 = ssub.s32 %s27, %s39
    %p377 = scmp.eq.s32.totalorder %s376, 0
    %s379 = sadd.s32 %s378, 1
    %s380 = scalar_select %p377, %s378, %s379
    %p383 = pneg %p377
    %p384 = scmp.eq.s32.totalorder %s20, 1
    %p385 = por %p383, %p384
    %p386 = scmp.ne.s32.totalorder %s378, %s381
    %p387 = scmp.eq.s32.totalorder %s20, 0
    %p388 = por %p386, %p387
    %p389 = scmp.ne.s32.totalorder %s378, %s381
    %p390 = scmp.eq.s32.totalorder %s25, 1
    %p391 = por %p389, %p390
    %p392 = scmp.ne.s32.totalorder %s381, %s382
    %p393 = scmp.eq.s32.totalorder %s25, 0
    %p394 = por %p392, %p393
    %p395 = scmp.ne.s32.totalorder %s381, %s382
    %p396 = scmp.eq.s32.totalorder %s26, 1
    %p397 = por %p395, %p396
    %p399 = scmp.ne.s32.totalorder %s382, %s398
    %p400 = scmp.eq.s32.totalorder %s26, 0
    %p401 = por %p399, %p400
    %p402 = scmp.le.s32.totalorder 1, %s20
    %p403 = scmp.lt.s32.totalorder %s20, 3
    %p404 = pnand %p402, %p403
    %p405 = pneg %p404
    // Predicated region
    $region9: #{dgcnn_forward.20} parent=5 // pred_check
      _
    $region10: #{dgcnn_forward.20} parent=5 // pred_check_branch
      %407 = sbr.rel (%p404) target = $region12
    $region11: #{dgcnn_forward.20} parent=5 // pred_region
      %s408 = ssub.s32 %s20, 1
      // Predicated region
      $region13: #{dgcnn_forward.20} parent=11 // pred_check
        %p409 = pneg %p221
      $region14: #{dgcnn_forward.20} parent=11 // pred_check_branch
        %411 = sbr.rel (%p409) target = $region16
      $region15: #{dgcnn_forward.20} parent=11 // pred_region
        _
      $region16: #{dgcnn_forward.20} parent=11 // pred_fallthru
        _
      // Predicated region
      $region17: #{dgcnn_forward.20} parent=11 // pred_check
        %p412 = pneg %p242
      $region18: #{dgcnn_forward.20} parent=11 // pred_check_branch
        %414 = sbr.rel (%p412) target = $region20
      $region19: #{dgcnn_forward.20} parent=11 // pred_region
        _
      $region20: #{dgcnn_forward.20} parent=11 // pred_fallthru
        _
      // Predicated region
      $region21: #{dgcnn_forward.20} parent=11 // pred_check
        %p415 = pneg %p263
      $region22: #{dgcnn_forward.20} parent=11 // pred_check_branch
        %417 = sbr.rel (%p415) target = $region24
      $region23: #{dgcnn_forward.20} parent=11 // pred_region
        _
      $region24: #{dgcnn_forward.20} parent=11 // pred_fallthru
        _
      // Predicated region
      $region25: #{dgcnn_forward.20} parent=11 // pred_check
        %p418 = pneg %p284
      $region26: #{dgcnn_forward.20} parent=11 // pred_check_branch
        %420 = sbr.rel (%p418) target = $region28
      $region27: #{dgcnn_forward.20} parent=11 // pred_region
        _
      $region28: #{dgcnn_forward.20} parent=11 // pred_fallthru
        _
      // Predicated region
      $region29: #{dgcnn_forward.20} parent=11 // pred_check
        %p421 = pneg %p305
      $region30: #{dgcnn_forward.20} parent=11 // pred_check_branch
        %423 = sbr.rel (%p421) target = $region32
      $region31: #{dgcnn_forward.20} parent=11 // pred_region
        _
      $region32: #{dgcnn_forward.20} parent=11 // pred_fallthru
        _
      // Predicated region
      $region33: #{dgcnn_forward.20} parent=11 // pred_check
        %p424 = pneg %p326
      $region34: #{dgcnn_forward.20} parent=11 // pred_check_branch
        %426 = sbr.rel (%p424) target = $region36
      $region35: #{dgcnn_forward.20} parent=11 // pred_region
        _
      $region36: #{dgcnn_forward.20} parent=11 // pred_fallthru
        _
      // Predicated region
      $region37: #{dgcnn_forward.20} parent=11 // pred_check
        %p427 = pneg %p347
      $region38: #{dgcnn_forward.20} parent=11 // pred_check_branch
        %429 = sbr.rel (%p427) target = $region40
      $region39: #{dgcnn_forward.20} parent=11 // pred_region
        _
      $region40: #{dgcnn_forward.20} parent=11 // pred_fallthru
        _
      // Predicated region
      $region41: #{dgcnn_forward.20} parent=11 // pred_check
        %p430 = pneg %p368
      $region42: #{dgcnn_forward.20} parent=11 // pred_check_branch
        %432 = sbr.rel (%p430) target = $region44
      $region43: #{dgcnn_forward.20} parent=11 // pred_region
        _
      $region44: #{dgcnn_forward.20} parent=11 // pred_fallthru
        _
    $region12: #{dgcnn_forward.20} parent=5 // pred_fallthru
      _
    %p433 = scmp.lt.s32.totalorder %s20, 2
    // Predicated region
    $region45: #{dgcnn_forward.20} parent=5 // pred_check
      %p434 = pneg %p433
    $region46: #{dgcnn_forward.20} parent=5 // pred_check_branch
      %436 = sbr.rel (%p434) target = $region48
    $region47: #{dgcnn_forward.20} parent=5 // pred_region
      // Predicated region
      $region49: #{dgcnn_forward.20} parent=47 // pred_check
        %p437 = pneg %p54
      $region50: #{dgcnn_forward.20} parent=47 // pred_check_branch
        %439 = sbr.rel (%p437) target = $region52
      $region51: #{dgcnn_forward.20} parent=47 // pred_region
        %s440 = smul.u32 2, %s28
        %p441 = scmp.lt.s32.totalorder %s27, 1
        %s442 = scalar_select %p441, %s27, 1
        %p443 = scmp.lt.s32.totalorder %s440, 1
        %s444 = scalar_select %p443, %s440, 1
        %s445 = smul.addr %s442, 2
        %s446 = sadd.s32 %s444, %s445
        %s447 = smul.addr %s446, 4
        %s448 = scalar_lea.vmem %s0, %s447
        %s449 = smul.u32 2, %s28
      $region52: #{dgcnn_forward.20} parent=47 // pred_fallthru
        _
      // Predicated region
      $region53: #{dgcnn_forward.20} parent=47 // pred_check
        %p450 = pneg %p82
      $region54: #{dgcnn_forward.20} parent=47 // pred_check_branch
        %452 = sbr.rel (%p450) target = $region56
      $region55: #{dgcnn_forward.20} parent=47 // pred_region
        %s453 = smul.u32 2, %s28
        %p454 = scmp.lt.s32.totalorder %s27, 1
        %s455 = scalar_select %p454, %s27, 1
        %p456 = scmp.lt.s32.totalorder %s453, 1
        %s457 = scalar_select %p456, %s453, 1
        %s458 = smul.addr %s455, 2
        %s459 = sadd.s32 %s457, %s458
        %s460 = smul.addr %s459, 4
        %s461 = scalar_lea.vmem %s1, %s460
        %s462 = smul.u32 2, %s28
      $region56: #{dgcnn_forward.20} parent=47 // pred_fallthru
        _
      // Predicated region
      $region57: #{dgcnn_forward.20} parent=47 // pred_check
        %p463 = pneg %p110
      $region58: #{dgcnn_forward.20} parent=47 // pred_check_branch
        %465 = sbr.rel (%p463) target = $region60
      $region59: #{dgcnn_forward.20} parent=47 // pred_region
        %s466 = smul.u32 2, %s28
        %p467 = scmp.lt.s32.totalorder %s27, 1
        %s468 = scalar_select %p467, %s27, 1
        %p469 = scmp.lt.s32.totalorder %s466, 1
        %s470 = scalar_select %p469, %s466, 1
        %s471 = smul.addr %s468, 2
        %s472 = sadd.s32 %s470, %s471
        %s473 = smul.addr %s472, 4
        %s474 = scalar_lea.vmem %s2, %s473
        %s475 = smul.u32 2, %s28
      $region60: #{dgcnn_forward.20} parent=47 // pred_fallthru
        _
      // Predicated region
      $region61: #{dgcnn_forward.20} parent=47 // pred_check
        %p476 = pneg %p138
      $region62: #{dgcnn_forward.20} parent=47 // pred_check_branch
        %478 = sbr.rel (%p476) target = $region64
      $region63: #{dgcnn_forward.20} parent=47 // pred_region
        %s479 = smul.u32 2, %s28
        %p480 = scmp.lt.s32.totalorder %s27, 1
        %s481 = scalar_select %p480, %s27, 1
        %p482 = scmp.lt.s32.totalorder %s479, 1
        %s483 = scalar_select %p482, %s479, 1
        %s484 = smul.addr %s483, 2
        %s485 = smul.addr %s481, 4
        %s486 = sadd.s32 %s484, %s485
        %s487 = smul.addr %s486, 4
        %s488 = scalar_lea.vmem %s3, %s487
        %s489 = smul.u32 2, %s28
      $region64: #{dgcnn_forward.20} parent=47 // pred_fallthru
        _
      // Predicated region
      $region65: #{dgcnn_forward.20} parent=47 // pred_check
        %p490 = pneg %p166
      $region66: #{dgcnn_forward.20} parent=47 // pred_check_branch
        %492 = sbr.rel (%p490) target = $region68
      $region67: #{dgcnn_forward.20} parent=47 // pred_region
        %s493 = smul.u32 2, %s28
        %p494 = scmp.lt.s32.totalorder %s27, 1
        %s495 = scalar_select %p494, %s27, 1
        %p496 = scmp.lt.s32.totalorder %s493, 1
        %s497 = scalar_select %p496, %s493, 1
        %s498 = smul.addr %s497, 2
        %s499 = smul.addr %s495, 4
        %s500 = sadd.s32 %s498, %s499
        %s501 = smul.addr %s500, 4
        %s502 = scalar_lea.vmem %s4, %s501
        %s503 = smul.u32 2, %s28
      $region68: #{dgcnn_forward.20} parent=47 // pred_fallthru
        _
      // Predicated region
      $region69: #{dgcnn_forward.20} parent=47 // pred_check
        %p504 = pneg %p194
      $region70: #{dgcnn_forward.20} parent=47 // pred_check_branch
        %506 = sbr.rel (%p504) target = $region72
      $region71: #{dgcnn_forward.20} parent=47 // pred_region
        %s507 = smul.u32 2, %s28
        %p508 = scmp.lt.s32.totalorder %s27, 1
        %s509 = scalar_select %p508, %s27, 1
        %p510 = scmp.lt.s32.totalorder %s507, 1
        %s511 = scalar_select %p510, %s507, 1
        %s512 = smul.addr %s511, 2
        %s513 = smul.addr %s509, 4
        %s514 = sadd.s32 %s512, %s513
        %s515 = smul.addr %s514, 4
        %s516 = scalar_lea.vmem %s5, %s515
        %s517 = smul.u32 2, %s28
      $region72: #{dgcnn_forward.20} parent=47 // pred_fallthru
        _
    $region48: #{dgcnn_forward.20} parent=5 // pred_fallthru
      _
    %p518 = scmp.le.s32.totalorder 1, %s20
    %p519 = scmp.lt.s32.totalorder %s20, 3
    %p520 = pnand %p518, %p519
    %p521 = pneg %p520
    // Predicated region
    $region73: #{dgcnn_forward.20} parent=5 // pred_check
      _
    $region74: #{dgcnn_forward.20} parent=5 // pred_check_branch
      %523 = sbr.rel (%p520) target = $region76
    $region75: #{dgcnn_forward.20} parent=5 // pred_region
      %s524 = ssub.s32 %s20, 1
      %s525 = smul.u32 2, %s30
      %p526 = scmp.lt.s32.totalorder %s29, 1
      %s527 = scalar_select %p526, %s29, 1
      %p528 = scmp.lt.s32.totalorder %s525, 1
      %s529 = scalar_select %p528, %s525, 1
      %s530 = smul.addr %s527, 2
      %s531 = sadd.s32 %s529, %s530
      %s532 = smul.addr %s531, 4
      %s533 = scalar_lea.vmem %s0, %s532
      %p534 = pneg %p60
      %p535 = pneg %p57
      %s536 = smul.u32 2, %s30
      %p537 = scmp.lt.s32.totalorder %s29, 1
      %s538 = scalar_select %p537, %s29, 1
      %p539 = scmp.lt.s32.totalorder %s536, 1
      %s540 = scalar_select %p539, %s536, 1
      %s541 = smul.addr %s538, 2
      %s542 = sadd.s32 %s540, %s541
      %s543 = smul.addr %s542, 4
      %s544 = scalar_lea.vmem %s1, %s543
      %p545 = pneg %p88
      %p546 = pneg %p85
      %s547 = smul.u32 2, %s30
      %p548 = scmp.lt.s32.totalorder %s29, 1
      %s549 = scalar_select %p548, %s29, 1
      %p550 = scmp.lt.s32.totalorder %s547, 1
      %s551 = scalar_select %p550, %s547, 1
      %s552 = smul.addr %s549, 2
      %s553 = sadd.s32 %s551, %s552
      %s554 = smul.addr %s553, 4
      %s555 = scalar_lea.vmem %s2, %s554
      %p556 = pneg %p116
      %p557 = pneg %p113
      %s558 = smul.u32 2, %s30
      %p559 = scmp.lt.s32.totalorder %s29, 1
      %s560 = scalar_select %p559, %s29, 1
      %p561 = scmp.lt.s32.totalorder %s558, 1
      %s562 = scalar_select %p561, %s558, 1
      %s563 = smul.addr %s562, 2
      %s564 = smul.addr %s560, 4
      %s565 = sadd.s32 %s563, %s564
      %s566 = smul.addr %s565, 4
      %s567 = scalar_lea.vmem %s3, %s566
      %p568 = pneg %p144
      %p569 = pneg %p141
      %s570 = smul.u32 2, %s30
      %p571 = scmp.lt.s32.totalorder %s29, 1
      %s572 = scalar_select %p571, %s29, 1
      %p573 = scmp.lt.s32.totalorder %s570, 1
      %s574 = scalar_select %p573, %s570, 1
      %s575 = smul.addr %s574, 2
      %s576 = smul.addr %s572, 4
      %s577 = sadd.s32 %s575, %s576
      %s578 = smul.addr %s577, 4
      %s579 = scalar_lea.vmem %s4, %s578
      %p580 = pneg %p172
      %p581 = pneg %p169
      %s582 = smul.u32 2, %s30
      %p583 = scmp.lt.s32.totalorder %s29, 1
      %s584 = scalar_select %p583, %s29, 1
      %p585 = scmp.lt.s32.totalorder %s582, 1
      %s586 = scalar_select %p585, %s582, 1
      %s587 = smul.addr %s586, 2
      %s588 = smul.addr %s584, 4
      %s589 = sadd.s32 %s587, %s588
      %s590 = smul.addr %s589, 4
      %s591 = scalar_lea.vmem %s5, %s590
      %p592 = pneg %p200
      %p593 = pneg %p197
      %p594 = pneg %p221
      %p595 = pneg %p218
      %p596 = pneg %p242
      %p597 = pneg %p239
      %p598 = pneg %p263
      %p599 = pneg %p260
      %p600 = pneg %p284
      %p601 = pneg %p281
      %p602 = pneg %p305
      %p603 = pneg %p302
      %p604 = pneg %p326
      %p605 = pneg %p323
      %p606 = pneg %p347
      %p607 = pneg %p344
      %p608 = pneg %p368
      %p609 = pneg %p365
      %p610 = pneg %p394
      %p611 = pneg %p391
      %p612 = scmp.lt.s32.totalorder %s29, 1
      %s613 = scalar_select %p612, %s29, 1
      %s614 = scalar_lea.vmem %s14, %s613
      %s615 = smul.u32 2, %s30
      %p616 = scmp.lt.s32.totalorder %s29, 1
      %s617 = scalar_select %p616, %s29, 1
      %p618 = scmp.lt.s32.totalorder %s615, 1
      %s619 = scalar_select %p618, %s615, 1
      %s620 = smul.addr %s617, 2
      %s621 = sadd.s32 %s619, %s620
      %s622 = smul.addr %s621, 4
      %s623 = scalar_lea.vmem %s0, %s622
      %s624 = smul.u32 2, %s30
      %s625 = smul.u32 2, %s30
      %p626 = scmp.lt.s32.totalorder %s29, 1
      %s627 = scalar_select %p626, %s29, 1
      %p628 = scmp.lt.s32.totalorder %s625, 1
      %s629 = scalar_select %p628, %s625, 1
      %s630 = smul.addr %s627, 2
      %s631 = sadd.s32 %s629, %s630
      %s632 = smul.addr %s631, 4
      %s633 = scalar_lea.vmem %s1, %s632
      %s634 = smul.u32 2, %s30
      %s635 = smul.u32 2, %s30
      %p636 = scmp.lt.s32.totalorder %s29, 1
      %s637 = scalar_select %p636, %s29, 1
      %p638 = scmp.lt.s32.totalorder %s635, 1
      %s639 = scalar_select %p638, %s635, 1
      %s640 = smul.addr %s637, 2
      %s641 = sadd.s32 %s639, %s640
      %s642 = smul.addr %s641, 4
      %s643 = scalar_lea.vmem %s2, %s642
      %s644 = smul.u32 2, %s30
      %s645 = smul.u32 2, %s30
      %p646 = scmp.lt.s32.totalorder %s29, 1
      %s647 = scalar_select %p646, %s29, 1
      %p648 = scmp.lt.s32.totalorder %s645, 1
      %s649 = scalar_select %p648, %s645, 1
      %s650 = smul.addr %s649, 2
      %s651 = smul.addr %s647, 4
      %s652 = sadd.s32 %s650, %s651
      %s653 = smul.addr %s652, 4
      %s654 = scalar_lea.vmem %s3, %s653
      %s655 = smul.u32 2, %s30
      %s656 = smul.u32 2, %s30
      %p657 = scmp.lt.s32.totalorder %s29, 1
      %s658 = scalar_select %p657, %s29, 1
      %p659 = scmp.lt.s32.totalorder %s656, 1
      %s660 = scalar_select %p659, %s656, 1
      %s661 = smul.addr %s660, 2
      %s662 = smul.addr %s658, 4
      %s663 = sadd.s32 %s661, %s662
      %s664 = smul.addr %s663, 4
      %s665 = scalar_lea.vmem %s4, %s664
      %s666 = smul.u32 2, %s30
      %s667 = smul.u32 2, %s30
      %p668 = scmp.lt.s32.totalorder %s29, 1
      %s669 = scalar_select %p668, %s29, 1
      %p670 = scmp.lt.s32.totalorder %s667, 1
      %s671 = scalar_select %p670, %s667, 1
      %s672 = smul.addr %s671, 2
      %s673 = smul.addr %s669, 4
      %s674 = sadd.s32 %s672, %s673
      %s675 = smul.addr %s674, 4
      %s676 = scalar_lea.vmem %s5, %s675
      %s677 = smul.u32 2, %s30
      %p678 = scmp.lt.s32.totalorder %s29, 1
      %s679 = scalar_select %p678, %s29, 1
      %s680 = scalar_lea.vmem %s14, %s679
      %p682 = scmp.eq.s32.totalorder %s30, 0
      // Predicated region
      $region77: #{dgcnn_forward.20} parent=75 // pred_check
        %p683 = pneg %p682
      $region78: #{dgcnn_forward.20} parent=75 // pred_check_branch
        %685 = sbr.rel (%p683) target = $region80
      $region79: #{dgcnn_forward.20} parent=75 // pred_region
        %vm686 = vcmask 516096
        %687 = vst.msk [vmem:[#allocation2] sm:$0x1] %vm686, -inf
        %688 = vst.msk [vmem:[#allocation3] sm:$0x1] %vm686, 0.0
      $region80: #{dgcnn_forward.20} parent=75 // pred_fallthru
        _
      %v689 = vld [vmem:[%s623] sm:$0xf]
      %v690 = vld [vmem:[%s623 + $0x4] sm:$0xf]
      %v691 = vld [vmem:[%s6] sm:$0xf]
      %v692 = vld [vmem:[%s6 + $0x4] sm:$0xf]
      %v693 = vld [vmem:[%s6 + $0x8] sm:$0xf]
      %v694 = vld [vmem:[%s6 + $0xc] sm:$0xf]
      %v695 = vld [vmem:[%s6 + $0x10] sm:$0xf]
      %v696 = vld [vmem:[%s6 + $0x14] sm:$0xf]
      %v697 = vld [vmem:[%s6 + $0x18] sm:$0xf]
      %v698 = vld [vmem:[%s6 + $0x1c] sm:$0xf]
      %v699 = vld [vmem:[%s633] sm:$0xf]
      %v700 = vld [vmem:[%s633 + $0x4] sm:$0xf]
      %v701 = vld [vmem:[%s7] sm:$0xf]
      %v702 = vld [vmem:[%s7 + $0x4] sm:$0xf]
      %v703 = vld [vmem:[%s7 + $0x8] sm:$0xf]
      %v704 = vld [vmem:[%s7 + $0xc] sm:$0xf]
      %v705 = vld [vmem:[%s7 + $0x10] sm:$0xf]
      %v706 = vld [vmem:[%s7 + $0x14] sm:$0xf]
      %v707 = vld [vmem:[%s7 + $0x18] sm:$0xf]
      %v708 = vld [vmem:[%s7 + $0x1c] sm:$0xf]
      %v711 = vunpack.c.l.b16 %v699
      %v712 = vunpack.c.l.b16 %v700
      %v713 = vpack.c.b16 %v712, %v711
      %v722 = vunpack.c.l.b16 %v701
      %v723 = vunpack.c.l.b16 %v702
      %v724 = vunpack.c.l.b16 %v703
      %v725 = vunpack.c.l.b16 %v704
      %v726 = vunpack.c.l.b16 %v705
      %v727 = vunpack.c.l.b16 %v706
      %v728 = vunpack.c.l.b16 %v707
      %v729 = vunpack.c.l.b16 %v708
      %v730 = vpack.c.b16 %v723, %v722
      %v731 = vpack.c.b16 %v725, %v724
      %v732 = vpack.c.b16 %v727, %v726
      %v733 = vpack.c.b16 %v729, %v728
      %vm738 = vcmask 523264
      %v740 = vsel %vm738, %v713, 0
      %742 = vmatprep.subr.bf16.mxu0 0
      %743 = vmatpush1.bf16.msra.mxu0 %v730
      %744 = vmatprep.subr.bf16.mxu0 0
      %745 = vmatpush1.bf16.msra.mxu0 %v731
      %746 = vmatprep.subr.bf16.mxu0 0
      %747 = vmatpush1.bf16.msra.mxu0 %v732
      %748 = vmatprep.subr.bf16.mxu0 0
      %749 = vmatpush1.bf16.msra.mxu0 %v733
      %750 = vmatprep.subr.bf16.mxu0 0
      %751 = vmatpush1.bf16.msra.mxu0 0
      %752 = vmatprep.subr.bf16.mxu0 0
      %753 = vmatpush1.bf16.msra.mxu0 0
      %754 = vmatprep.subr.bf16.mxu0 0
      %755 = vmatpush1.bf16.msra.mxu0 0
      %756 = vmatprep.subr.bf16.mxu0 0
      %757 = vmatpush1.bf16.msra.mxu0 0
      %758 = vmatprep.subr.bf16.mxu0 0
      %759 = vmatpush1.bf16.msra.mxu0 0
      %760 = vmatprep.subr.bf16.mxu0 0
      %761 = vmatpush1.bf16.msra.mxu0 0
      %762 = vmatprep.subr.bf16.mxu0 0
      %763 = vmatpush1.bf16.msra.mxu0 0
      %764 = vmatprep.subr.bf16.mxu0 0
      %765 = vmatpush1.bf16.msra.mxu0 0
      %766 = vmatprep.subr.bf16.mxu0 0
      %767 = vmatpush1.bf16.msra.mxu0 0
      %768 = vmatprep.subr.bf16.mxu0 0
      %769 = vmatpush1.bf16.msra.mxu0 0
      %770 = vmatprep.subr.bf16.mxu0 0
      %771 = vmatpush1.bf16.msra.mxu0 0
      %772 = vmatprep.subr.bf16.mxu0 0
      %773 = vmatpush1.bf16.msra.mxu0 0
      %774 = vmatprep.mubr.bf16.mxu0 0
      %775 = vmatmul.mubr.bf16.gmra.mrb[0].mxu0 %v740
      %v776 = vpop.f32.mrb[0].mxu0
      %v777 = vadd.f32 0.0, %v776
      %v778 = vpop.f32.mrb[0].mxu0
      %v779 = vpop.f32.mrb[0].mxu0
      %v780 = vadd.f32 0.0, %v779
      %v781 = vpop.f32.mrb[0].mxu0
      %782 = vdwg.mxu0
      %v785 = vunpack.c.l.b16 %v689
      %v786 = vunpack.c.l.b16 %v690
      %v787 = vpack.c.b16 %v786, %v785
      %v796 = vunpack.c.l.b16 %v691
      %v797 = vunpack.c.l.b16 %v692
      %v798 = vunpack.c.l.b16 %v693
      %v799 = vunpack.c.l.b16 %v694
      %v800 = vunpack.c.l.b16 %v695
      %v801 = vunpack.c.l.b16 %v696
      %v802 = vunpack.c.l.b16 %v697
      %v803 = vunpack.c.l.b16 %v698
      %v804 = vpack.c.b16 %v797, %v796
      %v805 = vpack.c.b16 %v799, %v798
      %v806 = vpack.c.b16 %v801, %v800
      %v807 = vpack.c.b16 %v803, %v802
      %v813 = vsel %vm738, %v787, 0
      %815 = vmatprep.subr.bf16.mxu0 0
      %816 = vmatpush1.bf16.msra.mxu0 %v804
      %817 = vmatprep.subr.bf16.mxu0 0
      %818 = vmatpush1.bf16.msra.mxu0 %v805
      %819 = vmatprep.subr.bf16.mxu0 0
      %820 = vmatpush1.bf16.msra.mxu0 %v806
      %821 = vmatprep.subr.bf16.mxu0 0
      %822 = vmatpush1.bf16.msra.mxu0 %v807
      %823 = vmatprep.subr.bf16.mxu0 0
      %824 = vmatpush1.bf16.msra.mxu0 0
      %825 = vmatprep.subr.bf16.mxu0 0
      %826 = vmatpush1.bf16.msra.mxu0 0
      %827 = vmatprep.subr.bf16.mxu0 0
      %828 = vmatpush1.bf16.msra.mxu0 0
      %829 = vmatprep.subr.bf16.mxu0 0
      %830 = vmatpush1.bf16.msra.mxu0 0
      %831 = vmatprep.subr.bf16.mxu0 0
      %832 = vmatpush1.bf16.msra.mxu0 0
      %833 = vmatprep.subr.bf16.mxu0 0
      %834 = vmatpush1.bf16.msra.mxu0 0
      %835 = vmatprep.subr.bf16.mxu0 0
      %836 = vmatpush1.bf16.msra.mxu0 0
      %837 = vmatprep.subr.bf16.mxu0 0
      %838 = vmatpush1.bf16.msra.mxu0 0
      %839 = vmatprep.subr.bf16.mxu0 0
      %840 = vmatpush1.bf16.msra.mxu0 0
      %841 = vmatprep.subr.bf16.mxu0 0
      %842 = vmatpush1.bf16.msra.mxu0 0
      %843 = vmatprep.subr.bf16.mxu0 0
      %844 = vmatpush1.bf16.msra.mxu0 0
      %845 = vmatprep.subr.bf16.mxu0 0
      %846 = vmatpush1.bf16.msra.mxu0 0
      %847 = vmatprep.mubr.bf16.mxu0 0
      %848 = vmatmul.mubr.bf16.gmra.mrb[0].mxu0 %v813
      %v849 = vpop.f32.mrb[0].mxu0
      %v850 = vadd.f32 %v777, %v849
      %v851 = vpop.f32.mrb[0].mxu0
      %v852 = vpop.f32.mrb[0].mxu0
      %v853 = vadd.f32 %v780, %v852
      %v854 = vpop.f32.mrb[0].mxu0
      %855 = vdwg.mxu0
      %v856 = vld [vmem:[%s643] sm:$0xf]
      %v857 = vld [vmem:[%s643 + $0x4] sm:$0xf]
      %v858 = vld [vmem:[%s8] sm:$0xf]
      %v859 = vld [vmem:[%s8 + $0x4] sm:$0xf]
      %v860 = vld [vmem:[%s8 + $0x8] sm:$0xf]
      %v861 = vld [vmem:[%s8 + $0xc] sm:$0xf]
      %v862 = vld [vmem:[%s8 + $0x10] sm:$0xf]
      %v863 = vld [vmem:[%s8 + $0x14] sm:$0xf]
      %v864 = vld [vmem:[%s8 + $0x18] sm:$0xf]
      %v865 = vld [vmem:[%s8 + $0x1c] sm:$0xf]
      %v866 = vld [vmem:[%s8 + $0x20] sm:$0xf]
      %v867 = vld [vmem:[%s8 + $0x24] sm:$0xf]
      %v868 = vld [vmem:[%s8 + $0x28] sm:$0xf]
      %v869 = vld [vmem:[%s8 + $0x2c] sm:$0xf]
      %v870 = vld [vmem:[%s8 + $0x30] sm:$0xf]
      %v871 = vld [vmem:[%s8 + $0x34] sm:$0xf]
      %v872 = vld [vmem:[%s8 + $0x38] sm:$0xf]
      %v873 = vld [vmem:[%s8 + $0x3c] sm:$0xf]
      %v876 = vunpack.c.l.b16 %v856
      %v877 = vunpack.c.l.b16 %v857
      %v878 = vpack.c.b16 %v877, %v876
      %v896 = vunpack.c.l.b16 %v858
      %v897 = vunpack.c.l.b16 %v859
      %v898 = vunpack.c.l.b16 %v860
      %v899 = vunpack.c.l.b16 %v861
      %v900 = vunpack.c.l.b16 %v862
      %v901 = vunpack.c.l.b16 %v863
      %v902 = vunpack.c.l.b16 %v864
      %v903 = vunpack.c.l.b16 %v865
      %v904 = vunpack.c.l.b16 %v866
      %v905 = vunpack.c.l.b16 %v867
      %v906 = vunpack.c.l.b16 %v868
      %v907 = vunpack.c.l.b16 %v869
      %v908 = vunpack.c.l.b16 %v870
      %v909 = vunpack.c.l.b16 %v871
      %v910 = vunpack.c.l.b16 %v872
      %v911 = vunpack.c.l.b16 %v873
      %v912 = vpack.c.b16 %v897, %v896
      %v913 = vpack.c.b16 %v899, %v898
      %v914 = vpack.c.b16 %v901, %v900
      %v915 = vpack.c.b16 %v903, %v902
      %v916 = vpack.c.b16 %v905, %v904
      %v917 = vpack.c.b16 %v907, %v906
      %v918 = vpack.c.b16 %v909, %v908
      %v919 = vpack.c.b16 %v911, %v910
      %928 = vmatprep.subr.bf16.mxu0 0
      %929 = vmatpush1.bf16.msra.mxu0 %v912
      %930 = vmatprep.subr.bf16.mxu0 0
      %931 = vmatpush1.bf16.msra.mxu0 %v913
      %932 = vmatprep.subr.bf16.mxu0 0
      %933 = vmatpush1.bf16.msra.mxu0 %v914
      %934 = vmatprep.subr.bf16.mxu0 0
      %935 = vmatpush1.bf16.msra.mxu0 %v915
      %936 = vmatprep.subr.bf16.mxu0 0
      %937 = vmatpush1.bf16.msra.mxu0 %v916
      %938 = vmatprep.subr.bf16.mxu0 0
      %939 = vmatpush1.bf16.msra.mxu0 %v917
      %940 = vmatprep.subr.bf16.mxu0 0
      %941 = vmatpush1.bf16.msra.mxu0 %v918
      %942 = vmatprep.subr.bf16.mxu0 0
      %943 = vmatpush1.bf16.msra.mxu0 %v919
      %944 = vmatprep.subr.bf16.mxu0 0
      %945 = vmatpush1.bf16.msra.mxu0 0
      %946 = vmatprep.subr.bf16.mxu0 0
      %947 = vmatpush1.bf16.msra.mxu0 0
      %948 = vmatprep.subr.bf16.mxu0 0
      %949 = vmatpush1.bf16.msra.mxu0 0
      %950 = vmatprep.subr.bf16.mxu0 0
      %951 = vmatpush1.bf16.msra.mxu0 0
      %952 = vmatprep.subr.bf16.mxu0 0
      %953 = vmatpush1.bf16.msra.mxu0 0
      %954 = vmatprep.subr.bf16.mxu0 0
      %955 = vmatpush1.bf16.msra.mxu0 0
      %956 = vmatprep.subr.bf16.mxu0 0
      %957 = vmatpush1.bf16.msra.mxu0 0
      %958 = vmatprep.subr.bf16.mxu0 0
      %959 = vmatpush1.bf16.msra.mxu0 0
      %960 = vmatprep.mubr.bf16.mxu0 0
      %961 = vmatmul.mubr.bf16.gmra.mrb[0].mxu0 %v878
      %v962 = vpop.f32.mrb[0].mxu0
      %v963 = vadd.f32 0.0, %v962
      %v964 = vpop.f32.mrb[0].mxu0
      %v965 = vpop.f32.mrb[0].mxu0
      %v966 = vadd.f32 0.0, %v965
      %v967 = vpop.f32.mrb[0].mxu0
      %968 = vdwg.mxu0
      %v969 = vadd.f32 %v850, %v963
      %v970 = vadd.f32 %v853, %v966
      %v971 = vld [vmem:[%s654] sm:$0xff]
      %v972 = vld [vmem:[%s654 + $0x8] sm:$0xff]
      %v973 = vld [vmem:[%s9] sm:$0xf]
      %v974 = vld [vmem:[%s9 + $0x4] sm:$0xf]
      %v975 = vld [vmem:[%s9 + $0x8] sm:$0xf]
      %v976 = vld [vmem:[%s9 + $0xc] sm:$0xf]
      %v977 = vld [vmem:[%s9 + $0x10] sm:$0xf]
      %v978 = vld [vmem:[%s9 + $0x14] sm:$0xf]
      %v979 = vld [vmem:[%s9 + $0x18] sm:$0xf]
      %v980 = vld [vmem:[%s9 + $0x1c] sm:$0xf]
      %v981 = vld [vmem:[%s9 + $0x20] sm:$0xf]
      %v982 = vld [vmem:[%s9 + $0x24] sm:$0xf]
      %v983 = vld [vmem:[%s9 + $0x28] sm:$0xf]
      %v984 = vld [vmem:[%s9 + $0x2c] sm:$0xf]
      %v985 = vld [vmem:[%s9 + $0x30] sm:$0xf]
      %v986 = vld [vmem:[%s9 + $0x34] sm:$0xf]
      %v987 = vld [vmem:[%s9 + $0x38] sm:$0xf]
      %v988 = vld [vmem:[%s9 + $0x3c] sm:$0xf]
      %v989 = vld [vmem:[%s9 + $0x40] sm:$0xf]
      %v990 = vld [vmem:[%s9 + $0x44] sm:$0xf]
      %v991 = vld [vmem:[%s9 + $0x48] sm:$0xf]
      %v992 = vld [vmem:[%s9 + $0x4c] sm:$0xf]
      %v993 = vld [vmem:[%s9 + $0x50] sm:$0xf]
      %v994 = vld [vmem:[%s9 + $0x54] sm:$0xf]
      %v995 = vld [vmem:[%s9 + $0x58] sm:$0xf]
      %v996 = vld [vmem:[%s9 + $0x5c] sm:$0xf]
      %v997 = vld [vmem:[%s9 + $0x60] sm:$0xf]
      %v998 = vld [vmem:[%s9 + $0x64] sm:$0xf]
      %v999 = vld [vmem:[%s9 + $0x68] sm:$0xf]
      %v1000 = vld [vmem:[%s9 + $0x6c] sm:$0xf]
      %v1001 = vld [vmem:[%s9 + $0x70] sm:$0xf]
      %v1002 = vld [vmem:[%s9 + $0x74] sm:$0xf]
      %v1003 = vld [vmem:[%s9 + $0x78] sm:$0xf]
      %v1004 = vld [vmem:[%s9 + $0x7c] sm:$0xf]
      %v1007 = vunpack.c.l.b16 %v971
      %v1008 = vunpack.c.h.b16 %v971
      %v1009 = vunpack.c.l.b16 %v972
      %v1010 = vunpack.c.h.b16 %v972
      %v1011 = vpack.c.b16 %v1009, %v1007
      %v1012 = vpack.c.b16 %v1010, %v1008
      %v1047 = vunpack.c.l.b16 %v973
      %v1048 = vunpack.c.l.b16 %v974
      %v1049 = vunpack.c.l.b16 %v975
      %v1050 = vunpack.c.l.b16 %v976
      %v1051 = vunpack.c.l.b16 %v977
      %v1052 = vunpack.c.l.b16 %v978
      %v1053 = vunpack.c.l.b16 %v979
      %v1054 = vunpack.c.l.b16 %v980
      %v1055 = vunpack.c.l.b16 %v981
      %v1056 = vunpack.c.l.b16 %v982
      %v1057 = vunpack.c.l.b16 %v983
      %v1058 = vunpack.c.l.b16 %v984
      %v1059 = vunpack.c.l.b16 %v985
      %v1060 = vunpack.c.l.b16 %v986
      %v1061 = vunpack.c.l.b16 %v987
      %v1062 = vunpack.c.l.b16 %v988
      %v1063 = vunpack.c.l.b16 %v989
      %v1064 = vunpack.c.l.b16 %v990
      %v1065 = vunpack.c.l.b16 %v991
      %v1066 = vunpack.c.l.b16 %v992
      %v1067 = vunpack.c.l.b16 %v993
      %v1068 = vunpack.c.l.b16 %v994
      %v1069 = vunpack.c.l.b16 %v995
      %v1070 = vunpack.c.l.b16 %v996
      %v1071 = vunpack.c.l.b16 %v997
      %v1072 = vunpack.c.l.b16 %v998
      %v1073 = vunpack.c.l.b16 %v999
      %v1074 = vunpack.c.l.b16 %v1000
      %v1075 = vunpack.c.l.b16 %v1001
      %v1076 = vunpack.c.l.b16 %v1002
      %v1077 = vunpack.c.l.b16 %v1003
      %v1078 = vunpack.c.l.b16 %v1004
      %v1079 = vpack.c.b16 %v1048, %v1047
      %v1080 = vpack.c.b16 %v1050, %v1049
      %v1081 = vpack.c.b16 %v1052, %v1051
      %v1082 = vpack.c.b16 %v1054, %v1053
      %v1083 = vpack.c.b16 %v1056, %v1055
      %v1084 = vpack.c.b16 %v1058, %v1057
      %v1085 = vpack.c.b16 %v1060, %v1059
      %v1086 = vpack.c.b16 %v1062, %v1061
      %v1087 = vpack.c.b16 %v1064, %v1063
      %v1088 = vpack.c.b16 %v1066, %v1065
      %v1089 = vpack.c.b16 %v1068, %v1067
      %v1090 = vpack.c.b16 %v1070, %v1069
      %v1091 = vpack.c.b16 %v1072, %v1071
      %v1092 = vpack.c.b16 %v1074, %v1073
      %v1093 = vpack.c.b16 %v1076, %v1075
      %v1094 = vpack.c.b16 %v1078, %v1077
      %1111 = vmatprep.subr.bf16.mxu0 0
      %1112 = vmatpush1.bf16.msra.mxu0 %v1079
      %1113 = vmatprep.subr.bf16.mxu0 0
      %1114 = vmatpush1.bf16.msra.mxu0 %v1080
      %1115 = vmatprep.subr.bf16.mxu0 0
      %1116 = vmatpush1.bf16.msra.mxu0 %v1081
      %1117 = vmatprep.subr.bf16.mxu0 0
      %1118 = vmatpush1.bf16.msra.mxu0 %v1082
      %1119 = vmatprep.subr.bf16.mxu0 0
      %1120 = vmatpush1.bf16.msra.mxu0 %v1083
      %1121 = vmatprep.subr.bf16.mxu0 0
      %1122 = vmatpush1.bf16.msra.mxu0 %v1084
      %1123 = vmatprep.subr.bf16.mxu0 0
      %1124 = vmatpush1.bf16.msra.mxu0 %v1085
      %1125 = vmatprep.subr.bf16.mxu0 0
      %1126 = vmatpush1.bf16.msra.mxu0 %v1086
      %1127 = vmatprep.subr.bf16.mxu0 0
      %1128 = vmatpush1.bf16.msra.mxu0 %v1087
      %1129 = vmatprep.subr.bf16.mxu0 0
      %1130 = vmatpush1.bf16.msra.mxu0 %v1088
      %1131 = vmatprep.subr.bf16.mxu0 0
      %1132 = vmatpush1.bf16.msra.mxu0 %v1089
      %1133 = vmatprep.subr.bf16.mxu0 0
      %1134 = vmatpush1.bf16.msra.mxu0 %v1090
      %1135 = vmatprep.subr.bf16.mxu0 0
      %1136 = vmatpush1.bf16.msra.mxu0 %v1091
      %1137 = vmatprep.subr.bf16.mxu0 0
      %1138 = vmatpush1.bf16.msra.mxu0 %v1092
      %1139 = vmatprep.subr.bf16.mxu0 0
      %1140 = vmatpush1.bf16.msra.mxu0 %v1093
      %1141 = vmatprep.subr.bf16.mxu0 0
      %1142 = vmatpush1.bf16.msra.mxu0 %v1094
      %1143 = vmatprep.mubr.bf16.mxu0 %v1012
      %1144 = vmatmul.mubr.bf16.gmra.mrb[0].mxu0 %v1011
      %v1145 = vpop.f32.mrb[0].mxu0
      %v1146 = vadd.f32 0.0, %v1145
      %v1147 = vpop.f32.mrb[0].mxu0
      %v1148 = vpop.f32.mrb[0].mxu0
      %v1149 = vadd.f32 0.0, %v1148
      %v1150 = vpop.f32.mrb[0].mxu0
      %1151 = vdwg.mxu0
      %v1152 = vadd.f32 %v969, %v1146
      %v1153 = vadd.f32 %v970, %v1149
      %v1154 = vld [vmem:[%s665] sm:$0xff]
      %v1155 = vld [vmem:[%s665 + $0x8] sm:$0xff]
      %v1156 = vld [vmem:[%s10] sm:$0xf]
      %v1157 = vld [vmem:[%s10 + $0x4] sm:$0xf]
      %v1158 = vld [vmem:[%s10 + $0x8] sm:$0xf]
      %v1159 = vld [vmem:[%s10 + $0xc] sm:$0xf]
      %v1160 = vld [vmem:[%s10 + $0x10] sm:$0xf]
      %v1161 = vld [vmem:[%s10 + $0x14] sm:$0xf]
      %v1162 = vld [vmem:[%s10 + $0x18] sm:$0xf]
      %v1163 = vld [vmem:[%s10 + $0x1c] sm:$0xf]
      %v1164 = vld [vmem:[%s10 + $0x20] sm:$0xf]
      %v1165 = vld [vmem:[%s10 + $0x24] sm:$0xf]
      %v1166 = vld [vmem:[%s10 + $0x28] sm:$0xf]
      %v1167 = vld [vmem:[%s10 + $0x2c] sm:$0xf]
      %v1168 = vld [vmem:[%s10 + $0x30] sm:$0xf]
      %v1169 = vld [vmem:[%s10 + $0x34] sm:$0xf]
      %v1170 = vld [vmem:[%s10 + $0x38] sm:$0xf]
      %v1171 = vld [vmem:[%s10 + $0x3c] sm:$0xf]
      %v1172 = vld [vmem:[%s10 + $0x40] sm:$0xf]
      %v1173 = vld [vmem:[%s10 + $0x44] sm:$0xf]
      %v1174 = vld [vmem:[%s10 + $0x48] sm:$0xf]
      %v1175 = vld [vmem:[%s10 + $0x4c] sm:$0xf]
      %v1176 = vld [vmem:[%s10 + $0x50] sm:$0xf]
      %v1177 = vld [vmem:[%s10 + $0x54] sm:$0xf]
      %v1178 = vld [vmem:[%s10 + $0x58] sm:$0xf]
      %v1179 = vld [vmem:[%s10 + $0x5c] sm:$0xf]
      %v1180 = vld [vmem:[%s10 + $0x60] sm:$0xf]
      %v1181 = vld [vmem:[%s10 + $0x64] sm:$0xf]
      %v1182 = vld [vmem:[%s10 + $0x68] sm:$0xf]
      %v1183 = vld [vmem:[%s10 + $0x6c] sm:$0xf]
      %v1184 = vld [vmem:[%s10 + $0x70] sm:$0xf]
      %v1185 = vld [vmem:[%s10 + $0x74] sm:$0xf]
      %v1186 = vld [vmem:[%s10 + $0x78] sm:$0xf]
      %v1187 = vld [vmem:[%s10 + $0x7c] sm:$0xf]
      %v1190 = vunpack.c.l.b16 %v1154
      %v1191 = vunpack.c.h.b16 %v1154
      %v1192 = vunpack.c.l.b16 %v1155
      %v1193 = vunpack.c.h.b16 %v1155
      %v1194 = vpack.c.b16 %v1192, %v1190
      %v1195 = vpack.c.b16 %v1193, %v1191
      %v1230 = vunpack.c.l.b16 %v1156
      %v1231 = vunpack.c.l.b16 %v1157
      %v1232 = vunpack.c.l.b16 %v1158
      %v1233 = vunpack.c.l.b16 %v1159
      %v1234 = vunpack.c.l.b16 %v1160
      %v1235 = vunpack.c.l.b16 %v1161
      %v1236 = vunpack.c.l.b16 %v1162
      %v1237 = vunpack.c.l.b16 %v1163
      %v1238 = vunpack.c.l.b16 %v1164
      %v1239 = vunpack.c.l.b16 %v1165
      %v1240 = vunpack.c.l.b16 %v1166
      %v1241 = vunpack.c.l.b16 %v1167
      %v1242 = vunpack.c.l.b16 %v1168
      %v1243 = vunpack.c.l.b16 %v1169
      %v1244 = vunpack.c.l.b16 %v1170
      %v1245 = vunpack.c.l.b16 %v1171
      %v1246 = vunpack.c.l.b16 %v1172
      %v1247 = vunpack.c.l.b16 %v1173
      %v1248 = vunpack.c.l.b16 %v1174
      %v1249 = vunpack.c.l.b16 %v1175
      %v1250 = vunpack.c.l.b16 %v1176
      %v1251 = vunpack.c.l.b16 %v1177
      %v1252 = vunpack.c.l.b16 %v1178
      %v1253 = vunpack.c.l.b16 %v1179
      %v1254 = vunpack.c.l.b16 %v1180
      %v1255 = vunpack.c.l.b16 %v1181
      %v1256 = vunpack.c.l.b16 %v1182
      %v1257 = vunpack.c.l.b16 %v1183
      %v1258 = vunpack.c.l.b16 %v1184
      %v1259 = vunpack.c.l.b16 %v1185
      %v1260 = vunpack.c.l.b16 %v1186
      %v1261 = vunpack.c.l.b16 %v1187
      %v1262 = vpack.c.b16 %v1231, %v1230
      %v1263 = vpack.c.b16 %v1233, %v1232
      %v1264 = vpack.c.b16 %v1235, %v1234
      %v1265 = vpack.c.b16 %v1237, %v1236
      %v1266 = vpack.c.b16 %v1239, %v1238
      %v1267 = vpack.c.b16 %v1241, %v1240
      %v1268 = vpack.c.b16 %v1243, %v1242
      %v1269 = vpack.c.b16 %v1245, %v1244
      %v1270 = vpack.c.b16 %v1247, %v1246
      %v1271 = vpack.c.b16 %v1249, %v1248
      %v1272 = vpack.c.b16 %v1251, %v1250
      %v1273 = vpack.c.b16 %v1253, %v1252
      %v1274 = vpack.c.b16 %v1255, %v1254
      %v1275 = vpack.c.b16 %v1257, %v1256
      %v1276 = vpack.c.b16 %v1259, %v1258
      %v1277 = vpack.c.b16 %v1261, %v1260
      %1294 = vmatprep.subr.bf16.mxu0 0
      %1295 = vmatpush1.bf16.msra.mxu0 %v1262
      %1296 = vmatprep.subr.bf16.mxu0 0
      %1297 = vmatpush1.bf16.msra.mxu0 %v1263
      %1298 = vmatprep.subr.bf16.mxu0 0
      %1299 = vmatpush1.bf16.msra.mxu0 %v1264
      %1300 = vmatprep.subr.bf16.mxu0 0
      %1301 = vmatpush1.bf16.msra.mxu0 %v1265
      %1302 = vmatprep.subr.bf16.mxu0 0
      %1303 = vmatpush1.bf16.msra.mxu0 %v1266
      %1304 = vmatprep.subr.bf16.mxu0 0
      %1305 = vmatpush1.bf16.msra.mxu0 %v1267
      %1306 = vmatprep.subr.bf16.mxu0 0
      %1307 = vmatpush1.bf16.msra.mxu0 %v1268
      %1308 = vmatprep.subr.bf16.mxu0 0
      %1309 = vmatpush1.bf16.msra.mxu0 %v1269
      %1310 = vmatprep.subr.bf16.mxu0 0
      %1311 = vmatpush1.bf16.msra.mxu0 %v1270
      %1312 = vmatprep.subr.bf16.mxu0 0
      %1313 = vmatpush1.bf16.msra.mxu0 %v1271
      %1314 = vmatprep.subr.bf16.mxu0 0
      %1315 = vmatpush1.bf16.msra.mxu0 %v1272
      %1316 = vmatprep.subr.bf16.mxu0 0
      %1317 = vmatpush1.bf16.msra.mxu0 %v1273
      %1318 = vmatprep.subr.bf16.mxu0 0
      %1319 = vmatpush1.bf16.msra.mxu0 %v1274
      %1320 = vmatprep.subr.bf16.mxu0 0
      %1321 = vmatpush1.bf16.msra.mxu0 %v1275
      %1322 = vmatprep.subr.bf16.mxu0 0
      %1323 = vmatpush1.bf16.msra.mxu0 %v1276
      %1324 = vmatprep.subr.bf16.mxu0 0
      %1325 = vmatpush1.bf16.msra.mxu0 %v1277
      %1326 = vmatprep.mubr.bf16.mxu0 %v1195
      %1327 = vmatmul.mubr.bf16.gmra.mrb[0].mxu0 %v1194
      %v1328 = vpop.f32.mrb[0].mxu0
      %v1329 = vadd.f32 0.0, %v1328
      %v1330 = vpop.f32.mrb[0].mxu0
      %v1331 = vpop.f32.mrb[0].mxu0
      %v1332 = vadd.f32 0.0, %v1331
      %v1333 = vpop.f32.mrb[0].mxu0
      %1334 = vdwg.mxu0
      %v1335 = vadd.f32 %v1152, %v1329
      %v1336 = vadd.f32 %v1153, %v1332
      %v1337 = vld [vmem:[%s676] sm:$0xff]
      %v1338 = vld [vmem:[%s676 + $0x8] sm:$0xff]
      %v1339 = vld [vmem:[%s11] sm:$0xf]
      %v1340 = vld [vmem:[%s11 + $0x4] sm:$0xf]
      %v1341 = vld [vmem:[%s11 + $0x8] sm:$0xf]
      %v1342 = vld [vmem:[%s11 + $0xc] sm:$0xf]
      %v1343 = vld [vmem:[%s11 + $0x10] sm:$0xf]
      %v1344 = vld [vmem:[%s11 + $0x14] sm:$0xf]
      %v1345 = vld [vmem:[%s11 + $0x18] sm:$0xf]
      %v1346 = vld [vmem:[%s11 + $0x1c] sm:$0xf]
      %v1347 = vld [vmem:[%s11 + $0x20] sm:$0xf]
      %v1348 = vld [vmem:[%s11 + $0x24] sm:$0xf]
      %v1349 = vld [vmem:[%s11 + $0x28] sm:$0xf]
      %v1350 = vld [vmem:[%s11 + $0x2c] sm:$0xf]
      %v1351 = vld [vmem:[%s11 + $0x30] sm:$0xf]
      %v1352 = vld [vmem:[%s11 + $0x34] sm:$0xf]
      %v1353 = vld [vmem:[%s11 + $0x38] sm:$0xf]
      %v1354 = vld [vmem:[%s11 + $0x3c] sm:$0xf]
      %v1355 = vld [vmem:[%s11 + $0x40] sm:$0xf]
      %v1356 = vld [vmem:[%s11 + $0x44] sm:$0xf]
      %v1357 = vld [vmem:[%s11 + $0x48] sm:$0xf]
      %v1358 = vld [vmem:[%s11 + $0x4c] sm:$0xf]
      %v1359 = vld [vmem:[%s11 + $0x50] sm:$0xf]
      %v1360 = vld [vmem:[%s11 + $0x54] sm:$0xf]
      %v1361 = vld [vmem:[%s11 + $0x58] sm:$0xf]
      %v1362 = vld [vmem:[%s11 + $0x5c] sm:$0xf]
      %v1363 = vld [vmem:[%s11 + $0x60] sm:$0xf]
      %v1364 = vld [vmem:[%s11 + $0x64] sm:$0xf]
      %v1365 = vld [vmem:[%s11 + $0x68] sm:$0xf]
      %v1366 = vld [vmem:[%s11 + $0x6c] sm:$0xf]
      %v1367 = vld [vmem:[%s11 + $0x70] sm:$0xf]
      %v1368 = vld [vmem:[%s11 + $0x74] sm:$0xf]
      %v1369 = vld [vmem:[%s11 + $0x78] sm:$0xf]
      %v1370 = vld [vmem:[%s11 + $0x7c] sm:$0xf]
      %v1373 = vunpack.c.l.b16 %v1337
      %v1374 = vunpack.c.h.b16 %v1337
      %v1375 = vunpack.c.l.b16 %v1338
      %v1376 = vunpack.c.h.b16 %v1338
      %v1377 = vpack.c.b16 %v1375, %v1373
      %v1378 = vpack.c.b16 %v1376, %v1374
      %v1413 = vunpack.c.l.b16 %v1339
      %v1414 = vunpack.c.l.b16 %v1340
      %v1415 = vunpack.c.l.b16 %v1341
      %v1416 = vunpack.c.l.b16 %v1342
      %v1417 = vunpack.c.l.b16 %v1343
      %v1418 = vunpack.c.l.b16 %v1344
      %v1419 = vunpack.c.l.b16 %v1345
      %v1420 = vunpack.c.l.b16 %v1346
      %v1421 = vunpack.c.l.b16 %v1347
      %v1422 = vunpack.c.l.b16 %v1348
      %v1423 = vunpack.c.l.b16 %v1349
      %v1424 = vunpack.c.l.b16 %v1350
      %v1425 = vunpack.c.l.b16 %v1351
      %v1426 = vunpack.c.l.b16 %v1352
      %v1427 = vunpack.c.l.b16 %v1353
      %v1428 = vunpack.c.l.b16 %v1354
      %v1429 = vunpack.c.l.b16 %v1355
      %v1430 = vunpack.c.l.b16 %v1356
      %v1431 = vunpack.c.l.b16 %v1357
      %v1432 = vunpack.c.l.b16 %v1358
      %v1433 = vunpack.c.l.b16 %v1359
      %v1434 = vunpack.c.l.b16 %v1360
      %v1435 = vunpack.c.l.b16 %v1361
      %v1436 = vunpack.c.l.b16 %v1362
      %v1437 = vunpack.c.l.b16 %v1363
      %v1438 = vunpack.c.l.b16 %v1364
      %v1439 = vunpack.c.l.b16 %v1365
      %v1440 = vunpack.c.l.b16 %v1366
      %v1441 = vunpack.c.l.b16 %v1367
      %v1442 = vunpack.c.l.b16 %v1368
      %v1443 = vunpack.c.l.b16 %v1369
      %v1444 = vunpack.c.l.b16 %v1370
      %v1445 = vpack.c.b16 %v1414, %v1413
      %v1446 = vpack.c.b16 %v1416, %v1415
      %v1447 = vpack.c.b16 %v1418, %v1417
      %v1448 = vpack.c.b16 %v1420, %v1419
      %v1449 = vpack.c.b16 %v1422, %v1421
      %v1450 = vpack.c.b16 %v1424, %v1423
      %v1451 = vpack.c.b16 %v1426, %v1425
      %v1452 = vpack.c.b16 %v1428, %v1427
      %v1453 = vpack.c.b16 %v1430, %v1429
      %v1454 = vpack.c.b16 %v1432, %v1431
      %v1455 = vpack.c.b16 %v1434, %v1433
      %v1456 = vpack.c.b16 %v1436, %v1435
      %v1457 = vpack.c.b16 %v1438, %v1437
      %v1458 = vpack.c.b16 %v1440, %v1439
      %v1459 = vpack.c.b16 %v1442, %v1441
      %v1460 = vpack.c.b16 %v1444, %v1443
      %1477 = vmatprep.subr.bf16.mxu0 0
      %1478 = vmatpush1.bf16.msra.mxu0 %v1445
      %1479 = vmatprep.subr.bf16.mxu0 0
      %1480 = vmatpush1.bf16.msra.mxu0 %v1446
      %1481 = vmatprep.subr.bf16.mxu0 0
      %1482 = vmatpush1.bf16.msra.mxu0 %v1447
      %1483 = vmatprep.subr.bf16.mxu0 0
      %1484 = vmatpush1.bf16.msra.mxu0 %v1448
      %1485 = vmatprep.subr.bf16.mxu0 0
      %1486 = vmatpush1.bf16.msra.mxu0 %v1449
      %1487 = vmatprep.subr.bf16.mxu0 0
      %1488 = vmatpush1.bf16.msra.mxu0 %v1450
      %1489 = vmatprep.subr.bf16.mxu0 0
      %1490 = vmatpush1.bf16.msra.mxu0 %v1451
      %1491 = vmatprep.subr.bf16.mxu0 0
      %1492 = vmatpush1.bf16.msra.mxu0 %v1452
      %1493 = vmatprep.subr.bf16.mxu0 0
      %1494 = vmatpush1.bf16.msra.mxu0 %v1453
      %1495 = vmatprep.subr.bf16.mxu0 0
      %1496 = vmatpush1.bf16.msra.mxu0 %v1454
      %1497 = vmatprep.subr.bf16.mxu0 0
      %1498 = vmatpush1.bf16.msra.mxu0 %v1455
      %1499 = vmatprep.subr.bf16.mxu0 0
      %1500 = vmatpush1.bf16.msra.mxu0 %v1456
      %1501 = vmatprep.subr.bf16.mxu0 0
      %1502 = vmatpush1.bf16.msra.mxu0 %v1457
      %1503 = vmatprep.subr.bf16.mxu0 0
      %1504 = vmatpush1.bf16.msra.mxu0 %v1458
      %1505 = vmatprep.subr.bf16.mxu0 0
      %1506 = vmatpush1.bf16.msra.mxu0 %v1459
      %1507 = vmatprep.subr.bf16.mxu0 0
      %1508 = vmatpush1.bf16.msra.mxu0 %v1460
      %1509 = vmatprep.mubr.bf16.mxu0 %v1378
      %1510 = vmatmul.mubr.bf16.gmra.mrb[0].mxu0 %v1377
      %v1511 = vpop.f32.mrb[0].mxu0
      %v1512 = vadd.f32 0.0, %v1511
      %v1513 = vpop.f32.mrb[0].mxu0
      %v1514 = vpop.f32.mrb[0].mxu0
      %v1515 = vadd.f32 0.0, %v1514
      %v1516 = vpop.f32.mrb[0].mxu0
      %1517 = vdwg.mxu0
      %v1518 = vadd.f32 %v1335, %v1512
      %v1519 = vadd.f32 %v1336, %v1515
      %v1520 = vld [vmem:[%s12] sm:$0x1]
      %v1522 = vlaneseq
      %v1523 = vshrl.u32 %v1522, 7
      %v1524 = vsub.s32 0, %v1523
      %v1525 = vrot.slane %v1520, %v1524
      %v1527 = vmul.f32 %v1518, %v1525
      %v1528 = vmul.f32 %v1519, %v1525
      %v1529 = vld [vmem:[%s13] sm:$0x1]
      %v1531 = vlaneseq
      %v1532 = vshrl.u32 %v1531, 7
      %v1533 = vsub.s32 0, %v1532
      %v1534 = vrot.slane %v1529, %v1533
      %v1536 = vadd.f32 %v1527, %v1534
      %v1537 = vadd.f32 %v1528, %v1534
      %vm1538 = vcmp.ge.f32.partialorder %v1536, 0.0
      %vm1539 = vcmp.ge.f32.partialorder %v1537, 0.0
      %v1540 = vmul.f32 %v1536, 0.2
      %v1541 = vmul.f32 %v1537, 0.2
      %v1542 = vsel %vm1538, %v1536, %v1540
      %v1543 = vsel %vm1539, %v1537, %v1541
      %v1544 = vld [vmem:[#allocation2] sm:$0x1]
      %v1545 = vsel %vm738, %v1542, -inf
      %v1546 = vsel %vm738, %v1543, -inf
      %v1547 = vmax.f32 %v1545, %v1546
      %v1548 = vrot.slane %v1547, 4
      %v1549 = vmax.f32 %v1547, %v1548
      %v1550 = vrot.slane %v1549, 2
      %v1551 = vmax.f32 %v1549, %v1550
      %v1552 = vrot.slane %v1551, 1
      %v1553 = vmax.f32 %v1551, %v1552
      %v1554 = vmax.f32 %v1544, %v1553
      %vm1555 = vcmask 516096
      %1556 = vst.msk [vmem:[#allocation2] sm:$0x1] %vm1555, %v1554
      %v1557 = vld [vmem:[#allocation3] sm:$0x1]
      %v1558 = vsel %vm738, %v1542, 0.0
      %v1559 = vsel %vm738, %v1543, 0.0
      %v1560 = vadd.f32 %v1558, %v1559
      %v1561 = vrot.slane %v1560, 4
      %v1562 = vadd.f32 %v1560, %v1561
      %v1563 = vrot.slane %v1562, 2
      %v1564 = vadd.f32 %v1562, %v1563
      %v1565 = vrot.slane %v1564, 1
      %v1566 = vadd.f32 %v1564, %v1565
      %v1567 = vadd.f32 %v1557, %v1566
      %1568 = vst.msk [vmem:[#allocation3] sm:$0x1] %vm1555, %v1567
      // Predicated region
      $region81: #{dgcnn_forward.20} parent=75 // pred_check
        %p1569 = pneg %p682
      $region82: #{dgcnn_forward.20} parent=75 // pred_check_branch
        %1571 = sbr.rel (%p1569) target = $region84
      $region83: #{dgcnn_forward.20} parent=75 // pred_region
        %v1572 = vld [vmem:[#allocation2] sm:$0x1]
        %v1573 = vld [vmem:[#allocation3] sm:$0x1]
        %v1574 = vmul.f32 %v1573, 0.0625
        %v1576 = vlaneseq
        %v1577 = vshrl.u32 %v1576, 7
        %v1578 = vsub.s32 0, %v1577
        %v1579 = vrot.slane %v1574, %v1578
        %1580 = vrot.lane.b32.xlu0 %v1579, 64
        %v1581 = vpop.permute.xlu0 %1580
        %v1583 = vsel %vm738, %v1572, %v1581
        %1584 = vst [vmem:[%s680] sm:$0x1] %v1583
      $region84: #{dgcnn_forward.20} parent=75 // pred_fallthru
        _
      %p1585 = scmp.lt.s32.totalorder %s29, 1
      %s1586 = scalar_select %p1585, %s29, 1
      %s1587 = scalar_lea.vmem %s14, %s1586
      // Predicated region
      $region85: #{dgcnn_forward.20} parent=75 // pred_check
        %p1588 = pneg %p391
      $region86: #{dgcnn_forward.20} parent=75 // pred_check_branch
        %1590 = sbr.rel (%p1588) target = $region88
      $region87: #{dgcnn_forward.20} parent=75 // pred_region
        _
      $region88: #{dgcnn_forward.20} parent=75 // pred_fallthru
        _
    $region76: #{dgcnn_forward.20} parent=5 // pred_fallthru
      _
    %p1591 = scmp.le.s32.totalorder 2, %s20
    // Predicated region
    $region89: #{dgcnn_forward.20} parent=5 // pred_check
      %p1592 = pneg %p1591
    $region90: #{dgcnn_forward.20} parent=5 // pred_check_branch
      %1594 = sbr.rel (%p1592) target = $region92
    $region91: #{dgcnn_forward.20} parent=5 // pred_region
      %s1595 = ssub.s32 %s20, 2
      // Predicated region
      $region93: #{dgcnn_forward.20} parent=91 // pred_check
        %p1596 = pneg %p397
      $region94: #{dgcnn_forward.20} parent=91 // pred_check_branch
        %1598 = sbr.rel (%p1596) target = $region96
      $region95: #{dgcnn_forward.20} parent=91 // pred_region
        %p1599 = scmp.lt.s32.totalorder %s31, 1
        %s1600 = scalar_select %p1599, %s31, 1
        %s1601 = scalar_lea.vmem %s14, %s1600
      $region96: #{dgcnn_forward.20} parent=91 // pred_fallthru
        _
    $region92: #{dgcnn_forward.20} parent=5 // pred_fallthru
      _
  $region6: #{dgcnn_forward.20} parent=0 // loop_footer
    %s24 = sadd.s32 1, %s20
  $region7: #{dgcnn_forward.20} parent=0 // loop_footer_branch
    %19 = sbr.rel target = $region3
  $region8: #{dgcnn_forward.20} parent=0 // loop_exit
    _

</llo_original>
